<compile_context>
chip_gen: v6e
topology: v6e:2x2x1
jax: 0.10.0
libtpu: 0.0.40
codegen_flags: <defaults>
</compile_context>

<pallas_src>
import functools

import jax
import jax.numpy as jnp
from jax.experimental import pallas as pl
from jax.experimental.pallas import tpu as pltpu

H1 = 512       # first hidden size (fixed by the module)
H2 = 256       # second hidden size (fixed by the module)
OUT = 1        # final output size (fixed by the module)
OUT_PAD = 128  # lane-dense padded output width
NEG_SLOPE = 0.2
LANE = 128


def _leaky_relu(x, slope):
    return jnp.where(x > 0, x, x * slope)


def _discriminator_kernel(x_ref, w1_ref, b1_ref, w2_ref, b2_ref,
                          w3_ref, b3_ref, o_ref, *, bf16_epilogue):
    # In-kernel bf16 cast of the streamed f32 activation tile (VPU, hidden
    # under the MXU); avoids a separate pad/convert pass over x in HBM.
    x = x_ref[...].astype(jnp.bfloat16)

    # Layer 1: bf16 operands on the MXU, f32 accumulation.
    h1 = jnp.dot(x, w1_ref[...], preferred_element_type=jnp.float32)
    if bf16_epilogue:  # v6e/v7x: bf16 VALU epilogue (halves VPU work/vregs)
        h1 = _leaky_relu(h1.astype(jnp.bfloat16) + b1_ref[...].astype(jnp.bfloat16),
                         NEG_SLOPE)
    else:              # v5e: no bf16 VPU -> keep the epilogue in f32
        h1 = _leaky_relu(h1 + b1_ref[...], NEG_SLOPE).astype(jnp.bfloat16)

    # Layer 2.
    h2 = jnp.dot(h1, w2_ref[...], preferred_element_type=jnp.float32)
    if bf16_epilogue:
        h2 = _leaky_relu(h2.astype(jnp.bfloat16) + b2_ref[...].astype(jnp.bfloat16),
                         NEG_SLOPE)
    else:
        h2 = _leaky_relu(h2 + b2_ref[...], NEG_SLOPE).astype(jnp.bfloat16)

    # Layer 3 (N padded to 128 so the store is lane-dense / unmasked).
    out = jnp.dot(h2, w3_ref[...], preferred_element_type=jnp.float32)
    o_ref[...] = (out + b3_ref[...]).astype(o_ref.dtype)


def _round_up(x, m):
    return ((x + m - 1) // m) * m


def _device_kind():
    try:
        return jax.devices()[0].device_kind.lower()
    except Exception:
        return ""


def _default_batch_tile():
    # v5e: MXU-bound + tighter default scoped VMEM -> tb=256 is enough.
    # v6e/v7x: tb=512 halves the per-grid-step pipeline overhead tax.
    return 256 if "v5" in _device_kind() else 512


def _vpu_supports_bf16():
    # v6e / v7x VALUs run bf16 natively; v5e (and older) do not.
    kind = _device_kind()
    return ("v6" in kind) or ("v7" in kind)


@functools.partial(jax.jit, static_argnames=("batch_tile", "bf16_epilogue"))
def _discriminator_forward_impl(image, params, batch_tile, bf16_epilogue):
    w1, b1, w2, b2, w3, b3 = params
    B = image.shape[0]
    D = 1
    for s in image.shape[1:]:
        D *= s

    # Flatten NCHW -> [B, D]  (same as torch .view(B, -1)); stays f32.
    x = image.reshape(B, D).astype(jnp.float32)

    Dp = _round_up(D, LANE)

    # Adaptive batch tile: never pad a tiny batch up to the full tile, and
    # keep >=2 grid steps when possible so the "parallel" batch axis can
    # shard across v7x's two TensorCores.
    tb = min(batch_tile, _round_up(B, 128))
    B_pad = _round_up(B, tb)
    if B_pad // tb < 2 and tb > 128:
        tb = max(128, tb // 2)
        B_pad = _round_up(B, tb)

    if (B_pad != B) or (Dp != D):
        # f32 zero-pad only when needed (no dtype conversion pass over x).
        x = jnp.pad(x, ((0, B_pad - B), (0, Dp - D)))

    # Weights as (in, out) bf16 operands; biases kept in f32 (cheap, one-time).
    w1p = jnp.pad(w1, ((0, Dp - D), (0, 0))).astype(jnp.bfloat16)
    w2p = w2.astype(jnp.bfloat16)
    w3p = jnp.pad(w3, ((0, 0), (0, OUT_PAD - OUT))).astype(jnp.bfloat16)

    b1r = b1.reshape(1, H1).astype(jnp.float32)
    b2r = b2.reshape(1, H2).astype(jnp.float32)
    b3r = jnp.pad(b3.reshape(1, OUT),
                  ((0, 0), (0, OUT_PAD - OUT))).astype(jnp.float32)

    grid = (B_pad // tb,)

    # Grid-invariant operands: single-buffer (constant index_map => no benefit
    # from double-buffering, halves the resident-weight VMEM footprint).
    resident = pl.Buffered(1)

    in_specs = [
        pl.BlockSpec((tb, Dp), lambda i: (i, 0)),                              # x tile (f32)
        pl.BlockSpec((Dp, H1), lambda i: (0, 0), pipeline_mode=resident),      # W1
        pl.BlockSpec((1, H1), lambda i: (0, 0), pipeline_mode=resident),       # b1
        pl.BlockSpec((H1, H2), lambda i: (0, 0), pipeline_mode=resident),      # W2
        pl.BlockSpec((1, H2), lambda i: (0, 0), pipeline_mode=resident),       # b2
        pl.BlockSpec((H2, OUT_PAD), lambda i: (0, 0), pipeline_mode=resident), # W3 (N padded)
        pl.BlockSpec((1, OUT_PAD), lambda i: (0, 0), pipeline_mode=resident),  # b3 (padded)
    ]

    flops = 2 * B_pad * (Dp * H1 + H1 * H2 + H2 * OUT_PAD)
    bytes_accessed = (
        B_pad * Dp * 4                                   # x (f32, read once in-kernel)
        + (Dp * H1 + H1 * H2 + H2 * OUT_PAD) * 2         # weights (bf16)
        + (H1 + H2 + OUT_PAD) * 4                        # biases (f32)
        + B_pad * OUT_PAD * 4                            # output (f32)
    )

    # Explicit scoped-VMEM budget: double-buffered f32 x/out tiles,
    # single-buffered bf16 weights, f32 biases, plus h1/h2 temporaries and
    # headroom.  Capped at 48 MiB (safe on v7x's 64 MiB physical VMEM).
    vmem_bytes = (
        2 * tb * Dp * 4
        + (Dp * H1 + H1 * H2 + H2 * OUT_PAD) * 2
        + (H1 + H2 + OUT_PAD) * 4
        + 2 * tb * OUT_PAD * 4
        + 2 * tb * (H1 + H2) * 4
    )
    vmem_limit = int(min(max(vmem_bytes + (8 << 20), 20 << 20), 48 << 20))

    kernel = functools.partial(_discriminator_kernel, bf16_epilogue=bf16_epilogue)

    out = pl.pallas_call(
        kernel,
        out_shape=jax.ShapeDtypeStruct((B_pad, OUT_PAD), jnp.float32),
        grid_spec=pltpu.PrefetchScalarGridSpec(
            num_scalar_prefetch=0,
            grid=grid,
            in_specs=in_specs,
            out_specs=pl.BlockSpec((tb, OUT_PAD), lambda i: (i, 0)),
        ),
        compiler_params=pltpu.CompilerParams(
            dimension_semantics=("parallel",),
            vmem_limit_bytes=vmem_limit),
        cost_estimate=pl.CostEstimate(
            flops=flops, transcendentals=0, bytes_accessed=bytes_accessed),
    )(x, w1p, b1r, w2p, b2r, w3p, b3r)

    # Drop batch padding and the 127 zero output lanes.
    return out[:B, :OUT]


def discriminator_forward(image, params, batch_tile=None, bf16_epilogue=None):
    """image: [B, C, H, W] float32 -> logits [B, 1] float32."""
    if batch_tile is None:
        batch_tile = _default_batch_tile()
    if bf16_epilogue is None:
        bf16_epilogue = _vpu_supports_bf16()
    return _discriminator_forward_impl(image, params, int(batch_tile),
                                       bool(bf16_epilogue))


def init_params(key, image_dim):
    """Deterministic init matching nn.Linear's U(-1/sqrt(fan_in), 1/sqrt(fan_in)).
    Weights stored as (in, out)."""
    ks = jax.random.split(key, 6)

    def lin(kw, kb, fan_in, fan_out):
        bound = 1.0 / jnp.sqrt(jnp.float32(fan_in))
        w = jax.random.uniform(kw, (fan_in, fan_out), jnp.float32, -bound, bound)
        b = jax.random.uniform(kb, (fan_out,), jnp.float32, -bound, bound)
        return w, b

    w1, b1 = lin(ks[0], ks[1], image_dim, H1)
    w2, b2 = lin(ks[2], ks[3], H1, H2)
    w3, b3 = lin(ks[4], ks[5], H2, OUT)
    return (w1, b1, w2, b2, w3, b3)


def _reference_forward(image, params):
    """Pure-JAX f32 reference of the PyTorch forward pass."""
    w1, b1, w2, b2, w3, b3 = params
    x = image.reshape(image.shape[0], -1)
    h = x @ w1 + b1
    h = jnp.where(h > 0, h, NEG_SLOPE * h)
    h = h @ w2 + b2
    h = jnp.where(h > 0, h, NEG_SLOPE * h)
    return h @ w3 + b3


if __name__ == "__main__":
    key = jax.random.PRNGKey(0)
    k_img, k_par = jax.random.split(key)

    # Shapes implied by the module: image_dim = 64*64 -> image [B, 1, 64, 64].
    B, C, H, W = 2, 1, 64, 64
    image_dim = C * H * W

    image = jax.random.normal(k_img, (B, C, H, W), jnp.float32)
    params = init_params(k_par, image_dim)

    out = discriminator_forward(image, params)
    out = jax.block_until_ready(out)

    ref = _reference_forward(image, params)
    assert out.shape == (B, 1), out.shape
    # bf16 matmul operands (f32 accumulation) -> relaxed tolerance vs f32 ref.
    assert jnp.allclose(out, ref, atol=3e-2, rtol=3e-2), (out, ref)

    print("KERNEL_OK")
</pallas_src>

<mosaic_0001>
module attributes {stable_mosaic.version = 11 : i64} {
  func.func @_discriminator_kernel(%arg0: i32, %arg1: memref<128x4096xf32, #tpu.memory_space<vmem>>, %arg2: memref<4096x512xbf16, #tpu.memory_space<vmem>>, %arg3: memref<1x512xf32, #tpu.memory_space<vmem>>, %arg4: memref<512x256xbf16, #tpu.memory_space<vmem>>, %arg5: memref<1x256xf32, #tpu.memory_space<vmem>>, %arg6: memref<256x128xbf16, #tpu.memory_space<vmem>>, %arg7: memref<1x128xf32, #tpu.memory_space<vmem>>, %arg8: memref<128x128xf32, #tpu.memory_space<vmem>>) attributes {dimension_semantics = [#tpu.dimension_semantics<parallel>], iteration_bounds = array<i64: 1>, scalar_prefetch = 0 : i64, scratch_operands = 0 : i64, tpu.core_type = #tpu.core_type<tc>, window_params = [{transform_indices = @transform_0, window_bounds = array<i64: 128, 4096>}, {pipeline_mode = #tpu.pipeline_mode<synchronous>, transform_indices = @transform_1, window_bounds = array<i64: 4096, 512>}, {pipeline_mode = #tpu.pipeline_mode<synchronous>, transform_indices = @transform_2, window_bounds = array<i64: 1, 512>}, {pipeline_mode = #tpu.pipeline_mode<synchronous>, transform_indices = @transform_3, window_bounds = array<i64: 512, 256>}, {pipeline_mode = #tpu.pipeline_mode<synchronous>, transform_indices = @transform_4, window_bounds = array<i64: 1, 256>}, {pipeline_mode = #tpu.pipeline_mode<synchronous>, transform_indices = @transform_5, window_bounds = array<i64: 256, 128>}, {pipeline_mode = #tpu.pipeline_mode<synchronous>, transform_indices = @transform_6, window_bounds = array<i64: 1, 128>}, {transform_indices = @transform_7, window_bounds = array<i64: 128, 128>}]} {
    %c0 = arith.constant 0 : index
    %c0_0 = arith.constant 0 : index
    %0 = vector.load %arg1[%c0, %c0_0] : memref<128x4096xf32, #tpu.memory_space<vmem>>, vector<128x4096xf32>
    %1 = arith.truncf %0 : vector<128x4096xf32> to vector<128x4096xbf16>
    %c0_1 = arith.constant 0 : index
    %c0_2 = arith.constant 0 : index
    %2 = vector.load %arg2[%c0_1, %c0_2] : memref<4096x512xbf16, #tpu.memory_space<vmem>>, vector<4096x512xbf16>
    %cst = arith.constant dense<0.000000e+00> : vector<128x512xf32>
    %3 = tpu.matmul %1, %2, %cst {dimension_numbers = #tpu.dot_dimension_numbers<[1], [0], [0], [1], [0, 0, 1, 1], [], []>} : vector<128x4096xbf16>, vector<4096x512xbf16>, vector<128x512xf32> -> vector<128x512xf32>
    %c0_3 = arith.constant 0 : index
    %c0_4 = arith.constant 0 : index
    %4 = vector.load %arg3[%c0_3, %c0_4] : memref<1x512xf32, #tpu.memory_space<vmem>>, vector<1x512xf32>
    %5 = vector.broadcast %4 : vector<1x512xf32> to vector<128x512xf32>
    %6 = arith.addf %3, %5 : vector<128x512xf32>
    %cst_5 = arith.constant 0.000000e+00 : f32
    %7 = vector.broadcast %cst_5 : f32 to vector<128x512xf32>
    %8 = arith.cmpf ogt, %6, %7 : vector<128x512xf32>
    %cst_6 = arith.constant 2.000000e-01 : f32
    %9 = vector.broadcast %cst_6 : f32 to vector<128x512xf32>
    %10 = arith.mulf %6, %9 : vector<128x512xf32>
    %11 = arith.select %8, %6, %10 : vector<128x512xi1>, vector<128x512xf32>
    %12 = arith.truncf %11 : vector<128x512xf32> to vector<128x512xbf16>
    %c0_7 = arith.constant 0 : index
    %c0_8 = arith.constant 0 : index
    %13 = vector.load %arg4[%c0_7, %c0_8] : memref<512x256xbf16, #tpu.memory_space<vmem>>, vector<512x256xbf16>
    %cst_9 = arith.constant dense<0.000000e+00> : vector<128x256xf32>
    %14 = tpu.matmul %12, %13, %cst_9 {dimension_numbers = #tpu.dot_dimension_numbers<[1], [0], [0], [1], [0, 0, 1, 1], [], []>} : vector<128x512xbf16>, vector<512x256xbf16>, vector<128x256xf32> -> vector<128x256xf32>
    %c0_10 = arith.constant 0 : index
    %c0_11 = arith.constant 0 : index
    %15 = vector.load %arg5[%c0_10, %c0_11] : memref<1x256xf32, #tpu.memory_space<vmem>>, vector<1x256xf32>
    %16 = vector.broadcast %15 : vector<1x256xf32> to vector<128x256xf32>
    %17 = arith.addf %14, %16 : vector<128x256xf32>
    %cst_12 = arith.constant 0.000000e+00 : f32
    %18 = vector.broadcast %cst_12 : f32 to vector<128x256xf32>
    %19 = arith.cmpf ogt, %17, %18 : vector<128x256xf32>
    %cst_13 = arith.constant 2.000000e-01 : f32
    %20 = vector.broadcast %cst_13 : f32 to vector<128x256xf32>
    %21 = arith.mulf %17, %20 : vector<128x256xf32>
    %22 = arith.select %19, %17, %21 : vector<128x256xi1>, vector<128x256xf32>
    %23 = arith.truncf %22 : vector<128x256xf32> to vector<128x256xbf16>
    %c0_14 = arith.constant 0 : index
    %c0_15 = arith.constant 0 : index
    %24 = vector.load %arg6[%c0_14, %c0_15] : memref<256x128xbf16, #tpu.memory_space<vmem>>, vector<256x128xbf16>
    %cst_16 = arith.constant dense<0.000000e+00> : vector<128x128xf32>
    %25 = tpu.matmul %23, %24, %cst_16 {dimension_numbers = #tpu.dot_dimension_numbers<[1], [0], [0], [1], [0, 0, 1, 1], [], []>} : vector<128x256xbf16>, vector<256x128xbf16>, vector<128x128xf32> -> vector<128x128xf32>
    %c0_17 = arith.constant 0 : index
    %c0_18 = arith.constant 0 : index
    %26 = vector.load %arg7[%c0_17, %c0_18] : memref<1x128xf32, #tpu.memory_space<vmem>>, vector<1x128xf32>
    %27 = vector.broadcast %26 : vector<1x128xf32> to vector<128x128xf32>
    %28 = arith.addf %25, %27 : vector<128x128xf32>
    %c0_19 = arith.constant 0 : index
    %c0_20 = arith.constant 0 : index
    %29 = vector.load %arg8[%c0_19, %c0_20] : memref<128x128xf32, #tpu.memory_space<vmem>>, vector<128x128xf32>
    tpu.vector_store %arg8[%c0_19, %c0_20], %28 {strides = array<i32>} : memref<128x128xf32, #tpu.memory_space<vmem>>, vector<128x128xf32>,
    return
  }
  func.func @transform_0(%arg0: i32) -> (i32, i32) {
    %c0_i32 = arith.constant 0 : i32
    %c0_i32_0 = arith.constant 0 : i32
    return %arg0, %c0_i32 : i32, i32
  }
  func.func @transform_1(%arg0: i32) -> (i32, i32) {
    %c0_i32 = arith.constant 0 : i32
    %c0_i32_0 = arith.constant 0 : i32
    %c0_i32_1 = arith.constant 0 : i32
    return %c0_i32, %c0_i32_0 : i32, i32
  }
  func.func @transform_2(%arg0: i32) -> (i32, i32) {
    %c0_i32 = arith.constant 0 : i32
    %c0_i32_0 = arith.constant 0 : i32
    %c0_i32_1 = arith.constant 0 : i32
    return %c0_i32, %c0_i32_0 : i32, i32
  }
  func.func @transform_3(%arg0: i32) -> (i32, i32) {
    %c0_i32 = arith.constant 0 : i32
    %c0_i32_0 = arith.constant 0 : i32
    %c0_i32_1 = arith.constant 0 : i32
    return %c0_i32, %c0_i32_0 : i32, i32
  }
  func.func @transform_4(%arg0: i32) -> (i32, i32) {
    %c0_i32 = arith.constant 0 : i32
    %c0_i32_0 = arith.constant 0 : i32
    %c0_i32_1 = arith.constant 0 : i32
    return %c0_i32, %c0_i32_0 : i32, i32
  }
  func.func @transform_5(%arg0: i32) -> (i32, i32) {
    %c0_i32 = arith.constant 0 : i32
    %c0_i32_0 = arith.constant 0 : i32
    %c0_i32_1 = arith.constant 0 : i32
    return %c0_i32, %c0_i32_0 : i32, i32
  }
  func.func @transform_6(%arg0: i32) -> (i32, i32) {
    %c0_i32 = arith.constant 0 : i32
    %c0_i32_0 = arith.constant 0 : i32
    %c0_i32_1 = arith.constant 0 : i32
    return %c0_i32, %c0_i32_0 : i32, i32
  }
  func.func @transform_7(%arg0: i32) -> (i32, i32) {
    %c0_i32 = arith.constant 0 : i32
    %c0_i32_0 = arith.constant 0 : i32
    return %arg0, %c0_i32 : i32, i32
  }
}

</mosaic_0001>

<llo_original>
// kernel: _discriminator_forward_impl.1
$region0: #{_discriminator_forward_impl.1}
  #allocation0 [shape = 'u32[]', space=smem, size = 0x4, offset = 0x4, fixed_abs, tag = 'smem constant byte address 0x4 - core index']
  #allocation1 [shape = 'u32[144,128]{1,0:T(1,128)}', space=vmem, size = 0x12000, scoped, tag = 'internal scratch']
  %s0 = inlined_call_operand.vmem [shape: f32[128,4096], index: 0, kind: input, shape index: {}]
  %s1 = inlined_call_operand.vmem [shape: bf16[4096,512], index: 1, kind: input, shape index: {}]
  %s2 = inlined_call_operand.vmem [shape: f32[1,512], index: 2, kind: input, shape index: {}]
  %s3 = inlined_call_operand.vmem [shape: bf16[512,256], index: 3, kind: input, shape index: {}]
  %s4 = inlined_call_operand.vmem [shape: f32[1,256], index: 4, kind: input, shape index: {}]
  %s5 = inlined_call_operand.vmem [shape: bf16[256,128], index: 5, kind: input, shape index: {}]
  %s6 = inlined_call_operand.vmem [shape: f32[1,128], index: 6, kind: input, shape index: {}]
  %s7 = inlined_call_operand.vmem [shape: f32[128,128], index: 7, kind: output, shape index: {}]
  %s8 = sld [smem:[#allocation0]]
  $region38: #{_discriminator_forward_impl.1} parent=0
    _
  %s10 = ssub.s32 1, %s8
  %s11 = scalar_select 0, %s10, %s8
  // Predicated region
  $region2: #{_discriminator_forward_impl.1} parent=0 // pred_check
    _
  $region3: #{_discriminator_forward_impl.1} parent=0 // pred_check_branch
    %13 = sbr.rel (0) target = $region5
  $region4: #{_discriminator_forward_impl.1} parent=0 // pred_region
    _
  $region5: #{_discriminator_forward_impl.1} parent=0 // pred_fallthru
    _
  // Predicated region
  $region6: #{_discriminator_forward_impl.1} parent=0 // pred_check
    _
  $region7: #{_discriminator_forward_impl.1} parent=0 // pred_check_branch
    %15 = sbr.rel (0) target = $region9
  $region8: #{_discriminator_forward_impl.1} parent=0 // pred_region
    _
  $region9: #{_discriminator_forward_impl.1} parent=0 // pred_fallthru
    _
  // Predicated region
  $region10: #{_discriminator_forward_impl.1} parent=0 // pred_check
    _
  $region11: #{_discriminator_forward_impl.1} parent=0 // pred_check_branch
    %17 = sbr.rel (0) target = $region13
  $region12: #{_discriminator_forward_impl.1} parent=0 // pred_region
    _
  $region13: #{_discriminator_forward_impl.1} parent=0 // pred_fallthru
    _
  // Predicated region
  $region14: #{_discriminator_forward_impl.1} parent=0 // pred_check
    _
  $region15: #{_discriminator_forward_impl.1} parent=0 // pred_check_branch
    %19 = sbr.rel (0) target = $region17
  $region16: #{_discriminator_forward_impl.1} parent=0 // pred_region
    _
  $region17: #{_discriminator_forward_impl.1} parent=0 // pred_fallthru
    _
  // Predicated region
  $region18: #{_discriminator_forward_impl.1} parent=0 // pred_check
    _
  $region19: #{_discriminator_forward_impl.1} parent=0 // pred_check_branch
    %21 = sbr.rel (0) target = $region21
  $region20: #{_discriminator_forward_impl.1} parent=0 // pred_region
    _
  $region21: #{_discriminator_forward_impl.1} parent=0 // pred_fallthru
    _
  // Predicated region
  $region22: #{_discriminator_forward_impl.1} parent=0 // pred_check
    _
  $region23: #{_discriminator_forward_impl.1} parent=0 // pred_check_branch
    %23 = sbr.rel (0) target = $region25
  $region24: #{_discriminator_forward_impl.1} parent=0 // pred_region
    _
  $region25: #{_discriminator_forward_impl.1} parent=0 // pred_fallthru
    _
  // Predicated region
  $region26: #{_discriminator_forward_impl.1} parent=0 // pred_check
    _
  $region27: #{_discriminator_forward_impl.1} parent=0 // pred_check_branch
    %25 = sbr.rel (0) target = $region29
  $region28: #{_discriminator_forward_impl.1} parent=0 // pred_region
    _
  $region29: #{_discriminator_forward_impl.1} parent=0 // pred_fallthru
    _
  %v27 = vld [vmem:[%s0] sm:$0xff]
  %v28 = vld [vmem:[%s0 + $0x8] sm:$0xff]
  %v29 = vld [vmem:[%s0 + $0x10] sm:$0xff]
  %v30 = vld [vmem:[%s0 + $0x18] sm:$0xff]
  %v31 = vld [vmem:[%s0 + $0x20] sm:$0xff]
  %v32 = vld [vmem:[%s0 + $0x28] sm:$0xff]
  %v33 = vld [vmem:[%s0 + $0x30] sm:$0xff]
  %v34 = vld [vmem:[%s0 + $0x38] sm:$0xff]
  %v35 = vld [vmem:[%s0 + $0x40] sm:$0xff]
  %v36 = vld [vmem:[%s0 + $0x48] sm:$0xff]
  %v37 = vld [vmem:[%s0 + $0x50] sm:$0xff]
  %v38 = vld [vmem:[%s0 + $0x58] sm:$0xff]
  %v39 = vld [vmem:[%s0 + $0x60] sm:$0xff]
  %v40 = vld [vmem:[%s0 + $0x68] sm:$0xff]
  %v41 = vld [vmem:[%s0 + $0x70] sm:$0xff]
  %v42 = vld [vmem:[%s0 + $0x78] sm:$0xff]
  %v43 = vld [vmem:[%s0 + $0x80] sm:$0xff]
  %v44 = vld [vmem:[%s0 + $0x88] sm:$0xff]
  %v45 = vld [vmem:[%s0 + $0x90] sm:$0xff]
  %v46 = vld [vmem:[%s0 + $0x98] sm:$0xff]
  %v47 = vld [vmem:[%s0 + $0xa0] sm:$0xff]
  %v48 = vld [vmem:[%s0 + $0xa8] sm:$0xff]
  %v49 = vld [vmem:[%s0 + $0xb0] sm:$0xff]
  %v50 = vld [vmem:[%s0 + $0xb8] sm:$0xff]
  %v51 = vld [vmem:[%s0 + $0xc0] sm:$0xff]
  %v52 = vld [vmem:[%s0 + $0xc8] sm:$0xff]
  %v53 = vld [vmem:[%s0 + $0xd0] sm:$0xff]
  %v54 = vld [vmem:[%s0 + $0xd8] sm:$0xff]
  %v55 = vld [vmem:[%s0 + $0xe0] sm:$0xff]
  %v56 = vld [vmem:[%s0 + $0xe8] sm:$0xff]
  %v57 = vld [vmem:[%s0 + $0xf0] sm:$0xff]
  %v58 = vld [vmem:[%s0 + $0xf8] sm:$0xff]
  %v59 = vld [vmem:[%s0 + $0x100] sm:$0xff]
  %v60 = vld [vmem:[%s0 + $0x108] sm:$0xff]
  %v61 = vld [vmem:[%s0 + $0x110] sm:$0xff]
  %v62 = vld [vmem:[%s0 + $0x118] sm:$0xff]
  %v63 = vld [vmem:[%s0 + $0x120] sm:$0xff]
  %v64 = vld [vmem:[%s0 + $0x128] sm:$0xff]
  %v65 = vld [vmem:[%s0 + $0x130] sm:$0xff]
  %v66 = vld [vmem:[%s0 + $0x138] sm:$0xff]
  %v67 = vld [vmem:[%s0 + $0x140] sm:$0xff]
  %v68 = vld [vmem:[%s0 + $0x148] sm:$0xff]
  %v69 = vld [vmem:[%s0 + $0x150] sm:$0xff]
  %v70 = vld [vmem:[%s0 + $0x158] sm:$0xff]
  %v71 = vld [vmem:[%s0 + $0x160] sm:$0xff]
  %v72 = vld [vmem:[%s0 + $0x168] sm:$0xff]
  %v73 = vld [vmem:[%s0 + $0x170] sm:$0xff]
  %v74 = vld [vmem:[%s0 + $0x178] sm:$0xff]
  %v75 = vld [vmem:[%s0 + $0x180] sm:$0xff]
  %v76 = vld [vmem:[%s0 + $0x188] sm:$0xff]
  %v77 = vld [vmem:[%s0 + $0x190] sm:$0xff]
  %v78 = vld [vmem:[%s0 + $0x198] sm:$0xff]
  %v79 = vld [vmem:[%s0 + $0x1a0] sm:$0xff]
  %v80 = vld [vmem:[%s0 + $0x1a8] sm:$0xff]
  %v81 = vld [vmem:[%s0 + $0x1b0] sm:$0xff]
  %v82 = vld [vmem:[%s0 + $0x1b8] sm:$0xff]
  %v83 = vld [vmem:[%s0 + $0x1c0] sm:$0xff]
  %v84 = vld [vmem:[%s0 + $0x1c8] sm:$0xff]
  %v85 = vld [vmem:[%s0 + $0x1d0] sm:$0xff]
  %v86 = vld [vmem:[%s0 + $0x1d8] sm:$0xff]
  %v87 = vld [vmem:[%s0 + $0x1e0] sm:$0xff]
  %v88 = vld [vmem:[%s0 + $0x1e8] sm:$0xff]
  %v89 = vld [vmem:[%s0 + $0x1f0] sm:$0xff]
  %v90 = vld [vmem:[%s0 + $0x1f8] sm:$0xff]
  %v91 = vld [vmem:[%s0 + $0x200] sm:$0xff]
  %v92 = vld [vmem:[%s0 + $0x208] sm:$0xff]
  %v93 = vld [vmem:[%s0 + $0x210] sm:$0xff]
  %v94 = vld [vmem:[%s0 + $0x218] sm:$0xff]
  %v95 = vld [vmem:[%s0 + $0x220] sm:$0xff]
  %v96 = vld [vmem:[%s0 + $0x228] sm:$0xff]
  %v97 = vld [vmem:[%s0 + $0x230] sm:$0xff]
  %v98 = vld [vmem:[%s0 + $0x238] sm:$0xff]
  %v99 = vld [vmem:[%s0 + $0x240] sm:$0xff]
  %v100 = vld [vmem:[%s0 + $0x248] sm:$0xff]
  %v101 = vld [vmem:[%s0 + $0x250] sm:$0xff]
  %v102 = vld [vmem:[%s0 + $0x258] sm:$0xff]
  %v103 = vld [vmem:[%s0 + $0x260] sm:$0xff]
  %v104 = vld [vmem:[%s0 + $0x268] sm:$0xff]
  %v105 = vld [vmem:[%s0 + $0x270] sm:$0xff]
  %v106 = vld [vmem:[%s0 + $0x278] sm:$0xff]
  %v107 = vld [vmem:[%s0 + $0x280] sm:$0xff]
  %v108 = vld [vmem:[%s0 + $0x288] sm:$0xff]
  %v109 = vld [vmem:[%s0 + $0x290] sm:$0xff]
  %v110 = vld [vmem:[%s0 + $0x298] sm:$0xff]
  %v111 = vld [vmem:[%s0 + $0x2a0] sm:$0xff]
  %v112 = vld [vmem:[%s0 + $0x2a8] sm:$0xff]
  %v113 = vld [vmem:[%s0 + $0x2b0] sm:$0xff]
  %v114 = vld [vmem:[%s0 + $0x2b8] sm:$0xff]
  %v115 = vld [vmem:[%s0 + $0x2c0] sm:$0xff]
  %v116 = vld [vmem:[%s0 + $0x2c8] sm:$0xff]
  %v117 = vld [vmem:[%s0 + $0x2d0] sm:$0xff]
  %v118 = vld [vmem:[%s0 + $0x2d8] sm:$0xff]
  %v119 = vld [vmem:[%s0 + $0x2e0] sm:$0xff]
  %v120 = vld [vmem:[%s0 + $0x2e8] sm:$0xff]
  %v121 = vld [vmem:[%s0 + $0x2f0] sm:$0xff]
  %v122 = vld [vmem:[%s0 + $0x2f8] sm:$0xff]
  %v123 = vld [vmem:[%s0 + $0x300] sm:$0xff]
  %v124 = vld [vmem:[%s0 + $0x308] sm:$0xff]
  %v125 = vld [vmem:[%s0 + $0x310] sm:$0xff]
  %v126 = vld [vmem:[%s0 + $0x318] sm:$0xff]
  %v127 = vld [vmem:[%s0 + $0x320] sm:$0xff]
  %v128 = vld [vmem:[%s0 + $0x328] sm:$0xff]
  %v129 = vld [vmem:[%s0 + $0x330] sm:$0xff]
  %v130 = vld [vmem:[%s0 + $0x338] sm:$0xff]
  %v131 = vld [vmem:[%s0 + $0x340] sm:$0xff]
  %v132 = vld [vmem:[%s0 + $0x348] sm:$0xff]
  %v133 = vld [vmem:[%s0 + $0x350] sm:$0xff]
  %v134 = vld [vmem:[%s0 + $0x358] sm:$0xff]
  %v135 = vld [vmem:[%s0 + $0x360] sm:$0xff]
  %v136 = vld [vmem:[%s0 + $0x368] sm:$0xff]
  %v137 = vld [vmem:[%s0 + $0x370] sm:$0xff]
  %v138 = vld [vmem:[%s0 + $0x378] sm:$0xff]
  %v139 = vld [vmem:[%s0 + $0x380] sm:$0xff]
  %v140 = vld [vmem:[%s0 + $0x388] sm:$0xff]
  %v141 = vld [vmem:[%s0 + $0x390] sm:$0xff]
  %v142 = vld [vmem:[%s0 + $0x398] sm:$0xff]
  %v143 = vld [vmem:[%s0 + $0x3a0] sm:$0xff]
  %v144 = vld [vmem:[%s0 + $0x3a8] sm:$0xff]
  %v145 = vld [vmem:[%s0 + $0x3b0] sm:$0xff]
  %v146 = vld [vmem:[%s0 + $0x3b8] sm:$0xff]
  %v147 = vld [vmem:[%s0 + $0x3c0] sm:$0xff]
  %v148 = vld [vmem:[%s0 + $0x3c8] sm:$0xff]
  %v149 = vld [vmem:[%s0 + $0x3d0] sm:$0xff]
  %v150 = vld [vmem:[%s0 + $0x3d8] sm:$0xff]
  %v151 = vld [vmem:[%s0 + $0x3e0] sm:$0xff]
  %v152 = vld [vmem:[%s0 + $0x3e8] sm:$0xff]
  %v153 = vld [vmem:[%s0 + $0x3f0] sm:$0xff]
  %v154 = vld [vmem:[%s0 + $0x3f8] sm:$0xff]
  %v155 = vld [vmem:[%s0 + $0x400] sm:$0xff]
  %v156 = vld [vmem:[%s0 + $0x408] sm:$0xff]
  %v157 = vld [vmem:[%s0 + $0x410] sm:$0xff]
  %v158 = vld [vmem:[%s0 + $0x418] sm:$0xff]
  %v159 = vld [vmem:[%s0 + $0x420] sm:$0xff]
  %v160 = vld [vmem:[%s0 + $0x428] sm:$0xff]
  %v161 = vld [vmem:[%s0 + $0x430] sm:$0xff]
  %v162 = vld [vmem:[%s0 + $0x438] sm:$0xff]
  %v163 = vld [vmem:[%s0 + $0x440] sm:$0xff]
  %v164 = vld [vmem:[%s0 + $0x448] sm:$0xff]
  %v165 = vld [vmem:[%s0 + $0x450] sm:$0xff]
  %v166 = vld [vmem:[%s0 + $0x458] sm:$0xff]
  %v167 = vld [vmem:[%s0 + $0x460] sm:$0xff]
  %v168 = vld [vmem:[%s0 + $0x468] sm:$0xff]
  %v169 = vld [vmem:[%s0 + $0x470] sm:$0xff]
  %v170 = vld [vmem:[%s0 + $0x478] sm:$0xff]
  %v171 = vld [vmem:[%s0 + $0x480] sm:$0xff]
  %v172 = vld [vmem:[%s0 + $0x488] sm:$0xff]
  %v173 = vld [vmem:[%s0 + $0x490] sm:$0xff]
  %v174 = vld [vmem:[%s0 + $0x498] sm:$0xff]
  %v175 = vld [vmem:[%s0 + $0x4a0] sm:$0xff]
  %v176 = vld [vmem:[%s0 + $0x4a8] sm:$0xff]
  %v177 = vld [vmem:[%s0 + $0x4b0] sm:$0xff]
  %v178 = vld [vmem:[%s0 + $0x4b8] sm:$0xff]
  %v179 = vld [vmem:[%s0 + $0x4c0] sm:$0xff]
  %v180 = vld [vmem:[%s0 + $0x4c8] sm:$0xff]
  %v181 = vld [vmem:[%s0 + $0x4d0] sm:$0xff]
  %v182 = vld [vmem:[%s0 + $0x4d8] sm:$0xff]
  %v183 = vld [vmem:[%s0 + $0x4e0] sm:$0xff]
  %v184 = vld [vmem:[%s0 + $0x4e8] sm:$0xff]
  %v185 = vld [vmem:[%s0 + $0x4f0] sm:$0xff]
  %v186 = vld [vmem:[%s0 + $0x4f8] sm:$0xff]
  %v187 = vld [vmem:[%s0 + $0x500] sm:$0xff]
  %v188 = vld [vmem:[%s0 + $0x508] sm:$0xff]
  %v189 = vld [vmem:[%s0 + $0x510] sm:$0xff]
  %v190 = vld [vmem:[%s0 + $0x518] sm:$0xff]
  %v191 = vld [vmem:[%s0 + $0x520] sm:$0xff]
  %v192 = vld [vmem:[%s0 + $0x528] sm:$0xff]
  %v193 = vld [vmem:[%s0 + $0x530] sm:$0xff]
  %v194 = vld [vmem:[%s0 + $0x538] sm:$0xff]
  %v195 = vld [vmem:[%s0 + $0x540] sm:$0xff]
  %v196 = vld [vmem:[%s0 + $0x548] sm:$0xff]
  %v197 = vld [vmem:[%s0 + $0x550] sm:$0xff]
  %v198 = vld [vmem:[%s0 + $0x558] sm:$0xff]
  %v199 = vld [vmem:[%s0 + $0x560] sm:$0xff]
  %v200 = vld [vmem:[%s0 + $0x568] sm:$0xff]
  %v201 = vld [vmem:[%s0 + $0x570] sm:$0xff]
  %v202 = vld [vmem:[%s0 + $0x578] sm:$0xff]
  %v203 = vld [vmem:[%s0 + $0x580] sm:$0xff]
  %v204 = vld [vmem:[%s0 + $0x588] sm:$0xff]
  %v205 = vld [vmem:[%s0 + $0x590] sm:$0xff]
  %v206 = vld [vmem:[%s0 + $0x598] sm:$0xff]
  %v207 = vld [vmem:[%s0 + $0x5a0] sm:$0xff]
  %v208 = vld [vmem:[%s0 + $0x5a8] sm:$0xff]
  %v209 = vld [vmem:[%s0 + $0x5b0] sm:$0xff]
  %v210 = vld [vmem:[%s0 + $0x5b8] sm:$0xff]
  %v211 = vld [vmem:[%s0 + $0x5c0] sm:$0xff]
  %v212 = vld [vmem:[%s0 + $0x5c8] sm:$0xff]
  %v213 = vld [vmem:[%s0 + $0x5d0] sm:$0xff]
  %v214 = vld [vmem:[%s0 + $0x5d8] sm:$0xff]
  %v215 = vld [vmem:[%s0 + $0x5e0] sm:$0xff]
  %v216 = vld [vmem:[%s0 + $0x5e8] sm:$0xff]
  %v217 = vld [vmem:[%s0 + $0x5f0] sm:$0xff]
  %v218 = vld [vmem:[%s0 + $0x5f8] sm:$0xff]
  %v219 = vld [vmem:[%s0 + $0x600] sm:$0xff]
  %v220 = vld [vmem:[%s0 + $0x608] sm:$0xff]
  %v221 = vld [vmem:[%s0 + $0x610] sm:$0xff]
  %v222 = vld [vmem:[%s0 + $0x618] sm:$0xff]
  %v223 = vld [vmem:[%s0 + $0x620] sm:$0xff]
  %v224 = vld [vmem:[%s0 + $0x628] sm:$0xff]
  %v225 = vld [vmem:[%s0 + $0x630] sm:$0xff]
  %v226 = vld [vmem:[%s0 + $0x638] sm:$0xff]
  %v227 = vld [vmem:[%s0 + $0x640] sm:$0xff]
  %v228 = vld [vmem:[%s0 + $0x648] sm:$0xff]
  %v229 = vld [vmem:[%s0 + $0x650] sm:$0xff]
  %v230 = vld [vmem:[%s0 + $0x658] sm:$0xff]
  %v231 = vld [vmem:[%s0 + $0x660] sm:$0xff]
  %v232 = vld [vmem:[%s0 + $0x668] sm:$0xff]
  %v233 = vld [vmem:[%s0 + $0x670] sm:$0xff]
  %v234 = vld [vmem:[%s0 + $0x678] sm:$0xff]
  %v235 = vld [vmem:[%s0 + $0x680] sm:$0xff]
  %v236 = vld [vmem:[%s0 + $0x688] sm:$0xff]
  %v237 = vld [vmem:[%s0 + $0x690] sm:$0xff]
  %v238 = vld [vmem:[%s0 + $0x698] sm:$0xff]
  %v239 = vld [vmem:[%s0 + $0x6a0] sm:$0xff]
  %v240 = vld [vmem:[%s0 + $0x6a8] sm:$0xff]
  %v241 = vld [vmem:[%s0 + $0x6b0] sm:$0xff]
  %v242 = vld [vmem:[%s0 + $0x6b8] sm:$0xff]
  %v243 = vld [vmem:[%s0 + $0x6c0] sm:$0xff]
  %v244 = vld [vmem:[%s0 + $0x6c8] sm:$0xff]
  %v245 = vld [vmem:[%s0 + $0x6d0] sm:$0xff]
  %v246 = vld [vmem:[%s0 + $0x6d8] sm:$0xff]
  %v247 = vld [vmem:[%s0 + $0x6e0] sm:$0xff]
  %v248 = vld [vmem:[%s0 + $0x6e8] sm:$0xff]
  %v249 = vld [vmem:[%s0 + $0x6f0] sm:$0xff]
  %v250 = vld [vmem:[%s0 + $0x6f8] sm:$0xff]
  %v251 = vld [vmem:[%s0 + $0x700] sm:$0xff]
  %v252 = vld [vmem:[%s0 + $0x708] sm:$0xff]
  %v253 = vld [vmem:[%s0 + $0x710] sm:$0xff]
  %v254 = vld [vmem:[%s0 + $0x718] sm:$0xff]
  %v255 = vld [vmem:[%s0 + $0x720] sm:$0xff]
  %v256 = vld [vmem:[%s0 + $0x728] sm:$0xff]
  %v257 = vld [vmem:[%s0 + $0x730] sm:$0xff]
  %v258 = vld [vmem:[%s0 + $0x738] sm:$0xff]
  %v259 = vld [vmem:[%s0 + $0x740] sm:$0xff]
  %v260 = vld [vmem:[%s0 + $0x748] sm:$0xff]
  %v261 = vld [vmem:[%s0 + $0x750] sm:$0xff]
  %v262 = vld [vmem:[%s0 + $0x758] sm:$0xff]
  %v263 = vld [vmem:[%s0 + $0x760] sm:$0xff]
  %v264 = vld [vmem:[%s0 + $0x768] sm:$0xff]
  %v265 = vld [vmem:[%s0 + $0x770] sm:$0xff]
  %v266 = vld [vmem:[%s0 + $0x778] sm:$0xff]
  %v267 = vld [vmem:[%s0 + $0x780] sm:$0xff]
  %v268 = vld [vmem:[%s0 + $0x788] sm:$0xff]
  %v269 = vld [vmem:[%s0 + $0x790] sm:$0xff]
  %v270 = vld [vmem:[%s0 + $0x798] sm:$0xff]
  %v271 = vld [vmem:[%s0 + $0x7a0] sm:$0xff]
  %v272 = vld [vmem:[%s0 + $0x7a8] sm:$0xff]
  %v273 = vld [vmem:[%s0 + $0x7b0] sm:$0xff]
  %v274 = vld [vmem:[%s0 + $0x7b8] sm:$0xff]
  %v275 = vld [vmem:[%s0 + $0x7c0] sm:$0xff]
  %v276 = vld [vmem:[%s0 + $0x7c8] sm:$0xff]
  %v277 = vld [vmem:[%s0 + $0x7d0] sm:$0xff]
  %v278 = vld [vmem:[%s0 + $0x7d8] sm:$0xff]
  %v279 = vld [vmem:[%s0 + $0x7e0] sm:$0xff]
  %v280 = vld [vmem:[%s0 + $0x7e8] sm:$0xff]
  %v281 = vld [vmem:[%s0 + $0x7f0] sm:$0xff]
  %v282 = vld [vmem:[%s0 + $0x7f8] sm:$0xff]
  %v283 = vld [vmem:[%s0 + $0x800] sm:$0xff]
  %v284 = vld [vmem:[%s0 + $0x808] sm:$0xff]
  %v285 = vld [vmem:[%s0 + $0x810] sm:$0xff]
  %v286 = vld [vmem:[%s0 + $0x818] sm:$0xff]
  %v287 = vld [vmem:[%s0 + $0x820] sm:$0xff]
  %v288 = vld [vmem:[%s0 + $0x828] sm:$0xff]
  %v289 = vld [vmem:[%s0 + $0x830] sm:$0xff]
  %v290 = vld [vmem:[%s0 + $0x838] sm:$0xff]
  %v291 = vld [vmem:[%s0 + $0x840] sm:$0xff]
  %v292 = vld [vmem:[%s0 + $0x848] sm:$0xff]
  %v293 = vld [vmem:[%s0 + $0x850] sm:$0xff]
  %v294 = vld [vmem:[%s0 + $0x858] sm:$0xff]
  %v295 = vld [vmem:[%s0 + $0x860] sm:$0xff]
  %v296 = vld [vmem:[%s0 + $0x868] sm:$0xff]
  %v297 = vld [vmem:[%s0 + $0x870] sm:$0xff]
  %v298 = vld [vmem:[%s0 + $0x878] sm:$0xff]
  %v299 = vld [vmem:[%s0 + $0x880] sm:$0xff]
  %v300 = vld [vmem:[%s0 + $0x888] sm:$0xff]
  %v301 = vld [vmem:[%s0 + $0x890] sm:$0xff]
  %v302 = vld [vmem:[%s0 + $0x898] sm:$0xff]
  %v303 = vld [vmem:[%s0 + $0x8a0] sm:$0xff]
  %v304 = vld [vmem:[%s0 + $0x8a8] sm:$0xff]
  %v305 = vld [vmem:[%s0 + $0x8b0] sm:$0xff]
  %v306 = vld [vmem:[%s0 + $0x8b8] sm:$0xff]
  %v307 = vld [vmem:[%s0 + $0x8c0] sm:$0xff]
  %v308 = vld [vmem:[%s0 + $0x8c8] sm:$0xff]
  %v309 = vld [vmem:[%s0 + $0x8d0] sm:$0xff]
  %v310 = vld [vmem:[%s0 + $0x8d8] sm:$0xff]
  %v311 = vld [vmem:[%s0 + $0x8e0] sm:$0xff]
  %v312 = vld [vmem:[%s0 + $0x8e8] sm:$0xff]
  %v313 = vld [vmem:[%s0 + $0x8f0] sm:$0xff]
  %v314 = vld [vmem:[%s0 + $0x8f8] sm:$0xff]
  %v315 = vld [vmem:[%s0 + $0x900] sm:$0xff]
  %v316 = vld [vmem:[%s0 + $0x908] sm:$0xff]
  %v317 = vld [vmem:[%s0 + $0x910] sm:$0xff]
  %v318 = vld [vmem:[%s0 + $0x918] sm:$0xff]
  %v319 = vld [vmem:[%s0 + $0x920] sm:$0xff]
  %v320 = vld [vmem:[%s0 + $0x928] sm:$0xff]
  %v321 = vld [vmem:[%s0 + $0x930] sm:$0xff]
  %v322 = vld [vmem:[%s0 + $0x938] sm:$0xff]
  %v323 = vld [vmem:[%s0 + $0x940] sm:$0xff]
  %v324 = vld [vmem:[%s0 + $0x948] sm:$0xff]
  %v325 = vld [vmem:[%s0 + $0x950] sm:$0xff]
  %v326 = vld [vmem:[%s0 + $0x958] sm:$0xff]
  %v327 = vld [vmem:[%s0 + $0x960] sm:$0xff]
  %v328 = vld [vmem:[%s0 + $0x968] sm:$0xff]
  %v329 = vld [vmem:[%s0 + $0x970] sm:$0xff]
  %v330 = vld [vmem:[%s0 + $0x978] sm:$0xff]
  %v331 = vld [vmem:[%s0 + $0x980] sm:$0xff]
  %v332 = vld [vmem:[%s0 + $0x988] sm:$0xff]
  %v333 = vld [vmem:[%s0 + $0x990] sm:$0xff]
  %v334 = vld [vmem:[%s0 + $0x998] sm:$0xff]
  %v335 = vld [vmem:[%s0 + $0x9a0] sm:$0xff]
  %v336 = vld [vmem:[%s0 + $0x9a8] sm:$0xff]
  %v337 = vld [vmem:[%s0 + $0x9b0] sm:$0xff]
  %v338 = vld [vmem:[%s0 + $0x9b8] sm:$0xff]
  %v339 = vld [vmem:[%s0 + $0x9c0] sm:$0xff]
  %v340 = vld [vmem:[%s0 + $0x9c8] sm:$0xff]
  %v341 = vld [vmem:[%s0 + $0x9d0] sm:$0xff]
  %v342 = vld [vmem:[%s0 + $0x9d8] sm:$0xff]
  %v343 = vld [vmem:[%s0 + $0x9e0] sm:$0xff]
  %v344 = vld [vmem:[%s0 + $0x9e8] sm:$0xff]
  %v345 = vld [vmem:[%s0 + $0x9f0] sm:$0xff]
  %v346 = vld [vmem:[%s0 + $0x9f8] sm:$0xff]
  %v347 = vld [vmem:[%s0 + $0xa00] sm:$0xff]
  %v348 = vld [vmem:[%s0 + $0xa08] sm:$0xff]
  %v349 = vld [vmem:[%s0 + $0xa10] sm:$0xff]
  %v350 = vld [vmem:[%s0 + $0xa18] sm:$0xff]
  %v351 = vld [vmem:[%s0 + $0xa20] sm:$0xff]
  %v352 = vld [vmem:[%s0 + $0xa28] sm:$0xff]
  %v353 = vld [vmem:[%s0 + $0xa30] sm:$0xff]
  %v354 = vld [vmem:[%s0 + $0xa38] sm:$0xff]
  %v355 = vld [vmem:[%s0 + $0xa40] sm:$0xff]
  %v356 = vld [vmem:[%s0 + $0xa48] sm:$0xff]
  %v357 = vld [vmem:[%s0 + $0xa50] sm:$0xff]
  %v358 = vld [vmem:[%s0 + $0xa58] sm:$0xff]
  %v359 = vld [vmem:[%s0 + $0xa60] sm:$0xff]
  %v360 = vld [vmem:[%s0 + $0xa68] sm:$0xff]
  %v361 = vld [vmem:[%s0 + $0xa70] sm:$0xff]
  %v362 = vld [vmem:[%s0 + $0xa78] sm:$0xff]
  %v363 = vld [vmem:[%s0 + $0xa80] sm:$0xff]
  %v364 = vld [vmem:[%s0 + $0xa88] sm:$0xff]
  %v365 = vld [vmem:[%s0 + $0xa90] sm:$0xff]
  %v366 = vld [vmem:[%s0 + $0xa98] sm:$0xff]
  %v367 = vld [vmem:[%s0 + $0xaa0] sm:$0xff]
  %v368 = vld [vmem:[%s0 + $0xaa8] sm:$0xff]
  %v369 = vld [vmem:[%s0 + $0xab0] sm:$0xff]
  %v370 = vld [vmem:[%s0 + $0xab8] sm:$0xff]
  %v371 = vld [vmem:[%s0 + $0xac0] sm:$0xff]
  %v372 = vld [vmem:[%s0 + $0xac8] sm:$0xff]
  %v373 = vld [vmem:[%s0 + $0xad0] sm:$0xff]
  %v374 = vld [vmem:[%s0 + $0xad8] sm:$0xff]
  %v375 = vld [vmem:[%s0 + $0xae0] sm:$0xff]
  %v376 = vld [vmem:[%s0 + $0xae8] sm:$0xff]
  %v377 = vld [vmem:[%s0 + $0xaf0] sm:$0xff]
  %v378 = vld [vmem:[%s0 + $0xaf8] sm:$0xff]
  %v379 = vld [vmem:[%s0 + $0xb00] sm:$0xff]
  %v380 = vld [vmem:[%s0 + $0xb08] sm:$0xff]
  %v381 = vld [vmem:[%s0 + $0xb10] sm:$0xff]
  %v382 = vld [vmem:[%s0 + $0xb18] sm:$0xff]
  %v383 = vld [vmem:[%s0 + $0xb20] sm:$0xff]
  %v384 = vld [vmem:[%s0 + $0xb28] sm:$0xff]
  %v385 = vld [vmem:[%s0 + $0xb30] sm:$0xff]
  %v386 = vld [vmem:[%s0 + $0xb38] sm:$0xff]
  %v387 = vld [vmem:[%s0 + $0xb40] sm:$0xff]
  %v388 = vld [vmem:[%s0 + $0xb48] sm:$0xff]
  %v389 = vld [vmem:[%s0 + $0xb50] sm:$0xff]
  %v390 = vld [vmem:[%s0 + $0xb58] sm:$0xff]
  %v391 = vld [vmem:[%s0 + $0xb60] sm:$0xff]
  %v392 = vld [vmem:[%s0 + $0xb68] sm:$0xff]
  %v393 = vld [vmem:[%s0 + $0xb70] sm:$0xff]
  %v394 = vld [vmem:[%s0 + $0xb78] sm:$0xff]
  %v395 = vld [vmem:[%s0 + $0xb80] sm:$0xff]
  %v396 = vld [vmem:[%s0 + $0xb88] sm:$0xff]
  %v397 = vld [vmem:[%s0 + $0xb90] sm:$0xff]
  %v398 = vld [vmem:[%s0 + $0xb98] sm:$0xff]
  %v399 = vld [vmem:[%s0 + $0xba0] sm:$0xff]
  %v400 = vld [vmem:[%s0 + $0xba8] sm:$0xff]
  %v401 = vld [vmem:[%s0 + $0xbb0] sm:$0xff]
  %v402 = vld [vmem:[%s0 + $0xbb8] sm:$0xff]
  %v403 = vld [vmem:[%s0 + $0xbc0] sm:$0xff]
  %v404 = vld [vmem:[%s0 + $0xbc8] sm:$0xff]
  %v405 = vld [vmem:[%s0 + $0xbd0] sm:$0xff]
  %v406 = vld [vmem:[%s0 + $0xbd8] sm:$0xff]
  %v407 = vld [vmem:[%s0 + $0xbe0] sm:$0xff]
  %v408 = vld [vmem:[%s0 + $0xbe8] sm:$0xff]
  %v409 = vld [vmem:[%s0 + $0xbf0] sm:$0xff]
  %v410 = vld [vmem:[%s0 + $0xbf8] sm:$0xff]
  %v411 = vld [vmem:[%s0 + $0xc00] sm:$0xff]
  %v412 = vld [vmem:[%s0 + $0xc08] sm:$0xff]
  %v413 = vld [vmem:[%s0 + $0xc10] sm:$0xff]
  %v414 = vld [vmem:[%s0 + $0xc18] sm:$0xff]
  %v415 = vld [vmem:[%s0 + $0xc20] sm:$0xff]
  %v416 = vld [vmem:[%s0 + $0xc28] sm:$0xff]
  %v417 = vld [vmem:[%s0 + $0xc30] sm:$0xff]
  %v418 = vld [vmem:[%s0 + $0xc38] sm:$0xff]
  %v419 = vld [vmem:[%s0 + $0xc40] sm:$0xff]
  %v420 = vld [vmem:[%s0 + $0xc48] sm:$0xff]
  %v421 = vld [vmem:[%s0 + $0xc50] sm:$0xff]
  %v422 = vld [vmem:[%s0 + $0xc58] sm:$0xff]
  %v423 = vld [vmem:[%s0 + $0xc60] sm:$0xff]
  %v424 = vld [vmem:[%s0 + $0xc68] sm:$0xff]
  %v425 = vld [vmem:[%s0 + $0xc70] sm:$0xff]
  %v426 = vld [vmem:[%s0 + $0xc78] sm:$0xff]
  %v427 = vld [vmem:[%s0 + $0xc80] sm:$0xff]
  %v428 = vld [vmem:[%s0 + $0xc88] sm:$0xff]
  %v429 = vld [vmem:[%s0 + $0xc90] sm:$0xff]
  %v430 = vld [vmem:[%s0 + $0xc98] sm:$0xff]
  %v431 = vld [vmem:[%s0 + $0xca0] sm:$0xff]
  %v432 = vld [vmem:[%s0 + $0xca8] sm:$0xff]
  %v433 = vld [vmem:[%s0 + $0xcb0] sm:$0xff]
  %v434 = vld [vmem:[%s0 + $0xcb8] sm:$0xff]
  %v435 = vld [vmem:[%s0 + $0xcc0] sm:$0xff]
  %v436 = vld [vmem:[%s0 + $0xcc8] sm:$0xff]
  %v437 = vld [vmem:[%s0 + $0xcd0] sm:$0xff]
  %v438 = vld [vmem:[%s0 + $0xcd8] sm:$0xff]
  %v439 = vld [vmem:[%s0 + $0xce0] sm:$0xff]
  %v440 = vld [vmem:[%s0 + $0xce8] sm:$0xff]
  %v441 = vld [vmem:[%s0 + $0xcf0] sm:$0xff]
  %v442 = vld [vmem:[%s0 + $0xcf8] sm:$0xff]
  %v443 = vld [vmem:[%s0 + $0xd00] sm:$0xff]
  %v444 = vld [vmem:[%s0 + $0xd08] sm:$0xff]
  %v445 = vld [vmem:[%s0 + $0xd10] sm:$0xff]
  %v446 = vld [vmem:[%s0 + $0xd18] sm:$0xff]
  %v447 = vld [vmem:[%s0 + $0xd20] sm:$0xff]
  %v448 = vld [vmem:[%s0 + $0xd28] sm:$0xff]
  %v449 = vld [vmem:[%s0 + $0xd30] sm:$0xff]
  %v450 = vld [vmem:[%s0 + $0xd38] sm:$0xff]
  %v451 = vld [vmem:[%s0 + $0xd40] sm:$0xff]
  %v452 = vld [vmem:[%s0 + $0xd48] sm:$0xff]
  %v453 = vld [vmem:[%s0 + $0xd50] sm:$0xff]
  %v454 = vld [vmem:[%s0 + $0xd58] sm:$0xff]
  %v455 = vld [vmem:[%s0 + $0xd60] sm:$0xff]
  %v456 = vld [vmem:[%s0 + $0xd68] sm:$0xff]
  %v457 = vld [vmem:[%s0 + $0xd70] sm:$0xff]
  %v458 = vld [vmem:[%s0 + $0xd78] sm:$0xff]
  %v459 = vld [vmem:[%s0 + $0xd80] sm:$0xff]
  %v460 = vld [vmem:[%s0 + $0xd88] sm:$0xff]
  %v461 = vld [vmem:[%s0 + $0xd90] sm:$0xff]
  %v462 = vld [vmem:[%s0 + $0xd98] sm:$0xff]
  %v463 = vld [vmem:[%s0 + $0xda0] sm:$0xff]
  %v464 = vld [vmem:[%s0 + $0xda8] sm:$0xff]
  %v465 = vld [vmem:[%s0 + $0xdb0] sm:$0xff]
  %v466 = vld [vmem:[%s0 + $0xdb8] sm:$0xff]
  %v467 = vld [vmem:[%s0 + $0xdc0] sm:$0xff]
  %v468 = vld [vmem:[%s0 + $0xdc8] sm:$0xff]
  %v469 = vld [vmem:[%s0 + $0xdd0] sm:$0xff]
  %v470 = vld [vmem:[%s0 + $0xdd8] sm:$0xff]
  %v471 = vld [vmem:[%s0 + $0xde0] sm:$0xff]
  %v472 = vld [vmem:[%s0 + $0xde8] sm:$0xff]
  %v473 = vld [vmem:[%s0 + $0xdf0] sm:$0xff]
  %v474 = vld [vmem:[%s0 + $0xdf8] sm:$0xff]
  %v475 = vld [vmem:[%s0 + $0xe00] sm:$0xff]
  %v476 = vld [vmem:[%s0 + $0xe08] sm:$0xff]
  %v477 = vld [vmem:[%s0 + $0xe10] sm:$0xff]
  %v478 = vld [vmem:[%s0 + $0xe18] sm:$0xff]
  %v479 = vld [vmem:[%s0 + $0xe20] sm:$0xff]
  %v480 = vld [vmem:[%s0 + $0xe28] sm:$0xff]
  %v481 = vld [vmem:[%s0 + $0xe30] sm:$0xff]
  %v482 = vld [vmem:[%s0 + $0xe38] sm:$0xff]
  %v483 = vld [vmem:[%s0 + $0xe40] sm:$0xff]
  %v484 = vld [vmem:[%s0 + $0xe48] sm:$0xff]
  %v485 = vld [vmem:[%s0 + $0xe50] sm:$0xff]
  %v486 = vld [vmem:[%s0 + $0xe58] sm:$0xff]
  %v487 = vld [vmem:[%s0 + $0xe60] sm:$0xff]
  %v488 = vld [vmem:[%s0 + $0xe68] sm:$0xff]
  %v489 = vld [vmem:[%s0 + $0xe70] sm:$0xff]
  %v490 = vld [vmem:[%s0 + $0xe78] sm:$0xff]
  %v491 = vld [vmem:[%s0 + $0xe80] sm:$0xff]
  %v492 = vld [vmem:[%s0 + $0xe88] sm:$0xff]
  %v493 = vld [vmem:[%s0 + $0xe90] sm:$0xff]
  %v494 = vld [vmem:[%s0 + $0xe98] sm:$0xff]
  %v495 = vld [vmem:[%s0 + $0xea0] sm:$0xff]
  %v496 = vld [vmem:[%s0 + $0xea8] sm:$0xff]
  %v497 = vld [vmem:[%s0 + $0xeb0] sm:$0xff]
  %v498 = vld [vmem:[%s0 + $0xeb8] sm:$0xff]
  %v499 = vld [vmem:[%s0 + $0xec0] sm:$0xff]
  %v500 = vld [vmem:[%s0 + $0xec8] sm:$0xff]
  %v501 = vld [vmem:[%s0 + $0xed0] sm:$0xff]
  %v502 = vld [vmem:[%s0 + $0xed8] sm:$0xff]
  %v503 = vld [vmem:[%s0 + $0xee0] sm:$0xff]
  %v504 = vld [vmem:[%s0 + $0xee8] sm:$0xff]
  %v505 = vld [vmem:[%s0 + $0xef0] sm:$0xff]
  %v506 = vld [vmem:[%s0 + $0xef8] sm:$0xff]
  %v507 = vld [vmem:[%s0 + $0xf00] sm:$0xff]
  %v508 = vld [vmem:[%s0 + $0xf08] sm:$0xff]
  %v509 = vld [vmem:[%s0 + $0xf10] sm:$0xff]
  %v510 = vld [vmem:[%s0 + $0xf18] sm:$0xff]
  %v511 = vld [vmem:[%s0 + $0xf20] sm:$0xff]
  %v512 = vld [vmem:[%s0 + $0xf28] sm:$0xff]
  %v513 = vld [vmem:[%s0 + $0xf30] sm:$0xff]
  %v514 = vld [vmem:[%s0 + $0xf38] sm:$0xff]
  %v515 = vld [vmem:[%s0 + $0xf40] sm:$0xff]
  %v516 = vld [vmem:[%s0 + $0xf48] sm:$0xff]
  %v517 = vld [vmem:[%s0 + $0xf50] sm:$0xff]
  %v518 = vld [vmem:[%s0 + $0xf58] sm:$0xff]
  %v519 = vld [vmem:[%s0 + $0xf60] sm:$0xff]
  %v520 = vld [vmem:[%s0 + $0xf68] sm:$0xff]
  %v521 = vld [vmem:[%s0 + $0xf70] sm:$0xff]
  %v522 = vld [vmem:[%s0 + $0xf78] sm:$0xff]
  %v523 = vld [vmem:[%s0 + $0xf80] sm:$0xff]
  %v524 = vld [vmem:[%s0 + $0xf88] sm:$0xff]
  %v525 = vld [vmem:[%s0 + $0xf90] sm:$0xff]
  %v526 = vld [vmem:[%s0 + $0xf98] sm:$0xff]
  %v527 = vld [vmem:[%s0 + $0xfa0] sm:$0xff]
  %v528 = vld [vmem:[%s0 + $0xfa8] sm:$0xff]
  %v529 = vld [vmem:[%s0 + $0xfb0] sm:$0xff]
  %v530 = vld [vmem:[%s0 + $0xfb8] sm:$0xff]
  %v531 = vld [vmem:[%s0 + $0xfc0] sm:$0xff]
  %v532 = vld [vmem:[%s0 + $0xfc8] sm:$0xff]
  %v533 = vld [vmem:[%s0 + $0xfd0] sm:$0xff]
  %v534 = vld [vmem:[%s0 + $0xfd8] sm:$0xff]
  %v535 = vld [vmem:[%s0 + $0xfe0] sm:$0xff]
  %v536 = vld [vmem:[%s0 + $0xfe8] sm:$0xff]
  %v537 = vld [vmem:[%s0 + $0xff0] sm:$0xff]
  %v538 = vld [vmem:[%s0 + $0xff8] sm:$0xff]
  %v539 = vpack.c.bf16 %v59, %v27
  %v540 = vpack.c.bf16 %v60, %v28
  %v541 = vpack.c.bf16 %v61, %v29
  %v542 = vpack.c.bf16 %v62, %v30
  %v543 = vpack.c.bf16 %v63, %v31
  %v544 = vpack.c.bf16 %v64, %v32
  %v545 = vpack.c.bf16 %v65, %v33
  %v546 = vpack.c.bf16 %v66, %v34
  %v547 = vpack.c.bf16 %v67, %v35
  %v548 = vpack.c.bf16 %v68, %v36
  %v549 = vpack.c.bf16 %v69, %v37
  %v550 = vpack.c.bf16 %v70, %v38
  %v551 = vpack.c.bf16 %v71, %v39
  %v552 = vpack.c.bf16 %v72, %v40
  %v553 = vpack.c.bf16 %v73, %v41
  %v554 = vpack.c.bf16 %v74, %v42
  %v555 = vpack.c.bf16 %v75, %v43
  %v556 = vpack.c.bf16 %v76, %v44
  %v557 = vpack.c.bf16 %v77, %v45
  %v558 = vpack.c.bf16 %v78, %v46
  %v559 = vpack.c.bf16 %v79, %v47
  %v560 = vpack.c.bf16 %v80, %v48
  %v561 = vpack.c.bf16 %v81, %v49
  %v562 = vpack.c.bf16 %v82, %v50
  %v563 = vpack.c.bf16 %v83, %v51
  %v564 = vpack.c.bf16 %v84, %v52
  %v565 = vpack.c.bf16 %v85, %v53
  %v566 = vpack.c.bf16 %v86, %v54
  %v567 = vpack.c.bf16 %v87, %v55
  %v568 = vpack.c.bf16 %v88, %v56
  %v569 = vpack.c.bf16 %v89, %v57
  %v570 = vpack.c.bf16 %v90, %v58
  %v571 = vpack.c.bf16 %v123, %v91
  %v572 = vpack.c.bf16 %v124, %v92
  %v573 = vpack.c.bf16 %v125, %v93
  %v574 = vpack.c.bf16 %v126, %v94
  %v575 = vpack.c.bf16 %v127, %v95
  %v576 = vpack.c.bf16 %v128, %v96
  %v577 = vpack.c.bf16 %v129, %v97
  %v578 = vpack.c.bf16 %v130, %v98
  %v579 = vpack.c.bf16 %v131, %v99
  %v580 = vpack.c.bf16 %v132, %v100
  %v581 = vpack.c.bf16 %v133, %v101
  %v582 = vpack.c.bf16 %v134, %v102
  %v583 = vpack.c.bf16 %v135, %v103
  %v584 = vpack.c.bf16 %v136, %v104
  %v585 = vpack.c.bf16 %v137, %v105
  %v586 = vpack.c.bf16 %v138, %v106
  %v587 = vpack.c.bf16 %v139, %v107
  %v588 = vpack.c.bf16 %v140, %v108
  %v589 = vpack.c.bf16 %v141, %v109
  %v590 = vpack.c.bf16 %v142, %v110
  %v591 = vpack.c.bf16 %v143, %v111
  %v592 = vpack.c.bf16 %v144, %v112
  %v593 = vpack.c.bf16 %v145, %v113
  %v594 = vpack.c.bf16 %v146, %v114
  %v595 = vpack.c.bf16 %v147, %v115
  %v596 = vpack.c.bf16 %v148, %v116
  %v597 = vpack.c.bf16 %v149, %v117
  %v598 = vpack.c.bf16 %v150, %v118
  %v599 = vpack.c.bf16 %v151, %v119
  %v600 = vpack.c.bf16 %v152, %v120
  %v601 = vpack.c.bf16 %v153, %v121
  %v602 = vpack.c.bf16 %v154, %v122
  %v603 = vpack.c.bf16 %v187, %v155
  %v604 = vpack.c.bf16 %v188, %v156
  %v605 = vpack.c.bf16 %v189, %v157
  %v606 = vpack.c.bf16 %v190, %v158
  %v607 = vpack.c.bf16 %v191, %v159
  %v608 = vpack.c.bf16 %v192, %v160
  %v609 = vpack.c.bf16 %v193, %v161
  %v610 = vpack.c.bf16 %v194, %v162
  %v611 = vpack.c.bf16 %v195, %v163
  %v612 = vpack.c.bf16 %v196, %v164
  %v613 = vpack.c.bf16 %v197, %v165
  %v614 = vpack.c.bf16 %v198, %v166
  %v615 = vpack.c.bf16 %v199, %v167
  %v616 = vpack.c.bf16 %v200, %v168
  %v617 = vpack.c.bf16 %v201, %v169
  %v618 = vpack.c.bf16 %v202, %v170
  %v619 = vpack.c.bf16 %v203, %v171
  %v620 = vpack.c.bf16 %v204, %v172
  %v621 = vpack.c.bf16 %v205, %v173
  %v622 = vpack.c.bf16 %v206, %v174
  %v623 = vpack.c.bf16 %v207, %v175
  %v624 = vpack.c.bf16 %v208, %v176
  %v625 = vpack.c.bf16 %v209, %v177
  %v626 = vpack.c.bf16 %v210, %v178
  %v627 = vpack.c.bf16 %v211, %v179
  %v628 = vpack.c.bf16 %v212, %v180
  %v629 = vpack.c.bf16 %v213, %v181
  %v630 = vpack.c.bf16 %v214, %v182
  %v631 = vpack.c.bf16 %v215, %v183
  %v632 = vpack.c.bf16 %v216, %v184
  %v633 = vpack.c.bf16 %v217, %v185
  %v634 = vpack.c.bf16 %v218, %v186
  %v635 = vpack.c.bf16 %v251, %v219
  %v636 = vpack.c.bf16 %v252, %v220
  %v637 = vpack.c.bf16 %v253, %v221
  %v638 = vpack.c.bf16 %v254, %v222
  %v639 = vpack.c.bf16 %v255, %v223
  %v640 = vpack.c.bf16 %v256, %v224
  %v641 = vpack.c.bf16 %v257, %v225
  %v642 = vpack.c.bf16 %v258, %v226
  %v643 = vpack.c.bf16 %v259, %v227
  %v644 = vpack.c.bf16 %v260, %v228
  %v645 = vpack.c.bf16 %v261, %v229
  %v646 = vpack.c.bf16 %v262, %v230
  %v647 = vpack.c.bf16 %v263, %v231
  %v648 = vpack.c.bf16 %v264, %v232
  %v649 = vpack.c.bf16 %v265, %v233
  %v650 = vpack.c.bf16 %v266, %v234
  %v651 = vpack.c.bf16 %v267, %v235
  %v652 = vpack.c.bf16 %v268, %v236
  %v653 = vpack.c.bf16 %v269, %v237
  %v654 = vpack.c.bf16 %v270, %v238
  %v655 = vpack.c.bf16 %v271, %v239
  %v656 = vpack.c.bf16 %v272, %v240
  %v657 = vpack.c.bf16 %v273, %v241
  %v658 = vpack.c.bf16 %v274, %v242
  %v659 = vpack.c.bf16 %v275, %v243
  %v660 = vpack.c.bf16 %v276, %v244
  %v661 = vpack.c.bf16 %v277, %v245
  %v662 = vpack.c.bf16 %v278, %v246
  %v663 = vpack.c.bf16 %v279, %v247
  %v664 = vpack.c.bf16 %v280, %v248
  %v665 = vpack.c.bf16 %v281, %v249
  %v666 = vpack.c.bf16 %v282, %v250
  %v667 = vpack.c.bf16 %v315, %v283
  %v668 = vpack.c.bf16 %v316, %v284
  %v669 = vpack.c.bf16 %v317, %v285
  %v670 = vpack.c.bf16 %v318, %v286
  %v671 = vpack.c.bf16 %v319, %v287
  %v672 = vpack.c.bf16 %v320, %v288
  %v673 = vpack.c.bf16 %v321, %v289
  %v674 = vpack.c.bf16 %v322, %v290
  %v675 = vpack.c.bf16 %v323, %v291
  %v676 = vpack.c.bf16 %v324, %v292
  %v677 = vpack.c.bf16 %v325, %v293
  %v678 = vpack.c.bf16 %v326, %v294
  %v679 = vpack.c.bf16 %v327, %v295
  %v680 = vpack.c.bf16 %v328, %v296
  %v681 = vpack.c.bf16 %v329, %v297
  %v682 = vpack.c.bf16 %v330, %v298
  %v683 = vpack.c.bf16 %v331, %v299
  %v684 = vpack.c.bf16 %v332, %v300
  %v685 = vpack.c.bf16 %v333, %v301
  %v686 = vpack.c.bf16 %v334, %v302
  %v687 = vpack.c.bf16 %v335, %v303
  %v688 = vpack.c.bf16 %v336, %v304
  %v689 = vpack.c.bf16 %v337, %v305
  %v690 = vpack.c.bf16 %v338, %v306
  %v691 = vpack.c.bf16 %v339, %v307
  %v692 = vpack.c.bf16 %v340, %v308
  %v693 = vpack.c.bf16 %v341, %v309
  %v694 = vpack.c.bf16 %v342, %v310
  %v695 = vpack.c.bf16 %v343, %v311
  %v696 = vpack.c.bf16 %v344, %v312
  %v697 = vpack.c.bf16 %v345, %v313
  %v698 = vpack.c.bf16 %v346, %v314
  %v699 = vpack.c.bf16 %v379, %v347
  %v700 = vpack.c.bf16 %v380, %v348
  %v701 = vpack.c.bf16 %v381, %v349
  %v702 = vpack.c.bf16 %v382, %v350
  %v703 = vpack.c.bf16 %v383, %v351
  %v704 = vpack.c.bf16 %v384, %v352
  %v705 = vpack.c.bf16 %v385, %v353
  %v706 = vpack.c.bf16 %v386, %v354
  %v707 = vpack.c.bf16 %v387, %v355
  %v708 = vpack.c.bf16 %v388, %v356
  %v709 = vpack.c.bf16 %v389, %v357
  %v710 = vpack.c.bf16 %v390, %v358
  %v711 = vpack.c.bf16 %v391, %v359
  %v712 = vpack.c.bf16 %v392, %v360
  %v713 = vpack.c.bf16 %v393, %v361
  %v714 = vpack.c.bf16 %v394, %v362
  %v715 = vpack.c.bf16 %v395, %v363
  %v716 = vpack.c.bf16 %v396, %v364
  %v717 = vpack.c.bf16 %v397, %v365
  %v718 = vpack.c.bf16 %v398, %v366
  %v719 = vpack.c.bf16 %v399, %v367
  %v720 = vpack.c.bf16 %v400, %v368
  %v721 = vpack.c.bf16 %v401, %v369
  %v722 = vpack.c.bf16 %v402, %v370
  %v723 = vpack.c.bf16 %v403, %v371
  %v724 = vpack.c.bf16 %v404, %v372
  %v725 = vpack.c.bf16 %v405, %v373
  %v726 = vpack.c.bf16 %v406, %v374
  %v727 = vpack.c.bf16 %v407, %v375
  %v728 = vpack.c.bf16 %v408, %v376
  %v729 = vpack.c.bf16 %v409, %v377
  %v730 = vpack.c.bf16 %v410, %v378
  %v731 = vpack.c.bf16 %v443, %v411
  %v732 = vpack.c.bf16 %v444, %v412
  %v733 = vpack.c.bf16 %v445, %v413
  %v734 = vpack.c.bf16 %v446, %v414
  %v735 = vpack.c.bf16 %v447, %v415
  %v736 = vpack.c.bf16 %v448, %v416
  %v737 = vpack.c.bf16 %v449, %v417
  %v738 = vpack.c.bf16 %v450, %v418
  %v739 = vpack.c.bf16 %v451, %v419
  %v740 = vpack.c.bf16 %v452, %v420
  %v741 = vpack.c.bf16 %v453, %v421
  %v742 = vpack.c.bf16 %v454, %v422
  %v743 = vpack.c.bf16 %v455, %v423
  %v744 = vpack.c.bf16 %v456, %v424
  %v745 = vpack.c.bf16 %v457, %v425
  %v746 = vpack.c.bf16 %v458, %v426
  %v747 = vpack.c.bf16 %v459, %v427
  %v748 = vpack.c.bf16 %v460, %v428
  %v749 = vpack.c.bf16 %v461, %v429
  %v750 = vpack.c.bf16 %v462, %v430
  %v751 = vpack.c.bf16 %v463, %v431
  %v752 = vpack.c.bf16 %v464, %v432
  %v753 = vpack.c.bf16 %v465, %v433
  %v754 = vpack.c.bf16 %v466, %v434
  %v755 = vpack.c.bf16 %v467, %v435
  %v756 = vpack.c.bf16 %v468, %v436
  %v757 = vpack.c.bf16 %v469, %v437
  %v758 = vpack.c.bf16 %v470, %v438
  %v759 = vpack.c.bf16 %v471, %v439
  %v760 = vpack.c.bf16 %v472, %v440
  %v761 = vpack.c.bf16 %v473, %v441
  %v762 = vpack.c.bf16 %v474, %v442
  %v763 = vpack.c.bf16 %v507, %v475
  %v764 = vpack.c.bf16 %v508, %v476
  %v765 = vpack.c.bf16 %v509, %v477
  %v766 = vpack.c.bf16 %v510, %v478
  %v767 = vpack.c.bf16 %v511, %v479
  %v768 = vpack.c.bf16 %v512, %v480
  %v769 = vpack.c.bf16 %v513, %v481
  %v770 = vpack.c.bf16 %v514, %v482
  %v771 = vpack.c.bf16 %v515, %v483
  %v772 = vpack.c.bf16 %v516, %v484
  %v773 = vpack.c.bf16 %v517, %v485
  %v774 = vpack.c.bf16 %v518, %v486
  %v775 = vpack.c.bf16 %v519, %v487
  %v776 = vpack.c.bf16 %v520, %v488
  %v777 = vpack.c.bf16 %v521, %v489
  %v778 = vpack.c.bf16 %v522, %v490
  %v779 = vpack.c.bf16 %v523, %v491
  %v780 = vpack.c.bf16 %v524, %v492
  %v781 = vpack.c.bf16 %v525, %v493
  %v782 = vpack.c.bf16 %v526, %v494
  %v783 = vpack.c.bf16 %v527, %v495
  %v784 = vpack.c.bf16 %v528, %v496
  %v785 = vpack.c.bf16 %v529, %v497
  %v786 = vpack.c.bf16 %v530, %v498
  %v787 = vpack.c.bf16 %v531, %v499
  %v788 = vpack.c.bf16 %v532, %v500
  %v789 = vpack.c.bf16 %v533, %v501
  %v790 = vpack.c.bf16 %v534, %v502
  %v791 = vpack.c.bf16 %v535, %v503
  %v792 = vpack.c.bf16 %v536, %v504
  %v793 = vpack.c.bf16 %v537, %v505
  %v794 = vpack.c.bf16 %v538, %v506
  %v795 = vld [vmem:[%s1] sm:$0xff]
  %v796 = vld [vmem:[%s1 + $0x8] sm:$0xff]
  %v797 = vld [vmem:[%s1 + $0x10] sm:$0xff]
  %v798 = vld [vmem:[%s1 + $0x18] sm:$0xff]
  %v799 = vld [vmem:[%s1 + $0x20] sm:$0xff]
  %v800 = vld [vmem:[%s1 + $0x28] sm:$0xff]
  %v801 = vld [vmem:[%s1 + $0x30] sm:$0xff]
  %v802 = vld [vmem:[%s1 + $0x38] sm:$0xff]
  %v803 = vld [vmem:[%s1 + $0x40] sm:$0xff]
  %v804 = vld [vmem:[%s1 + $0x48] sm:$0xff]
  %v805 = vld [vmem:[%s1 + $0x50] sm:$0xff]
  %v806 = vld [vmem:[%s1 + $0x58] sm:$0xff]
  %v807 = vld [vmem:[%s1 + $0x60] sm:$0xff]
  %v808 = vld [vmem:[%s1 + $0x68] sm:$0xff]
  %v809 = vld [vmem:[%s1 + $0x70] sm:$0xff]
  %v810 = vld [vmem:[%s1 + $0x78] sm:$0xff]
  %v811 = vld [vmem:[%s1 + $0x80] sm:$0xff]
  %v812 = vld [vmem:[%s1 + $0x88] sm:$0xff]
  %v813 = vld [vmem:[%s1 + $0x90] sm:$0xff]
  %v814 = vld [vmem:[%s1 + $0x98] sm:$0xff]
  %v815 = vld [vmem:[%s1 + $0xa0] sm:$0xff]
  %v816 = vld [vmem:[%s1 + $0xa8] sm:$0xff]
  %v817 = vld [vmem:[%s1 + $0xb0] sm:$0xff]
  %v818 = vld [vmem:[%s1 + $0xb8] sm:$0xff]
  %v819 = vld [vmem:[%s1 + $0xc0] sm:$0xff]
  %v820 = vld [vmem:[%s1 + $0xc8] sm:$0xff]
  %v821 = vld [vmem:[%s1 + $0xd0] sm:$0xff]
  %v822 = vld [vmem:[%s1 + $0xd8] sm:$0xff]
  %v823 = vld [vmem:[%s1 + $0xe0] sm:$0xff]
  %v824 = vld [vmem:[%s1 + $0xe8] sm:$0xff]
  %v825 = vld [vmem:[%s1 + $0xf0] sm:$0xff]
  %v826 = vld [vmem:[%s1 + $0xf8] sm:$0xff]
  %v827 = vld [vmem:[%s1 + $0x100] sm:$0xff]
  %v828 = vld [vmem:[%s1 + $0x108] sm:$0xff]
  %v829 = vld [vmem:[%s1 + $0x110] sm:$0xff]
  %v830 = vld [vmem:[%s1 + $0x118] sm:$0xff]
  %v831 = vld [vmem:[%s1 + $0x120] sm:$0xff]
  %v832 = vld [vmem:[%s1 + $0x128] sm:$0xff]
  %v833 = vld [vmem:[%s1 + $0x130] sm:$0xff]
  %v834 = vld [vmem:[%s1 + $0x138] sm:$0xff]
  %v835 = vld [vmem:[%s1 + $0x140] sm:$0xff]
  %v836 = vld [vmem:[%s1 + $0x148] sm:$0xff]
  %v837 = vld [vmem:[%s1 + $0x150] sm:$0xff]
  %v838 = vld [vmem:[%s1 + $0x158] sm:$0xff]
  %v839 = vld [vmem:[%s1 + $0x160] sm:$0xff]
  %v840 = vld [vmem:[%s1 + $0x168] sm:$0xff]
  %v841 = vld [vmem:[%s1 + $0x170] sm:$0xff]
  %v842 = vld [vmem:[%s1 + $0x178] sm:$0xff]
  %v843 = vld [vmem:[%s1 + $0x180] sm:$0xff]
  %v844 = vld [vmem:[%s1 + $0x188] sm:$0xff]
  %v845 = vld [vmem:[%s1 + $0x190] sm:$0xff]
  %v846 = vld [vmem:[%s1 + $0x198] sm:$0xff]
  %v847 = vld [vmem:[%s1 + $0x1a0] sm:$0xff]
  %v848 = vld [vmem:[%s1 + $0x1a8] sm:$0xff]
  %v849 = vld [vmem:[%s1 + $0x1b0] sm:$0xff]
  %v850 = vld [vmem:[%s1 + $0x1b8] sm:$0xff]
  %v851 = vld [vmem:[%s1 + $0x1c0] sm:$0xff]
  %v852 = vld [vmem:[%s1 + $0x1c8] sm:$0xff]
  %v853 = vld [vmem:[%s1 + $0x1d0] sm:$0xff]
  %v854 = vld [vmem:[%s1 + $0x1d8] sm:$0xff]
  %v855 = vld [vmem:[%s1 + $0x1e0] sm:$0xff]
  %v856 = vld [vmem:[%s1 + $0x1e8] sm:$0xff]
  %v857 = vld [vmem:[%s1 + $0x1f0] sm:$0xff]
  %v858 = vld [vmem:[%s1 + $0x1f8] sm:$0xff]
  %v859 = vld [vmem:[%s1 + $0x200] sm:$0xff]
  %v860 = vld [vmem:[%s1 + $0x208] sm:$0xff]
  %v861 = vld [vmem:[%s1 + $0x210] sm:$0xff]
  %v862 = vld [vmem:[%s1 + $0x218] sm:$0xff]
  %v863 = vld [vmem:[%s1 + $0x220] sm:$0xff]
  %v864 = vld [vmem:[%s1 + $0x228] sm:$0xff]
  %v865 = vld [vmem:[%s1 + $0x230] sm:$0xff]
  %v866 = vld [vmem:[%s1 + $0x238] sm:$0xff]
  %v867 = vld [vmem:[%s1 + $0x240] sm:$0xff]
  %v868 = vld [vmem:[%s1 + $0x248] sm:$0xff]
  %v869 = vld [vmem:[%s1 + $0x250] sm:$0xff]
  %v870 = vld [vmem:[%s1 + $0x258] sm:$0xff]
  %v871 = vld [vmem:[%s1 + $0x260] sm:$0xff]
  %v872 = vld [vmem:[%s1 + $0x268] sm:$0xff]
  %v873 = vld [vmem:[%s1 + $0x270] sm:$0xff]
  %v874 = vld [vmem:[%s1 + $0x278] sm:$0xff]
  %v875 = vld [vmem:[%s1 + $0x280] sm:$0xff]
  %v876 = vld [vmem:[%s1 + $0x288] sm:$0xff]
  %v877 = vld [vmem:[%s1 + $0x290] sm:$0xff]
  %v878 = vld [vmem:[%s1 + $0x298] sm:$0xff]
  %v879 = vld [vmem:[%s1 + $0x2a0] sm:$0xff]
  %v880 = vld [vmem:[%s1 + $0x2a8] sm:$0xff]
  %v881 = vld [vmem:[%s1 + $0x2b0] sm:$0xff]
  %v882 = vld [vmem:[%s1 + $0x2b8] sm:$0xff]
  %v883 = vld [vmem:[%s1 + $0x2c0] sm:$0xff]
  %v884 = vld [vmem:[%s1 + $0x2c8] sm:$0xff]
  %v885 = vld [vmem:[%s1 + $0x2d0] sm:$0xff]
  %v886 = vld [vmem:[%s1 + $0x2d8] sm:$0xff]
  %v887 = vld [vmem:[%s1 + $0x2e0] sm:$0xff]
  %v888 = vld [vmem:[%s1 + $0x2e8] sm:$0xff]
  %v889 = vld [vmem:[%s1 + $0x2f0] sm:$0xff]
  %v890 = vld [vmem:[%s1 + $0x2f8] sm:$0xff]
  %v891 = vld [vmem:[%s1 + $0x300] sm:$0xff]
  %v892 = vld [vmem:[%s1 + $0x308] sm:$0xff]
  %v893 = vld [vmem:[%s1 + $0x310] sm:$0xff]
  %v894 = vld [vmem:[%s1 + $0x318] sm:$0xff]
  %v895 = vld [vmem:[%s1 + $0x320] sm:$0xff]
  %v896 = vld [vmem:[%s1 + $0x328] sm:$0xff]
  %v897 = vld [vmem:[%s1 + $0x330] sm:$0xff]
  %v898 = vld [vmem:[%s1 + $0x338] sm:$0xff]
  %v899 = vld [vmem:[%s1 + $0x340] sm:$0xff]
  %v900 = vld [vmem:[%s1 + $0x348] sm:$0xff]
  %v901 = vld [vmem:[%s1 + $0x350] sm:$0xff]
  %v902 = vld [vmem:[%s1 + $0x358] sm:$0xff]
  %v903 = vld [vmem:[%s1 + $0x360] sm:$0xff]
  %v904 = vld [vmem:[%s1 + $0x368] sm:$0xff]
  %v905 = vld [vmem:[%s1 + $0x370] sm:$0xff]
  %v906 = vld [vmem:[%s1 + $0x378] sm:$0xff]
  %v907 = vld [vmem:[%s1 + $0x380] sm:$0xff]
  %v908 = vld [vmem:[%s1 + $0x388] sm:$0xff]
  %v909 = vld [vmem:[%s1 + $0x390] sm:$0xff]
  %v910 = vld [vmem:[%s1 + $0x398] sm:$0xff]
  %v911 = vld [vmem:[%s1 + $0x3a0] sm:$0xff]
  %v912 = vld [vmem:[%s1 + $0x3a8] sm:$0xff]
  %v913 = vld [vmem:[%s1 + $0x3b0] sm:$0xff]
  %v914 = vld [vmem:[%s1 + $0x3b8] sm:$0xff]
  %v915 = vld [vmem:[%s1 + $0x3c0] sm:$0xff]
  %v916 = vld [vmem:[%s1 + $0x3c8] sm:$0xff]
  %v917 = vld [vmem:[%s1 + $0x3d0] sm:$0xff]
  %v918 = vld [vmem:[%s1 + $0x3d8] sm:$0xff]
  %v919 = vld [vmem:[%s1 + $0x3e0] sm:$0xff]
  %v920 = vld [vmem:[%s1 + $0x3e8] sm:$0xff]
  %v921 = vld [vmem:[%s1 + $0x3f0] sm:$0xff]
  %v922 = vld [vmem:[%s1 + $0x3f8] sm:$0xff]
  %v923 = vld [vmem:[%s1 + $0x400] sm:$0xff]
  %v924 = vld [vmem:[%s1 + $0x408] sm:$0xff]
  %v925 = vld [vmem:[%s1 + $0x410] sm:$0xff]
  %v926 = vld [vmem:[%s1 + $0x418] sm:$0xff]
  %v927 = vld [vmem:[%s1 + $0x420] sm:$0xff]
  %v928 = vld [vmem:[%s1 + $0x428] sm:$0xff]
  %v929 = vld [vmem:[%s1 + $0x430] sm:$0xff]
  %v930 = vld [vmem:[%s1 + $0x438] sm:$0xff]
  %v931 = vld [vmem:[%s1 + $0x440] sm:$0xff]
  %v932 = vld [vmem:[%s1 + $0x448] sm:$0xff]
  %v933 = vld [vmem:[%s1 + $0x450] sm:$0xff]
  %v934 = vld [vmem:[%s1 + $0x458] sm:$0xff]
  %v935 = vld [vmem:[%s1 + $0x460] sm:$0xff]
  %v936 = vld [vmem:[%s1 + $0x468] sm:$0xff]
  %v937 = vld [vmem:[%s1 + $0x470] sm:$0xff]
  %v938 = vld [vmem:[%s1 + $0x478] sm:$0xff]
  %v939 = vld [vmem:[%s1 + $0x480] sm:$0xff]
  %v940 = vld [vmem:[%s1 + $0x488] sm:$0xff]
  %v941 = vld [vmem:[%s1 + $0x490] sm:$0xff]
  %v942 = vld [vmem:[%s1 + $0x498] sm:$0xff]
  %v943 = vld [vmem:[%s1 + $0x4a0] sm:$0xff]
  %v944 = vld [vmem:[%s1 + $0x4a8] sm:$0xff]
  %v945 = vld [vmem:[%s1 + $0x4b0] sm:$0xff]
  %v946 = vld [vmem:[%s1 + $0x4b8] sm:$0xff]
  %v947 = vld [vmem:[%s1 + $0x4c0] sm:$0xff]
  %v948 = vld [vmem:[%s1 + $0x4c8] sm:$0xff]
  %v949 = vld [vmem:[%s1 + $0x4d0] sm:$0xff]
  %v950 = vld [vmem:[%s1 + $0x4d8] sm:$0xff]
  %v951 = vld [vmem:[%s1 + $0x4e0] sm:$0xff]
  %v952 = vld [vmem:[%s1 + $0x4e8] sm:$0xff]
  %v953 = vld [vmem:[%s1 + $0x4f0] sm:$0xff]
  %v954 = vld [vmem:[%s1 + $0x4f8] sm:$0xff]
  %v955 = vld [vmem:[%s1 + $0x500] sm:$0xff]
  %v956 = vld [vmem:[%s1 + $0x508] sm:$0xff]
  %v957 = vld [vmem:[%s1 + $0x510] sm:$0xff]
  %v958 = vld [vmem:[%s1 + $0x518] sm:$0xff]
  %v959 = vld [vmem:[%s1 + $0x520] sm:$0xff]
  %v960 = vld [vmem:[%s1 + $0x528] sm:$0xff]
  %v961 = vld [vmem:[%s1 + $0x530] sm:$0xff]
  %v962 = vld [vmem:[%s1 + $0x538] sm:$0xff]
  %v963 = vld [vmem:[%s1 + $0x540] sm:$0xff]
  %v964 = vld [vmem:[%s1 + $0x548] sm:$0xff]
  %v965 = vld [vmem:[%s1 + $0x550] sm:$0xff]
  %v966 = vld [vmem:[%s1 + $0x558] sm:$0xff]
  %v967 = vld [vmem:[%s1 + $0x560] sm:$0xff]
  %v968 = vld [vmem:[%s1 + $0x568] sm:$0xff]
  %v969 = vld [vmem:[%s1 + $0x570] sm:$0xff]
  %v970 = vld [vmem:[%s1 + $0x578] sm:$0xff]
  %v971 = vld [vmem:[%s1 + $0x580] sm:$0xff]
  %v972 = vld [vmem:[%s1 + $0x588] sm:$0xff]
  %v973 = vld [vmem:[%s1 + $0x590] sm:$0xff]
  %v974 = vld [vmem:[%s1 + $0x598] sm:$0xff]
  %v975 = vld [vmem:[%s1 + $0x5a0] sm:$0xff]
  %v976 = vld [vmem:[%s1 + $0x5a8] sm:$0xff]
  %v977 = vld [vmem:[%s1 + $0x5b0] sm:$0xff]
  %v978 = vld [vmem:[%s1 + $0x5b8] sm:$0xff]
  %v979 = vld [vmem:[%s1 + $0x5c0] sm:$0xff]
  %v980 = vld [vmem:[%s1 + $0x5c8] sm:$0xff]
  %v981 = vld [vmem:[%s1 + $0x5d0] sm:$0xff]
  %v982 = vld [vmem:[%s1 + $0x5d8] sm:$0xff]
  %v983 = vld [vmem:[%s1 + $0x5e0] sm:$0xff]
  %v984 = vld [vmem:[%s1 + $0x5e8] sm:$0xff]
  %v985 = vld [vmem:[%s1 + $0x5f0] sm:$0xff]
  %v986 = vld [vmem:[%s1 + $0x5f8] sm:$0xff]
  %v987 = vld [vmem:[%s1 + $0x600] sm:$0xff]
  %v988 = vld [vmem:[%s1 + $0x608] sm:$0xff]
  %v989 = vld [vmem:[%s1 + $0x610] sm:$0xff]
  %v990 = vld [vmem:[%s1 + $0x618] sm:$0xff]
  %v991 = vld [vmem:[%s1 + $0x620] sm:$0xff]
  %v992 = vld [vmem:[%s1 + $0x628] sm:$0xff]
  %v993 = vld [vmem:[%s1 + $0x630] sm:$0xff]
  %v994 = vld [vmem:[%s1 + $0x638] sm:$0xff]
  %v995 = vld [vmem:[%s1 + $0x640] sm:$0xff]
  %v996 = vld [vmem:[%s1 + $0x648] sm:$0xff]
  %v997 = vld [vmem:[%s1 + $0x650] sm:$0xff]
  %v998 = vld [vmem:[%s1 + $0x658] sm:$0xff]
  %v999 = vld [vmem:[%s1 + $0x660] sm:$0xff]
  %v1000 = vld [vmem:[%s1 + $0x668] sm:$0xff]
  %v1001 = vld [vmem:[%s1 + $0x670] sm:$0xff]
  %v1002 = vld [vmem:[%s1 + $0x678] sm:$0xff]
  %v1003 = vld [vmem:[%s1 + $0x680] sm:$0xff]
  %v1004 = vld [vmem:[%s1 + $0x688] sm:$0xff]
  %v1005 = vld [vmem:[%s1 + $0x690] sm:$0xff]
  %v1006 = vld [vmem:[%s1 + $0x698] sm:$0xff]
  %v1007 = vld [vmem:[%s1 + $0x6a0] sm:$0xff]
  %v1008 = vld [vmem:[%s1 + $0x6a8] sm:$0xff]
  %v1009 = vld [vmem:[%s1 + $0x6b0] sm:$0xff]
  %v1010 = vld [vmem:[%s1 + $0x6b8] sm:$0xff]
  %v1011 = vld [vmem:[%s1 + $0x6c0] sm:$0xff]
  %v1012 = vld [vmem:[%s1 + $0x6c8] sm:$0xff]
  %v1013 = vld [vmem:[%s1 + $0x6d0] sm:$0xff]
  %v1014 = vld [vmem:[%s1 + $0x6d8] sm:$0xff]
  %v1015 = vld [vmem:[%s1 + $0x6e0] sm:$0xff]
  %v1016 = vld [vmem:[%s1 + $0x6e8] sm:$0xff]
  %v1017 = vld [vmem:[%s1 + $0x6f0] sm:$0xff]
  %v1018 = vld [vmem:[%s1 + $0x6f8] sm:$0xff]
  %v1019 = vld [vmem:[%s1 + $0x700] sm:$0xff]
  %v1020 = vld [vmem:[%s1 + $0x708] sm:$0xff]
  %v1021 = vld [vmem:[%s1 + $0x710] sm:$0xff]
  %v1022 = vld [vmem:[%s1 + $0x718] sm:$0xff]
  %v1023 = vld [vmem:[%s1 + $0x720] sm:$0xff]
  %v1024 = vld [vmem:[%s1 + $0x728] sm:$0xff]
  %v1025 = vld [vmem:[%s1 + $0x730] sm:$0xff]
  %v1026 = vld [vmem:[%s1 + $0x738] sm:$0xff]
  %v1027 = vld [vmem:[%s1 + $0x740] sm:$0xff]
  %v1028 = vld [vmem:[%s1 + $0x748] sm:$0xff]
  %v1029 = vld [vmem:[%s1 + $0x750] sm:$0xff]
  %v1030 = vld [vmem:[%s1 + $0x758] sm:$0xff]
  %v1031 = vld [vmem:[%s1 + $0x760] sm:$0xff]
  %v1032 = vld [vmem:[%s1 + $0x768] sm:$0xff]
  %v1033 = vld [vmem:[%s1 + $0x770] sm:$0xff]
  %v1034 = vld [vmem:[%s1 + $0x778] sm:$0xff]
  %v1035 = vld [vmem:[%s1 + $0x780] sm:$0xff]
  %v1036 = vld [vmem:[%s1 + $0x788] sm:$0xff]
  %v1037 = vld [vmem:[%s1 + $0x790] sm:$0xff]
  %v1038 = vld [vmem:[%s1 + $0x798] sm:$0xff]
  %v1039 = vld [vmem:[%s1 + $0x7a0] sm:$0xff]
  %v1040 = vld [vmem:[%s1 + $0x7a8] sm:$0xff]
  %v1041 = vld [vmem:[%s1 + $0x7b0] sm:$0xff]
  %v1042 = vld [vmem:[%s1 + $0x7b8] sm:$0xff]
  %v1043 = vld [vmem:[%s1 + $0x7c0] sm:$0xff]
  %v1044 = vld [vmem:[%s1 + $0x7c8] sm:$0xff]
  %v1045 = vld [vmem:[%s1 + $0x7d0] sm:$0xff]
  %v1046 = vld [vmem:[%s1 + $0x7d8] sm:$0xff]
  %v1047 = vld [vmem:[%s1 + $0x7e0] sm:$0xff]
  %v1048 = vld [vmem:[%s1 + $0x7e8] sm:$0xff]
  %v1049 = vld [vmem:[%s1 + $0x7f0] sm:$0xff]
  %v1050 = vld [vmem:[%s1 + $0x7f8] sm:$0xff]
  %v1051 = vld [vmem:[%s1 + $0x800] sm:$0xff]
  %v1052 = vld [vmem:[%s1 + $0x808] sm:$0xff]
  %v1053 = vld [vmem:[%s1 + $0x810] sm:$0xff]
  %v1054 = vld [vmem:[%s1 + $0x818] sm:$0xff]
  %v1055 = vld [vmem:[%s1 + $0x820] sm:$0xff]
  %v1056 = vld [vmem:[%s1 + $0x828] sm:$0xff]
  %v1057 = vld [vmem:[%s1 + $0x830] sm:$0xff]
  %v1058 = vld [vmem:[%s1 + $0x838] sm:$0xff]
  %v1059 = vld [vmem:[%s1 + $0x840] sm:$0xff]
  %v1060 = vld [vmem:[%s1 + $0x848] sm:$0xff]
  %v1061 = vld [vmem:[%s1 + $0x850] sm:$0xff]
  %v1062 = vld [vmem:[%s1 + $0x858] sm:$0xff]
  %v1063 = vld [vmem:[%s1 + $0x860] sm:$0xff]
  %v1064 = vld [vmem:[%s1 + $0x868] sm:$0xff]
  %v1065 = vld [vmem:[%s1 + $0x870] sm:$0xff]
  %v1066 = vld [vmem:[%s1 + $0x878] sm:$0xff]
  %v1067 = vld [vmem:[%s1 + $0x880] sm:$0xff]
  %v1068 = vld [vmem:[%s1 + $0x888] sm:$0xff]
  %v1069 = vld [vmem:[%s1 + $0x890] sm:$0xff]
  %v1070 = vld [vmem:[%s1 + $0x898] sm:$0xff]
  %v1071 = vld [vmem:[%s1 + $0x8a0] sm:$0xff]
  %v1072 = vld [vmem:[%s1 + $0x8a8] sm:$0xff]
  %v1073 = vld [vmem:[%s1 + $0x8b0] sm:$0xff]
  %v1074 = vld [vmem:[%s1 + $0x8b8] sm:$0xff]
  %v1075 = vld [vmem:[%s1 + $0x8c0] sm:$0xff]
  %v1076 = vld [vmem:[%s1 + $0x8c8] sm:$0xff]
  %v1077 = vld [vmem:[%s1 + $0x8d0] sm:$0xff]
  %v1078 = vld [vmem:[%s1 + $0x8d8] sm:$0xff]
  %v1079 = vld [vmem:[%s1 + $0x8e0] sm:$0xff]
  %v1080 = vld [vmem:[%s1 + $0x8e8] sm:$0xff]
  %v1081 = vld [vmem:[%s1 + $0x8f0] sm:$0xff]
  %v1082 = vld [vmem:[%s1 + $0x8f8] sm:$0xff]
  %v1083 = vld [vmem:[%s1 + $0x900] sm:$0xff]
  %v1084 = vld [vmem:[%s1 + $0x908] sm:$0xff]
  %v1085 = vld [vmem:[%s1 + $0x910] sm:$0xff]
  %v1086 = vld [vmem:[%s1 + $0x918] sm:$0xff]
  %v1087 = vld [vmem:[%s1 + $0x920] sm:$0xff]
  %v1088 = vld [vmem:[%s1 + $0x928] sm:$0xff]
  %v1089 = vld [vmem:[%s1 + $0x930] sm:$0xff]
  %v1090 = vld [vmem:[%s1 + $0x938] sm:$0xff]
  %v1091 = vld [vmem:[%s1 + $0x940] sm:$0xff]
  %v1092 = vld [vmem:[%s1 + $0x948] sm:$0xff]
  %v1093 = vld [vmem:[%s1 + $0x950] sm:$0xff]
  %v1094 = vld [vmem:[%s1 + $0x958] sm:$0xff]
  %v1095 = vld [vmem:[%s1 + $0x960] sm:$0xff]
  %v1096 = vld [vmem:[%s1 + $0x968] sm:$0xff]
  %v1097 = vld [vmem:[%s1 + $0x970] sm:$0xff]
  %v1098 = vld [vmem:[%s1 + $0x978] sm:$0xff]
  %v1099 = vld [vmem:[%s1 + $0x980] sm:$0xff]
  %v1100 = vld [vmem:[%s1 + $0x988] sm:$0xff]
  %v1101 = vld [vmem:[%s1 + $0x990] sm:$0xff]
  %v1102 = vld [vmem:[%s1 + $0x998] sm:$0xff]
  %v1103 = vld [vmem:[%s1 + $0x9a0] sm:$0xff]
  %v1104 = vld [vmem:[%s1 + $0x9a8] sm:$0xff]
  %v1105 = vld [vmem:[%s1 + $0x9b0] sm:$0xff]
  %v1106 = vld [vmem:[%s1 + $0x9b8] sm:$0xff]
  %v1107 = vld [vmem:[%s1 + $0x9c0] sm:$0xff]
  %v1108 = vld [vmem:[%s1 + $0x9c8] sm:$0xff]
  %v1109 = vld [vmem:[%s1 + $0x9d0] sm:$0xff]
  %v1110 = vld [vmem:[%s1 + $0x9d8] sm:$0xff]
  %v1111 = vld [vmem:[%s1 + $0x9e0] sm:$0xff]
  %v1112 = vld [vmem:[%s1 + $0x9e8] sm:$0xff]
  %v1113 = vld [vmem:[%s1 + $0x9f0] sm:$0xff]
  %v1114 = vld [vmem:[%s1 + $0x9f8] sm:$0xff]
  %v1115 = vld [vmem:[%s1 + $0xa00] sm:$0xff]
  %v1116 = vld [vmem:[%s1 + $0xa08] sm:$0xff]
  %v1117 = vld [vmem:[%s1 + $0xa10] sm:$0xff]
  %v1118 = vld [vmem:[%s1 + $0xa18] sm:$0xff]
  %v1119 = vld [vmem:[%s1 + $0xa20] sm:$0xff]
  %v1120 = vld [vmem:[%s1 + $0xa28] sm:$0xff]
  %v1121 = vld [vmem:[%s1 + $0xa30] sm:$0xff]
  %v1122 = vld [vmem:[%s1 + $0xa38] sm:$0xff]
  %v1123 = vld [vmem:[%s1 + $0xa40] sm:$0xff]
  %v1124 = vld [vmem:[%s1 + $0xa48] sm:$0xff]
  %v1125 = vld [vmem:[%s1 + $0xa50] sm:$0xff]
  %v1126 = vld [vmem:[%s1 + $0xa58] sm:$0xff]
  %v1127 = vld [vmem:[%s1 + $0xa60] sm:$0xff]
  %v1128 = vld [vmem:[%s1 + $0xa68] sm:$0xff]
  %v1129 = vld [vmem:[%s1 + $0xa70] sm:$0xff]
  %v1130 = vld [vmem:[%s1 + $0xa78] sm:$0xff]
  %v1131 = vld [vmem:[%s1 + $0xa80] sm:$0xff]
  %v1132 = vld [vmem:[%s1 + $0xa88] sm:$0xff]
  %v1133 = vld [vmem:[%s1 + $0xa90] sm:$0xff]
  %v1134 = vld [vmem:[%s1 + $0xa98] sm:$0xff]
  %v1135 = vld [vmem:[%s1 + $0xaa0] sm:$0xff]
  %v1136 = vld [vmem:[%s1 + $0xaa8] sm:$0xff]
  %v1137 = vld [vmem:[%s1 + $0xab0] sm:$0xff]
  %v1138 = vld [vmem:[%s1 + $0xab8] sm:$0xff]
  %v1139 = vld [vmem:[%s1 + $0xac0] sm:$0xff]
  %v1140 = vld [vmem:[%s1 + $0xac8] sm:$0xff]
  %v1141 = vld [vmem:[%s1 + $0xad0] sm:$0xff]
  %v1142 = vld [vmem:[%s1 + $0xad8] sm:$0xff]
  %v1143 = vld [vmem:[%s1 + $0xae0] sm:$0xff]
  %v1144 = vld [vmem:[%s1 + $0xae8] sm:$0xff]
  %v1145 = vld [vmem:[%s1 + $0xaf0] sm:$0xff]
  %v1146 = vld [vmem:[%s1 + $0xaf8] sm:$0xff]
  %v1147 = vld [vmem:[%s1 + $0xb00] sm:$0xff]
  %v1148 = vld [vmem:[%s1 + $0xb08] sm:$0xff]
  %v1149 = vld [vmem:[%s1 + $0xb10] sm:$0xff]
  %v1150 = vld [vmem:[%s1 + $0xb18] sm:$0xff]
  %v1151 = vld [vmem:[%s1 + $0xb20] sm:$0xff]
  %v1152 = vld [vmem:[%s1 + $0xb28] sm:$0xff]
  %v1153 = vld [vmem:[%s1 + $0xb30] sm:$0xff]
  %v1154 = vld [vmem:[%s1 + $0xb38] sm:$0xff]
  %v1155 = vld [vmem:[%s1 + $0xb40] sm:$0xff]
  %v1156 = vld [vmem:[%s1 + $0xb48] sm:$0xff]
  %v1157 = vld [vmem:[%s1 + $0xb50] sm:$0xff]
  %v1158 = vld [vmem:[%s1 + $0xb58] sm:$0xff]
  %v1159 = vld [vmem:[%s1 + $0xb60] sm:$0xff]
  %v1160 = vld [vmem:[%s1 + $0xb68] sm:$0xff]
  %v1161 = vld [vmem:[%s1 + $0xb70] sm:$0xff]
  %v1162 = vld [vmem:[%s1 + $0xb78] sm:$0xff]
  %v1163 = vld [vmem:[%s1 + $0xb80] sm:$0xff]
  %v1164 = vld [vmem:[%s1 + $0xb88] sm:$0xff]
  %v1165 = vld [vmem:[%s1 + $0xb90] sm:$0xff]
  %v1166 = vld [vmem:[%s1 + $0xb98] sm:$0xff]
  %v1167 = vld [vmem:[%s1 + $0xba0] sm:$0xff]
  %v1168 = vld [vmem:[%s1 + $0xba8] sm:$0xff]
  %v1169 = vld [vmem:[%s1 + $0xbb0] sm:$0xff]
  %v1170 = vld [vmem:[%s1 + $0xbb8] sm:$0xff]
  %v1171 = vld [vmem:[%s1 + $0xbc0] sm:$0xff]
  %v1172 = vld [vmem:[%s1 + $0xbc8] sm:$0xff]
  %v1173 = vld [vmem:[%s1 + $0xbd0] sm:$0xff]
  %v1174 = vld [vmem:[%s1 + $0xbd8] sm:$0xff]
  %v1175 = vld [vmem:[%s1 + $0xbe0] sm:$0xff]
  %v1176 = vld [vmem:[%s1 + $0xbe8] sm:$0xff]
  %v1177 = vld [vmem:[%s1 + $0xbf0] sm:$0xff]
  %v1178 = vld [vmem:[%s1 + $0xbf8] sm:$0xff]
  %v1179 = vld [vmem:[%s1 + $0xc00] sm:$0xff]
  %v1180 = vld [vmem:[%s1 + $0xc08] sm:$0xff]
  %v1181 = vld [vmem:[%s1 + $0xc10] sm:$0xff]
  %v1182 = vld [vmem:[%s1 + $0xc18] sm:$0xff]
  %v1183 = vld [vmem:[%s1 + $0xc20] sm:$0xff]
  %v1184 = vld [vmem:[%s1 + $0xc28] sm:$0xff]
  %v1185 = vld [vmem:[%s1 + $0xc30] sm:$0xff]
  %v1186 = vld [vmem:[%s1 + $0xc38] sm:$0xff]
  %v1187 = vld [vmem:[%s1 + $0xc40] sm:$0xff]
  %v1188 = vld [vmem:[%s1 + $0xc48] sm:$0xff]
  %v1189 = vld [vmem:[%s1 + $0xc50] sm:$0xff]
  %v1190 = vld [vmem:[%s1 + $0xc58] sm:$0xff]
  %v1191 = vld [vmem:[%s1 + $0xc60] sm:$0xff]
  %v1192 = vld [vmem:[%s1 + $0xc68] sm:$0xff]
  %v1193 = vld [vmem:[%s1 + $0xc70] sm:$0xff]
  %v1194 = vld [vmem:[%s1 + $0xc78] sm:$0xff]
  %v1195 = vld [vmem:[%s1 + $0xc80] sm:$0xff]
  %v1196 = vld [vmem:[%s1 + $0xc88] sm:$0xff]
  %v1197 = vld [vmem:[%s1 + $0xc90] sm:$0xff]
  %v1198 = vld [vmem:[%s1 + $0xc98] sm:$0xff]
  %v1199 = vld [vmem:[%s1 + $0xca0] sm:$0xff]
  %v1200 = vld [vmem:[%s1 + $0xca8] sm:$0xff]
  %v1201 = vld [vmem:[%s1 + $0xcb0] sm:$0xff]
  %v1202 = vld [vmem:[%s1 + $0xcb8] sm:$0xff]
  %v1203 = vld [vmem:[%s1 + $0xcc0] sm:$0xff]
  %v1204 = vld [vmem:[%s1 + $0xcc8] sm:$0xff]
  %v1205 = vld [vmem:[%s1 + $0xcd0] sm:$0xff]
  %v1206 = vld [vmem:[%s1 + $0xcd8] sm:$0xff]
  %v1207 = vld [vmem:[%s1 + $0xce0] sm:$0xff]
  %v1208 = vld [vmem:[%s1 + $0xce8] sm:$0xff]
  %v1209 = vld [vmem:[%s1 + $0xcf0] sm:$0xff]
  %v1210 = vld [vmem:[%s1 + $0xcf8] sm:$0xff]
  %v1211 = vld [vmem:[%s1 + $0xd00] sm:$0xff]
  %v1212 = vld [vmem:[%s1 + $0xd08] sm:$0xff]
  %v1213 = vld [vmem:[%s1 + $0xd10] sm:$0xff]
  %v1214 = vld [vmem:[%s1 + $0xd18] sm:$0xff]
  %v1215 = vld [vmem:[%s1 + $0xd20] sm:$0xff]
  %v1216 = vld [vmem:[%s1 + $0xd28] sm:$0xff]
  %v1217 = vld [vmem:[%s1 + $0xd30] sm:$0xff]
  %v1218 = vld [vmem:[%s1 + $0xd38] sm:$0xff]
  %v1219 = vld [vmem:[%s1 + $0xd40] sm:$0xff]
  %v1220 = vld [vmem:[%s1 + $0xd48] sm:$0xff]
  %v1221 = vld [vmem:[%s1 + $0xd50] sm:$0xff]
  %v1222 = vld [vmem:[%s1 + $0xd58] sm:$0xff]
  %v1223 = vld [vmem:[%s1 + $0xd60] sm:$0xff]
  %v1224 = vld [vmem:[%s1 + $0xd68] sm:$0xff]
  %v1225 = vld [vmem:[%s1 + $0xd70] sm:$0xff]
  %v1226 = vld [vmem:[%s1 + $0xd78] sm:$0xff]
  %v1227 = vld [vmem:[%s1 + $0xd80] sm:$0xff]
  %v1228 = vld [vmem:[%s1 + $0xd88] sm:$0xff]
  %v1229 = vld [vmem:[%s1 + $0xd90] sm:$0xff]
  %v1230 = vld [vmem:[%s1 + $0xd98] sm:$0xff]
  %v1231 = vld [vmem:[%s1 + $0xda0] sm:$0xff]
  %v1232 = vld [vmem:[%s1 + $0xda8] sm:$0xff]
  %v1233 = vld [vmem:[%s1 + $0xdb0] sm:$0xff]
  %v1234 = vld [vmem:[%s1 + $0xdb8] sm:$0xff]
  %v1235 = vld [vmem:[%s1 + $0xdc0] sm:$0xff]
  %v1236 = vld [vmem:[%s1 + $0xdc8] sm:$0xff]
  %v1237 = vld [vmem:[%s1 + $0xdd0] sm:$0xff]
  %v1238 = vld [vmem:[%s1 + $0xdd8] sm:$0xff]
  %v1239 = vld [vmem:[%s1 + $0xde0] sm:$0xff]
  %v1240 = vld [vmem:[%s1 + $0xde8] sm:$0xff]
  %v1241 = vld [vmem:[%s1 + $0xdf0] sm:$0xff]
  %v1242 = vld [vmem:[%s1 + $0xdf8] sm:$0xff]
  %v1243 = vld [vmem:[%s1 + $0xe00] sm:$0xff]
  %v1244 = vld [vmem:[%s1 + $0xe08] sm:$0xff]
  %v1245 = vld [vmem:[%s1 + $0xe10] sm:$0xff]
  %v1246 = vld [vmem:[%s1 + $0xe18] sm:$0xff]
  %v1247 = vld [vmem:[%s1 + $0xe20] sm:$0xff]
  %v1248 = vld [vmem:[%s1 + $0xe28] sm:$0xff]
  %v1249 = vld [vmem:[%s1 + $0xe30] sm:$0xff]
  %v1250 = vld [vmem:[%s1 + $0xe38] sm:$0xff]
  %v1251 = vld [vmem:[%s1 + $0xe40] sm:$0xff]
  %v1252 = vld [vmem:[%s1 + $0xe48] sm:$0xff]
  %v1253 = vld [vmem:[%s1 + $0xe50] sm:$0xff]
  %v1254 = vld [vmem:[%s1 + $0xe58] sm:$0xff]
  %v1255 = vld [vmem:[%s1 + $0xe60] sm:$0xff]
  %v1256 = vld [vmem:[%s1 + $0xe68] sm:$0xff]
  %v1257 = vld [vmem:[%s1 + $0xe70] sm:$0xff]
  %v1258 = vld [vmem:[%s1 + $0xe78] sm:$0xff]
  %v1259 = vld [vmem:[%s1 + $0xe80] sm:$0xff]
  %v1260 = vld [vmem:[%s1 + $0xe88] sm:$0xff]
  %v1261 = vld [vmem:[%s1 + $0xe90] sm:$0xff]
  %v1262 = vld [vmem:[%s1 + $0xe98] sm:$0xff]
  %v1263 = vld [vmem:[%s1 + $0xea0] sm:$0xff]
  %v1264 = vld [vmem:[%s1 + $0xea8] sm:$0xff]
  %v1265 = vld [vmem:[%s1 + $0xeb0] sm:$0xff]
  %v1266 = vld [vmem:[%s1 + $0xeb8] sm:$0xff]
  %v1267 = vld [vmem:[%s1 + $0xec0] sm:$0xff]
  %v1268 = vld [vmem:[%s1 + $0xec8] sm:$0xff]
  %v1269 = vld [vmem:[%s1 + $0xed0] sm:$0xff]
  %v1270 = vld [vmem:[%s1 + $0xed8] sm:$0xff]
  %v1271 = vld [vmem:[%s1 + $0xee0] sm:$0xff]
  %v1272 = vld [vmem:[%s1 + $0xee8] sm:$0xff]
  %v1273 = vld [vmem:[%s1 + $0xef0] sm:$0xff]
  %v1274 = vld [vmem:[%s1 + $0xef8] sm:$0xff]
  %v1275 = vld [vmem:[%s1 + $0xf00] sm:$0xff]
  %v1276 = vld [vmem:[%s1 + $0xf08] sm:$0xff]
  %v1277 = vld [vmem:[%s1 + $0xf10] sm:$0xff]
  %v1278 = vld [vmem:[%s1 + $0xf18] sm:$0xff]
  %v1279 = vld [vmem:[%s1 + $0xf20] sm:$0xff]
  %v1280 = vld [vmem:[%s1 + $0xf28] sm:$0xff]
  %v1281 = vld [vmem:[%s1 + $0xf30] sm:$0xff]
  %v1282 = vld [vmem:[%s1 + $0xf38] sm:$0xff]
  %v1283 = vld [vmem:[%s1 + $0xf40] sm:$0xff]
  %v1284 = vld [vmem:[%s1 + $0xf48] sm:$0xff]
  %v1285 = vld [vmem:[%s1 + $0xf50] sm:$0xff]
  %v1286 = vld [vmem:[%s1 + $0xf58] sm:$0xff]
  %v1287 = vld [vmem:[%s1 + $0xf60] sm:$0xff]
  %v1288 = vld [vmem:[%s1 + $0xf68] sm:$0xff]
  %v1289 = vld [vmem:[%s1 + $0xf70] sm:$0xff]
  %v1290 = vld [vmem:[%s1 + $0xf78] sm:$0xff]
  %v1291 = vld [vmem:[%s1 + $0xf80] sm:$0xff]
  %v1292 = vld [vmem:[%s1 + $0xf88] sm:$0xff]
  %v1293 = vld [vmem:[%s1 + $0xf90] sm:$0xff]
  %v1294 = vld [vmem:[%s1 + $0xf98] sm:$0xff]
  %v1295 = vld [vmem:[%s1 + $0xfa0] sm:$0xff]
  %v1296 = vld [vmem:[%s1 + $0xfa8] sm:$0xff]
  %v1297 = vld [vmem:[%s1 + $0xfb0] sm:$0xff]
  %v1298 = vld [vmem:[%s1 + $0xfb8] sm:$0xff]
  %v1299 = vld [vmem:[%s1 + $0xfc0] sm:$0xff]
  %v1300 = vld [vmem:[%s1 + $0xfc8] sm:$0xff]
  %v1301 = vld [vmem:[%s1 + $0xfd0] sm:$0xff]
  %v1302 = vld [vmem:[%s1 + $0xfd8] sm:$0xff]
  %v1303 = vld [vmem:[%s1 + $0xfe0] sm:$0xff]
  %v1304 = vld [vmem:[%s1 + $0xfe8] sm:$0xff]
  %v1305 = vld [vmem:[%s1 + $0xff0] sm:$0xff]
  %v1306 = vld [vmem:[%s1 + $0xff8] sm:$0xff]
  %v1307 = vld [vmem:[%s1 + $0x1000] sm:$0xff]
  %v1308 = vld [vmem:[%s1 + $0x1008] sm:$0xff]
  %v1309 = vld [vmem:[%s1 + $0x1010] sm:$0xff]
  %v1310 = vld [vmem:[%s1 + $0x1018] sm:$0xff]
  %v1311 = vld [vmem:[%s1 + $0x1020] sm:$0xff]
  %v1312 = vld [vmem:[%s1 + $0x1028] sm:$0xff]
  %v1313 = vld [vmem:[%s1 + $0x1030] sm:$0xff]
  %v1314 = vld [vmem:[%s1 + $0x1038] sm:$0xff]
  %v1315 = vld [vmem:[%s1 + $0x1040] sm:$0xff]
  %v1316 = vld [vmem:[%s1 + $0x1048] sm:$0xff]
  %v1317 = vld [vmem:[%s1 + $0x1050] sm:$0xff]
  %v1318 = vld [vmem:[%s1 + $0x1058] sm:$0xff]
  %v1319 = vld [vmem:[%s1 + $0x1060] sm:$0xff]
  %v1320 = vld [vmem:[%s1 + $0x1068] sm:$0xff]
  %v1321 = vld [vmem:[%s1 + $0x1070] sm:$0xff]
  %v1322 = vld [vmem:[%s1 + $0x1078] sm:$0xff]
  %v1323 = vld [vmem:[%s1 + $0x1080] sm:$0xff]
  %v1324 = vld [vmem:[%s1 + $0x1088] sm:$0xff]
  %v1325 = vld [vmem:[%s1 + $0x1090] sm:$0xff]
  %v1326 = vld [vmem:[%s1 + $0x1098] sm:$0xff]
  %v1327 = vld [vmem:[%s1 + $0x10a0] sm:$0xff]
  %v1328 = vld [vmem:[%s1 + $0x10a8] sm:$0xff]
  %v1329 = vld [vmem:[%s1 + $0x10b0] sm:$0xff]
  %v1330 = vld [vmem:[%s1 + $0x10b8] sm:$0xff]
  %v1331 = vld [vmem:[%s1 + $0x10c0] sm:$0xff]
  %v1332 = vld [vmem:[%s1 + $0x10c8] sm:$0xff]
  %v1333 = vld [vmem:[%s1 + $0x10d0] sm:$0xff]
  %v1334 = vld [vmem:[%s1 + $0x10d8] sm:$0xff]
  %v1335 = vld [vmem:[%s1 + $0x10e0] sm:$0xff]
  %v1336 = vld [vmem:[%s1 + $0x10e8] sm:$0xff]
  %v1337 = vld [vmem:[%s1 + $0x10f0] sm:$0xff]
  %v1338 = vld [vmem:[%s1 + $0x10f8] sm:$0xff]
  %v1339 = vld [vmem:[%s1 + $0x1100] sm:$0xff]
  %v1340 = vld [vmem:[%s1 + $0x1108] sm:$0xff]
  %v1341 = vld [vmem:[%s1 + $0x1110] sm:$0xff]
  %v1342 = vld [vmem:[%s1 + $0x1118] sm:$0xff]
  %v1343 = vld [vmem:[%s1 + $0x1120] sm:$0xff]
  %v1344 = vld [vmem:[%s1 + $0x1128] sm:$0xff]
  %v1345 = vld [vmem:[%s1 + $0x1130] sm:$0xff]
  %v1346 = vld [vmem:[%s1 + $0x1138] sm:$0xff]
  %v1347 = vld [vmem:[%s1 + $0x1140] sm:$0xff]
  %v1348 = vld [vmem:[%s1 + $0x1148] sm:$0xff]
  %v1349 = vld [vmem:[%s1 + $0x1150] sm:$0xff]
  %v1350 = vld [vmem:[%s1 + $0x1158] sm:$0xff]
  %v1351 = vld [vmem:[%s1 + $0x1160] sm:$0xff]
  %v1352 = vld [vmem:[%s1 + $0x1168] sm:$0xff]
  %v1353 = vld [vmem:[%s1 + $0x1170] sm:$0xff]
  %v1354 = vld [vmem:[%s1 + $0x1178] sm:$0xff]
  %v1355 = vld [vmem:[%s1 + $0x1180] sm:$0xff]
  %v1356 = vld [vmem:[%s1 + $0x1188] sm:$0xff]
  %v1357 = vld [vmem:[%s1 + $0x1190] sm:$0xff]
  %v1358 = vld [vmem:[%s1 + $0x1198] sm:$0xff]
  %v1359 = vld [vmem:[%s1 + $0x11a0] sm:$0xff]
  %v1360 = vld [vmem:[%s1 + $0x11a8] sm:$0xff]
  %v1361 = vld [vmem:[%s1 + $0x11b0] sm:$0xff]
  %v1362 = vld [vmem:[%s1 + $0x11b8] sm:$0xff]
  %v1363 = vld [vmem:[%s1 + $0x11c0] sm:$0xff]
  %v1364 = vld [vmem:[%s1 + $0x11c8] sm:$0xff]
  %v1365 = vld [vmem:[%s1 + $0x11d0] sm:$0xff]
  %v1366 = vld [vmem:[%s1 + $0x11d8] sm:$0xff]
  %v1367 = vld [vmem:[%s1 + $0x11e0] sm:$0xff]
  %v1368 = vld [vmem:[%s1 + $0x11e8] sm:$0xff]
  %v1369 = vld [vmem:[%s1 + $0x11f0] sm:$0xff]
  %v1370 = vld [vmem:[%s1 + $0x11f8] sm:$0xff]
  %v1371 = vld [vmem:[%s1 + $0x1200] sm:$0xff]
  %v1372 = vld [vmem:[%s1 + $0x1208] sm:$0xff]
  %v1373 = vld [vmem:[%s1 + $0x1210] sm:$0xff]
  %v1374 = vld [vmem:[%s1 + $0x1218] sm:$0xff]
  %v1375 = vld [vmem:[%s1 + $0x1220] sm:$0xff]
  %v1376 = vld [vmem:[%s1 + $0x1228] sm:$0xff]
  %v1377 = vld [vmem:[%s1 + $0x1230] sm:$0xff]
  %v1378 = vld [vmem:[%s1 + $0x1238] sm:$0xff]
  %v1379 = vld [vmem:[%s1 + $0x1240] sm:$0xff]
  %v1380 = vld [vmem:[%s1 + $0x1248] sm:$0xff]
  %v1381 = vld [vmem:[%s1 + $0x1250] sm:$0xff]
  %v1382 = vld [vmem:[%s1 + $0x1258] sm:$0xff]
  %v1383 = vld [vmem:[%s1 + $0x1260] sm:$0xff]
  %v1384 = vld [vmem:[%s1 + $0x1268] sm:$0xff]
  %v1385 = vld [vmem:[%s1 + $0x1270] sm:$0xff]
  %v1386 = vld [vmem:[%s1 + $0x1278] sm:$0xff]
  %v1387 = vld [vmem:[%s1 + $0x1280] sm:$0xff]
  %v1388 = vld [vmem:[%s1 + $0x1288] sm:$0xff]
  %v1389 = vld [vmem:[%s1 + $0x1290] sm:$0xff]
  %v1390 = vld [vmem:[%s1 + $0x1298] sm:$0xff]
  %v1391 = vld [vmem:[%s1 + $0x12a0] sm:$0xff]
  %v1392 = vld [vmem:[%s1 + $0x12a8] sm:$0xff]
  %v1393 = vld [vmem:[%s1 + $0x12b0] sm:$0xff]
  %v1394 = vld [vmem:[%s1 + $0x12b8] sm:$0xff]
  %v1395 = vld [vmem:[%s1 + $0x12c0] sm:$0xff]
  %v1396 = vld [vmem:[%s1 + $0x12c8] sm:$0xff]
  %v1397 = vld [vmem:[%s1 + $0x12d0] sm:$0xff]
  %v1398 = vld [vmem:[%s1 + $0x12d8] sm:$0xff]
  %v1399 = vld [vmem:[%s1 + $0x12e0] sm:$0xff]
  %v1400 = vld [vmem:[%s1 + $0x12e8] sm:$0xff]
  %v1401 = vld [vmem:[%s1 + $0x12f0] sm:$0xff]
  %v1402 = vld [vmem:[%s1 + $0x12f8] sm:$0xff]
  %v1403 = vld [vmem:[%s1 + $0x1300] sm:$0xff]
  %v1404 = vld [vmem:[%s1 + $0x1308] sm:$0xff]
  %v1405 = vld [vmem:[%s1 + $0x1310] sm:$0xff]
  %v1406 = vld [vmem:[%s1 + $0x1318] sm:$0xff]
  %v1407 = vld [vmem:[%s1 + $0x1320] sm:$0xff]
  %v1408 = vld [vmem:[%s1 + $0x1328] sm:$0xff]
  %v1409 = vld [vmem:[%s1 + $0x1330] sm:$0xff]
  %v1410 = vld [vmem:[%s1 + $0x1338] sm:$0xff]
  %v1411 = vld [vmem:[%s1 + $0x1340] sm:$0xff]
  %v1412 = vld [vmem:[%s1 + $0x1348] sm:$0xff]
  %v1413 = vld [vmem:[%s1 + $0x1350] sm:$0xff]
  %v1414 = vld [vmem:[%s1 + $0x1358] sm:$0xff]
  %v1415 = vld [vmem:[%s1 + $0x1360] sm:$0xff]
  %v1416 = vld [vmem:[%s1 + $0x1368] sm:$0xff]
  %v1417 = vld [vmem:[%s1 + $0x1370] sm:$0xff]
  %v1418 = vld [vmem:[%s1 + $0x1378] sm:$0xff]
  %v1419 = vld [vmem:[%s1 + $0x1380] sm:$0xff]
  %v1420 = vld [vmem:[%s1 + $0x1388] sm:$0xff]
  %v1421 = vld [vmem:[%s1 + $0x1390] sm:$0xff]
  %v1422 = vld [vmem:[%s1 + $0x1398] sm:$0xff]
  %v1423 = vld [vmem:[%s1 + $0x13a0] sm:$0xff]
  %v1424 = vld [vmem:[%s1 + $0x13a8] sm:$0xff]
  %v1425 = vld [vmem:[%s1 + $0x13b0] sm:$0xff]
  %v1426 = vld [vmem:[%s1 + $0x13b8] sm:$0xff]
  %v1427 = vld [vmem:[%s1 + $0x13c0] sm:$0xff]
  %v1428 = vld [vmem:[%s1 + $0x13c8] sm:$0xff]
  %v1429 = vld [vmem:[%s1 + $0x13d0] sm:$0xff]
  %v1430 = vld [vmem:[%s1 + $0x13d8] sm:$0xff]
  %v1431 = vld [vmem:[%s1 + $0x13e0] sm:$0xff]
  %v1432 = vld [vmem:[%s1 + $0x13e8] sm:$0xff]
  %v1433 = vld [vmem:[%s1 + $0x13f0] sm:$0xff]
  %v1434 = vld [vmem:[%s1 + $0x13f8] sm:$0xff]
  %v1435 = vld [vmem:[%s1 + $0x1400] sm:$0xff]
  %v1436 = vld [vmem:[%s1 + $0x1408] sm:$0xff]
  %v1437 = vld [vmem:[%s1 + $0x1410] sm:$0xff]
  %v1438 = vld [vmem:[%s1 + $0x1418] sm:$0xff]
  %v1439 = vld [vmem:[%s1 + $0x1420] sm:$0xff]
  %v1440 = vld [vmem:[%s1 + $0x1428] sm:$0xff]
  %v1441 = vld [vmem:[%s1 + $0x1430] sm:$0xff]
  %v1442 = vld [vmem:[%s1 + $0x1438] sm:$0xff]
  %v1443 = vld [vmem:[%s1 + $0x1440] sm:$0xff]
  %v1444 = vld [vmem:[%s1 + $0x1448] sm:$0xff]
  %v1445 = vld [vmem:[%s1 + $0x1450] sm:$0xff]
  %v1446 = vld [vmem:[%s1 + $0x1458] sm:$0xff]
  %v1447 = vld [vmem:[%s1 + $0x1460] sm:$0xff]
  %v1448 = vld [vmem:[%s1 + $0x1468] sm:$0xff]
  %v1449 = vld [vmem:[%s1 + $0x1470] sm:$0xff]
  %v1450 = vld [vmem:[%s1 + $0x1478] sm:$0xff]
  %v1451 = vld [vmem:[%s1 + $0x1480] sm:$0xff]
  %v1452 = vld [vmem:[%s1 + $0x1488] sm:$0xff]
  %v1453 = vld [vmem:[%s1 + $0x1490] sm:$0xff]
  %v1454 = vld [vmem:[%s1 + $0x1498] sm:$0xff]
  %v1455 = vld [vmem:[%s1 + $0x14a0] sm:$0xff]
  %v1456 = vld [vmem:[%s1 + $0x14a8] sm:$0xff]
  %v1457 = vld [vmem:[%s1 + $0x14b0] sm:$0xff]
  %v1458 = vld [vmem:[%s1 + $0x14b8] sm:$0xff]
  %v1459 = vld [vmem:[%s1 + $0x14c0] sm:$0xff]
  %v1460 = vld [vmem:[%s1 + $0x14c8] sm:$0xff]
  %v1461 = vld [vmem:[%s1 + $0x14d0] sm:$0xff]
  %v1462 = vld [vmem:[%s1 + $0x14d8] sm:$0xff]
  %v1463 = vld [vmem:[%s1 + $0x14e0] sm:$0xff]
  %v1464 = vld [vmem:[%s1 + $0x14e8] sm:$0xff]
  %v1465 = vld [vmem:[%s1 + $0x14f0] sm:$0xff]
  %v1466 = vld [vmem:[%s1 + $0x14f8] sm:$0xff]
  %v1467 = vld [vmem:[%s1 + $0x1500] sm:$0xff]
  %v1468 = vld [vmem:[%s1 + $0x1508] sm:$0xff]
  %v1469 = vld [vmem:[%s1 + $0x1510] sm:$0xff]
  %v1470 = vld [vmem:[%s1 + $0x1518] sm:$0xff]
  %v1471 = vld [vmem:[%s1 + $0x1520] sm:$0xff]
  %v1472 = vld [vmem:[%s1 + $0x1528] sm:$0xff]
  %v1473 = vld [vmem:[%s1 + $0x1530] sm:$0xff]
  %v1474 = vld [vmem:[%s1 + $0x1538] sm:$0xff]
  %v1475 = vld [vmem:[%s1 + $0x1540] sm:$0xff]
  %v1476 = vld [vmem:[%s1 + $0x1548] sm:$0xff]
  %v1477 = vld [vmem:[%s1 + $0x1550] sm:$0xff]
  %v1478 = vld [vmem:[%s1 + $0x1558] sm:$0xff]
  %v1479 = vld [vmem:[%s1 + $0x1560] sm:$0xff]
  %v1480 = vld [vmem:[%s1 + $0x1568] sm:$0xff]
  %v1481 = vld [vmem:[%s1 + $0x1570] sm:$0xff]
  %v1482 = vld [vmem:[%s1 + $0x1578] sm:$0xff]
  %v1483 = vld [vmem:[%s1 + $0x1580] sm:$0xff]
  %v1484 = vld [vmem:[%s1 + $0x1588] sm:$0xff]
  %v1485 = vld [vmem:[%s1 + $0x1590] sm:$0xff]
  %v1486 = vld [vmem:[%s1 + $0x1598] sm:$0xff]
  %v1487 = vld [vmem:[%s1 + $0x15a0] sm:$0xff]
  %v1488 = vld [vmem:[%s1 + $0x15a8] sm:$0xff]
  %v1489 = vld [vmem:[%s1 + $0x15b0] sm:$0xff]
  %v1490 = vld [vmem:[%s1 + $0x15b8] sm:$0xff]
  %v1491 = vld [vmem:[%s1 + $0x15c0] sm:$0xff]
  %v1492 = vld [vmem:[%s1 + $0x15c8] sm:$0xff]
  %v1493 = vld [vmem:[%s1 + $0x15d0] sm:$0xff]
  %v1494 = vld [vmem:[%s1 + $0x15d8] sm:$0xff]
  %v1495 = vld [vmem:[%s1 + $0x15e0] sm:$0xff]
  %v1496 = vld [vmem:[%s1 + $0x15e8] sm:$0xff]
  %v1497 = vld [vmem:[%s1 + $0x15f0] sm:$0xff]
  %v1498 = vld [vmem:[%s1 + $0x15f8] sm:$0xff]
  %v1499 = vld [vmem:[%s1 + $0x1600] sm:$0xff]
  %v1500 = vld [vmem:[%s1 + $0x1608] sm:$0xff]
  %v1501 = vld [vmem:[%s1 + $0x1610] sm:$0xff]
  %v1502 = vld [vmem:[%s1 + $0x1618] sm:$0xff]
  %v1503 = vld [vmem:[%s1 + $0x1620] sm:$0xff]
  %v1504 = vld [vmem:[%s1 + $0x1628] sm:$0xff]
  %v1505 = vld [vmem:[%s1 + $0x1630] sm:$0xff]
  %v1506 = vld [vmem:[%s1 + $0x1638] sm:$0xff]
  %v1507 = vld [vmem:[%s1 + $0x1640] sm:$0xff]
  %v1508 = vld [vmem:[%s1 + $0x1648] sm:$0xff]
  %v1509 = vld [vmem:[%s1 + $0x1650] sm:$0xff]
  %v1510 = vld [vmem:[%s1 + $0x1658] sm:$0xff]
  %v1511 = vld [vmem:[%s1 + $0x1660] sm:$0xff]
  %v1512 = vld [vmem:[%s1 + $0x1668] sm:$0xff]
  %v1513 = vld [vmem:[%s1 + $0x1670] sm:$0xff]
  %v1514 = vld [vmem:[%s1 + $0x1678] sm:$0xff]
  %v1515 = vld [vmem:[%s1 + $0x1680] sm:$0xff]
  %v1516 = vld [vmem:[%s1 + $0x1688] sm:$0xff]
  %v1517 = vld [vmem:[%s1 + $0x1690] sm:$0xff]
  %v1518 = vld [vmem:[%s1 + $0x1698] sm:$0xff]
  %v1519 = vld [vmem:[%s1 + $0x16a0] sm:$0xff]
  %v1520 = vld [vmem:[%s1 + $0x16a8] sm:$0xff]
  %v1521 = vld [vmem:[%s1 + $0x16b0] sm:$0xff]
  %v1522 = vld [vmem:[%s1 + $0x16b8] sm:$0xff]
  %v1523 = vld [vmem:[%s1 + $0x16c0] sm:$0xff]
  %v1524 = vld [vmem:[%s1 + $0x16c8] sm:$0xff]
  %v1525 = vld [vmem:[%s1 + $0x16d0] sm:$0xff]
  %v1526 = vld [vmem:[%s1 + $0x16d8] sm:$0xff]
  %v1527 = vld [vmem:[%s1 + $0x16e0] sm:$0xff]
  %v1528 = vld [vmem:[%s1 + $0x16e8] sm:$0xff]
  %v1529 = vld [vmem:[%s1 + $0x16f0] sm:$0xff]
  %v1530 = vld [vmem:[%s1 + $0x16f8] sm:$0xff]
  %v1531 = vld [vmem:[%s1 + $0x1700] sm:$0xff]
  %v1532 = vld [vmem:[%s1 + $0x1708] sm:$0xff]
  %v1533 = vld [vmem:[%s1 + $0x1710] sm:$0xff]
  %v1534 = vld [vmem:[%s1 + $0x1718] sm:$0xff]
  %v1535 = vld [vmem:[%s1 + $0x1720] sm:$0xff]
  %v1536 = vld [vmem:[%s1 + $0x1728] sm:$0xff]
  %v1537 = vld [vmem:[%s1 + $0x1730] sm:$0xff]
  %v1538 = vld [vmem:[%s1 + $0x1738] sm:$0xff]
  %v1539 = vld [vmem:[%s1 + $0x1740] sm:$0xff]
  %v1540 = vld [vmem:[%s1 + $0x1748] sm:$0xff]
  %v1541 = vld [vmem:[%s1 + $0x1750] sm:$0xff]
  %v1542 = vld [vmem:[%s1 + $0x1758] sm:$0xff]
  %v1543 = vld [vmem:[%s1 + $0x1760] sm:$0xff]
  %v1544 = vld [vmem:[%s1 + $0x1768] sm:$0xff]
  %v1545 = vld [vmem:[%s1 + $0x1770] sm:$0xff]
  %v1546 = vld [vmem:[%s1 + $0x1778] sm:$0xff]
  %v1547 = vld [vmem:[%s1 + $0x1780] sm:$0xff]
  %v1548 = vld [vmem:[%s1 + $0x1788] sm:$0xff]
  %v1549 = vld [vmem:[%s1 + $0x1790] sm:$0xff]
  %v1550 = vld [vmem:[%s1 + $0x1798] sm:$0xff]
  %v1551 = vld [vmem:[%s1 + $0x17a0] sm:$0xff]
  %v1552 = vld [vmem:[%s1 + $0x17a8] sm:$0xff]
  %v1553 = vld [vmem:[%s1 + $0x17b0] sm:$0xff]
  %v1554 = vld [vmem:[%s1 + $0x17b8] sm:$0xff]
  %v1555 = vld [vmem:[%s1 + $0x17c0] sm:$0xff]
  %v1556 = vld [vmem:[%s1 + $0x17c8] sm:$0xff]
  %v1557 = vld [vmem:[%s1 + $0x17d0] sm:$0xff]
  %v1558 = vld [vmem:[%s1 + $0x17d8] sm:$0xff]
  %v1559 = vld [vmem:[%s1 + $0x17e0] sm:$0xff]
  %v1560 = vld [vmem:[%s1 + $0x17e8] sm:$0xff]
  %v1561 = vld [vmem:[%s1 + $0x17f0] sm:$0xff]
  %v1562 = vld [vmem:[%s1 + $0x17f8] sm:$0xff]
  %v1563 = vld [vmem:[%s1 + $0x1800] sm:$0xff]
  %v1564 = vld [vmem:[%s1 + $0x1808] sm:$0xff]
  %v1565 = vld [vmem:[%s1 + $0x1810] sm:$0xff]
  %v1566 = vld [vmem:[%s1 + $0x1818] sm:$0xff]
  %v1567 = vld [vmem:[%s1 + $0x1820] sm:$0xff]
  %v1568 = vld [vmem:[%s1 + $0x1828] sm:$0xff]
  %v1569 = vld [vmem:[%s1 + $0x1830] sm:$0xff]
  %v1570 = vld [vmem:[%s1 + $0x1838] sm:$0xff]
  %v1571 = vld [vmem:[%s1 + $0x1840] sm:$0xff]
  %v1572 = vld [vmem:[%s1 + $0x1848] sm:$0xff]
  %v1573 = vld [vmem:[%s1 + $0x1850] sm:$0xff]
  %v1574 = vld [vmem:[%s1 + $0x1858] sm:$0xff]
  %v1575 = vld [vmem:[%s1 + $0x1860] sm:$0xff]
  %v1576 = vld [vmem:[%s1 + $0x1868] sm:$0xff]
  %v1577 = vld [vmem:[%s1 + $0x1870] sm:$0xff]
  %v1578 = vld [vmem:[%s1 + $0x1878] sm:$0xff]
  %v1579 = vld [vmem:[%s1 + $0x1880] sm:$0xff]
  %v1580 = vld [vmem:[%s1 + $0x1888] sm:$0xff]
  %v1581 = vld [vmem:[%s1 + $0x1890] sm:$0xff]
  %v1582 = vld [vmem:[%s1 + $0x1898] sm:$0xff]
  %v1583 = vld [vmem:[%s1 + $0x18a0] sm:$0xff]
  %v1584 = vld [vmem:[%s1 + $0x18a8] sm:$0xff]
  %v1585 = vld [vmem:[%s1 + $0x18b0] sm:$0xff]
  %v1586 = vld [vmem:[%s1 + $0x18b8] sm:$0xff]
  %v1587 = vld [vmem:[%s1 + $0x18c0] sm:$0xff]
  %v1588 = vld [vmem:[%s1 + $0x18c8] sm:$0xff]
  %v1589 = vld [vmem:[%s1 + $0x18d0] sm:$0xff]
  %v1590 = vld [vmem:[%s1 + $0x18d8] sm:$0xff]
  %v1591 = vld [vmem:[%s1 + $0x18e0] sm:$0xff]
  %v1592 = vld [vmem:[%s1 + $0x18e8] sm:$0xff]
  %v1593 = vld [vmem:[%s1 + $0x18f0] sm:$0xff]
  %v1594 = vld [vmem:[%s1 + $0x18f8] sm:$0xff]
  %v1595 = vld [vmem:[%s1 + $0x1900] sm:$0xff]
  %v1596 = vld [vmem:[%s1 + $0x1908] sm:$0xff]
  %v1597 = vld [vmem:[%s1 + $0x1910] sm:$0xff]
  %v1598 = vld [vmem:[%s1 + $0x1918] sm:$0xff]
  %v1599 = vld [vmem:[%s1 + $0x1920] sm:$0xff]
  %v1600 = vld [vmem:[%s1 + $0x1928] sm:$0xff]
  %v1601 = vld [vmem:[%s1 + $0x1930] sm:$0xff]
  %v1602 = vld [vmem:[%s1 + $0x1938] sm:$0xff]
  %v1603 = vld [vmem:[%s1 + $0x1940] sm:$0xff]
  %v1604 = vld [vmem:[%s1 + $0x1948] sm:$0xff]
  %v1605 = vld [vmem:[%s1 + $0x1950] sm:$0xff]
  %v1606 = vld [vmem:[%s1 + $0x1958] sm:$0xff]
  %v1607 = vld [vmem:[%s1 + $0x1960] sm:$0xff]
  %v1608 = vld [vmem:[%s1 + $0x1968] sm:$0xff]
  %v1609 = vld [vmem:[%s1 + $0x1970] sm:$0xff]
  %v1610 = vld [vmem:[%s1 + $0x1978] sm:$0xff]
  %v1611 = vld [vmem:[%s1 + $0x1980] sm:$0xff]
  %v1612 = vld [vmem:[%s1 + $0x1988] sm:$0xff]
  %v1613 = vld [vmem:[%s1 + $0x1990] sm:$0xff]
  %v1614 = vld [vmem:[%s1 + $0x1998] sm:$0xff]
  %v1615 = vld [vmem:[%s1 + $0x19a0] sm:$0xff]
  %v1616 = vld [vmem:[%s1 + $0x19a8] sm:$0xff]
  %v1617 = vld [vmem:[%s1 + $0x19b0] sm:$0xff]
  %v1618 = vld [vmem:[%s1 + $0x19b8] sm:$0xff]
  %v1619 = vld [vmem:[%s1 + $0x19c0] sm:$0xff]
  %v1620 = vld [vmem:[%s1 + $0x19c8] sm:$0xff]
  %v1621 = vld [vmem:[%s1 + $0x19d0] sm:$0xff]
  %v1622 = vld [vmem:[%s1 + $0x19d8] sm:$0xff]
  %v1623 = vld [vmem:[%s1 + $0x19e0] sm:$0xff]
  %v1624 = vld [vmem:[%s1 + $0x19e8] sm:$0xff]
  %v1625 = vld [vmem:[%s1 + $0x19f0] sm:$0xff]
  %v1626 = vld [vmem:[%s1 + $0x19f8] sm:$0xff]
  %v1627 = vld [vmem:[%s1 + $0x1a00] sm:$0xff]
  %v1628 = vld [vmem:[%s1 + $0x1a08] sm:$0xff]
  %v1629 = vld [vmem:[%s1 + $0x1a10] sm:$0xff]
  %v1630 = vld [vmem:[%s1 + $0x1a18] sm:$0xff]
  %v1631 = vld [vmem:[%s1 + $0x1a20] sm:$0xff]
  %v1632 = vld [vmem:[%s1 + $0x1a28] sm:$0xff]
  %v1633 = vld [vmem:[%s1 + $0x1a30] sm:$0xff]
  %v1634 = vld [vmem:[%s1 + $0x1a38] sm:$0xff]
  %v1635 = vld [vmem:[%s1 + $0x1a40] sm:$0xff]
  %v1636 = vld [vmem:[%s1 + $0x1a48] sm:$0xff]
  %v1637 = vld [vmem:[%s1 + $0x1a50] sm:$0xff]
  %v1638 = vld [vmem:[%s1 + $0x1a58] sm:$0xff]
  %v1639 = vld [vmem:[%s1 + $0x1a60] sm:$0xff]
  %v1640 = vld [vmem:[%s1 + $0x1a68] sm:$0xff]
  %v1641 = vld [vmem:[%s1 + $0x1a70] sm:$0xff]
  %v1642 = vld [vmem:[%s1 + $0x1a78] sm:$0xff]
  %v1643 = vld [vmem:[%s1 + $0x1a80] sm:$0xff]
  %v1644 = vld [vmem:[%s1 + $0x1a88] sm:$0xff]
  %v1645 = vld [vmem:[%s1 + $0x1a90] sm:$0xff]
  %v1646 = vld [vmem:[%s1 + $0x1a98] sm:$0xff]
  %v1647 = vld [vmem:[%s1 + $0x1aa0] sm:$0xff]
  %v1648 = vld [vmem:[%s1 + $0x1aa8] sm:$0xff]
  %v1649 = vld [vmem:[%s1 + $0x1ab0] sm:$0xff]
  %v1650 = vld [vmem:[%s1 + $0x1ab8] sm:$0xff]
  %v1651 = vld [vmem:[%s1 + $0x1ac0] sm:$0xff]
  %v1652 = vld [vmem:[%s1 + $0x1ac8] sm:$0xff]
  %v1653 = vld [vmem:[%s1 + $0x1ad0] sm:$0xff]
  %v1654 = vld [vmem:[%s1 + $0x1ad8] sm:$0xff]
  %v1655 = vld [vmem:[%s1 + $0x1ae0] sm:$0xff]
  %v1656 = vld [vmem:[%s1 + $0x1ae8] sm:$0xff]
  %v1657 = vld [vmem:[%s1 + $0x1af0] sm:$0xff]
  %v1658 = vld [vmem:[%s1 + $0x1af8] sm:$0xff]
  %v1659 = vld [vmem:[%s1 + $0x1b00] sm:$0xff]
  %v1660 = vld [vmem:[%s1 + $0x1b08] sm:$0xff]
  %v1661 = vld [vmem:[%s1 + $0x1b10] sm:$0xff]
  %v1662 = vld [vmem:[%s1 + $0x1b18] sm:$0xff]
  %v1663 = vld [vmem:[%s1 + $0x1b20] sm:$0xff]
  %v1664 = vld [vmem:[%s1 + $0x1b28] sm:$0xff]
  %v1665 = vld [vmem:[%s1 + $0x1b30] sm:$0xff]
  %v1666 = vld [vmem:[%s1 + $0x1b38] sm:$0xff]
  %v1667 = vld [vmem:[%s1 + $0x1b40] sm:$0xff]
  %v1668 = vld [vmem:[%s1 + $0x1b48] sm:$0xff]
  %v1669 = vld [vmem:[%s1 + $0x1b50] sm:$0xff]
  %v1670 = vld [vmem:[%s1 + $0x1b58] sm:$0xff]
  %v1671 = vld [vmem:[%s1 + $0x1b60] sm:$0xff]
  %v1672 = vld [vmem:[%s1 + $0x1b68] sm:$0xff]
  %v1673 = vld [vmem:[%s1 + $0x1b70] sm:$0xff]
  %v1674 = vld [vmem:[%s1 + $0x1b78] sm:$0xff]
  %v1675 = vld [vmem:[%s1 + $0x1b80] sm:$0xff]
  %v1676 = vld [vmem:[%s1 + $0x1b88] sm:$0xff]
  %v1677 = vld [vmem:[%s1 + $0x1b90] sm:$0xff]
  %v1678 = vld [vmem:[%s1 + $0x1b98] sm:$0xff]
  %v1679 = vld [vmem:[%s1 + $0x1ba0] sm:$0xff]
  %v1680 = vld [vmem:[%s1 + $0x1ba8] sm:$0xff]
  %v1681 = vld [vmem:[%s1 + $0x1bb0] sm:$0xff]
  %v1682 = vld [vmem:[%s1 + $0x1bb8] sm:$0xff]
  %v1683 = vld [vmem:[%s1 + $0x1bc0] sm:$0xff]
  %v1684 = vld [vmem:[%s1 + $0x1bc8] sm:$0xff]
  %v1685 = vld [vmem:[%s1 + $0x1bd0] sm:$0xff]
  %v1686 = vld [vmem:[%s1 + $0x1bd8] sm:$0xff]
  %v1687 = vld [vmem:[%s1 + $0x1be0] sm:$0xff]
  %v1688 = vld [vmem:[%s1 + $0x1be8] sm:$0xff]
  %v1689 = vld [vmem:[%s1 + $0x1bf0] sm:$0xff]
  %v1690 = vld [vmem:[%s1 + $0x1bf8] sm:$0xff]
  %v1691 = vld [vmem:[%s1 + $0x1c00] sm:$0xff]
  %v1692 = vld [vmem:[%s1 + $0x1c08] sm:$0xff]
  %v1693 = vld [vmem:[%s1 + $0x1c10] sm:$0xff]
  %v1694 = vld [vmem:[%s1 + $0x1c18] sm:$0xff]
  %v1695 = vld [vmem:[%s1 + $0x1c20] sm:$0xff]
  %v1696 = vld [vmem:[%s1 + $0x1c28] sm:$0xff]
  %v1697 = vld [vmem:[%s1 + $0x1c30] sm:$0xff]
  %v1698 = vld [vmem:[%s1 + $0x1c38] sm:$0xff]
  %v1699 = vld [vmem:[%s1 + $0x1c40] sm:$0xff]
  %v1700 = vld [vmem:[%s1 + $0x1c48] sm:$0xff]
  %v1701 = vld [vmem:[%s1 + $0x1c50] sm:$0xff]
  %v1702 = vld [vmem:[%s1 + $0x1c58] sm:$0xff]
  %v1703 = vld [vmem:[%s1 + $0x1c60] sm:$0xff]
  %v1704 = vld [vmem:[%s1 + $0x1c68] sm:$0xff]
  %v1705 = vld [vmem:[%s1 + $0x1c70] sm:$0xff]
  %v1706 = vld [vmem:[%s1 + $0x1c78] sm:$0xff]
  %v1707 = vld [vmem:[%s1 + $0x1c80] sm:$0xff]
  %v1708 = vld [vmem:[%s1 + $0x1c88] sm:$0xff]
  %v1709 = vld [vmem:[%s1 + $0x1c90] sm:$0xff]
  %v1710 = vld [vmem:[%s1 + $0x1c98] sm:$0xff]
  %v1711 = vld [vmem:[%s1 + $0x1ca0] sm:$0xff]
  %v1712 = vld [vmem:[%s1 + $0x1ca8] sm:$0xff]
  %v1713 = vld [vmem:[%s1 + $0x1cb0] sm:$0xff]
  %v1714 = vld [vmem:[%s1 + $0x1cb8] sm:$0xff]
  %v1715 = vld [vmem:[%s1 + $0x1cc0] sm:$0xff]
  %v1716 = vld [vmem:[%s1 + $0x1cc8] sm:$0xff]
  %v1717 = vld [vmem:[%s1 + $0x1cd0] sm:$0xff]
  %v1718 = vld [vmem:[%s1 + $0x1cd8] sm:$0xff]
  %v1719 = vld [vmem:[%s1 + $0x1ce0] sm:$0xff]
  %v1720 = vld [vmem:[%s1 + $0x1ce8] sm:$0xff]
  %v1721 = vld [vmem:[%s1 + $0x1cf0] sm:$0xff]
  %v1722 = vld [vmem:[%s1 + $0x1cf8] sm:$0xff]
  %v1723 = vld [vmem:[%s1 + $0x1d00] sm:$0xff]
  %v1724 = vld [vmem:[%s1 + $0x1d08] sm:$0xff]
  %v1725 = vld [vmem:[%s1 + $0x1d10] sm:$0xff]
  %v1726 = vld [vmem:[%s1 + $0x1d18] sm:$0xff]
  %v1727 = vld [vmem:[%s1 + $0x1d20] sm:$0xff]
  %v1728 = vld [vmem:[%s1 + $0x1d28] sm:$0xff]
  %v1729 = vld [vmem:[%s1 + $0x1d30] sm:$0xff]
  %v1730 = vld [vmem:[%s1 + $0x1d38] sm:$0xff]
  %v1731 = vld [vmem:[%s1 + $0x1d40] sm:$0xff]
  %v1732 = vld [vmem:[%s1 + $0x1d48] sm:$0xff]
  %v1733 = vld [vmem:[%s1 + $0x1d50] sm:$0xff]
  %v1734 = vld [vmem:[%s1 + $0x1d58] sm:$0xff]
  %v1735 = vld [vmem:[%s1 + $0x1d60] sm:$0xff]
  %v1736 = vld [vmem:[%s1 + $0x1d68] sm:$0xff]
  %v1737 = vld [vmem:[%s1 + $0x1d70] sm:$0xff]
  %v1738 = vld [vmem:[%s1 + $0x1d78] sm:$0xff]
  %v1739 = vld [vmem:[%s1 + $0x1d80] sm:$0xff]
  %v1740 = vld [vmem:[%s1 + $0x1d88] sm:$0xff]
  %v1741 = vld [vmem:[%s1 + $0x1d90] sm:$0xff]
  %v1742 = vld [vmem:[%s1 + $0x1d98] sm:$0xff]
  %v1743 = vld [vmem:[%s1 + $0x1da0] sm:$0xff]
  %v1744 = vld [vmem:[%s1 + $0x1da8] sm:$0xff]
  %v1745 = vld [vmem:[%s1 + $0x1db0] sm:$0xff]
  %v1746 = vld [vmem:[%s1 + $0x1db8] sm:$0xff]
  %v1747 = vld [vmem:[%s1 + $0x1dc0] sm:$0xff]
  %v1748 = vld [vmem:[%s1 + $0x1dc8] sm:$0xff]
  %v1749 = vld [vmem:[%s1 + $0x1dd0] sm:$0xff]
  %v1750 = vld [vmem:[%s1 + $0x1dd8] sm:$0xff]
  %v1751 = vld [vmem:[%s1 + $0x1de0] sm:$0xff]
  %v1752 = vld [vmem:[%s1 + $0x1de8] sm:$0xff]
  %v1753 = vld [vmem:[%s1 + $0x1df0] sm:$0xff]
  %v1754 = vld [vmem:[%s1 + $0x1df8] sm:$0xff]
  %v1755 = vld [vmem:[%s1 + $0x1e00] sm:$0xff]
  %v1756 = vld [vmem:[%s1 + $0x1e08] sm:$0xff]
  %v1757 = vld [vmem:[%s1 + $0x1e10] sm:$0xff]
  %v1758 = vld [vmem:[%s1 + $0x1e18] sm:$0xff]
  %v1759 = vld [vmem:[%s1 + $0x1e20] sm:$0xff]
  %v1760 = vld [vmem:[%s1 + $0x1e28] sm:$0xff]
  %v1761 = vld [vmem:[%s1 + $0x1e30] sm:$0xff]
  %v1762 = vld [vmem:[%s1 + $0x1e38] sm:$0xff]
  %v1763 = vld [vmem:[%s1 + $0x1e40] sm:$0xff]
  %v1764 = vld [vmem:[%s1 + $0x1e48] sm:$0xff]
  %v1765 = vld [vmem:[%s1 + $0x1e50] sm:$0xff]
  %v1766 = vld [vmem:[%s1 + $0x1e58] sm:$0xff]
  %v1767 = vld [vmem:[%s1 + $0x1e60] sm:$0xff]
  %v1768 = vld [vmem:[%s1 + $0x1e68] sm:$0xff]
  %v1769 = vld [vmem:[%s1 + $0x1e70] sm:$0xff]
  %v1770 = vld [vmem:[%s1 + $0x1e78] sm:$0xff]
  %v1771 = vld [vmem:[%s1 + $0x1e80] sm:$0xff]
  %v1772 = vld [vmem:[%s1 + $0x1e88] sm:$0xff]
  %v1773 = vld [vmem:[%s1 + $0x1e90] sm:$0xff]
  %v1774 = vld [vmem:[%s1 + $0x1e98] sm:$0xff]
  %v1775 = vld [vmem:[%s1 + $0x1ea0] sm:$0xff]
  %v1776 = vld [vmem:[%s1 + $0x1ea8] sm:$0xff]
  %v1777 = vld [vmem:[%s1 + $0x1eb0] sm:$0xff]
  %v1778 = vld [vmem:[%s1 + $0x1eb8] sm:$0xff]
  %v1779 = vld [vmem:[%s1 + $0x1ec0] sm:$0xff]
  %v1780 = vld [vmem:[%s1 + $0x1ec8] sm:$0xff]
  %v1781 = vld [vmem:[%s1 + $0x1ed0] sm:$0xff]
  %v1782 = vld [vmem:[%s1 + $0x1ed8] sm:$0xff]
  %v1783 = vld [vmem:[%s1 + $0x1ee0] sm:$0xff]
  %v1784 = vld [vmem:[%s1 + $0x1ee8] sm:$0xff]
  %v1785 = vld [vmem:[%s1 + $0x1ef0] sm:$0xff]
  %v1786 = vld [vmem:[%s1 + $0x1ef8] sm:$0xff]
  %v1787 = vld [vmem:[%s1 + $0x1f00] sm:$0xff]
  %v1788 = vld [vmem:[%s1 + $0x1f08] sm:$0xff]
  %v1789 = vld [vmem:[%s1 + $0x1f10] sm:$0xff]
  %v1790 = vld [vmem:[%s1 + $0x1f18] sm:$0xff]
  %v1791 = vld [vmem:[%s1 + $0x1f20] sm:$0xff]
  %v1792 = vld [vmem:[%s1 + $0x1f28] sm:$0xff]
  %v1793 = vld [vmem:[%s1 + $0x1f30] sm:$0xff]
  %v1794 = vld [vmem:[%s1 + $0x1f38] sm:$0xff]
  %v1795 = vld [vmem:[%s1 + $0x1f40] sm:$0xff]
  %v1796 = vld [vmem:[%s1 + $0x1f48] sm:$0xff]
  %v1797 = vld [vmem:[%s1 + $0x1f50] sm:$0xff]
  %v1798 = vld [vmem:[%s1 + $0x1f58] sm:$0xff]
  %v1799 = vld [vmem:[%s1 + $0x1f60] sm:$0xff]
  %v1800 = vld [vmem:[%s1 + $0x1f68] sm:$0xff]
  %v1801 = vld [vmem:[%s1 + $0x1f70] sm:$0xff]
  %v1802 = vld [vmem:[%s1 + $0x1f78] sm:$0xff]
  %v1803 = vld [vmem:[%s1 + $0x1f80] sm:$0xff]
  %v1804 = vld [vmem:[%s1 + $0x1f88] sm:$0xff]
  %v1805 = vld [vmem:[%s1 + $0x1f90] sm:$0xff]
  %v1806 = vld [vmem:[%s1 + $0x1f98] sm:$0xff]
  %v1807 = vld [vmem:[%s1 + $0x1fa0] sm:$0xff]
  %v1808 = vld [vmem:[%s1 + $0x1fa8] sm:$0xff]
  %v1809 = vld [vmem:[%s1 + $0x1fb0] sm:$0xff]
  %v1810 = vld [vmem:[%s1 + $0x1fb8] sm:$0xff]
  %v1811 = vld [vmem:[%s1 + $0x1fc0] sm:$0xff]
  %v1812 = vld [vmem:[%s1 + $0x1fc8] sm:$0xff]
  %v1813 = vld [vmem:[%s1 + $0x1fd0] sm:$0xff]
  %v1814 = vld [vmem:[%s1 + $0x1fd8] sm:$0xff]
  %v1815 = vld [vmem:[%s1 + $0x1fe0] sm:$0xff]
  %v1816 = vld [vmem:[%s1 + $0x1fe8] sm:$0xff]
  %v1817 = vld [vmem:[%s1 + $0x1ff0] sm:$0xff]
  %v1818 = vld [vmem:[%s1 + $0x1ff8] sm:$0xff]
  %v1819 = vld [vmem:[%s2] sm:$0xf]
  %v1821 = vlaneseq
  %v1822 = vshrl.u32 %v1821, 7
  %v1823 = vsub.s32 0, %v1822
  %v1824 = vrot.slane %v1819, %v1823
  %v1825 = vlaneseq
  %v1826 = vshrl.u32 %v1825, 7
  %v1827 = vsub.s32 1, %v1826
  %v1828 = vrot.slane %v1819, %v1827
  %v1829 = vlaneseq
  %v1830 = vshrl.u32 %v1829, 7
  %v1831 = vsub.s32 2, %v1830
  %v1832 = vrot.slane %v1819, %v1831
  %v1833 = vlaneseq
  %v1834 = vshrl.u32 %v1833, 7
  %v1835 = vsub.s32 3, %v1834
  %v1836 = vrot.slane %v1819, %v1835
  %v2865 = vunpack.c.l.b16 %v795
  %v2866 = vunpack.c.h.b16 %v795
  %v2867 = vunpack.c.l.b16 %v796
  %v2868 = vunpack.c.h.b16 %v796
  %v2869 = vunpack.c.l.b16 %v797
  %v2870 = vunpack.c.h.b16 %v797
  %v2871 = vunpack.c.l.b16 %v798
  %v2872 = vunpack.c.h.b16 %v798
  %v2873 = vunpack.c.l.b16 %v799
  %v2874 = vunpack.c.h.b16 %v799
  %v2875 = vunpack.c.l.b16 %v800
  %v2876 = vunpack.c.h.b16 %v800
  %v2877 = vunpack.c.l.b16 %v801
  %v2878 = vunpack.c.h.b16 %v801
  %v2879 = vunpack.c.l.b16 %v802
  %v2880 = vunpack.c.h.b16 %v802
  %v2881 = vunpack.c.l.b16 %v803
  %v2882 = vunpack.c.h.b16 %v803
  %v2883 = vunpack.c.l.b16 %v804
  %v2884 = vunpack.c.h.b16 %v804
  %v2885 = vunpack.c.l.b16 %v805
  %v2886 = vunpack.c.h.b16 %v805
  %v2887 = vunpack.c.l.b16 %v806
  %v2888 = vunpack.c.h.b16 %v806
  %v2889 = vunpack.c.l.b16 %v807
  %v2890 = vunpack.c.h.b16 %v807
  %v2891 = vunpack.c.l.b16 %v808
  %v2892 = vunpack.c.h.b16 %v808
  %v2893 = vunpack.c.l.b16 %v809
  %v2894 = vunpack.c.h.b16 %v809
  %v2895 = vunpack.c.l.b16 %v810
  %v2896 = vunpack.c.h.b16 %v810
  %v2897 = vunpack.c.l.b16 %v811
  %v2898 = vunpack.c.h.b16 %v811
  %v2899 = vunpack.c.l.b16 %v812
  %v2900 = vunpack.c.h.b16 %v812
  %v2901 = vunpack.c.l.b16 %v813
  %v2902 = vunpack.c.h.b16 %v813
  %v2903 = vunpack.c.l.b16 %v814
  %v2904 = vunpack.c.h.b16 %v814
  %v2905 = vunpack.c.l.b16 %v815
  %v2906 = vunpack.c.h.b16 %v815
  %v2907 = vunpack.c.l.b16 %v816
  %v2908 = vunpack.c.h.b16 %v816
  %v2909 = vunpack.c.l.b16 %v817
  %v2910 = vunpack.c.h.b16 %v817
  %v2911 = vunpack.c.l.b16 %v818
  %v2912 = vunpack.c.h.b16 %v818
  %v2913 = vunpack.c.l.b16 %v819
  %v2914 = vunpack.c.h.b16 %v819
  %v2915 = vunpack.c.l.b16 %v820
  %v2916 = vunpack.c.h.b16 %v820
  %v2917 = vunpack.c.l.b16 %v821
  %v2918 = vunpack.c.h.b16 %v821
  %v2919 = vunpack.c.l.b16 %v822
  %v2920 = vunpack.c.h.b16 %v822
  %v2921 = vunpack.c.l.b16 %v823
  %v2922 = vunpack.c.h.b16 %v823
  %v2923 = vunpack.c.l.b16 %v824
  %v2924 = vunpack.c.h.b16 %v824
  %v2925 = vunpack.c.l.b16 %v825
  %v2926 = vunpack.c.h.b16 %v825
  %v2927 = vunpack.c.l.b16 %v826
  %v2928 = vunpack.c.h.b16 %v826
  %v2929 = vunpack.c.l.b16 %v827
  %v2930 = vunpack.c.h.b16 %v827
  %v2931 = vunpack.c.l.b16 %v828
  %v2932 = vunpack.c.h.b16 %v828
  %v2933 = vunpack.c.l.b16 %v829
  %v2934 = vunpack.c.h.b16 %v829
  %v2935 = vunpack.c.l.b16 %v830
  %v2936 = vunpack.c.h.b16 %v830
  %v2937 = vunpack.c.l.b16 %v831
  %v2938 = vunpack.c.h.b16 %v831
  %v2939 = vunpack.c.l.b16 %v832
  %v2940 = vunpack.c.h.b16 %v832
  %v2941 = vunpack.c.l.b16 %v833
  %v2942 = vunpack.c.h.b16 %v833
  %v2943 = vunpack.c.l.b16 %v834
  %v2944 = vunpack.c.h.b16 %v834
  %v2945 = vunpack.c.l.b16 %v835
  %v2946 = vunpack.c.h.b16 %v835
  %v2947 = vunpack.c.l.b16 %v836
  %v2948 = vunpack.c.h.b16 %v836
  %v2949 = vunpack.c.l.b16 %v837
  %v2950 = vunpack.c.h.b16 %v837
  %v2951 = vunpack.c.l.b16 %v838
  %v2952 = vunpack.c.h.b16 %v838
  %v2953 = vunpack.c.l.b16 %v839
  %v2954 = vunpack.c.h.b16 %v839
  %v2955 = vunpack.c.l.b16 %v840
  %v2956 = vunpack.c.h.b16 %v840
  %v2957 = vunpack.c.l.b16 %v841
  %v2958 = vunpack.c.h.b16 %v841
  %v2959 = vunpack.c.l.b16 %v842
  %v2960 = vunpack.c.h.b16 %v842
  %v2961 = vunpack.c.l.b16 %v843
  %v2962 = vunpack.c.h.b16 %v843
  %v2963 = vunpack.c.l.b16 %v844
  %v2964 = vunpack.c.h.b16 %v844
  %v2965 = vunpack.c.l.b16 %v845
  %v2966 = vunpack.c.h.b16 %v845
  %v2967 = vunpack.c.l.b16 %v846
  %v2968 = vunpack.c.h.b16 %v846
  %v2969 = vunpack.c.l.b16 %v847
  %v2970 = vunpack.c.h.b16 %v847
  %v2971 = vunpack.c.l.b16 %v848
  %v2972 = vunpack.c.h.b16 %v848
  %v2973 = vunpack.c.l.b16 %v849
  %v2974 = vunpack.c.h.b16 %v849
  %v2975 = vunpack.c.l.b16 %v850
  %v2976 = vunpack.c.h.b16 %v850
  %v2977 = vunpack.c.l.b16 %v851
  %v2978 = vunpack.c.h.b16 %v851
  %v2979 = vunpack.c.l.b16 %v852
  %v2980 = vunpack.c.h.b16 %v852
  %v2981 = vunpack.c.l.b16 %v853
  %v2982 = vunpack.c.h.b16 %v853
  %v2983 = vunpack.c.l.b16 %v854
  %v2984 = vunpack.c.h.b16 %v854
  %v2985 = vunpack.c.l.b16 %v855
  %v2986 = vunpack.c.h.b16 %v855
  %v2987 = vunpack.c.l.b16 %v856
  %v2988 = vunpack.c.h.b16 %v856
  %v2989 = vunpack.c.l.b16 %v857
  %v2990 = vunpack.c.h.b16 %v857
  %v2991 = vunpack.c.l.b16 %v858
  %v2992 = vunpack.c.h.b16 %v858
  %v2993 = vunpack.c.l.b16 %v859
  %v2994 = vunpack.c.h.b16 %v859
  %v2995 = vunpack.c.l.b16 %v860
  %v2996 = vunpack.c.h.b16 %v860
  %v2997 = vunpack.c.l.b16 %v861
  %v2998 = vunpack.c.h.b16 %v861
  %v2999 = vunpack.c.l.b16 %v862
  %v3000 = vunpack.c.h.b16 %v862
  %v3001 = vunpack.c.l.b16 %v863
  %v3002 = vunpack.c.h.b16 %v863
  %v3003 = vunpack.c.l.b16 %v864
  %v3004 = vunpack.c.h.b16 %v864
  %v3005 = vunpack.c.l.b16 %v865
  %v3006 = vunpack.c.h.b16 %v865
  %v3007 = vunpack.c.l.b16 %v866
  %v3008 = vunpack.c.h.b16 %v866
  %v3009 = vunpack.c.l.b16 %v867
  %v3010 = vunpack.c.h.b16 %v867
  %v3011 = vunpack.c.l.b16 %v868
  %v3012 = vunpack.c.h.b16 %v868
  %v3013 = vunpack.c.l.b16 %v869
  %v3014 = vunpack.c.h.b16 %v869
  %v3015 = vunpack.c.l.b16 %v870
  %v3016 = vunpack.c.h.b16 %v870
  %v3017 = vunpack.c.l.b16 %v871
  %v3018 = vunpack.c.h.b16 %v871
  %v3019 = vunpack.c.l.b16 %v872
  %v3020 = vunpack.c.h.b16 %v872
  %v3021 = vunpack.c.l.b16 %v873
  %v3022 = vunpack.c.h.b16 %v873
  %v3023 = vunpack.c.l.b16 %v874
  %v3024 = vunpack.c.h.b16 %v874
  %v3025 = vunpack.c.l.b16 %v875
  %v3026 = vunpack.c.h.b16 %v875
  %v3027 = vunpack.c.l.b16 %v876
  %v3028 = vunpack.c.h.b16 %v876
  %v3029 = vunpack.c.l.b16 %v877
  %v3030 = vunpack.c.h.b16 %v877
  %v3031 = vunpack.c.l.b16 %v878
  %v3032 = vunpack.c.h.b16 %v878
  %v3033 = vunpack.c.l.b16 %v879
  %v3034 = vunpack.c.h.b16 %v879
  %v3035 = vunpack.c.l.b16 %v880
  %v3036 = vunpack.c.h.b16 %v880
  %v3037 = vunpack.c.l.b16 %v881
  %v3038 = vunpack.c.h.b16 %v881
  %v3039 = vunpack.c.l.b16 %v882
  %v3040 = vunpack.c.h.b16 %v882
  %v3041 = vunpack.c.l.b16 %v883
  %v3042 = vunpack.c.h.b16 %v883
  %v3043 = vunpack.c.l.b16 %v884
  %v3044 = vunpack.c.h.b16 %v884
  %v3045 = vunpack.c.l.b16 %v885
  %v3046 = vunpack.c.h.b16 %v885
  %v3047 = vunpack.c.l.b16 %v886
  %v3048 = vunpack.c.h.b16 %v886
  %v3049 = vunpack.c.l.b16 %v887
  %v3050 = vunpack.c.h.b16 %v887
  %v3051 = vunpack.c.l.b16 %v888
  %v3052 = vunpack.c.h.b16 %v888
  %v3053 = vunpack.c.l.b16 %v889
  %v3054 = vunpack.c.h.b16 %v889
  %v3055 = vunpack.c.l.b16 %v890
  %v3056 = vunpack.c.h.b16 %v890
  %v3057 = vunpack.c.l.b16 %v891
  %v3058 = vunpack.c.h.b16 %v891
  %v3059 = vunpack.c.l.b16 %v892
  %v3060 = vunpack.c.h.b16 %v892
  %v3061 = vunpack.c.l.b16 %v893
  %v3062 = vunpack.c.h.b16 %v893
  %v3063 = vunpack.c.l.b16 %v894
  %v3064 = vunpack.c.h.b16 %v894
  %v3065 = vunpack.c.l.b16 %v895
  %v3066 = vunpack.c.h.b16 %v895
  %v3067 = vunpack.c.l.b16 %v896
  %v3068 = vunpack.c.h.b16 %v896
  %v3069 = vunpack.c.l.b16 %v897
  %v3070 = vunpack.c.h.b16 %v897
  %v3071 = vunpack.c.l.b16 %v898
  %v3072 = vunpack.c.h.b16 %v898
  %v3073 = vunpack.c.l.b16 %v899
  %v3074 = vunpack.c.h.b16 %v899
  %v3075 = vunpack.c.l.b16 %v900
  %v3076 = vunpack.c.h.b16 %v900
  %v3077 = vunpack.c.l.b16 %v901
  %v3078 = vunpack.c.h.b16 %v901
  %v3079 = vunpack.c.l.b16 %v902
  %v3080 = vunpack.c.h.b16 %v902
  %v3081 = vunpack.c.l.b16 %v903
  %v3082 = vunpack.c.h.b16 %v903
  %v3083 = vunpack.c.l.b16 %v904
  %v3084 = vunpack.c.h.b16 %v904
  %v3085 = vunpack.c.l.b16 %v905
  %v3086 = vunpack.c.h.b16 %v905
  %v3087 = vunpack.c.l.b16 %v906
  %v3088 = vunpack.c.h.b16 %v906
  %v3089 = vunpack.c.l.b16 %v907
  %v3090 = vunpack.c.h.b16 %v907
  %v3091 = vunpack.c.l.b16 %v908
  %v3092 = vunpack.c.h.b16 %v908
  %v3093 = vunpack.c.l.b16 %v909
  %v3094 = vunpack.c.h.b16 %v909
  %v3095 = vunpack.c.l.b16 %v910
  %v3096 = vunpack.c.h.b16 %v910
  %v3097 = vunpack.c.l.b16 %v911
  %v3098 = vunpack.c.h.b16 %v911
  %v3099 = vunpack.c.l.b16 %v912
  %v3100 = vunpack.c.h.b16 %v912
  %v3101 = vunpack.c.l.b16 %v913
  %v3102 = vunpack.c.h.b16 %v913
  %v3103 = vunpack.c.l.b16 %v914
  %v3104 = vunpack.c.h.b16 %v914
  %v3105 = vunpack.c.l.b16 %v915
  %v3106 = vunpack.c.h.b16 %v915
  %v3107 = vunpack.c.l.b16 %v916
  %v3108 = vunpack.c.h.b16 %v916
  %v3109 = vunpack.c.l.b16 %v917
  %v3110 = vunpack.c.h.b16 %v917
  %v3111 = vunpack.c.l.b16 %v918
  %v3112 = vunpack.c.h.b16 %v918
  %v3113 = vunpack.c.l.b16 %v919
  %v3114 = vunpack.c.h.b16 %v919
  %v3115 = vunpack.c.l.b16 %v920
  %v3116 = vunpack.c.h.b16 %v920
  %v3117 = vunpack.c.l.b16 %v921
  %v3118 = vunpack.c.h.b16 %v921
  %v3119 = vunpack.c.l.b16 %v922
  %v3120 = vunpack.c.h.b16 %v922
  %v3121 = vunpack.c.l.b16 %v923
  %v3122 = vunpack.c.h.b16 %v923
  %v3123 = vunpack.c.l.b16 %v924
  %v3124 = vunpack.c.h.b16 %v924
  %v3125 = vunpack.c.l.b16 %v925
  %v3126 = vunpack.c.h.b16 %v925
  %v3127 = vunpack.c.l.b16 %v926
  %v3128 = vunpack.c.h.b16 %v926
  %v3129 = vunpack.c.l.b16 %v927
  %v3130 = vunpack.c.h.b16 %v927
  %v3131 = vunpack.c.l.b16 %v928
  %v3132 = vunpack.c.h.b16 %v928
  %v3133 = vunpack.c.l.b16 %v929
  %v3134 = vunpack.c.h.b16 %v929
  %v3135 = vunpack.c.l.b16 %v930
  %v3136 = vunpack.c.h.b16 %v930
  %v3137 = vunpack.c.l.b16 %v931
  %v3138 = vunpack.c.h.b16 %v931
  %v3139 = vunpack.c.l.b16 %v932
  %v3140 = vunpack.c.h.b16 %v932
  %v3141 = vunpack.c.l.b16 %v933
  %v3142 = vunpack.c.h.b16 %v933
  %v3143 = vunpack.c.l.b16 %v934
  %v3144 = vunpack.c.h.b16 %v934
  %v3145 = vunpack.c.l.b16 %v935
  %v3146 = vunpack.c.h.b16 %v935
  %v3147 = vunpack.c.l.b16 %v936
  %v3148 = vunpack.c.h.b16 %v936
  %v3149 = vunpack.c.l.b16 %v937
  %v3150 = vunpack.c.h.b16 %v937
  %v3151 = vunpack.c.l.b16 %v938
  %v3152 = vunpack.c.h.b16 %v938
  %v3153 = vunpack.c.l.b16 %v939
  %v3154 = vunpack.c.h.b16 %v939
  %v3155 = vunpack.c.l.b16 %v940
  %v3156 = vunpack.c.h.b16 %v940
  %v3157 = vunpack.c.l.b16 %v941
  %v3158 = vunpack.c.h.b16 %v941
  %v3159 = vunpack.c.l.b16 %v942
  %v3160 = vunpack.c.h.b16 %v942
  %v3161 = vunpack.c.l.b16 %v943
  %v3162 = vunpack.c.h.b16 %v943
  %v3163 = vunpack.c.l.b16 %v944
  %v3164 = vunpack.c.h.b16 %v944
  %v3165 = vunpack.c.l.b16 %v945
  %v3166 = vunpack.c.h.b16 %v945
  %v3167 = vunpack.c.l.b16 %v946
  %v3168 = vunpack.c.h.b16 %v946
  %v3169 = vunpack.c.l.b16 %v947
  %v3170 = vunpack.c.h.b16 %v947
  %v3171 = vunpack.c.l.b16 %v948
  %v3172 = vunpack.c.h.b16 %v948
  %v3173 = vunpack.c.l.b16 %v949
  %v3174 = vunpack.c.h.b16 %v949
  %v3175 = vunpack.c.l.b16 %v950
  %v3176 = vunpack.c.h.b16 %v950
  %v3177 = vunpack.c.l.b16 %v951
  %v3178 = vunpack.c.h.b16 %v951
  %v3179 = vunpack.c.l.b16 %v952
  %v3180 = vunpack.c.h.b16 %v952
  %v3181 = vunpack.c.l.b16 %v953
  %v3182 = vunpack.c.h.b16 %v953
  %v3183 = vunpack.c.l.b16 %v954
  %v3184 = vunpack.c.h.b16 %v954
  %v3185 = vunpack.c.l.b16 %v955
  %v3186 = vunpack.c.h.b16 %v955
  %v3187 = vunpack.c.l.b16 %v956
  %v3188 = vunpack.c.h.b16 %v956
  %v3189 = vunpack.c.l.b16 %v957
  %v3190 = vunpack.c.h.b16 %v957
  %v3191 = vunpack.c.l.b16 %v958
  %v3192 = vunpack.c.h.b16 %v958
  %v3193 = vunpack.c.l.b16 %v959
  %v3194 = vunpack.c.h.b16 %v959
  %v3195 = vunpack.c.l.b16 %v960
  %v3196 = vunpack.c.h.b16 %v960
  %v3197 = vunpack.c.l.b16 %v961
  %v3198 = vunpack.c.h.b16 %v961
  %v3199 = vunpack.c.l.b16 %v962
  %v3200 = vunpack.c.h.b16 %v962
  %v3201 = vunpack.c.l.b16 %v963
  %v3202 = vunpack.c.h.b16 %v963
  %v3203 = vunpack.c.l.b16 %v964
  %v3204 = vunpack.c.h.b16 %v964
  %v3205 = vunpack.c.l.b16 %v965
  %v3206 = vunpack.c.h.b16 %v965
  %v3207 = vunpack.c.l.b16 %v966
  %v3208 = vunpack.c.h.b16 %v966
  %v3209 = vunpack.c.l.b16 %v967
  %v3210 = vunpack.c.h.b16 %v967
  %v3211 = vunpack.c.l.b16 %v968
  %v3212 = vunpack.c.h.b16 %v968
  %v3213 = vunpack.c.l.b16 %v969
  %v3214 = vunpack.c.h.b16 %v969
  %v3215 = vunpack.c.l.b16 %v970
  %v3216 = vunpack.c.h.b16 %v970
  %v3217 = vunpack.c.l.b16 %v971
  %v3218 = vunpack.c.h.b16 %v971
  %v3219 = vunpack.c.l.b16 %v972
  %v3220 = vunpack.c.h.b16 %v972
  %v3221 = vunpack.c.l.b16 %v973
  %v3222 = vunpack.c.h.b16 %v973
  %v3223 = vunpack.c.l.b16 %v974
  %v3224 = vunpack.c.h.b16 %v974
  %v3225 = vunpack.c.l.b16 %v975
  %v3226 = vunpack.c.h.b16 %v975
  %v3227 = vunpack.c.l.b16 %v976
  %v3228 = vunpack.c.h.b16 %v976
  %v3229 = vunpack.c.l.b16 %v977
  %v3230 = vunpack.c.h.b16 %v977
  %v3231 = vunpack.c.l.b16 %v978
  %v3232 = vunpack.c.h.b16 %v978
  %v3233 = vunpack.c.l.b16 %v979
  %v3234 = vunpack.c.h.b16 %v979
  %v3235 = vunpack.c.l.b16 %v980
  %v3236 = vunpack.c.h.b16 %v980
  %v3237 = vunpack.c.l.b16 %v981
  %v3238 = vunpack.c.h.b16 %v981
  %v3239 = vunpack.c.l.b16 %v982
  %v3240 = vunpack.c.h.b16 %v982
  %v3241 = vunpack.c.l.b16 %v983
  %v3242 = vunpack.c.h.b16 %v983
  %v3243 = vunpack.c.l.b16 %v984
  %v3244 = vunpack.c.h.b16 %v984
  %v3245 = vunpack.c.l.b16 %v985
  %v3246 = vunpack.c.h.b16 %v985
  %v3247 = vunpack.c.l.b16 %v986
  %v3248 = vunpack.c.h.b16 %v986
  %v3249 = vunpack.c.l.b16 %v987
  %v3250 = vunpack.c.h.b16 %v987
  %v3251 = vunpack.c.l.b16 %v988
  %v3252 = vunpack.c.h.b16 %v988
  %v3253 = vunpack.c.l.b16 %v989
  %v3254 = vunpack.c.h.b16 %v989
  %v3255 = vunpack.c.l.b16 %v990
  %v3256 = vunpack.c.h.b16 %v990
  %v3257 = vunpack.c.l.b16 %v991
  %v3258 = vunpack.c.h.b16 %v991
  %v3259 = vunpack.c.l.b16 %v992
  %v3260 = vunpack.c.h.b16 %v992
  %v3261 = vunpack.c.l.b16 %v993
  %v3262 = vunpack.c.h.b16 %v993
  %v3263 = vunpack.c.l.b16 %v994
  %v3264 = vunpack.c.h.b16 %v994
  %v3265 = vunpack.c.l.b16 %v995
  %v3266 = vunpack.c.h.b16 %v995
  %v3267 = vunpack.c.l.b16 %v996
  %v3268 = vunpack.c.h.b16 %v996
  %v3269 = vunpack.c.l.b16 %v997
  %v3270 = vunpack.c.h.b16 %v997
  %v3271 = vunpack.c.l.b16 %v998
  %v3272 = vunpack.c.h.b16 %v998
  %v3273 = vunpack.c.l.b16 %v999
  %v3274 = vunpack.c.h.b16 %v999
  %v3275 = vunpack.c.l.b16 %v1000
  %v3276 = vunpack.c.h.b16 %v1000
  %v3277 = vunpack.c.l.b16 %v1001
  %v3278 = vunpack.c.h.b16 %v1001
  %v3279 = vunpack.c.l.b16 %v1002
  %v3280 = vunpack.c.h.b16 %v1002
  %v3281 = vunpack.c.l.b16 %v1003
  %v3282 = vunpack.c.h.b16 %v1003
  %v3283 = vunpack.c.l.b16 %v1004
  %v3284 = vunpack.c.h.b16 %v1004
  %v3285 = vunpack.c.l.b16 %v1005
  %v3286 = vunpack.c.h.b16 %v1005
  %v3287 = vunpack.c.l.b16 %v1006
  %v3288 = vunpack.c.h.b16 %v1006
  %v3289 = vunpack.c.l.b16 %v1007
  %v3290 = vunpack.c.h.b16 %v1007
  %v3291 = vunpack.c.l.b16 %v1008
  %v3292 = vunpack.c.h.b16 %v1008
  %v3293 = vunpack.c.l.b16 %v1009
  %v3294 = vunpack.c.h.b16 %v1009
  %v3295 = vunpack.c.l.b16 %v1010
  %v3296 = vunpack.c.h.b16 %v1010
  %v3297 = vunpack.c.l.b16 %v1011
  %v3298 = vunpack.c.h.b16 %v1011
  %v3299 = vunpack.c.l.b16 %v1012
  %v3300 = vunpack.c.h.b16 %v1012
  %v3301 = vunpack.c.l.b16 %v1013
  %v3302 = vunpack.c.h.b16 %v1013
  %v3303 = vunpack.c.l.b16 %v1014
  %v3304 = vunpack.c.h.b16 %v1014
  %v3305 = vunpack.c.l.b16 %v1015
  %v3306 = vunpack.c.h.b16 %v1015
  %v3307 = vunpack.c.l.b16 %v1016
  %v3308 = vunpack.c.h.b16 %v1016
  %v3309 = vunpack.c.l.b16 %v1017
  %v3310 = vunpack.c.h.b16 %v1017
  %v3311 = vunpack.c.l.b16 %v1018
  %v3312 = vunpack.c.h.b16 %v1018
  %v3313 = vunpack.c.l.b16 %v1019
  %v3314 = vunpack.c.h.b16 %v1019
  %v3315 = vunpack.c.l.b16 %v1020
  %v3316 = vunpack.c.h.b16 %v1020
  %v3317 = vunpack.c.l.b16 %v1021
  %v3318 = vunpack.c.h.b16 %v1021
  %v3319 = vunpack.c.l.b16 %v1022
  %v3320 = vunpack.c.h.b16 %v1022
  %v3321 = vunpack.c.l.b16 %v1023
  %v3322 = vunpack.c.h.b16 %v1023
  %v3323 = vunpack.c.l.b16 %v1024
  %v3324 = vunpack.c.h.b16 %v1024
  %v3325 = vunpack.c.l.b16 %v1025
  %v3326 = vunpack.c.h.b16 %v1025
  %v3327 = vunpack.c.l.b16 %v1026
  %v3328 = vunpack.c.h.b16 %v1026
  %v3329 = vunpack.c.l.b16 %v1027
  %v3330 = vunpack.c.h.b16 %v1027
  %v3331 = vunpack.c.l.b16 %v1028
  %v3332 = vunpack.c.h.b16 %v1028
  %v3333 = vunpack.c.l.b16 %v1029
  %v3334 = vunpack.c.h.b16 %v1029
  %v3335 = vunpack.c.l.b16 %v1030
  %v3336 = vunpack.c.h.b16 %v1030
  %v3337 = vunpack.c.l.b16 %v1031
  %v3338 = vunpack.c.h.b16 %v1031
  %v3339 = vunpack.c.l.b16 %v1032
  %v3340 = vunpack.c.h.b16 %v1032
  %v3341 = vunpack.c.l.b16 %v1033
  %v3342 = vunpack.c.h.b16 %v1033
  %v3343 = vunpack.c.l.b16 %v1034
  %v3344 = vunpack.c.h.b16 %v1034
  %v3345 = vunpack.c.l.b16 %v1035
  %v3346 = vunpack.c.h.b16 %v1035
  %v3347 = vunpack.c.l.b16 %v1036
  %v3348 = vunpack.c.h.b16 %v1036
  %v3349 = vunpack.c.l.b16 %v1037
  %v3350 = vunpack.c.h.b16 %v1037
  %v3351 = vunpack.c.l.b16 %v1038
  %v3352 = vunpack.c.h.b16 %v1038
  %v3353 = vunpack.c.l.b16 %v1039
  %v3354 = vunpack.c.h.b16 %v1039
  %v3355 = vunpack.c.l.b16 %v1040
  %v3356 = vunpack.c.h.b16 %v1040
  %v3357 = vunpack.c.l.b16 %v1041
  %v3358 = vunpack.c.h.b16 %v1041
  %v3359 = vunpack.c.l.b16 %v1042
  %v3360 = vunpack.c.h.b16 %v1042
  %v3361 = vunpack.c.l.b16 %v1043
  %v3362 = vunpack.c.h.b16 %v1043
  %v3363 = vunpack.c.l.b16 %v1044
  %v3364 = vunpack.c.h.b16 %v1044
  %v3365 = vunpack.c.l.b16 %v1045
  %v3366 = vunpack.c.h.b16 %v1045
  %v3367 = vunpack.c.l.b16 %v1046
  %v3368 = vunpack.c.h.b16 %v1046
  %v3369 = vunpack.c.l.b16 %v1047
  %v3370 = vunpack.c.h.b16 %v1047
  %v3371 = vunpack.c.l.b16 %v1048
  %v3372 = vunpack.c.h.b16 %v1048
  %v3373 = vunpack.c.l.b16 %v1049
  %v3374 = vunpack.c.h.b16 %v1049
  %v3375 = vunpack.c.l.b16 %v1050
  %v3376 = vunpack.c.h.b16 %v1050
  %v3377 = vunpack.c.l.b16 %v1051
  %v3378 = vunpack.c.h.b16 %v1051
  %v3379 = vunpack.c.l.b16 %v1052
  %v3380 = vunpack.c.h.b16 %v1052
  %v3381 = vunpack.c.l.b16 %v1053
  %v3382 = vunpack.c.h.b16 %v1053
  %v3383 = vunpack.c.l.b16 %v1054
  %v3384 = vunpack.c.h.b16 %v1054
  %v3385 = vunpack.c.l.b16 %v1055
  %v3386 = vunpack.c.h.b16 %v1055
  %v3387 = vunpack.c.l.b16 %v1056
  %v3388 = vunpack.c.h.b16 %v1056
  %v3389 = vunpack.c.l.b16 %v1057
  %v3390 = vunpack.c.h.b16 %v1057
  %v3391 = vunpack.c.l.b16 %v1058
  %v3392 = vunpack.c.h.b16 %v1058
  %v3393 = vunpack.c.l.b16 %v1059
  %v3394 = vunpack.c.h.b16 %v1059
  %v3395 = vunpack.c.l.b16 %v1060
  %v3396 = vunpack.c.h.b16 %v1060
  %v3397 = vunpack.c.l.b16 %v1061
  %v3398 = vunpack.c.h.b16 %v1061
  %v3399 = vunpack.c.l.b16 %v1062
  %v3400 = vunpack.c.h.b16 %v1062
  %v3401 = vunpack.c.l.b16 %v1063
  %v3402 = vunpack.c.h.b16 %v1063
  %v3403 = vunpack.c.l.b16 %v1064
  %v3404 = vunpack.c.h.b16 %v1064
  %v3405 = vunpack.c.l.b16 %v1065
  %v3406 = vunpack.c.h.b16 %v1065
  %v3407 = vunpack.c.l.b16 %v1066
  %v3408 = vunpack.c.h.b16 %v1066
  %v3409 = vunpack.c.l.b16 %v1067
  %v3410 = vunpack.c.h.b16 %v1067
  %v3411 = vunpack.c.l.b16 %v1068
  %v3412 = vunpack.c.h.b16 %v1068
  %v3413 = vunpack.c.l.b16 %v1069
  %v3414 = vunpack.c.h.b16 %v1069
  %v3415 = vunpack.c.l.b16 %v1070
  %v3416 = vunpack.c.h.b16 %v1070
  %v3417 = vunpack.c.l.b16 %v1071
  %v3418 = vunpack.c.h.b16 %v1071
  %v3419 = vunpack.c.l.b16 %v1072
  %v3420 = vunpack.c.h.b16 %v1072
  %v3421 = vunpack.c.l.b16 %v1073
  %v3422 = vunpack.c.h.b16 %v1073
  %v3423 = vunpack.c.l.b16 %v1074
  %v3424 = vunpack.c.h.b16 %v1074
  %v3425 = vunpack.c.l.b16 %v1075
  %v3426 = vunpack.c.h.b16 %v1075
  %v3427 = vunpack.c.l.b16 %v1076
  %v3428 = vunpack.c.h.b16 %v1076
  %v3429 = vunpack.c.l.b16 %v1077
  %v3430 = vunpack.c.h.b16 %v1077
  %v3431 = vunpack.c.l.b16 %v1078
  %v3432 = vunpack.c.h.b16 %v1078
  %v3433 = vunpack.c.l.b16 %v1079
  %v3434 = vunpack.c.h.b16 %v1079
  %v3435 = vunpack.c.l.b16 %v1080
  %v3436 = vunpack.c.h.b16 %v1080
  %v3437 = vunpack.c.l.b16 %v1081
  %v3438 = vunpack.c.h.b16 %v1081
  %v3439 = vunpack.c.l.b16 %v1082
  %v3440 = vunpack.c.h.b16 %v1082
  %v3441 = vunpack.c.l.b16 %v1083
  %v3442 = vunpack.c.h.b16 %v1083
  %v3443 = vunpack.c.l.b16 %v1084
  %v3444 = vunpack.c.h.b16 %v1084
  %v3445 = vunpack.c.l.b16 %v1085
  %v3446 = vunpack.c.h.b16 %v1085
  %v3447 = vunpack.c.l.b16 %v1086
  %v3448 = vunpack.c.h.b16 %v1086
  %v3449 = vunpack.c.l.b16 %v1087
  %v3450 = vunpack.c.h.b16 %v1087
  %v3451 = vunpack.c.l.b16 %v1088
  %v3452 = vunpack.c.h.b16 %v1088
  %v3453 = vunpack.c.l.b16 %v1089
  %v3454 = vunpack.c.h.b16 %v1089
  %v3455 = vunpack.c.l.b16 %v1090
  %v3456 = vunpack.c.h.b16 %v1090
  %v3457 = vunpack.c.l.b16 %v1091
  %v3458 = vunpack.c.h.b16 %v1091
  %v3459 = vunpack.c.l.b16 %v1092
  %v3460 = vunpack.c.h.b16 %v1092
  %v3461 = vunpack.c.l.b16 %v1093
  %v3462 = vunpack.c.h.b16 %v1093
  %v3463 = vunpack.c.l.b16 %v1094
  %v3464 = vunpack.c.h.b16 %v1094
  %v3465 = vunpack.c.l.b16 %v1095
  %v3466 = vunpack.c.h.b16 %v1095
  %v3467 = vunpack.c.l.b16 %v1096
  %v3468 = vunpack.c.h.b16 %v1096
  %v3469 = vunpack.c.l.b16 %v1097
  %v3470 = vunpack.c.h.b16 %v1097
  %v3471 = vunpack.c.l.b16 %v1098
  %v3472 = vunpack.c.h.b16 %v1098
  %v3473 = vunpack.c.l.b16 %v1099
  %v3474 = vunpack.c.h.b16 %v1099
  %v3475 = vunpack.c.l.b16 %v1100
  %v3476 = vunpack.c.h.b16 %v1100
  %v3477 = vunpack.c.l.b16 %v1101
  %v3478 = vunpack.c.h.b16 %v1101
  %v3479 = vunpack.c.l.b16 %v1102
  %v3480 = vunpack.c.h.b16 %v1102
  %v3481 = vunpack.c.l.b16 %v1103
  %v3482 = vunpack.c.h.b16 %v1103
  %v3483 = vunpack.c.l.b16 %v1104
  %v3484 = vunpack.c.h.b16 %v1104
  %v3485 = vunpack.c.l.b16 %v1105
  %v3486 = vunpack.c.h.b16 %v1105
  %v3487 = vunpack.c.l.b16 %v1106
  %v3488 = vunpack.c.h.b16 %v1106
  %v3489 = vunpack.c.l.b16 %v1107
  %v3490 = vunpack.c.h.b16 %v1107
  %v3491 = vunpack.c.l.b16 %v1108
  %v3492 = vunpack.c.h.b16 %v1108
  %v3493 = vunpack.c.l.b16 %v1109
  %v3494 = vunpack.c.h.b16 %v1109
  %v3495 = vunpack.c.l.b16 %v1110
  %v3496 = vunpack.c.h.b16 %v1110
  %v3497 = vunpack.c.l.b16 %v1111
  %v3498 = vunpack.c.h.b16 %v1111
  %v3499 = vunpack.c.l.b16 %v1112
  %v3500 = vunpack.c.h.b16 %v1112
  %v3501 = vunpack.c.l.b16 %v1113
  %v3502 = vunpack.c.h.b16 %v1113
  %v3503 = vunpack.c.l.b16 %v1114
  %v3504 = vunpack.c.h.b16 %v1114
  %v3505 = vunpack.c.l.b16 %v1115
  %v3506 = vunpack.c.h.b16 %v1115
  %v3507 = vunpack.c.l.b16 %v1116
  %v3508 = vunpack.c.h.b16 %v1116
  %v3509 = vunpack.c.l.b16 %v1117
  %v3510 = vunpack.c.h.b16 %v1117
  %v3511 = vunpack.c.l.b16 %v1118
  %v3512 = vunpack.c.h.b16 %v1118
  %v3513 = vunpack.c.l.b16 %v1119
  %v3514 = vunpack.c.h.b16 %v1119
  %v3515 = vunpack.c.l.b16 %v1120
  %v3516 = vunpack.c.h.b16 %v1120
  %v3517 = vunpack.c.l.b16 %v1121
  %v3518 = vunpack.c.h.b16 %v1121
  %v3519 = vunpack.c.l.b16 %v1122
  %v3520 = vunpack.c.h.b16 %v1122
  %v3521 = vunpack.c.l.b16 %v1123
  %v3522 = vunpack.c.h.b16 %v1123
  %v3523 = vunpack.c.l.b16 %v1124
  %v3524 = vunpack.c.h.b16 %v1124
  %v3525 = vunpack.c.l.b16 %v1125
  %v3526 = vunpack.c.h.b16 %v1125
  %v3527 = vunpack.c.l.b16 %v1126
  %v3528 = vunpack.c.h.b16 %v1126
  %v3529 = vunpack.c.l.b16 %v1127
  %v3530 = vunpack.c.h.b16 %v1127
  %v3531 = vunpack.c.l.b16 %v1128
  %v3532 = vunpack.c.h.b16 %v1128
  %v3533 = vunpack.c.l.b16 %v1129
  %v3534 = vunpack.c.h.b16 %v1129
  %v3535 = vunpack.c.l.b16 %v1130
  %v3536 = vunpack.c.h.b16 %v1130
  %v3537 = vunpack.c.l.b16 %v1131
  %v3538 = vunpack.c.h.b16 %v1131
  %v3539 = vunpack.c.l.b16 %v1132
  %v3540 = vunpack.c.h.b16 %v1132
  %v3541 = vunpack.c.l.b16 %v1133
  %v3542 = vunpack.c.h.b16 %v1133
  %v3543 = vunpack.c.l.b16 %v1134
  %v3544 = vunpack.c.h.b16 %v1134
  %v3545 = vunpack.c.l.b16 %v1135
  %v3546 = vunpack.c.h.b16 %v1135
  %v3547 = vunpack.c.l.b16 %v1136
  %v3548 = vunpack.c.h.b16 %v1136
  %v3549 = vunpack.c.l.b16 %v1137
  %v3550 = vunpack.c.h.b16 %v1137
  %v3551 = vunpack.c.l.b16 %v1138
  %v3552 = vunpack.c.h.b16 %v1138
  %v3553 = vunpack.c.l.b16 %v1139
  %v3554 = vunpack.c.h.b16 %v1139
  %v3555 = vunpack.c.l.b16 %v1140
  %v3556 = vunpack.c.h.b16 %v1140
  %v3557 = vunpack.c.l.b16 %v1141
  %v3558 = vunpack.c.h.b16 %v1141
  %v3559 = vunpack.c.l.b16 %v1142
  %v3560 = vunpack.c.h.b16 %v1142
  %v3561 = vunpack.c.l.b16 %v1143
  %v3562 = vunpack.c.h.b16 %v1143
  %v3563 = vunpack.c.l.b16 %v1144
  %v3564 = vunpack.c.h.b16 %v1144
  %v3565 = vunpack.c.l.b16 %v1145
  %v3566 = vunpack.c.h.b16 %v1145
  %v3567 = vunpack.c.l.b16 %v1146
  %v3568 = vunpack.c.h.b16 %v1146
  %v3569 = vunpack.c.l.b16 %v1147
  %v3570 = vunpack.c.h.b16 %v1147
  %v3571 = vunpack.c.l.b16 %v1148
  %v3572 = vunpack.c.h.b16 %v1148
  %v3573 = vunpack.c.l.b16 %v1149
  %v3574 = vunpack.c.h.b16 %v1149
  %v3575 = vunpack.c.l.b16 %v1150
  %v3576 = vunpack.c.h.b16 %v1150
  %v3577 = vunpack.c.l.b16 %v1151
  %v3578 = vunpack.c.h.b16 %v1151
  %v3579 = vunpack.c.l.b16 %v1152
  %v3580 = vunpack.c.h.b16 %v1152
  %v3581 = vunpack.c.l.b16 %v1153
  %v3582 = vunpack.c.h.b16 %v1153
  %v3583 = vunpack.c.l.b16 %v1154
  %v3584 = vunpack.c.h.b16 %v1154
  %v3585 = vunpack.c.l.b16 %v1155
  %v3586 = vunpack.c.h.b16 %v1155
  %v3587 = vunpack.c.l.b16 %v1156
  %v3588 = vunpack.c.h.b16 %v1156
  %v3589 = vunpack.c.l.b16 %v1157
  %v3590 = vunpack.c.h.b16 %v1157
  %v3591 = vunpack.c.l.b16 %v1158
  %v3592 = vunpack.c.h.b16 %v1158
  %v3593 = vunpack.c.l.b16 %v1159
  %v3594 = vunpack.c.h.b16 %v1159
  %v3595 = vunpack.c.l.b16 %v1160
  %v3596 = vunpack.c.h.b16 %v1160
  %v3597 = vunpack.c.l.b16 %v1161
  %v3598 = vunpack.c.h.b16 %v1161
  %v3599 = vunpack.c.l.b16 %v1162
  %v3600 = vunpack.c.h.b16 %v1162
  %v3601 = vunpack.c.l.b16 %v1163
  %v3602 = vunpack.c.h.b16 %v1163
  %v3603 = vunpack.c.l.b16 %v1164
  %v3604 = vunpack.c.h.b16 %v1164
  %v3605 = vunpack.c.l.b16 %v1165
  %v3606 = vunpack.c.h.b16 %v1165
  %v3607 = vunpack.c.l.b16 %v1166
  %v3608 = vunpack.c.h.b16 %v1166
  %v3609 = vunpack.c.l.b16 %v1167
  %v3610 = vunpack.c.h.b16 %v1167
  %v3611 = vunpack.c.l.b16 %v1168
  %v3612 = vunpack.c.h.b16 %v1168
  %v3613 = vunpack.c.l.b16 %v1169
  %v3614 = vunpack.c.h.b16 %v1169
  %v3615 = vunpack.c.l.b16 %v1170
  %v3616 = vunpack.c.h.b16 %v1170
  %v3617 = vunpack.c.l.b16 %v1171
  %v3618 = vunpack.c.h.b16 %v1171
  %v3619 = vunpack.c.l.b16 %v1172
  %v3620 = vunpack.c.h.b16 %v1172
  %v3621 = vunpack.c.l.b16 %v1173
  %v3622 = vunpack.c.h.b16 %v1173
  %v3623 = vunpack.c.l.b16 %v1174
  %v3624 = vunpack.c.h.b16 %v1174
  %v3625 = vunpack.c.l.b16 %v1175
  %v3626 = vunpack.c.h.b16 %v1175
  %v3627 = vunpack.c.l.b16 %v1176
  %v3628 = vunpack.c.h.b16 %v1176
  %v3629 = vunpack.c.l.b16 %v1177
  %v3630 = vunpack.c.h.b16 %v1177
  %v3631 = vunpack.c.l.b16 %v1178
  %v3632 = vunpack.c.h.b16 %v1178
  %v3633 = vunpack.c.l.b16 %v1179
  %v3634 = vunpack.c.h.b16 %v1179
  %v3635 = vunpack.c.l.b16 %v1180
  %v3636 = vunpack.c.h.b16 %v1180
  %v3637 = vunpack.c.l.b16 %v1181
  %v3638 = vunpack.c.h.b16 %v1181
  %v3639 = vunpack.c.l.b16 %v1182
  %v3640 = vunpack.c.h.b16 %v1182
  %v3641 = vunpack.c.l.b16 %v1183
  %v3642 = vunpack.c.h.b16 %v1183
  %v3643 = vunpack.c.l.b16 %v1184
  %v3644 = vunpack.c.h.b16 %v1184
  %v3645 = vunpack.c.l.b16 %v1185
  %v3646 = vunpack.c.h.b16 %v1185
  %v3647 = vunpack.c.l.b16 %v1186
  %v3648 = vunpack.c.h.b16 %v1186
  %v3649 = vunpack.c.l.b16 %v1187
  %v3650 = vunpack.c.h.b16 %v1187
  %v3651 = vunpack.c.l.b16 %v1188
  %v3652 = vunpack.c.h.b16 %v1188
  %v3653 = vunpack.c.l.b16 %v1189
  %v3654 = vunpack.c.h.b16 %v1189
  %v3655 = vunpack.c.l.b16 %v1190
  %v3656 = vunpack.c.h.b16 %v1190
  %v3657 = vunpack.c.l.b16 %v1191
  %v3658 = vunpack.c.h.b16 %v1191
  %v3659 = vunpack.c.l.b16 %v1192
  %v3660 = vunpack.c.h.b16 %v1192
  %v3661 = vunpack.c.l.b16 %v1193
  %v3662 = vunpack.c.h.b16 %v1193
  %v3663 = vunpack.c.l.b16 %v1194
  %v3664 = vunpack.c.h.b16 %v1194
  %v3665 = vunpack.c.l.b16 %v1195
  %v3666 = vunpack.c.h.b16 %v1195
  %v3667 = vunpack.c.l.b16 %v1196
  %v3668 = vunpack.c.h.b16 %v1196
  %v3669 = vunpack.c.l.b16 %v1197
  %v3670 = vunpack.c.h.b16 %v1197
  %v3671 = vunpack.c.l.b16 %v1198
  %v3672 = vunpack.c.h.b16 %v1198
  %v3673 = vunpack.c.l.b16 %v1199
  %v3674 = vunpack.c.h.b16 %v1199
  %v3675 = vunpack.c.l.b16 %v1200
  %v3676 = vunpack.c.h.b16 %v1200
  %v3677 = vunpack.c.l.b16 %v1201
  %v3678 = vunpack.c.h.b16 %v1201
  %v3679 = vunpack.c.l.b16 %v1202
  %v3680 = vunpack.c.h.b16 %v1202
  %v3681 = vunpack.c.l.b16 %v1203
  %v3682 = vunpack.c.h.b16 %v1203
  %v3683 = vunpack.c.l.b16 %v1204
  %v3684 = vunpack.c.h.b16 %v1204
  %v3685 = vunpack.c.l.b16 %v1205
  %v3686 = vunpack.c.h.b16 %v1205
  %v3687 = vunpack.c.l.b16 %v1206
  %v3688 = vunpack.c.h.b16 %v1206
  %v3689 = vunpack.c.l.b16 %v1207
  %v3690 = vunpack.c.h.b16 %v1207
  %v3691 = vunpack.c.l.b16 %v1208
  %v3692 = vunpack.c.h.b16 %v1208
  %v3693 = vunpack.c.l.b16 %v1209
  %v3694 = vunpack.c.h.b16 %v1209
  %v3695 = vunpack.c.l.b16 %v1210
  %v3696 = vunpack.c.h.b16 %v1210
  %v3697 = vunpack.c.l.b16 %v1211
  %v3698 = vunpack.c.h.b16 %v1211
  %v3699 = vunpack.c.l.b16 %v1212
  %v3700 = vunpack.c.h.b16 %v1212
  %v3701 = vunpack.c.l.b16 %v1213
  %v3702 = vunpack.c.h.b16 %v1213
  %v3703 = vunpack.c.l.b16 %v1214
  %v3704 = vunpack.c.h.b16 %v1214
  %v3705 = vunpack.c.l.b16 %v1215
  %v3706 = vunpack.c.h.b16 %v1215
  %v3707 = vunpack.c.l.b16 %v1216
  %v3708 = vunpack.c.h.b16 %v1216
  %v3709 = vunpack.c.l.b16 %v1217
  %v3710 = vunpack.c.h.b16 %v1217
  %v3711 = vunpack.c.l.b16 %v1218
  %v3712 = vunpack.c.h.b16 %v1218
  %v3713 = vunpack.c.l.b16 %v1219
  %v3714 = vunpack.c.h.b16 %v1219
  %v3715 = vunpack.c.l.b16 %v1220
  %v3716 = vunpack.c.h.b16 %v1220
  %v3717 = vunpack.c.l.b16 %v1221
  %v3718 = vunpack.c.h.b16 %v1221
  %v3719 = vunpack.c.l.b16 %v1222
  %v3720 = vunpack.c.h.b16 %v1222
  %v3721 = vunpack.c.l.b16 %v1223
  %v3722 = vunpack.c.h.b16 %v1223
  %v3723 = vunpack.c.l.b16 %v1224
  %v3724 = vunpack.c.h.b16 %v1224
  %v3725 = vunpack.c.l.b16 %v1225
  %v3726 = vunpack.c.h.b16 %v1225
  %v3727 = vunpack.c.l.b16 %v1226
  %v3728 = vunpack.c.h.b16 %v1226
  %v3729 = vunpack.c.l.b16 %v1227
  %v3730 = vunpack.c.h.b16 %v1227
  %v3731 = vunpack.c.l.b16 %v1228
  %v3732 = vunpack.c.h.b16 %v1228
  %v3733 = vunpack.c.l.b16 %v1229
  %v3734 = vunpack.c.h.b16 %v1229
  %v3735 = vunpack.c.l.b16 %v1230
  %v3736 = vunpack.c.h.b16 %v1230
  %v3737 = vunpack.c.l.b16 %v1231
  %v3738 = vunpack.c.h.b16 %v1231
  %v3739 = vunpack.c.l.b16 %v1232
  %v3740 = vunpack.c.h.b16 %v1232
  %v3741 = vunpack.c.l.b16 %v1233
  %v3742 = vunpack.c.h.b16 %v1233
  %v3743 = vunpack.c.l.b16 %v1234
  %v3744 = vunpack.c.h.b16 %v1234
  %v3745 = vunpack.c.l.b16 %v1235
  %v3746 = vunpack.c.h.b16 %v1235
  %v3747 = vunpack.c.l.b16 %v1236
  %v3748 = vunpack.c.h.b16 %v1236
  %v3749 = vunpack.c.l.b16 %v1237
  %v3750 = vunpack.c.h.b16 %v1237
  %v3751 = vunpack.c.l.b16 %v1238
  %v3752 = vunpack.c.h.b16 %v1238
  %v3753 = vunpack.c.l.b16 %v1239
  %v3754 = vunpack.c.h.b16 %v1239
  %v3755 = vunpack.c.l.b16 %v1240
  %v3756 = vunpack.c.h.b16 %v1240
  %v3757 = vunpack.c.l.b16 %v1241
  %v3758 = vunpack.c.h.b16 %v1241
  %v3759 = vunpack.c.l.b16 %v1242
  %v3760 = vunpack.c.h.b16 %v1242
  %v3761 = vunpack.c.l.b16 %v1243
  %v3762 = vunpack.c.h.b16 %v1243
  %v3763 = vunpack.c.l.b16 %v1244
  %v3764 = vunpack.c.h.b16 %v1244
  %v3765 = vunpack.c.l.b16 %v1245
  %v3766 = vunpack.c.h.b16 %v1245
  %v3767 = vunpack.c.l.b16 %v1246
  %v3768 = vunpack.c.h.b16 %v1246
  %v3769 = vunpack.c.l.b16 %v1247
  %v3770 = vunpack.c.h.b16 %v1247
  %v3771 = vunpack.c.l.b16 %v1248
  %v3772 = vunpack.c.h.b16 %v1248
  %v3773 = vunpack.c.l.b16 %v1249
  %v3774 = vunpack.c.h.b16 %v1249
  %v3775 = vunpack.c.l.b16 %v1250
  %v3776 = vunpack.c.h.b16 %v1250
  %v3777 = vunpack.c.l.b16 %v1251
  %v3778 = vunpack.c.h.b16 %v1251
  %v3779 = vunpack.c.l.b16 %v1252
  %v3780 = vunpack.c.h.b16 %v1252
  %v3781 = vunpack.c.l.b16 %v1253
  %v3782 = vunpack.c.h.b16 %v1253
  %v3783 = vunpack.c.l.b16 %v1254
  %v3784 = vunpack.c.h.b16 %v1254
  %v3785 = vunpack.c.l.b16 %v1255
  %v3786 = vunpack.c.h.b16 %v1255
  %v3787 = vunpack.c.l.b16 %v1256
  %v3788 = vunpack.c.h.b16 %v1256
  %v3789 = vunpack.c.l.b16 %v1257
  %v3790 = vunpack.c.h.b16 %v1257
  %v3791 = vunpack.c.l.b16 %v1258
  %v3792 = vunpack.c.h.b16 %v1258
  %v3793 = vunpack.c.l.b16 %v1259
  %v3794 = vunpack.c.h.b16 %v1259
  %v3795 = vunpack.c.l.b16 %v1260
  %v3796 = vunpack.c.h.b16 %v1260
  %v3797 = vunpack.c.l.b16 %v1261
  %v3798 = vunpack.c.h.b16 %v1261
  %v3799 = vunpack.c.l.b16 %v1262
  %v3800 = vunpack.c.h.b16 %v1262
  %v3801 = vunpack.c.l.b16 %v1263
  %v3802 = vunpack.c.h.b16 %v1263
  %v3803 = vunpack.c.l.b16 %v1264
  %v3804 = vunpack.c.h.b16 %v1264
  %v3805 = vunpack.c.l.b16 %v1265
  %v3806 = vunpack.c.h.b16 %v1265
  %v3807 = vunpack.c.l.b16 %v1266
  %v3808 = vunpack.c.h.b16 %v1266
  %v3809 = vunpack.c.l.b16 %v1267
  %v3810 = vunpack.c.h.b16 %v1267
  %v3811 = vunpack.c.l.b16 %v1268
  %v3812 = vunpack.c.h.b16 %v1268
  %v3813 = vunpack.c.l.b16 %v1269
  %v3814 = vunpack.c.h.b16 %v1269
  %v3815 = vunpack.c.l.b16 %v1270
  %v3816 = vunpack.c.h.b16 %v1270
  %v3817 = vunpack.c.l.b16 %v1271
  %v3818 = vunpack.c.h.b16 %v1271
  %v3819 = vunpack.c.l.b16 %v1272
  %v3820 = vunpack.c.h.b16 %v1272
  %v3821 = vunpack.c.l.b16 %v1273
  %v3822 = vunpack.c.h.b16 %v1273
  %v3823 = vunpack.c.l.b16 %v1274
  %v3824 = vunpack.c.h.b16 %v1274
  %v3825 = vunpack.c.l.b16 %v1275
  %v3826 = vunpack.c.h.b16 %v1275
  %v3827 = vunpack.c.l.b16 %v1276
  %v3828 = vunpack.c.h.b16 %v1276
  %v3829 = vunpack.c.l.b16 %v1277
  %v3830 = vunpack.c.h.b16 %v1277
  %v3831 = vunpack.c.l.b16 %v1278
  %v3832 = vunpack.c.h.b16 %v1278
  %v3833 = vunpack.c.l.b16 %v1279
  %v3834 = vunpack.c.h.b16 %v1279
  %v3835 = vunpack.c.l.b16 %v1280
  %v3836 = vunpack.c.h.b16 %v1280
  %v3837 = vunpack.c.l.b16 %v1281
  %v3838 = vunpack.c.h.b16 %v1281
  %v3839 = vunpack.c.l.b16 %v1282
  %v3840 = vunpack.c.h.b16 %v1282
  %v3841 = vunpack.c.l.b16 %v1283
  %v3842 = vunpack.c.h.b16 %v1283
  %v3843 = vunpack.c.l.b16 %v1284
  %v3844 = vunpack.c.h.b16 %v1284
  %v3845 = vunpack.c.l.b16 %v1285
  %v3846 = vunpack.c.h.b16 %v1285
  %v3847 = vunpack.c.l.b16 %v1286
  %v3848 = vunpack.c.h.b16 %v1286
  %v3849 = vunpack.c.l.b16 %v1287
  %v3850 = vunpack.c.h.b16 %v1287
  %v3851 = vunpack.c.l.b16 %v1288
  %v3852 = vunpack.c.h.b16 %v1288
  %v3853 = vunpack.c.l.b16 %v1289
  %v3854 = vunpack.c.h.b16 %v1289
  %v3855 = vunpack.c.l.b16 %v1290
  %v3856 = vunpack.c.h.b16 %v1290
  %v3857 = vunpack.c.l.b16 %v1291
  %v3858 = vunpack.c.h.b16 %v1291
  %v3859 = vunpack.c.l.b16 %v1292
  %v3860 = vunpack.c.h.b16 %v1292
  %v3861 = vunpack.c.l.b16 %v1293
  %v3862 = vunpack.c.h.b16 %v1293
  %v3863 = vunpack.c.l.b16 %v1294
  %v3864 = vunpack.c.h.b16 %v1294
  %v3865 = vunpack.c.l.b16 %v1295
  %v3866 = vunpack.c.h.b16 %v1295
  %v3867 = vunpack.c.l.b16 %v1296
  %v3868 = vunpack.c.h.b16 %v1296
  %v3869 = vunpack.c.l.b16 %v1297
  %v3870 = vunpack.c.h.b16 %v1297
  %v3871 = vunpack.c.l.b16 %v1298
  %v3872 = vunpack.c.h.b16 %v1298
  %v3873 = vunpack.c.l.b16 %v1299
  %v3874 = vunpack.c.h.b16 %v1299
  %v3875 = vunpack.c.l.b16 %v1300
  %v3876 = vunpack.c.h.b16 %v1300
  %v3877 = vunpack.c.l.b16 %v1301
  %v3878 = vunpack.c.h.b16 %v1301
  %v3879 = vunpack.c.l.b16 %v1302
  %v3880 = vunpack.c.h.b16 %v1302
  %v3881 = vunpack.c.l.b16 %v1303
  %v3882 = vunpack.c.h.b16 %v1303
  %v3883 = vunpack.c.l.b16 %v1304
  %v3884 = vunpack.c.h.b16 %v1304
  %v3885 = vunpack.c.l.b16 %v1305
  %v3886 = vunpack.c.h.b16 %v1305
  %v3887 = vunpack.c.l.b16 %v1306
  %v3888 = vunpack.c.h.b16 %v1306
  %v3889 = vunpack.c.l.b16 %v1307
  %v3890 = vunpack.c.h.b16 %v1307
  %v3891 = vunpack.c.l.b16 %v1308
  %v3892 = vunpack.c.h.b16 %v1308
  %v3893 = vunpack.c.l.b16 %v1309
  %v3894 = vunpack.c.h.b16 %v1309
  %v3895 = vunpack.c.l.b16 %v1310
  %v3896 = vunpack.c.h.b16 %v1310
  %v3897 = vunpack.c.l.b16 %v1311
  %v3898 = vunpack.c.h.b16 %v1311
  %v3899 = vunpack.c.l.b16 %v1312
  %v3900 = vunpack.c.h.b16 %v1312
  %v3901 = vunpack.c.l.b16 %v1313
  %v3902 = vunpack.c.h.b16 %v1313
  %v3903 = vunpack.c.l.b16 %v1314
  %v3904 = vunpack.c.h.b16 %v1314
  %v3905 = vunpack.c.l.b16 %v1315
  %v3906 = vunpack.c.h.b16 %v1315
  %v3907 = vunpack.c.l.b16 %v1316
  %v3908 = vunpack.c.h.b16 %v1316
  %v3909 = vunpack.c.l.b16 %v1317
  %v3910 = vunpack.c.h.b16 %v1317
  %v3911 = vunpack.c.l.b16 %v1318
  %v3912 = vunpack.c.h.b16 %v1318
  %v3913 = vunpack.c.l.b16 %v1319
  %v3914 = vunpack.c.h.b16 %v1319
  %v3915 = vunpack.c.l.b16 %v1320
  %v3916 = vunpack.c.h.b16 %v1320
  %v3917 = vunpack.c.l.b16 %v1321
  %v3918 = vunpack.c.h.b16 %v1321
  %v3919 = vunpack.c.l.b16 %v1322
  %v3920 = vunpack.c.h.b16 %v1322
  %v3921 = vunpack.c.l.b16 %v1323
  %v3922 = vunpack.c.h.b16 %v1323
  %v3923 = vunpack.c.l.b16 %v1324
  %v3924 = vunpack.c.h.b16 %v1324
  %v3925 = vunpack.c.l.b16 %v1325
  %v3926 = vunpack.c.h.b16 %v1325
  %v3927 = vunpack.c.l.b16 %v1326
  %v3928 = vunpack.c.h.b16 %v1326
  %v3929 = vunpack.c.l.b16 %v1327
  %v3930 = vunpack.c.h.b16 %v1327
  %v3931 = vunpack.c.l.b16 %v1328
  %v3932 = vunpack.c.h.b16 %v1328
  %v3933 = vunpack.c.l.b16 %v1329
  %v3934 = vunpack.c.h.b16 %v1329
  %v3935 = vunpack.c.l.b16 %v1330
  %v3936 = vunpack.c.h.b16 %v1330
  %v3937 = vunpack.c.l.b16 %v1331
  %v3938 = vunpack.c.h.b16 %v1331
  %v3939 = vunpack.c.l.b16 %v1332
  %v3940 = vunpack.c.h.b16 %v1332
  %v3941 = vunpack.c.l.b16 %v1333
  %v3942 = vunpack.c.h.b16 %v1333
  %v3943 = vunpack.c.l.b16 %v1334
  %v3944 = vunpack.c.h.b16 %v1334
  %v3945 = vunpack.c.l.b16 %v1335
  %v3946 = vunpack.c.h.b16 %v1335
  %v3947 = vunpack.c.l.b16 %v1336
  %v3948 = vunpack.c.h.b16 %v1336
  %v3949 = vunpack.c.l.b16 %v1337
  %v3950 = vunpack.c.h.b16 %v1337
  %v3951 = vunpack.c.l.b16 %v1338
  %v3952 = vunpack.c.h.b16 %v1338
  %v3953 = vunpack.c.l.b16 %v1339
  %v3954 = vunpack.c.h.b16 %v1339
  %v3955 = vunpack.c.l.b16 %v1340
  %v3956 = vunpack.c.h.b16 %v1340
  %v3957 = vunpack.c.l.b16 %v1341
  %v3958 = vunpack.c.h.b16 %v1341
  %v3959 = vunpack.c.l.b16 %v1342
  %v3960 = vunpack.c.h.b16 %v1342
  %v3961 = vunpack.c.l.b16 %v1343
  %v3962 = vunpack.c.h.b16 %v1343
  %v3963 = vunpack.c.l.b16 %v1344
  %v3964 = vunpack.c.h.b16 %v1344
  %v3965 = vunpack.c.l.b16 %v1345
  %v3966 = vunpack.c.h.b16 %v1345
  %v3967 = vunpack.c.l.b16 %v1346
  %v3968 = vunpack.c.h.b16 %v1346
  %v3969 = vunpack.c.l.b16 %v1347
  %v3970 = vunpack.c.h.b16 %v1347
  %v3971 = vunpack.c.l.b16 %v1348
  %v3972 = vunpack.c.h.b16 %v1348
  %v3973 = vunpack.c.l.b16 %v1349
  %v3974 = vunpack.c.h.b16 %v1349
  %v3975 = vunpack.c.l.b16 %v1350
  %v3976 = vunpack.c.h.b16 %v1350
  %v3977 = vunpack.c.l.b16 %v1351
  %v3978 = vunpack.c.h.b16 %v1351
  %v3979 = vunpack.c.l.b16 %v1352
  %v3980 = vunpack.c.h.b16 %v1352
  %v3981 = vunpack.c.l.b16 %v1353
  %v3982 = vunpack.c.h.b16 %v1353
  %v3983 = vunpack.c.l.b16 %v1354
  %v3984 = vunpack.c.h.b16 %v1354
  %v3985 = vunpack.c.l.b16 %v1355
  %v3986 = vunpack.c.h.b16 %v1355
  %v3987 = vunpack.c.l.b16 %v1356
  %v3988 = vunpack.c.h.b16 %v1356
  %v3989 = vunpack.c.l.b16 %v1357
  %v3990 = vunpack.c.h.b16 %v1357
  %v3991 = vunpack.c.l.b16 %v1358
  %v3992 = vunpack.c.h.b16 %v1358
  %v3993 = vunpack.c.l.b16 %v1359
  %v3994 = vunpack.c.h.b16 %v1359
  %v3995 = vunpack.c.l.b16 %v1360
  %v3996 = vunpack.c.h.b16 %v1360
  %v3997 = vunpack.c.l.b16 %v1361
  %v3998 = vunpack.c.h.b16 %v1361
  %v3999 = vunpack.c.l.b16 %v1362
  %v4000 = vunpack.c.h.b16 %v1362
  %v4001 = vunpack.c.l.b16 %v1363
  %v4002 = vunpack.c.h.b16 %v1363
  %v4003 = vunpack.c.l.b16 %v1364
  %v4004 = vunpack.c.h.b16 %v1364
  %v4005 = vunpack.c.l.b16 %v1365
  %v4006 = vunpack.c.h.b16 %v1365
  %v4007 = vunpack.c.l.b16 %v1366
  %v4008 = vunpack.c.h.b16 %v1366
  %v4009 = vunpack.c.l.b16 %v1367
  %v4010 = vunpack.c.h.b16 %v1367
  %v4011 = vunpack.c.l.b16 %v1368
  %v4012 = vunpack.c.h.b16 %v1368
  %v4013 = vunpack.c.l.b16 %v1369
  %v4014 = vunpack.c.h.b16 %v1369
  %v4015 = vunpack.c.l.b16 %v1370
  %v4016 = vunpack.c.h.b16 %v1370
  %v4017 = vunpack.c.l.b16 %v1371
  %v4018 = vunpack.c.h.b16 %v1371
  %v4019 = vunpack.c.l.b16 %v1372
  %v4020 = vunpack.c.h.b16 %v1372
  %v4021 = vunpack.c.l.b16 %v1373
  %v4022 = vunpack.c.h.b16 %v1373
  %v4023 = vunpack.c.l.b16 %v1374
  %v4024 = vunpack.c.h.b16 %v1374
  %v4025 = vunpack.c.l.b16 %v1375
  %v4026 = vunpack.c.h.b16 %v1375
  %v4027 = vunpack.c.l.b16 %v1376
  %v4028 = vunpack.c.h.b16 %v1376
  %v4029 = vunpack.c.l.b16 %v1377
  %v4030 = vunpack.c.h.b16 %v1377
  %v4031 = vunpack.c.l.b16 %v1378
  %v4032 = vunpack.c.h.b16 %v1378
  %v4033 = vunpack.c.l.b16 %v1379
  %v4034 = vunpack.c.h.b16 %v1379
  %v4035 = vunpack.c.l.b16 %v1380
  %v4036 = vunpack.c.h.b16 %v1380
  %v4037 = vunpack.c.l.b16 %v1381
  %v4038 = vunpack.c.h.b16 %v1381
  %v4039 = vunpack.c.l.b16 %v1382
  %v4040 = vunpack.c.h.b16 %v1382
  %v4041 = vunpack.c.l.b16 %v1383
  %v4042 = vunpack.c.h.b16 %v1383
  %v4043 = vunpack.c.l.b16 %v1384
  %v4044 = vunpack.c.h.b16 %v1384
  %v4045 = vunpack.c.l.b16 %v1385
  %v4046 = vunpack.c.h.b16 %v1385
  %v4047 = vunpack.c.l.b16 %v1386
  %v4048 = vunpack.c.h.b16 %v1386
  %v4049 = vunpack.c.l.b16 %v1387
  %v4050 = vunpack.c.h.b16 %v1387
  %v4051 = vunpack.c.l.b16 %v1388
  %v4052 = vunpack.c.h.b16 %v1388
  %v4053 = vunpack.c.l.b16 %v1389
  %v4054 = vunpack.c.h.b16 %v1389
  %v4055 = vunpack.c.l.b16 %v1390
  %v4056 = vunpack.c.h.b16 %v1390
  %v4057 = vunpack.c.l.b16 %v1391
  %v4058 = vunpack.c.h.b16 %v1391
  %v4059 = vunpack.c.l.b16 %v1392
  %v4060 = vunpack.c.h.b16 %v1392
  %v4061 = vunpack.c.l.b16 %v1393
  %v4062 = vunpack.c.h.b16 %v1393
  %v4063 = vunpack.c.l.b16 %v1394
  %v4064 = vunpack.c.h.b16 %v1394
  %v4065 = vunpack.c.l.b16 %v1395
  %v4066 = vunpack.c.h.b16 %v1395
  %v4067 = vunpack.c.l.b16 %v1396
  %v4068 = vunpack.c.h.b16 %v1396
  %v4069 = vunpack.c.l.b16 %v1397
  %v4070 = vunpack.c.h.b16 %v1397
  %v4071 = vunpack.c.l.b16 %v1398
  %v4072 = vunpack.c.h.b16 %v1398
  %v4073 = vunpack.c.l.b16 %v1399
  %v4074 = vunpack.c.h.b16 %v1399
  %v4075 = vunpack.c.l.b16 %v1400
  %v4076 = vunpack.c.h.b16 %v1400
  %v4077 = vunpack.c.l.b16 %v1401
  %v4078 = vunpack.c.h.b16 %v1401
  %v4079 = vunpack.c.l.b16 %v1402
  %v4080 = vunpack.c.h.b16 %v1402
  %v4081 = vunpack.c.l.b16 %v1403
  %v4082 = vunpack.c.h.b16 %v1403
  %v4083 = vunpack.c.l.b16 %v1404
  %v4084 = vunpack.c.h.b16 %v1404
  %v4085 = vunpack.c.l.b16 %v1405
  %v4086 = vunpack.c.h.b16 %v1405
  %v4087 = vunpack.c.l.b16 %v1406
  %v4088 = vunpack.c.h.b16 %v1406
  %v4089 = vunpack.c.l.b16 %v1407
  %v4090 = vunpack.c.h.b16 %v1407
  %v4091 = vunpack.c.l.b16 %v1408
  %v4092 = vunpack.c.h.b16 %v1408
  %v4093 = vunpack.c.l.b16 %v1409
  %v4094 = vunpack.c.h.b16 %v1409
  %v4095 = vunpack.c.l.b16 %v1410
  %v4096 = vunpack.c.h.b16 %v1410
  %v4097 = vunpack.c.l.b16 %v1411
  %v4098 = vunpack.c.h.b16 %v1411
  %v4099 = vunpack.c.l.b16 %v1412
  %v4100 = vunpack.c.h.b16 %v1412
  %v4101 = vunpack.c.l.b16 %v1413
  %v4102 = vunpack.c.h.b16 %v1413
  %v4103 = vunpack.c.l.b16 %v1414
  %v4104 = vunpack.c.h.b16 %v1414
  %v4105 = vunpack.c.l.b16 %v1415
  %v4106 = vunpack.c.h.b16 %v1415
  %v4107 = vunpack.c.l.b16 %v1416
  %v4108 = vunpack.c.h.b16 %v1416
  %v4109 = vunpack.c.l.b16 %v1417
  %v4110 = vunpack.c.h.b16 %v1417
  %v4111 = vunpack.c.l.b16 %v1418
  %v4112 = vunpack.c.h.b16 %v1418
  %v4113 = vunpack.c.l.b16 %v1419
  %v4114 = vunpack.c.h.b16 %v1419
  %v4115 = vunpack.c.l.b16 %v1420
  %v4116 = vunpack.c.h.b16 %v1420
  %v4117 = vunpack.c.l.b16 %v1421
  %v4118 = vunpack.c.h.b16 %v1421
  %v4119 = vunpack.c.l.b16 %v1422
  %v4120 = vunpack.c.h.b16 %v1422
  %v4121 = vunpack.c.l.b16 %v1423
  %v4122 = vunpack.c.h.b16 %v1423
  %v4123 = vunpack.c.l.b16 %v1424
  %v4124 = vunpack.c.h.b16 %v1424
  %v4125 = vunpack.c.l.b16 %v1425
  %v4126 = vunpack.c.h.b16 %v1425
  %v4127 = vunpack.c.l.b16 %v1426
  %v4128 = vunpack.c.h.b16 %v1426
  %v4129 = vunpack.c.l.b16 %v1427
  %v4130 = vunpack.c.h.b16 %v1427
  %v4131 = vunpack.c.l.b16 %v1428
  %v4132 = vunpack.c.h.b16 %v1428
  %v4133 = vunpack.c.l.b16 %v1429
  %v4134 = vunpack.c.h.b16 %v1429
  %v4135 = vunpack.c.l.b16 %v1430
  %v4136 = vunpack.c.h.b16 %v1430
  %v4137 = vunpack.c.l.b16 %v1431
  %v4138 = vunpack.c.h.b16 %v1431
  %v4139 = vunpack.c.l.b16 %v1432
  %v4140 = vunpack.c.h.b16 %v1432
  %v4141 = vunpack.c.l.b16 %v1433
  %v4142 = vunpack.c.h.b16 %v1433
  %v4143 = vunpack.c.l.b16 %v1434
  %v4144 = vunpack.c.h.b16 %v1434
  %v4145 = vunpack.c.l.b16 %v1435
  %v4146 = vunpack.c.h.b16 %v1435
  %v4147 = vunpack.c.l.b16 %v1436
  %v4148 = vunpack.c.h.b16 %v1436
  %v4149 = vunpack.c.l.b16 %v1437
  %v4150 = vunpack.c.h.b16 %v1437
  %v4151 = vunpack.c.l.b16 %v1438
  %v4152 = vunpack.c.h.b16 %v1438
  %v4153 = vunpack.c.l.b16 %v1439
  %v4154 = vunpack.c.h.b16 %v1439
  %v4155 = vunpack.c.l.b16 %v1440
  %v4156 = vunpack.c.h.b16 %v1440
  %v4157 = vunpack.c.l.b16 %v1441
  %v4158 = vunpack.c.h.b16 %v1441
  %v4159 = vunpack.c.l.b16 %v1442
  %v4160 = vunpack.c.h.b16 %v1442
  %v4161 = vunpack.c.l.b16 %v1443
  %v4162 = vunpack.c.h.b16 %v1443
  %v4163 = vunpack.c.l.b16 %v1444
  %v4164 = vunpack.c.h.b16 %v1444
  %v4165 = vunpack.c.l.b16 %v1445
  %v4166 = vunpack.c.h.b16 %v1445
  %v4167 = vunpack.c.l.b16 %v1446
  %v4168 = vunpack.c.h.b16 %v1446
  %v4169 = vunpack.c.l.b16 %v1447
  %v4170 = vunpack.c.h.b16 %v1447
  %v4171 = vunpack.c.l.b16 %v1448
  %v4172 = vunpack.c.h.b16 %v1448
  %v4173 = vunpack.c.l.b16 %v1449
  %v4174 = vunpack.c.h.b16 %v1449
  %v4175 = vunpack.c.l.b16 %v1450
  %v4176 = vunpack.c.h.b16 %v1450
  %v4177 = vunpack.c.l.b16 %v1451
  %v4178 = vunpack.c.h.b16 %v1451
  %v4179 = vunpack.c.l.b16 %v1452
  %v4180 = vunpack.c.h.b16 %v1452
  %v4181 = vunpack.c.l.b16 %v1453
  %v4182 = vunpack.c.h.b16 %v1453
  %v4183 = vunpack.c.l.b16 %v1454
  %v4184 = vunpack.c.h.b16 %v1454
  %v4185 = vunpack.c.l.b16 %v1455
  %v4186 = vunpack.c.h.b16 %v1455
  %v4187 = vunpack.c.l.b16 %v1456
  %v4188 = vunpack.c.h.b16 %v1456
  %v4189 = vunpack.c.l.b16 %v1457
  %v4190 = vunpack.c.h.b16 %v1457
  %v4191 = vunpack.c.l.b16 %v1458
  %v4192 = vunpack.c.h.b16 %v1458
  %v4193 = vunpack.c.l.b16 %v1459
  %v4194 = vunpack.c.h.b16 %v1459
  %v4195 = vunpack.c.l.b16 %v1460
  %v4196 = vunpack.c.h.b16 %v1460
  %v4197 = vunpack.c.l.b16 %v1461
  %v4198 = vunpack.c.h.b16 %v1461
  %v4199 = vunpack.c.l.b16 %v1462
  %v4200 = vunpack.c.h.b16 %v1462
  %v4201 = vunpack.c.l.b16 %v1463
  %v4202 = vunpack.c.h.b16 %v1463
  %v4203 = vunpack.c.l.b16 %v1464
  %v4204 = vunpack.c.h.b16 %v1464
  %v4205 = vunpack.c.l.b16 %v1465
  %v4206 = vunpack.c.h.b16 %v1465
  %v4207 = vunpack.c.l.b16 %v1466
  %v4208 = vunpack.c.h.b16 %v1466
  %v4209 = vunpack.c.l.b16 %v1467
  %v4210 = vunpack.c.h.b16 %v1467
  %v4211 = vunpack.c.l.b16 %v1468
  %v4212 = vunpack.c.h.b16 %v1468
  %v4213 = vunpack.c.l.b16 %v1469
  %v4214 = vunpack.c.h.b16 %v1469
  %v4215 = vunpack.c.l.b16 %v1470
  %v4216 = vunpack.c.h.b16 %v1470
  %v4217 = vunpack.c.l.b16 %v1471
  %v4218 = vunpack.c.h.b16 %v1471
  %v4219 = vunpack.c.l.b16 %v1472
  %v4220 = vunpack.c.h.b16 %v1472
  %v4221 = vunpack.c.l.b16 %v1473
  %v4222 = vunpack.c.h.b16 %v1473
  %v4223 = vunpack.c.l.b16 %v1474
  %v4224 = vunpack.c.h.b16 %v1474
  %v4225 = vunpack.c.l.b16 %v1475
  %v4226 = vunpack.c.h.b16 %v1475
  %v4227 = vunpack.c.l.b16 %v1476
  %v4228 = vunpack.c.h.b16 %v1476
  %v4229 = vunpack.c.l.b16 %v1477
  %v4230 = vunpack.c.h.b16 %v1477
  %v4231 = vunpack.c.l.b16 %v1478
  %v4232 = vunpack.c.h.b16 %v1478
  %v4233 = vunpack.c.l.b16 %v1479
  %v4234 = vunpack.c.h.b16 %v1479
  %v4235 = vunpack.c.l.b16 %v1480
  %v4236 = vunpack.c.h.b16 %v1480
  %v4237 = vunpack.c.l.b16 %v1481
  %v4238 = vunpack.c.h.b16 %v1481
  %v4239 = vunpack.c.l.b16 %v1482
  %v4240 = vunpack.c.h.b16 %v1482
  %v4241 = vunpack.c.l.b16 %v1483
  %v4242 = vunpack.c.h.b16 %v1483
  %v4243 = vunpack.c.l.b16 %v1484
  %v4244 = vunpack.c.h.b16 %v1484
  %v4245 = vunpack.c.l.b16 %v1485
  %v4246 = vunpack.c.h.b16 %v1485
  %v4247 = vunpack.c.l.b16 %v1486
  %v4248 = vunpack.c.h.b16 %v1486
  %v4249 = vunpack.c.l.b16 %v1487
  %v4250 = vunpack.c.h.b16 %v1487
  %v4251 = vunpack.c.l.b16 %v1488
  %v4252 = vunpack.c.h.b16 %v1488
  %v4253 = vunpack.c.l.b16 %v1489
  %v4254 = vunpack.c.h.b16 %v1489
  %v4255 = vunpack.c.l.b16 %v1490
  %v4256 = vunpack.c.h.b16 %v1490
  %v4257 = vunpack.c.l.b16 %v1491
  %v4258 = vunpack.c.h.b16 %v1491
  %v4259 = vunpack.c.l.b16 %v1492
  %v4260 = vunpack.c.h.b16 %v1492
  %v4261 = vunpack.c.l.b16 %v1493
  %v4262 = vunpack.c.h.b16 %v1493
  %v4263 = vunpack.c.l.b16 %v1494
  %v4264 = vunpack.c.h.b16 %v1494
  %v4265 = vunpack.c.l.b16 %v1495
  %v4266 = vunpack.c.h.b16 %v1495
  %v4267 = vunpack.c.l.b16 %v1496
  %v4268 = vunpack.c.h.b16 %v1496
  %v4269 = vunpack.c.l.b16 %v1497
  %v4270 = vunpack.c.h.b16 %v1497
  %v4271 = vunpack.c.l.b16 %v1498
  %v4272 = vunpack.c.h.b16 %v1498
  %v4273 = vunpack.c.l.b16 %v1499
  %v4274 = vunpack.c.h.b16 %v1499
  %v4275 = vunpack.c.l.b16 %v1500
  %v4276 = vunpack.c.h.b16 %v1500
  %v4277 = vunpack.c.l.b16 %v1501
  %v4278 = vunpack.c.h.b16 %v1501
  %v4279 = vunpack.c.l.b16 %v1502
  %v4280 = vunpack.c.h.b16 %v1502
  %v4281 = vunpack.c.l.b16 %v1503
  %v4282 = vunpack.c.h.b16 %v1503
  %v4283 = vunpack.c.l.b16 %v1504
  %v4284 = vunpack.c.h.b16 %v1504
  %v4285 = vunpack.c.l.b16 %v1505
  %v4286 = vunpack.c.h.b16 %v1505
  %v4287 = vunpack.c.l.b16 %v1506
  %v4288 = vunpack.c.h.b16 %v1506
  %v4289 = vunpack.c.l.b16 %v1507
  %v4290 = vunpack.c.h.b16 %v1507
  %v4291 = vunpack.c.l.b16 %v1508
  %v4292 = vunpack.c.h.b16 %v1508
  %v4293 = vunpack.c.l.b16 %v1509
  %v4294 = vunpack.c.h.b16 %v1509
  %v4295 = vunpack.c.l.b16 %v1510
  %v4296 = vunpack.c.h.b16 %v1510
  %v4297 = vunpack.c.l.b16 %v1511
  %v4298 = vunpack.c.h.b16 %v1511
  %v4299 = vunpack.c.l.b16 %v1512
  %v4300 = vunpack.c.h.b16 %v1512
  %v4301 = vunpack.c.l.b16 %v1513
  %v4302 = vunpack.c.h.b16 %v1513
  %v4303 = vunpack.c.l.b16 %v1514
  %v4304 = vunpack.c.h.b16 %v1514
  %v4305 = vunpack.c.l.b16 %v1515
  %v4306 = vunpack.c.h.b16 %v1515
  %v4307 = vunpack.c.l.b16 %v1516
  %v4308 = vunpack.c.h.b16 %v1516
  %v4309 = vunpack.c.l.b16 %v1517
  %v4310 = vunpack.c.h.b16 %v1517
  %v4311 = vunpack.c.l.b16 %v1518
  %v4312 = vunpack.c.h.b16 %v1518
  %v4313 = vunpack.c.l.b16 %v1519
  %v4314 = vunpack.c.h.b16 %v1519
  %v4315 = vunpack.c.l.b16 %v1520
  %v4316 = vunpack.c.h.b16 %v1520
  %v4317 = vunpack.c.l.b16 %v1521
  %v4318 = vunpack.c.h.b16 %v1521
  %v4319 = vunpack.c.l.b16 %v1522
  %v4320 = vunpack.c.h.b16 %v1522
  %v4321 = vunpack.c.l.b16 %v1523
  %v4322 = vunpack.c.h.b16 %v1523
  %v4323 = vunpack.c.l.b16 %v1524
  %v4324 = vunpack.c.h.b16 %v1524
  %v4325 = vunpack.c.l.b16 %v1525
  %v4326 = vunpack.c.h.b16 %v1525
  %v4327 = vunpack.c.l.b16 %v1526
  %v4328 = vunpack.c.h.b16 %v1526
  %v4329 = vunpack.c.l.b16 %v1527
  %v4330 = vunpack.c.h.b16 %v1527
  %v4331 = vunpack.c.l.b16 %v1528
  %v4332 = vunpack.c.h.b16 %v1528
  %v4333 = vunpack.c.l.b16 %v1529
  %v4334 = vunpack.c.h.b16 %v1529
  %v4335 = vunpack.c.l.b16 %v1530
  %v4336 = vunpack.c.h.b16 %v1530
  %v4337 = vunpack.c.l.b16 %v1531
  %v4338 = vunpack.c.h.b16 %v1531
  %v4339 = vunpack.c.l.b16 %v1532
  %v4340 = vunpack.c.h.b16 %v1532
  %v4341 = vunpack.c.l.b16 %v1533
  %v4342 = vunpack.c.h.b16 %v1533
  %v4343 = vunpack.c.l.b16 %v1534
  %v4344 = vunpack.c.h.b16 %v1534
  %v4345 = vunpack.c.l.b16 %v1535
  %v4346 = vunpack.c.h.b16 %v1535
  %v4347 = vunpack.c.l.b16 %v1536
  %v4348 = vunpack.c.h.b16 %v1536
  %v4349 = vunpack.c.l.b16 %v1537
  %v4350 = vunpack.c.h.b16 %v1537
  %v4351 = vunpack.c.l.b16 %v1538
  %v4352 = vunpack.c.h.b16 %v1538
  %v4353 = vunpack.c.l.b16 %v1539
  %v4354 = vunpack.c.h.b16 %v1539
  %v4355 = vunpack.c.l.b16 %v1540
  %v4356 = vunpack.c.h.b16 %v1540
  %v4357 = vunpack.c.l.b16 %v1541
  %v4358 = vunpack.c.h.b16 %v1541
  %v4359 = vunpack.c.l.b16 %v1542
  %v4360 = vunpack.c.h.b16 %v1542
  %v4361 = vunpack.c.l.b16 %v1543
  %v4362 = vunpack.c.h.b16 %v1543
  %v4363 = vunpack.c.l.b16 %v1544
  %v4364 = vunpack.c.h.b16 %v1544
  %v4365 = vunpack.c.l.b16 %v1545
  %v4366 = vunpack.c.h.b16 %v1545
  %v4367 = vunpack.c.l.b16 %v1546
  %v4368 = vunpack.c.h.b16 %v1546
  %v4369 = vunpack.c.l.b16 %v1547
  %v4370 = vunpack.c.h.b16 %v1547
  %v4371 = vunpack.c.l.b16 %v1548
  %v4372 = vunpack.c.h.b16 %v1548
  %v4373 = vunpack.c.l.b16 %v1549
  %v4374 = vunpack.c.h.b16 %v1549
  %v4375 = vunpack.c.l.b16 %v1550
  %v4376 = vunpack.c.h.b16 %v1550
  %v4377 = vunpack.c.l.b16 %v1551
  %v4378 = vunpack.c.h.b16 %v1551
  %v4379 = vunpack.c.l.b16 %v1552
  %v4380 = vunpack.c.h.b16 %v1552
  %v4381 = vunpack.c.l.b16 %v1553
  %v4382 = vunpack.c.h.b16 %v1553
  %v4383 = vunpack.c.l.b16 %v1554
  %v4384 = vunpack.c.h.b16 %v1554
  %v4385 = vunpack.c.l.b16 %v1555
  %v4386 = vunpack.c.h.b16 %v1555
  %v4387 = vunpack.c.l.b16 %v1556
  %v4388 = vunpack.c.h.b16 %v1556
  %v4389 = vunpack.c.l.b16 %v1557
  %v4390 = vunpack.c.h.b16 %v1557
  %v4391 = vunpack.c.l.b16 %v1558
  %v4392 = vunpack.c.h.b16 %v1558
  %v4393 = vunpack.c.l.b16 %v1559
  %v4394 = vunpack.c.h.b16 %v1559
  %v4395 = vunpack.c.l.b16 %v1560
  %v4396 = vunpack.c.h.b16 %v1560
  %v4397 = vunpack.c.l.b16 %v1561
  %v4398 = vunpack.c.h.b16 %v1561
  %v4399 = vunpack.c.l.b16 %v1562
  %v4400 = vunpack.c.h.b16 %v1562
  %v4401 = vunpack.c.l.b16 %v1563
  %v4402 = vunpack.c.h.b16 %v1563
  %v4403 = vunpack.c.l.b16 %v1564
  %v4404 = vunpack.c.h.b16 %v1564
  %v4405 = vunpack.c.l.b16 %v1565
  %v4406 = vunpack.c.h.b16 %v1565
  %v4407 = vunpack.c.l.b16 %v1566
  %v4408 = vunpack.c.h.b16 %v1566
  %v4409 = vunpack.c.l.b16 %v1567
  %v4410 = vunpack.c.h.b16 %v1567
  %v4411 = vunpack.c.l.b16 %v1568
  %v4412 = vunpack.c.h.b16 %v1568
  %v4413 = vunpack.c.l.b16 %v1569
  %v4414 = vunpack.c.h.b16 %v1569
  %v4415 = vunpack.c.l.b16 %v1570
  %v4416 = vunpack.c.h.b16 %v1570
  %v4417 = vunpack.c.l.b16 %v1571
  %v4418 = vunpack.c.h.b16 %v1571
  %v4419 = vunpack.c.l.b16 %v1572
  %v4420 = vunpack.c.h.b16 %v1572
  %v4421 = vunpack.c.l.b16 %v1573
  %v4422 = vunpack.c.h.b16 %v1573
  %v4423 = vunpack.c.l.b16 %v1574
  %v4424 = vunpack.c.h.b16 %v1574
  %v4425 = vunpack.c.l.b16 %v1575
  %v4426 = vunpack.c.h.b16 %v1575
  %v4427 = vunpack.c.l.b16 %v1576
  %v4428 = vunpack.c.h.b16 %v1576
  %v4429 = vunpack.c.l.b16 %v1577
  %v4430 = vunpack.c.h.b16 %v1577
  %v4431 = vunpack.c.l.b16 %v1578
  %v4432 = vunpack.c.h.b16 %v1578
  %v4433 = vunpack.c.l.b16 %v1579
  %v4434 = vunpack.c.h.b16 %v1579
  %v4435 = vunpack.c.l.b16 %v1580
  %v4436 = vunpack.c.h.b16 %v1580
  %v4437 = vunpack.c.l.b16 %v1581
  %v4438 = vunpack.c.h.b16 %v1581
  %v4439 = vunpack.c.l.b16 %v1582
  %v4440 = vunpack.c.h.b16 %v1582
  %v4441 = vunpack.c.l.b16 %v1583
  %v4442 = vunpack.c.h.b16 %v1583
  %v4443 = vunpack.c.l.b16 %v1584
  %v4444 = vunpack.c.h.b16 %v1584
  %v4445 = vunpack.c.l.b16 %v1585
  %v4446 = vunpack.c.h.b16 %v1585
  %v4447 = vunpack.c.l.b16 %v1586
  %v4448 = vunpack.c.h.b16 %v1586
  %v4449 = vunpack.c.l.b16 %v1587
  %v4450 = vunpack.c.h.b16 %v1587
  %v4451 = vunpack.c.l.b16 %v1588
  %v4452 = vunpack.c.h.b16 %v1588
  %v4453 = vunpack.c.l.b16 %v1589
  %v4454 = vunpack.c.h.b16 %v1589
  %v4455 = vunpack.c.l.b16 %v1590
  %v4456 = vunpack.c.h.b16 %v1590
  %v4457 = vunpack.c.l.b16 %v1591
  %v4458 = vunpack.c.h.b16 %v1591
  %v4459 = vunpack.c.l.b16 %v1592
  %v4460 = vunpack.c.h.b16 %v1592
  %v4461 = vunpack.c.l.b16 %v1593
  %v4462 = vunpack.c.h.b16 %v1593
  %v4463 = vunpack.c.l.b16 %v1594
  %v4464 = vunpack.c.h.b16 %v1594
  %v4465 = vunpack.c.l.b16 %v1595
  %v4466 = vunpack.c.h.b16 %v1595
  %v4467 = vunpack.c.l.b16 %v1596
  %v4468 = vunpack.c.h.b16 %v1596
  %v4469 = vunpack.c.l.b16 %v1597
  %v4470 = vunpack.c.h.b16 %v1597
  %v4471 = vunpack.c.l.b16 %v1598
  %v4472 = vunpack.c.h.b16 %v1598
  %v4473 = vunpack.c.l.b16 %v1599
  %v4474 = vunpack.c.h.b16 %v1599
  %v4475 = vunpack.c.l.b16 %v1600
  %v4476 = vunpack.c.h.b16 %v1600
  %v4477 = vunpack.c.l.b16 %v1601
  %v4478 = vunpack.c.h.b16 %v1601
  %v4479 = vunpack.c.l.b16 %v1602
  %v4480 = vunpack.c.h.b16 %v1602
  %v4481 = vunpack.c.l.b16 %v1603
  %v4482 = vunpack.c.h.b16 %v1603
  %v4483 = vunpack.c.l.b16 %v1604
  %v4484 = vunpack.c.h.b16 %v1604
  %v4485 = vunpack.c.l.b16 %v1605
  %v4486 = vunpack.c.h.b16 %v1605
  %v4487 = vunpack.c.l.b16 %v1606
  %v4488 = vunpack.c.h.b16 %v1606
  %v4489 = vunpack.c.l.b16 %v1607
  %v4490 = vunpack.c.h.b16 %v1607
  %v4491 = vunpack.c.l.b16 %v1608
  %v4492 = vunpack.c.h.b16 %v1608
  %v4493 = vunpack.c.l.b16 %v1609
  %v4494 = vunpack.c.h.b16 %v1609
  %v4495 = vunpack.c.l.b16 %v1610
  %v4496 = vunpack.c.h.b16 %v1610
  %v4497 = vunpack.c.l.b16 %v1611
  %v4498 = vunpack.c.h.b16 %v1611
  %v4499 = vunpack.c.l.b16 %v1612
  %v4500 = vunpack.c.h.b16 %v1612
  %v4501 = vunpack.c.l.b16 %v1613
  %v4502 = vunpack.c.h.b16 %v1613
  %v4503 = vunpack.c.l.b16 %v1614
  %v4504 = vunpack.c.h.b16 %v1614
  %v4505 = vunpack.c.l.b16 %v1615
  %v4506 = vunpack.c.h.b16 %v1615
  %v4507 = vunpack.c.l.b16 %v1616
  %v4508 = vunpack.c.h.b16 %v1616
  %v4509 = vunpack.c.l.b16 %v1617
  %v4510 = vunpack.c.h.b16 %v1617
  %v4511 = vunpack.c.l.b16 %v1618
  %v4512 = vunpack.c.h.b16 %v1618
  %v4513 = vunpack.c.l.b16 %v1619
  %v4514 = vunpack.c.h.b16 %v1619
  %v4515 = vunpack.c.l.b16 %v1620
  %v4516 = vunpack.c.h.b16 %v1620
  %v4517 = vunpack.c.l.b16 %v1621
  %v4518 = vunpack.c.h.b16 %v1621
  %v4519 = vunpack.c.l.b16 %v1622
  %v4520 = vunpack.c.h.b16 %v1622
  %v4521 = vunpack.c.l.b16 %v1623
  %v4522 = vunpack.c.h.b16 %v1623
  %v4523 = vunpack.c.l.b16 %v1624
  %v4524 = vunpack.c.h.b16 %v1624
  %v4525 = vunpack.c.l.b16 %v1625
  %v4526 = vunpack.c.h.b16 %v1625
  %v4527 = vunpack.c.l.b16 %v1626
  %v4528 = vunpack.c.h.b16 %v1626
  %v4529 = vunpack.c.l.b16 %v1627
  %v4530 = vunpack.c.h.b16 %v1627
  %v4531 = vunpack.c.l.b16 %v1628
  %v4532 = vunpack.c.h.b16 %v1628
  %v4533 = vunpack.c.l.b16 %v1629
  %v4534 = vunpack.c.h.b16 %v1629
  %v4535 = vunpack.c.l.b16 %v1630
  %v4536 = vunpack.c.h.b16 %v1630
  %v4537 = vunpack.c.l.b16 %v1631
  %v4538 = vunpack.c.h.b16 %v1631
  %v4539 = vunpack.c.l.b16 %v1632
  %v4540 = vunpack.c.h.b16 %v1632
  %v4541 = vunpack.c.l.b16 %v1633
  %v4542 = vunpack.c.h.b16 %v1633
  %v4543 = vunpack.c.l.b16 %v1634
  %v4544 = vunpack.c.h.b16 %v1634
  %v4545 = vunpack.c.l.b16 %v1635
  %v4546 = vunpack.c.h.b16 %v1635
  %v4547 = vunpack.c.l.b16 %v1636
  %v4548 = vunpack.c.h.b16 %v1636
  %v4549 = vunpack.c.l.b16 %v1637
  %v4550 = vunpack.c.h.b16 %v1637
  %v4551 = vunpack.c.l.b16 %v1638
  %v4552 = vunpack.c.h.b16 %v1638
  %v4553 = vunpack.c.l.b16 %v1639
  %v4554 = vunpack.c.h.b16 %v1639
  %v4555 = vunpack.c.l.b16 %v1640
  %v4556 = vunpack.c.h.b16 %v1640
  %v4557 = vunpack.c.l.b16 %v1641
  %v4558 = vunpack.c.h.b16 %v1641
  %v4559 = vunpack.c.l.b16 %v1642
  %v4560 = vunpack.c.h.b16 %v1642
  %v4561 = vunpack.c.l.b16 %v1643
  %v4562 = vunpack.c.h.b16 %v1643
  %v4563 = vunpack.c.l.b16 %v1644
  %v4564 = vunpack.c.h.b16 %v1644
  %v4565 = vunpack.c.l.b16 %v1645
  %v4566 = vunpack.c.h.b16 %v1645
  %v4567 = vunpack.c.l.b16 %v1646
  %v4568 = vunpack.c.h.b16 %v1646
  %v4569 = vunpack.c.l.b16 %v1647
  %v4570 = vunpack.c.h.b16 %v1647
  %v4571 = vunpack.c.l.b16 %v1648
  %v4572 = vunpack.c.h.b16 %v1648
  %v4573 = vunpack.c.l.b16 %v1649
  %v4574 = vunpack.c.h.b16 %v1649
  %v4575 = vunpack.c.l.b16 %v1650
  %v4576 = vunpack.c.h.b16 %v1650
  %v4577 = vunpack.c.l.b16 %v1651
  %v4578 = vunpack.c.h.b16 %v1651
  %v4579 = vunpack.c.l.b16 %v1652
  %v4580 = vunpack.c.h.b16 %v1652
  %v4581 = vunpack.c.l.b16 %v1653
  %v4582 = vunpack.c.h.b16 %v1653
  %v4583 = vunpack.c.l.b16 %v1654
  %v4584 = vunpack.c.h.b16 %v1654
  %v4585 = vunpack.c.l.b16 %v1655
  %v4586 = vunpack.c.h.b16 %v1655
  %v4587 = vunpack.c.l.b16 %v1656
  %v4588 = vunpack.c.h.b16 %v1656
  %v4589 = vunpack.c.l.b16 %v1657
  %v4590 = vunpack.c.h.b16 %v1657
  %v4591 = vunpack.c.l.b16 %v1658
  %v4592 = vunpack.c.h.b16 %v1658
  %v4593 = vunpack.c.l.b16 %v1659
  %v4594 = vunpack.c.h.b16 %v1659
  %v4595 = vunpack.c.l.b16 %v1660
  %v4596 = vunpack.c.h.b16 %v1660
  %v4597 = vunpack.c.l.b16 %v1661
  %v4598 = vunpack.c.h.b16 %v1661
  %v4599 = vunpack.c.l.b16 %v1662
  %v4600 = vunpack.c.h.b16 %v1662
  %v4601 = vunpack.c.l.b16 %v1663
  %v4602 = vunpack.c.h.b16 %v1663
  %v4603 = vunpack.c.l.b16 %v1664
  %v4604 = vunpack.c.h.b16 %v1664
  %v4605 = vunpack.c.l.b16 %v1665
  %v4606 = vunpack.c.h.b16 %v1665
  %v4607 = vunpack.c.l.b16 %v1666
  %v4608 = vunpack.c.h.b16 %v1666
  %v4609 = vunpack.c.l.b16 %v1667
  %v4610 = vunpack.c.h.b16 %v1667
  %v4611 = vunpack.c.l.b16 %v1668
  %v4612 = vunpack.c.h.b16 %v1668
  %v4613 = vunpack.c.l.b16 %v1669
  %v4614 = vunpack.c.h.b16 %v1669
  %v4615 = vunpack.c.l.b16 %v1670
  %v4616 = vunpack.c.h.b16 %v1670
  %v4617 = vunpack.c.l.b16 %v1671
  %v4618 = vunpack.c.h.b16 %v1671
  %v4619 = vunpack.c.l.b16 %v1672
  %v4620 = vunpack.c.h.b16 %v1672
  %v4621 = vunpack.c.l.b16 %v1673
  %v4622 = vunpack.c.h.b16 %v1673
  %v4623 = vunpack.c.l.b16 %v1674
  %v4624 = vunpack.c.h.b16 %v1674
  %v4625 = vunpack.c.l.b16 %v1675
  %v4626 = vunpack.c.h.b16 %v1675
  %v4627 = vunpack.c.l.b16 %v1676
  %v4628 = vunpack.c.h.b16 %v1676
  %v4629 = vunpack.c.l.b16 %v1677
  %v4630 = vunpack.c.h.b16 %v1677
  %v4631 = vunpack.c.l.b16 %v1678
  %v4632 = vunpack.c.h.b16 %v1678
  %v4633 = vunpack.c.l.b16 %v1679
  %v4634 = vunpack.c.h.b16 %v1679
  %v4635 = vunpack.c.l.b16 %v1680
  %v4636 = vunpack.c.h.b16 %v1680
  %v4637 = vunpack.c.l.b16 %v1681
  %v4638 = vunpack.c.h.b16 %v1681
  %v4639 = vunpack.c.l.b16 %v1682
  %v4640 = vunpack.c.h.b16 %v1682
  %v4641 = vunpack.c.l.b16 %v1683
  %v4642 = vunpack.c.h.b16 %v1683
  %v4643 = vunpack.c.l.b16 %v1684
  %v4644 = vunpack.c.h.b16 %v1684
  %v4645 = vunpack.c.l.b16 %v1685
  %v4646 = vunpack.c.h.b16 %v1685
  %v4647 = vunpack.c.l.b16 %v1686
  %v4648 = vunpack.c.h.b16 %v1686
  %v4649 = vunpack.c.l.b16 %v1687
  %v4650 = vunpack.c.h.b16 %v1687
  %v4651 = vunpack.c.l.b16 %v1688
  %v4652 = vunpack.c.h.b16 %v1688
  %v4653 = vunpack.c.l.b16 %v1689
  %v4654 = vunpack.c.h.b16 %v1689
  %v4655 = vunpack.c.l.b16 %v1690
  %v4656 = vunpack.c.h.b16 %v1690
  %v4657 = vunpack.c.l.b16 %v1691
  %v4658 = vunpack.c.h.b16 %v1691
  %v4659 = vunpack.c.l.b16 %v1692
  %v4660 = vunpack.c.h.b16 %v1692
  %v4661 = vunpack.c.l.b16 %v1693
  %v4662 = vunpack.c.h.b16 %v1693
  %v4663 = vunpack.c.l.b16 %v1694
  %v4664 = vunpack.c.h.b16 %v1694
  %v4665 = vunpack.c.l.b16 %v1695
  %v4666 = vunpack.c.h.b16 %v1695
  %v4667 = vunpack.c.l.b16 %v1696
  %v4668 = vunpack.c.h.b16 %v1696
  %v4669 = vunpack.c.l.b16 %v1697
  %v4670 = vunpack.c.h.b16 %v1697
  %v4671 = vunpack.c.l.b16 %v1698
  %v4672 = vunpack.c.h.b16 %v1698
  %v4673 = vunpack.c.l.b16 %v1699
  %v4674 = vunpack.c.h.b16 %v1699
  %v4675 = vunpack.c.l.b16 %v1700
  %v4676 = vunpack.c.h.b16 %v1700
  %v4677 = vunpack.c.l.b16 %v1701
  %v4678 = vunpack.c.h.b16 %v1701
  %v4679 = vunpack.c.l.b16 %v1702
  %v4680 = vunpack.c.h.b16 %v1702
  %v4681 = vunpack.c.l.b16 %v1703
  %v4682 = vunpack.c.h.b16 %v1703
  %v4683 = vunpack.c.l.b16 %v1704
  %v4684 = vunpack.c.h.b16 %v1704
  %v4685 = vunpack.c.l.b16 %v1705
  %v4686 = vunpack.c.h.b16 %v1705
  %v4687 = vunpack.c.l.b16 %v1706
  %v4688 = vunpack.c.h.b16 %v1706
  %v4689 = vunpack.c.l.b16 %v1707
  %v4690 = vunpack.c.h.b16 %v1707
  %v4691 = vunpack.c.l.b16 %v1708
  %v4692 = vunpack.c.h.b16 %v1708
  %v4693 = vunpack.c.l.b16 %v1709
  %v4694 = vunpack.c.h.b16 %v1709
  %v4695 = vunpack.c.l.b16 %v1710
  %v4696 = vunpack.c.h.b16 %v1710
  %v4697 = vunpack.c.l.b16 %v1711
  %v4698 = vunpack.c.h.b16 %v1711
  %v4699 = vunpack.c.l.b16 %v1712
  %v4700 = vunpack.c.h.b16 %v1712
  %v4701 = vunpack.c.l.b16 %v1713
  %v4702 = vunpack.c.h.b16 %v1713
  %v4703 = vunpack.c.l.b16 %v1714
  %v4704 = vunpack.c.h.b16 %v1714
  %v4705 = vunpack.c.l.b16 %v1715
  %v4706 = vunpack.c.h.b16 %v1715
  %v4707 = vunpack.c.l.b16 %v1716
  %v4708 = vunpack.c.h.b16 %v1716
  %v4709 = vunpack.c.l.b16 %v1717
  %v4710 = vunpack.c.h.b16 %v1717
  %v4711 = vunpack.c.l.b16 %v1718
  %v4712 = vunpack.c.h.b16 %v1718
  %v4713 = vunpack.c.l.b16 %v1719
  %v4714 = vunpack.c.h.b16 %v1719
  %v4715 = vunpack.c.l.b16 %v1720
  %v4716 = vunpack.c.h.b16 %v1720
  %v4717 = vunpack.c.l.b16 %v1721
  %v4718 = vunpack.c.h.b16 %v1721
  %v4719 = vunpack.c.l.b16 %v1722
  %v4720 = vunpack.c.h.b16 %v1722
  %v4721 = vunpack.c.l.b16 %v1723
  %v4722 = vunpack.c.h.b16 %v1723
  %v4723 = vunpack.c.l.b16 %v1724
  %v4724 = vunpack.c.h.b16 %v1724
  %v4725 = vunpack.c.l.b16 %v1725
  %v4726 = vunpack.c.h.b16 %v1725
  %v4727 = vunpack.c.l.b16 %v1726
  %v4728 = vunpack.c.h.b16 %v1726
  %v4729 = vunpack.c.l.b16 %v1727
  %v4730 = vunpack.c.h.b16 %v1727
  %v4731 = vunpack.c.l.b16 %v1728
  %v4732 = vunpack.c.h.b16 %v1728
  %v4733 = vunpack.c.l.b16 %v1729
  %v4734 = vunpack.c.h.b16 %v1729
  %v4735 = vunpack.c.l.b16 %v1730
  %v4736 = vunpack.c.h.b16 %v1730
  %v4737 = vunpack.c.l.b16 %v1731
  %v4738 = vunpack.c.h.b16 %v1731
  %v4739 = vunpack.c.l.b16 %v1732
  %v4740 = vunpack.c.h.b16 %v1732
  %v4741 = vunpack.c.l.b16 %v1733
  %v4742 = vunpack.c.h.b16 %v1733
  %v4743 = vunpack.c.l.b16 %v1734
  %v4744 = vunpack.c.h.b16 %v1734
  %v4745 = vunpack.c.l.b16 %v1735
  %v4746 = vunpack.c.h.b16 %v1735
  %v4747 = vunpack.c.l.b16 %v1736
  %v4748 = vunpack.c.h.b16 %v1736
  %v4749 = vunpack.c.l.b16 %v1737
  %v4750 = vunpack.c.h.b16 %v1737
  %v4751 = vunpack.c.l.b16 %v1738
  %v4752 = vunpack.c.h.b16 %v1738
  %v4753 = vunpack.c.l.b16 %v1739
  %v4754 = vunpack.c.h.b16 %v1739
  %v4755 = vunpack.c.l.b16 %v1740
  %v4756 = vunpack.c.h.b16 %v1740
  %v4757 = vunpack.c.l.b16 %v1741
  %v4758 = vunpack.c.h.b16 %v1741
  %v4759 = vunpack.c.l.b16 %v1742
  %v4760 = vunpack.c.h.b16 %v1742
  %v4761 = vunpack.c.l.b16 %v1743
  %v4762 = vunpack.c.h.b16 %v1743
  %v4763 = vunpack.c.l.b16 %v1744
  %v4764 = vunpack.c.h.b16 %v1744
  %v4765 = vunpack.c.l.b16 %v1745
  %v4766 = vunpack.c.h.b16 %v1745
  %v4767 = vunpack.c.l.b16 %v1746
  %v4768 = vunpack.c.h.b16 %v1746
  %v4769 = vunpack.c.l.b16 %v1747
  %v4770 = vunpack.c.h.b16 %v1747
  %v4771 = vunpack.c.l.b16 %v1748
  %v4772 = vunpack.c.h.b16 %v1748
  %v4773 = vunpack.c.l.b16 %v1749
  %v4774 = vunpack.c.h.b16 %v1749
  %v4775 = vunpack.c.l.b16 %v1750
  %v4776 = vunpack.c.h.b16 %v1750
  %v4777 = vunpack.c.l.b16 %v1751
  %v4778 = vunpack.c.h.b16 %v1751
  %v4779 = vunpack.c.l.b16 %v1752
  %v4780 = vunpack.c.h.b16 %v1752
  %v4781 = vunpack.c.l.b16 %v1753
  %v4782 = vunpack.c.h.b16 %v1753
  %v4783 = vunpack.c.l.b16 %v1754
  %v4784 = vunpack.c.h.b16 %v1754
  %v4785 = vunpack.c.l.b16 %v1755
  %v4786 = vunpack.c.h.b16 %v1755
  %v4787 = vunpack.c.l.b16 %v1756
  %v4788 = vunpack.c.h.b16 %v1756
  %v4789 = vunpack.c.l.b16 %v1757
  %v4790 = vunpack.c.h.b16 %v1757
  %v4791 = vunpack.c.l.b16 %v1758
  %v4792 = vunpack.c.h.b16 %v1758
  %v4793 = vunpack.c.l.b16 %v1759
  %v4794 = vunpack.c.h.b16 %v1759
  %v4795 = vunpack.c.l.b16 %v1760
  %v4796 = vunpack.c.h.b16 %v1760
  %v4797 = vunpack.c.l.b16 %v1761
  %v4798 = vunpack.c.h.b16 %v1761
  %v4799 = vunpack.c.l.b16 %v1762
  %v4800 = vunpack.c.h.b16 %v1762
  %v4801 = vunpack.c.l.b16 %v1763
  %v4802 = vunpack.c.h.b16 %v1763
  %v4803 = vunpack.c.l.b16 %v1764
  %v4804 = vunpack.c.h.b16 %v1764
  %v4805 = vunpack.c.l.b16 %v1765
  %v4806 = vunpack.c.h.b16 %v1765
  %v4807 = vunpack.c.l.b16 %v1766
  %v4808 = vunpack.c.h.b16 %v1766
  %v4809 = vunpack.c.l.b16 %v1767
  %v4810 = vunpack.c.h.b16 %v1767
  %v4811 = vunpack.c.l.b16 %v1768
  %v4812 = vunpack.c.h.b16 %v1768
  %v4813 = vunpack.c.l.b16 %v1769
  %v4814 = vunpack.c.h.b16 %v1769
  %v4815 = vunpack.c.l.b16 %v1770
  %v4816 = vunpack.c.h.b16 %v1770
  %v4817 = vunpack.c.l.b16 %v1771
  %v4818 = vunpack.c.h.b16 %v1771
  %v4819 = vunpack.c.l.b16 %v1772
  %v4820 = vunpack.c.h.b16 %v1772
  %v4821 = vunpack.c.l.b16 %v1773
  %v4822 = vunpack.c.h.b16 %v1773
  %v4823 = vunpack.c.l.b16 %v1774
  %v4824 = vunpack.c.h.b16 %v1774
  %v4825 = vunpack.c.l.b16 %v1775
  %v4826 = vunpack.c.h.b16 %v1775
  %v4827 = vunpack.c.l.b16 %v1776
  %v4828 = vunpack.c.h.b16 %v1776
  %v4829 = vunpack.c.l.b16 %v1777
  %v4830 = vunpack.c.h.b16 %v1777
  %v4831 = vunpack.c.l.b16 %v1778
  %v4832 = vunpack.c.h.b16 %v1778
  %v4833 = vunpack.c.l.b16 %v1779
  %v4834 = vunpack.c.h.b16 %v1779
  %v4835 = vunpack.c.l.b16 %v1780
  %v4836 = vunpack.c.h.b16 %v1780
  %v4837 = vunpack.c.l.b16 %v1781
  %v4838 = vunpack.c.h.b16 %v1781
  %v4839 = vunpack.c.l.b16 %v1782
  %v4840 = vunpack.c.h.b16 %v1782
  %v4841 = vunpack.c.l.b16 %v1783
  %v4842 = vunpack.c.h.b16 %v1783
  %v4843 = vunpack.c.l.b16 %v1784
  %v4844 = vunpack.c.h.b16 %v1784
  %v4845 = vunpack.c.l.b16 %v1785
  %v4846 = vunpack.c.h.b16 %v1785
  %v4847 = vunpack.c.l.b16 %v1786
  %v4848 = vunpack.c.h.b16 %v1786
  %v4849 = vunpack.c.l.b16 %v1787
  %v4850 = vunpack.c.h.b16 %v1787
  %v4851 = vunpack.c.l.b16 %v1788
  %v4852 = vunpack.c.h.b16 %v1788
  %v4853 = vunpack.c.l.b16 %v1789
  %v4854 = vunpack.c.h.b16 %v1789
  %v4855 = vunpack.c.l.b16 %v1790
  %v4856 = vunpack.c.h.b16 %v1790
  %v4857 = vunpack.c.l.b16 %v1791
  %v4858 = vunpack.c.h.b16 %v1791
  %v4859 = vunpack.c.l.b16 %v1792
  %v4860 = vunpack.c.h.b16 %v1792
  %v4861 = vunpack.c.l.b16 %v1793
  %v4862 = vunpack.c.h.b16 %v1793
  %v4863 = vunpack.c.l.b16 %v1794
  %v4864 = vunpack.c.h.b16 %v1794
  %v4865 = vunpack.c.l.b16 %v1795
  %v4866 = vunpack.c.h.b16 %v1795
  %v4867 = vunpack.c.l.b16 %v1796
  %v4868 = vunpack.c.h.b16 %v1796
  %v4869 = vunpack.c.l.b16 %v1797
  %v4870 = vunpack.c.h.b16 %v1797
  %v4871 = vunpack.c.l.b16 %v1798
  %v4872 = vunpack.c.h.b16 %v1798
  %v4873 = vunpack.c.l.b16 %v1799
  %v4874 = vunpack.c.h.b16 %v1799
  %v4875 = vunpack.c.l.b16 %v1800
  %v4876 = vunpack.c.h.b16 %v1800
  %v4877 = vunpack.c.l.b16 %v1801
  %v4878 = vunpack.c.h.b16 %v1801
  %v4879 = vunpack.c.l.b16 %v1802
  %v4880 = vunpack.c.h.b16 %v1802
  %v4881 = vunpack.c.l.b16 %v1803
  %v4882 = vunpack.c.h.b16 %v1803
  %v4883 = vunpack.c.l.b16 %v1804
  %v4884 = vunpack.c.h.b16 %v1804
  %v4885 = vunpack.c.l.b16 %v1805
  %v4886 = vunpack.c.h.b16 %v1805
  %v4887 = vunpack.c.l.b16 %v1806
  %v4888 = vunpack.c.h.b16 %v1806
  %v4889 = vunpack.c.l.b16 %v1807
  %v4890 = vunpack.c.h.b16 %v1807
  %v4891 = vunpack.c.l.b16 %v1808
  %v4892 = vunpack.c.h.b16 %v1808
  %v4893 = vunpack.c.l.b16 %v1809
  %v4894 = vunpack.c.h.b16 %v1809
  %v4895 = vunpack.c.l.b16 %v1810
  %v4896 = vunpack.c.h.b16 %v1810
  %v4897 = vunpack.c.l.b16 %v1811
  %v4898 = vunpack.c.h.b16 %v1811
  %v4899 = vunpack.c.l.b16 %v1812
  %v4900 = vunpack.c.h.b16 %v1812
  %v4901 = vunpack.c.l.b16 %v1813
  %v4902 = vunpack.c.h.b16 %v1813
  %v4903 = vunpack.c.l.b16 %v1814
  %v4904 = vunpack.c.h.b16 %v1814
  %v4905 = vunpack.c.l.b16 %v1815
  %v4906 = vunpack.c.h.b16 %v1815
  %v4907 = vunpack.c.l.b16 %v1816
  %v4908 = vunpack.c.h.b16 %v1816
  %v4909 = vunpack.c.l.b16 %v1817
  %v4910 = vunpack.c.h.b16 %v1817
  %v4911 = vunpack.c.l.b16 %v1818
  %v4912 = vunpack.c.h.b16 %v1818
  %v4913 = vpack.c.b16 %v2869, %v2865
  %v4914 = vpack.c.b16 %v2870, %v2866
  %v4915 = vpack.c.b16 %v2871, %v2867
  %v4916 = vpack.c.b16 %v2872, %v2868
  %v4917 = vpack.c.b16 %v2877, %v2873
  %v4918 = vpack.c.b16 %v2878, %v2874
  %v4919 = vpack.c.b16 %v2879, %v2875
  %v4920 = vpack.c.b16 %v2880, %v2876
  %v4921 = vpack.c.b16 %v2885, %v2881
  %v4922 = vpack.c.b16 %v2886, %v2882
  %v4923 = vpack.c.b16 %v2887, %v2883
  %v4924 = vpack.c.b16 %v2888, %v2884
  %v4925 = vpack.c.b16 %v2893, %v2889
  %v4926 = vpack.c.b16 %v2894, %v2890
  %v4927 = vpack.c.b16 %v2895, %v2891
  %v4928 = vpack.c.b16 %v2896, %v2892
  %v4929 = vpack.c.b16 %v2901, %v2897
  %v4930 = vpack.c.b16 %v2902, %v2898
  %v4931 = vpack.c.b16 %v2903, %v2899
  %v4932 = vpack.c.b16 %v2904, %v2900
  %v4933 = vpack.c.b16 %v2909, %v2905
  %v4934 = vpack.c.b16 %v2910, %v2906
  %v4935 = vpack.c.b16 %v2911, %v2907
  %v4936 = vpack.c.b16 %v2912, %v2908
  %v4937 = vpack.c.b16 %v2917, %v2913
  %v4938 = vpack.c.b16 %v2918, %v2914
  %v4939 = vpack.c.b16 %v2919, %v2915
  %v4940 = vpack.c.b16 %v2920, %v2916
  %v4941 = vpack.c.b16 %v2925, %v2921
  %v4942 = vpack.c.b16 %v2926, %v2922
  %v4943 = vpack.c.b16 %v2927, %v2923
  %v4944 = vpack.c.b16 %v2928, %v2924
  %v4945 = vpack.c.b16 %v2933, %v2929
  %v4946 = vpack.c.b16 %v2934, %v2930
  %v4947 = vpack.c.b16 %v2935, %v2931
  %v4948 = vpack.c.b16 %v2936, %v2932
  %v4949 = vpack.c.b16 %v2941, %v2937
  %v4950 = vpack.c.b16 %v2942, %v2938
  %v4951 = vpack.c.b16 %v2943, %v2939
  %v4952 = vpack.c.b16 %v2944, %v2940
  %v4953 = vpack.c.b16 %v2949, %v2945
  %v4954 = vpack.c.b16 %v2950, %v2946
  %v4955 = vpack.c.b16 %v2951, %v2947
  %v4956 = vpack.c.b16 %v2952, %v2948
  %v4957 = vpack.c.b16 %v2957, %v2953
  %v4958 = vpack.c.b16 %v2958, %v2954
  %v4959 = vpack.c.b16 %v2959, %v2955
  %v4960 = vpack.c.b16 %v2960, %v2956
  %v4961 = vpack.c.b16 %v2965, %v2961
  %v4962 = vpack.c.b16 %v2966, %v2962
  %v4963 = vpack.c.b16 %v2967, %v2963
  %v4964 = vpack.c.b16 %v2968, %v2964
  %v4965 = vpack.c.b16 %v2973, %v2969
  %v4966 = vpack.c.b16 %v2974, %v2970
  %v4967 = vpack.c.b16 %v2975, %v2971
  %v4968 = vpack.c.b16 %v2976, %v2972
  %v4969 = vpack.c.b16 %v2981, %v2977
  %v4970 = vpack.c.b16 %v2982, %v2978
  %v4971 = vpack.c.b16 %v2983, %v2979
  %v4972 = vpack.c.b16 %v2984, %v2980
  %v4973 = vpack.c.b16 %v2989, %v2985
  %v4974 = vpack.c.b16 %v2990, %v2986
  %v4975 = vpack.c.b16 %v2991, %v2987
  %v4976 = vpack.c.b16 %v2992, %v2988
  %v4977 = vpack.c.b16 %v2997, %v2993
  %v4978 = vpack.c.b16 %v2998, %v2994
  %v4979 = vpack.c.b16 %v2999, %v2995
  %v4980 = vpack.c.b16 %v3000, %v2996
  %v4981 = vpack.c.b16 %v3005, %v3001
  %v4982 = vpack.c.b16 %v3006, %v3002
  %v4983 = vpack.c.b16 %v3007, %v3003
  %v4984 = vpack.c.b16 %v3008, %v3004
  %v4985 = vpack.c.b16 %v3013, %v3009
  %v4986 = vpack.c.b16 %v3014, %v3010
  %v4987 = vpack.c.b16 %v3015, %v3011
  %v4988 = vpack.c.b16 %v3016, %v3012
  %v4989 = vpack.c.b16 %v3021, %v3017
  %v4990 = vpack.c.b16 %v3022, %v3018
  %v4991 = vpack.c.b16 %v3023, %v3019
  %v4992 = vpack.c.b16 %v3024, %v3020
  %v4993 = vpack.c.b16 %v3029, %v3025
  %v4994 = vpack.c.b16 %v3030, %v3026
  %v4995 = vpack.c.b16 %v3031, %v3027
  %v4996 = vpack.c.b16 %v3032, %v3028
  %v4997 = vpack.c.b16 %v3037, %v3033
  %v4998 = vpack.c.b16 %v3038, %v3034
  %v4999 = vpack.c.b16 %v3039, %v3035
  %v5000 = vpack.c.b16 %v3040, %v3036
  %v5001 = vpack.c.b16 %v3045, %v3041
  %v5002 = vpack.c.b16 %v3046, %v3042
  %v5003 = vpack.c.b16 %v3047, %v3043
  %v5004 = vpack.c.b16 %v3048, %v3044
  %v5005 = vpack.c.b16 %v3053, %v3049
  %v5006 = vpack.c.b16 %v3054, %v3050
  %v5007 = vpack.c.b16 %v3055, %v3051
  %v5008 = vpack.c.b16 %v3056, %v3052
  %v5009 = vpack.c.b16 %v3061, %v3057
  %v5010 = vpack.c.b16 %v3062, %v3058
  %v5011 = vpack.c.b16 %v3063, %v3059
  %v5012 = vpack.c.b16 %v3064, %v3060
  %v5013 = vpack.c.b16 %v3069, %v3065
  %v5014 = vpack.c.b16 %v3070, %v3066
  %v5015 = vpack.c.b16 %v3071, %v3067
  %v5016 = vpack.c.b16 %v3072, %v3068
  %v5017 = vpack.c.b16 %v3077, %v3073
  %v5018 = vpack.c.b16 %v3078, %v3074
  %v5019 = vpack.c.b16 %v3079, %v3075
  %v5020 = vpack.c.b16 %v3080, %v3076
  %v5021 = vpack.c.b16 %v3085, %v3081
  %v5022 = vpack.c.b16 %v3086, %v3082
  %v5023 = vpack.c.b16 %v3087, %v3083
  %v5024 = vpack.c.b16 %v3088, %v3084
  %v5025 = vpack.c.b16 %v3093, %v3089
  %v5026 = vpack.c.b16 %v3094, %v3090
  %v5027 = vpack.c.b16 %v3095, %v3091
  %v5028 = vpack.c.b16 %v3096, %v3092
  %v5029 = vpack.c.b16 %v3101, %v3097
  %v5030 = vpack.c.b16 %v3102, %v3098
  %v5031 = vpack.c.b16 %v3103, %v3099
  %v5032 = vpack.c.b16 %v3104, %v3100
  %v5033 = vpack.c.b16 %v3109, %v3105
  %v5034 = vpack.c.b16 %v3110, %v3106
  %v5035 = vpack.c.b16 %v3111, %v3107
  %v5036 = vpack.c.b16 %v3112, %v3108
  %v5037 = vpack.c.b16 %v3117, %v3113
  %v5038 = vpack.c.b16 %v3118, %v3114
  %v5039 = vpack.c.b16 %v3119, %v3115
  %v5040 = vpack.c.b16 %v3120, %v3116
  %v5041 = vpack.c.b16 %v3125, %v3121
  %v5042 = vpack.c.b16 %v3126, %v3122
  %v5043 = vpack.c.b16 %v3127, %v3123
  %v5044 = vpack.c.b16 %v3128, %v3124
  %v5045 = vpack.c.b16 %v3133, %v3129
  %v5046 = vpack.c.b16 %v3134, %v3130
  %v5047 = vpack.c.b16 %v3135, %v3131
  %v5048 = vpack.c.b16 %v3136, %v3132
  %v5049 = vpack.c.b16 %v3141, %v3137
  %v5050 = vpack.c.b16 %v3142, %v3138
  %v5051 = vpack.c.b16 %v3143, %v3139
  %v5052 = vpack.c.b16 %v3144, %v3140
  %v5053 = vpack.c.b16 %v3149, %v3145
  %v5054 = vpack.c.b16 %v3150, %v3146
  %v5055 = vpack.c.b16 %v3151, %v3147
  %v5056 = vpack.c.b16 %v3152, %v3148
  %v5057 = vpack.c.b16 %v3157, %v3153
  %v5058 = vpack.c.b16 %v3158, %v3154
  %v5059 = vpack.c.b16 %v3159, %v3155
  %v5060 = vpack.c.b16 %v3160, %v3156
  %v5061 = vpack.c.b16 %v3165, %v3161
  %v5062 = vpack.c.b16 %v3166, %v3162
  %v5063 = vpack.c.b16 %v3167, %v3163
  %v5064 = vpack.c.b16 %v3168, %v3164
  %v5065 = vpack.c.b16 %v3173, %v3169
  %v5066 = vpack.c.b16 %v3174, %v3170
  %v5067 = vpack.c.b16 %v3175, %v3171
  %v5068 = vpack.c.b16 %v3176, %v3172
  %v5069 = vpack.c.b16 %v3181, %v3177
  %v5070 = vpack.c.b16 %v3182, %v3178
  %v5071 = vpack.c.b16 %v3183, %v3179
  %v5072 = vpack.c.b16 %v3184, %v3180
  %v5073 = vpack.c.b16 %v3189, %v3185
  %v5074 = vpack.c.b16 %v3190, %v3186
  %v5075 = vpack.c.b16 %v3191, %v3187
  %v5076 = vpack.c.b16 %v3192, %v3188
  %v5077 = vpack.c.b16 %v3197, %v3193
  %v5078 = vpack.c.b16 %v3198, %v3194
  %v5079 = vpack.c.b16 %v3199, %v3195
  %v5080 = vpack.c.b16 %v3200, %v3196
  %v5081 = vpack.c.b16 %v3205, %v3201
  %v5082 = vpack.c.b16 %v3206, %v3202
  %v5083 = vpack.c.b16 %v3207, %v3203
  %v5084 = vpack.c.b16 %v3208, %v3204
  %v5085 = vpack.c.b16 %v3213, %v3209
  %v5086 = vpack.c.b16 %v3214, %v3210
  %v5087 = vpack.c.b16 %v3215, %v3211
  %v5088 = vpack.c.b16 %v3216, %v3212
  %v5089 = vpack.c.b16 %v3221, %v3217
  %v5090 = vpack.c.b16 %v3222, %v3218
  %v5091 = vpack.c.b16 %v3223, %v3219
  %v5092 = vpack.c.b16 %v3224, %v3220
  %v5093 = vpack.c.b16 %v3229, %v3225
  %v5094 = vpack.c.b16 %v3230, %v3226
  %v5095 = vpack.c.b16 %v3231, %v3227
  %v5096 = vpack.c.b16 %v3232, %v3228
  %v5097 = vpack.c.b16 %v3237, %v3233
  %v5098 = vpack.c.b16 %v3238, %v3234
  %v5099 = vpack.c.b16 %v3239, %v3235
  %v5100 = vpack.c.b16 %v3240, %v3236
  %v5101 = vpack.c.b16 %v3245, %v3241
  %v5102 = vpack.c.b16 %v3246, %v3242
  %v5103 = vpack.c.b16 %v3247, %v3243
  %v5104 = vpack.c.b16 %v3248, %v3244
  %v5105 = vpack.c.b16 %v3253, %v3249
  %v5106 = vpack.c.b16 %v3254, %v3250
  %v5107 = vpack.c.b16 %v3255, %v3251
  %v5108 = vpack.c.b16 %v3256, %v3252
  %v5109 = vpack.c.b16 %v3261, %v3257
  %v5110 = vpack.c.b16 %v3262, %v3258
  %v5111 = vpack.c.b16 %v3263, %v3259
  %v5112 = vpack.c.b16 %v3264, %v3260
  %v5113 = vpack.c.b16 %v3269, %v3265
  %v5114 = vpack.c.b16 %v3270, %v3266
  %v5115 = vpack.c.b16 %v3271, %v3267
  %v5116 = vpack.c.b16 %v3272, %v3268
  %v5117 = vpack.c.b16 %v3277, %v3273
  %v5118 = vpack.c.b16 %v3278, %v3274
  %v5119 = vpack.c.b16 %v3279, %v3275
  %v5120 = vpack.c.b16 %v3280, %v3276
  %v5121 = vpack.c.b16 %v3285, %v3281
  %v5122 = vpack.c.b16 %v3286, %v3282
  %v5123 = vpack.c.b16 %v3287, %v3283
  %v5124 = vpack.c.b16 %v3288, %v3284
  %v5125 = vpack.c.b16 %v3293, %v3289
  %v5126 = vpack.c.b16 %v3294, %v3290
  %v5127 = vpack.c.b16 %v3295, %v3291
  %v5128 = vpack.c.b16 %v3296, %v3292
  %v5129 = vpack.c.b16 %v3301, %v3297
  %v5130 = vpack.c.b16 %v3302, %v3298
  %v5131 = vpack.c.b16 %v3303, %v3299
  %v5132 = vpack.c.b16 %v3304, %v3300
  %v5133 = vpack.c.b16 %v3309, %v3305
  %v5134 = vpack.c.b16 %v3310, %v3306
  %v5135 = vpack.c.b16 %v3311, %v3307
  %v5136 = vpack.c.b16 %v3312, %v3308
  %v5137 = vpack.c.b16 %v3317, %v3313
  %v5138 = vpack.c.b16 %v3318, %v3314
  %v5139 = vpack.c.b16 %v3319, %v3315
  %v5140 = vpack.c.b16 %v3320, %v3316
  %v5141 = vpack.c.b16 %v3325, %v3321
  %v5142 = vpack.c.b16 %v3326, %v3322
  %v5143 = vpack.c.b16 %v3327, %v3323
  %v5144 = vpack.c.b16 %v3328, %v3324
  %v5145 = vpack.c.b16 %v3333, %v3329
  %v5146 = vpack.c.b16 %v3334, %v3330
  %v5147 = vpack.c.b16 %v3335, %v3331
  %v5148 = vpack.c.b16 %v3336, %v3332
  %v5149 = vpack.c.b16 %v3341, %v3337
  %v5150 = vpack.c.b16 %v3342, %v3338
  %v5151 = vpack.c.b16 %v3343, %v3339
  %v5152 = vpack.c.b16 %v3344, %v3340
  %v5153 = vpack.c.b16 %v3349, %v3345
  %v5154 = vpack.c.b16 %v3350, %v3346
  %v5155 = vpack.c.b16 %v3351, %v3347
  %v5156 = vpack.c.b16 %v3352, %v3348
  %v5157 = vpack.c.b16 %v3357, %v3353
  %v5158 = vpack.c.b16 %v3358, %v3354
  %v5159 = vpack.c.b16 %v3359, %v3355
  %v5160 = vpack.c.b16 %v3360, %v3356
  %v5161 = vpack.c.b16 %v3365, %v3361
  %v5162 = vpack.c.b16 %v3366, %v3362
  %v5163 = vpack.c.b16 %v3367, %v3363
  %v5164 = vpack.c.b16 %v3368, %v3364
  %v5165 = vpack.c.b16 %v3373, %v3369
  %v5166 = vpack.c.b16 %v3374, %v3370
  %v5167 = vpack.c.b16 %v3375, %v3371
  %v5168 = vpack.c.b16 %v3376, %v3372
  %v5169 = vpack.c.b16 %v3381, %v3377
  %v5170 = vpack.c.b16 %v3382, %v3378
  %v5171 = vpack.c.b16 %v3383, %v3379
  %v5172 = vpack.c.b16 %v3384, %v3380
  %v5173 = vpack.c.b16 %v3389, %v3385
  %v5174 = vpack.c.b16 %v3390, %v3386
  %v5175 = vpack.c.b16 %v3391, %v3387
  %v5176 = vpack.c.b16 %v3392, %v3388
  %v5177 = vpack.c.b16 %v3397, %v3393
  %v5178 = vpack.c.b16 %v3398, %v3394
  %v5179 = vpack.c.b16 %v3399, %v3395
  %v5180 = vpack.c.b16 %v3400, %v3396
  %v5181 = vpack.c.b16 %v3405, %v3401
  %v5182 = vpack.c.b16 %v3406, %v3402
  %v5183 = vpack.c.b16 %v3407, %v3403
  %v5184 = vpack.c.b16 %v3408, %v3404
  %v5185 = vpack.c.b16 %v3413, %v3409
  %v5186 = vpack.c.b16 %v3414, %v3410
  %v5187 = vpack.c.b16 %v3415, %v3411
  %v5188 = vpack.c.b16 %v3416, %v3412
  %v5189 = vpack.c.b16 %v3421, %v3417
  %v5190 = vpack.c.b16 %v3422, %v3418
  %v5191 = vpack.c.b16 %v3423, %v3419
  %v5192 = vpack.c.b16 %v3424, %v3420
  %v5193 = vpack.c.b16 %v3429, %v3425
  %v5194 = vpack.c.b16 %v3430, %v3426
  %v5195 = vpack.c.b16 %v3431, %v3427
  %v5196 = vpack.c.b16 %v3432, %v3428
  %v5197 = vpack.c.b16 %v3437, %v3433
  %v5198 = vpack.c.b16 %v3438, %v3434
  %v5199 = vpack.c.b16 %v3439, %v3435
  %v5200 = vpack.c.b16 %v3440, %v3436
  %v5201 = vpack.c.b16 %v3445, %v3441
  %v5202 = vpack.c.b16 %v3446, %v3442
  %v5203 = vpack.c.b16 %v3447, %v3443
  %v5204 = vpack.c.b16 %v3448, %v3444
  %v5205 = vpack.c.b16 %v3453, %v3449
  %v5206 = vpack.c.b16 %v3454, %v3450
  %v5207 = vpack.c.b16 %v3455, %v3451
  %v5208 = vpack.c.b16 %v3456, %v3452
  %v5209 = vpack.c.b16 %v3461, %v3457
  %v5210 = vpack.c.b16 %v3462, %v3458
  %v5211 = vpack.c.b16 %v3463, %v3459
  %v5212 = vpack.c.b16 %v3464, %v3460
  %v5213 = vpack.c.b16 %v3469, %v3465
  %v5214 = vpack.c.b16 %v3470, %v3466
  %v5215 = vpack.c.b16 %v3471, %v3467
  %v5216 = vpack.c.b16 %v3472, %v3468
  %v5217 = vpack.c.b16 %v3477, %v3473
  %v5218 = vpack.c.b16 %v3478, %v3474
  %v5219 = vpack.c.b16 %v3479, %v3475
  %v5220 = vpack.c.b16 %v3480, %v3476
  %v5221 = vpack.c.b16 %v3485, %v3481
  %v5222 = vpack.c.b16 %v3486, %v3482
  %v5223 = vpack.c.b16 %v3487, %v3483
  %v5224 = vpack.c.b16 %v3488, %v3484
  %v5225 = vpack.c.b16 %v3493, %v3489
  %v5226 = vpack.c.b16 %v3494, %v3490
  %v5227 = vpack.c.b16 %v3495, %v3491
  %v5228 = vpack.c.b16 %v3496, %v3492
  %v5229 = vpack.c.b16 %v3501, %v3497
  %v5230 = vpack.c.b16 %v3502, %v3498
  %v5231 = vpack.c.b16 %v3503, %v3499
  %v5232 = vpack.c.b16 %v3504, %v3500
  %v5233 = vpack.c.b16 %v3509, %v3505
  %v5234 = vpack.c.b16 %v3510, %v3506
  %v5235 = vpack.c.b16 %v3511, %v3507
  %v5236 = vpack.c.b16 %v3512, %v3508
  %v5237 = vpack.c.b16 %v3517, %v3513
  %v5238 = vpack.c.b16 %v3518, %v3514
  %v5239 = vpack.c.b16 %v3519, %v3515
  %v5240 = vpack.c.b16 %v3520, %v3516
  %v5241 = vpack.c.b16 %v3525, %v3521
  %v5242 = vpack.c.b16 %v3526, %v3522
  %v5243 = vpack.c.b16 %v3527, %v3523
  %v5244 = vpack.c.b16 %v3528, %v3524
  %v5245 = vpack.c.b16 %v3533, %v3529
  %v5246 = vpack.c.b16 %v3534, %v3530
  %v5247 = vpack.c.b16 %v3535, %v3531
  %v5248 = vpack.c.b16 %v3536, %v3532
  %v5249 = vpack.c.b16 %v3541, %v3537
  %v5250 = vpack.c.b16 %v3542, %v3538
  %v5251 = vpack.c.b16 %v3543, %v3539
  %v5252 = vpack.c.b16 %v3544, %v3540
  %v5253 = vpack.c.b16 %v3549, %v3545
  %v5254 = vpack.c.b16 %v3550, %v3546
  %v5255 = vpack.c.b16 %v3551, %v3547
  %v5256 = vpack.c.b16 %v3552, %v3548
  %v5257 = vpack.c.b16 %v3557, %v3553
  %v5258 = vpack.c.b16 %v3558, %v3554
  %v5259 = vpack.c.b16 %v3559, %v3555
  %v5260 = vpack.c.b16 %v3560, %v3556
  %v5261 = vpack.c.b16 %v3565, %v3561
  %v5262 = vpack.c.b16 %v3566, %v3562
  %v5263 = vpack.c.b16 %v3567, %v3563
  %v5264 = vpack.c.b16 %v3568, %v3564
  %v5265 = vpack.c.b16 %v3573, %v3569
  %v5266 = vpack.c.b16 %v3574, %v3570
  %v5267 = vpack.c.b16 %v3575, %v3571
  %v5268 = vpack.c.b16 %v3576, %v3572
  %v5269 = vpack.c.b16 %v3581, %v3577
  %v5270 = vpack.c.b16 %v3582, %v3578
  %v5271 = vpack.c.b16 %v3583, %v3579
  %v5272 = vpack.c.b16 %v3584, %v3580
  %v5273 = vpack.c.b16 %v3589, %v3585
  %v5274 = vpack.c.b16 %v3590, %v3586
  %v5275 = vpack.c.b16 %v3591, %v3587
  %v5276 = vpack.c.b16 %v3592, %v3588
  %v5277 = vpack.c.b16 %v3597, %v3593
  %v5278 = vpack.c.b16 %v3598, %v3594
  %v5279 = vpack.c.b16 %v3599, %v3595
  %v5280 = vpack.c.b16 %v3600, %v3596
  %v5281 = vpack.c.b16 %v3605, %v3601
  %v5282 = vpack.c.b16 %v3606, %v3602
  %v5283 = vpack.c.b16 %v3607, %v3603
  %v5284 = vpack.c.b16 %v3608, %v3604
  %v5285 = vpack.c.b16 %v3613, %v3609
  %v5286 = vpack.c.b16 %v3614, %v3610
  %v5287 = vpack.c.b16 %v3615, %v3611
  %v5288 = vpack.c.b16 %v3616, %v3612
  %v5289 = vpack.c.b16 %v3621, %v3617
  %v5290 = vpack.c.b16 %v3622, %v3618
  %v5291 = vpack.c.b16 %v3623, %v3619
  %v5292 = vpack.c.b16 %v3624, %v3620
  %v5293 = vpack.c.b16 %v3629, %v3625
  %v5294 = vpack.c.b16 %v3630, %v3626
  %v5295 = vpack.c.b16 %v3631, %v3627
  %v5296 = vpack.c.b16 %v3632, %v3628
  %v5297 = vpack.c.b16 %v3637, %v3633
  %v5298 = vpack.c.b16 %v3638, %v3634
  %v5299 = vpack.c.b16 %v3639, %v3635
  %v5300 = vpack.c.b16 %v3640, %v3636
  %v5301 = vpack.c.b16 %v3645, %v3641
  %v5302 = vpack.c.b16 %v3646, %v3642
  %v5303 = vpack.c.b16 %v3647, %v3643
  %v5304 = vpack.c.b16 %v3648, %v3644
  %v5305 = vpack.c.b16 %v3653, %v3649
  %v5306 = vpack.c.b16 %v3654, %v3650
  %v5307 = vpack.c.b16 %v3655, %v3651
  %v5308 = vpack.c.b16 %v3656, %v3652
  %v5309 = vpack.c.b16 %v3661, %v3657
  %v5310 = vpack.c.b16 %v3662, %v3658
  %v5311 = vpack.c.b16 %v3663, %v3659
  %v5312 = vpack.c.b16 %v3664, %v3660
  %v5313 = vpack.c.b16 %v3669, %v3665
  %v5314 = vpack.c.b16 %v3670, %v3666
  %v5315 = vpack.c.b16 %v3671, %v3667
  %v5316 = vpack.c.b16 %v3672, %v3668
  %v5317 = vpack.c.b16 %v3677, %v3673
  %v5318 = vpack.c.b16 %v3678, %v3674
  %v5319 = vpack.c.b16 %v3679, %v3675
  %v5320 = vpack.c.b16 %v3680, %v3676
  %v5321 = vpack.c.b16 %v3685, %v3681
  %v5322 = vpack.c.b16 %v3686, %v3682
  %v5323 = vpack.c.b16 %v3687, %v3683
  %v5324 = vpack.c.b16 %v3688, %v3684
  %v5325 = vpack.c.b16 %v3693, %v3689
  %v5326 = vpack.c.b16 %v3694, %v3690
  %v5327 = vpack.c.b16 %v3695, %v3691
  %v5328 = vpack.c.b16 %v3696, %v3692
  %v5329 = vpack.c.b16 %v3701, %v3697
  %v5330 = vpack.c.b16 %v3702, %v3698
  %v5331 = vpack.c.b16 %v3703, %v3699
  %v5332 = vpack.c.b16 %v3704, %v3700
  %v5333 = vpack.c.b16 %v3709, %v3705
  %v5334 = vpack.c.b16 %v3710, %v3706
  %v5335 = vpack.c.b16 %v3711, %v3707
  %v5336 = vpack.c.b16 %v3712, %v3708
  %v5337 = vpack.c.b16 %v3717, %v3713
  %v5338 = vpack.c.b16 %v3718, %v3714
  %v5339 = vpack.c.b16 %v3719, %v3715
  %v5340 = vpack.c.b16 %v3720, %v3716
  %v5341 = vpack.c.b16 %v3725, %v3721
  %v5342 = vpack.c.b16 %v3726, %v3722
  %v5343 = vpack.c.b16 %v3727, %v3723
  %v5344 = vpack.c.b16 %v3728, %v3724
  %v5345 = vpack.c.b16 %v3733, %v3729
  %v5346 = vpack.c.b16 %v3734, %v3730
  %v5347 = vpack.c.b16 %v3735, %v3731
  %v5348 = vpack.c.b16 %v3736, %v3732
  %v5349 = vpack.c.b16 %v3741, %v3737
  %v5350 = vpack.c.b16 %v3742, %v3738
  %v5351 = vpack.c.b16 %v3743, %v3739
  %v5352 = vpack.c.b16 %v3744, %v3740
  %v5353 = vpack.c.b16 %v3749, %v3745
  %v5354 = vpack.c.b16 %v3750, %v3746
  %v5355 = vpack.c.b16 %v3751, %v3747
  %v5356 = vpack.c.b16 %v3752, %v3748
  %v5357 = vpack.c.b16 %v3757, %v3753
  %v5358 = vpack.c.b16 %v3758, %v3754
  %v5359 = vpack.c.b16 %v3759, %v3755
  %v5360 = vpack.c.b16 %v3760, %v3756
  %v5361 = vpack.c.b16 %v3765, %v3761
  %v5362 = vpack.c.b16 %v3766, %v3762
  %v5363 = vpack.c.b16 %v3767, %v3763
  %v5364 = vpack.c.b16 %v3768, %v3764
  %v5365 = vpack.c.b16 %v3773, %v3769
  %v5366 = vpack.c.b16 %v3774, %v3770
  %v5367 = vpack.c.b16 %v3775, %v3771
  %v5368 = vpack.c.b16 %v3776, %v3772
  %v5369 = vpack.c.b16 %v3781, %v3777
  %v5370 = vpack.c.b16 %v3782, %v3778
  %v5371 = vpack.c.b16 %v3783, %v3779
  %v5372 = vpack.c.b16 %v3784, %v3780
  %v5373 = vpack.c.b16 %v3789, %v3785
  %v5374 = vpack.c.b16 %v3790, %v3786
  %v5375 = vpack.c.b16 %v3791, %v3787
  %v5376 = vpack.c.b16 %v3792, %v3788
  %v5377 = vpack.c.b16 %v3797, %v3793
  %v5378 = vpack.c.b16 %v3798, %v3794
  %v5379 = vpack.c.b16 %v3799, %v3795
  %v5380 = vpack.c.b16 %v3800, %v3796
  %v5381 = vpack.c.b16 %v3805, %v3801
  %v5382 = vpack.c.b16 %v3806, %v3802
  %v5383 = vpack.c.b16 %v3807, %v3803
  %v5384 = vpack.c.b16 %v3808, %v3804
  %v5385 = vpack.c.b16 %v3813, %v3809
  %v5386 = vpack.c.b16 %v3814, %v3810
  %v5387 = vpack.c.b16 %v3815, %v3811
  %v5388 = vpack.c.b16 %v3816, %v3812
  %v5389 = vpack.c.b16 %v3821, %v3817
  %v5390 = vpack.c.b16 %v3822, %v3818
  %v5391 = vpack.c.b16 %v3823, %v3819
  %v5392 = vpack.c.b16 %v3824, %v3820
  %v5393 = vpack.c.b16 %v3829, %v3825
  %v5394 = vpack.c.b16 %v3830, %v3826
  %v5395 = vpack.c.b16 %v3831, %v3827
  %v5396 = vpack.c.b16 %v3832, %v3828
  %v5397 = vpack.c.b16 %v3837, %v3833
  %v5398 = vpack.c.b16 %v3838, %v3834
  %v5399 = vpack.c.b16 %v3839, %v3835
  %v5400 = vpack.c.b16 %v3840, %v3836
  %v5401 = vpack.c.b16 %v3845, %v3841
  %v5402 = vpack.c.b16 %v3846, %v3842
  %v5403 = vpack.c.b16 %v3847, %v3843
  %v5404 = vpack.c.b16 %v3848, %v3844
  %v5405 = vpack.c.b16 %v3853, %v3849
  %v5406 = vpack.c.b16 %v3854, %v3850
  %v5407 = vpack.c.b16 %v3855, %v3851
  %v5408 = vpack.c.b16 %v3856, %v3852
  %v5409 = vpack.c.b16 %v3861, %v3857
  %v5410 = vpack.c.b16 %v3862, %v3858
  %v5411 = vpack.c.b16 %v3863, %v3859
  %v5412 = vpack.c.b16 %v3864, %v3860
  %v5413 = vpack.c.b16 %v3869, %v3865
  %v5414 = vpack.c.b16 %v3870, %v3866
  %v5415 = vpack.c.b16 %v3871, %v3867
  %v5416 = vpack.c.b16 %v3872, %v3868
  %v5417 = vpack.c.b16 %v3877, %v3873
  %v5418 = vpack.c.b16 %v3878, %v3874
  %v5419 = vpack.c.b16 %v3879, %v3875
  %v5420 = vpack.c.b16 %v3880, %v3876
  %v5421 = vpack.c.b16 %v3885, %v3881
  %v5422 = vpack.c.b16 %v3886, %v3882
  %v5423 = vpack.c.b16 %v3887, %v3883
  %v5424 = vpack.c.b16 %v3888, %v3884
  %v5425 = vpack.c.b16 %v3893, %v3889
  %v5426 = vpack.c.b16 %v3894, %v3890
  %v5427 = vpack.c.b16 %v3895, %v3891
  %v5428 = vpack.c.b16 %v3896, %v3892
  %v5429 = vpack.c.b16 %v3901, %v3897
  %v5430 = vpack.c.b16 %v3902, %v3898
  %v5431 = vpack.c.b16 %v3903, %v3899
  %v5432 = vpack.c.b16 %v3904, %v3900
  %v5433 = vpack.c.b16 %v3909, %v3905
  %v5434 = vpack.c.b16 %v3910, %v3906
  %v5435 = vpack.c.b16 %v3911, %v3907
  %v5436 = vpack.c.b16 %v3912, %v3908
  %v5437 = vpack.c.b16 %v3917, %v3913
  %v5438 = vpack.c.b16 %v3918, %v3914
  %v5439 = vpack.c.b16 %v3919, %v3915
  %v5440 = vpack.c.b16 %v3920, %v3916
  %v5441 = vpack.c.b16 %v3925, %v3921
  %v5442 = vpack.c.b16 %v3926, %v3922
  %v5443 = vpack.c.b16 %v3927, %v3923
  %v5444 = vpack.c.b16 %v3928, %v3924
  %v5445 = vpack.c.b16 %v3933, %v3929
  %v5446 = vpack.c.b16 %v3934, %v3930
  %v5447 = vpack.c.b16 %v3935, %v3931
  %v5448 = vpack.c.b16 %v3936, %v3932
  %v5449 = vpack.c.b16 %v3941, %v3937
  %v5450 = vpack.c.b16 %v3942, %v3938
  %v5451 = vpack.c.b16 %v3943, %v3939
  %v5452 = vpack.c.b16 %v3944, %v3940
  %v5453 = vpack.c.b16 %v3949, %v3945
  %v5454 = vpack.c.b16 %v3950, %v3946
  %v5455 = vpack.c.b16 %v3951, %v3947
  %v5456 = vpack.c.b16 %v3952, %v3948
  %v5457 = vpack.c.b16 %v3957, %v3953
  %v5458 = vpack.c.b16 %v3958, %v3954
  %v5459 = vpack.c.b16 %v3959, %v3955
  %v5460 = vpack.c.b16 %v3960, %v3956
  %v5461 = vpack.c.b16 %v3965, %v3961
  %v5462 = vpack.c.b16 %v3966, %v3962
  %v5463 = vpack.c.b16 %v3967, %v3963
  %v5464 = vpack.c.b16 %v3968, %v3964
  %v5465 = vpack.c.b16 %v3973, %v3969
  %v5466 = vpack.c.b16 %v3974, %v3970
  %v5467 = vpack.c.b16 %v3975, %v3971
  %v5468 = vpack.c.b16 %v3976, %v3972
  %v5469 = vpack.c.b16 %v3981, %v3977
  %v5470 = vpack.c.b16 %v3982, %v3978
  %v5471 = vpack.c.b16 %v3983, %v3979
  %v5472 = vpack.c.b16 %v3984, %v3980
  %v5473 = vpack.c.b16 %v3989, %v3985
  %v5474 = vpack.c.b16 %v3990, %v3986
  %v5475 = vpack.c.b16 %v3991, %v3987
  %v5476 = vpack.c.b16 %v3992, %v3988
  %v5477 = vpack.c.b16 %v3997, %v3993
  %v5478 = vpack.c.b16 %v3998, %v3994
  %v5479 = vpack.c.b16 %v3999, %v3995
  %v5480 = vpack.c.b16 %v4000, %v3996
  %v5481 = vpack.c.b16 %v4005, %v4001
  %v5482 = vpack.c.b16 %v4006, %v4002
  %v5483 = vpack.c.b16 %v4007, %v4003
  %v5484 = vpack.c.b16 %v4008, %v4004
  %v5485 = vpack.c.b16 %v4013, %v4009
  %v5486 = vpack.c.b16 %v4014, %v4010
  %v5487 = vpack.c.b16 %v4015, %v4011
  %v5488 = vpack.c.b16 %v4016, %v4012
  %v5489 = vpack.c.b16 %v4021, %v4017
  %v5490 = vpack.c.b16 %v4022, %v4018
  %v5491 = vpack.c.b16 %v4023, %v4019
  %v5492 = vpack.c.b16 %v4024, %v4020
  %v5493 = vpack.c.b16 %v4029, %v4025
  %v5494 = vpack.c.b16 %v4030, %v4026
  %v5495 = vpack.c.b16 %v4031, %v4027
  %v5496 = vpack.c.b16 %v4032, %v4028
  %v5497 = vpack.c.b16 %v4037, %v4033
  %v5498 = vpack.c.b16 %v4038, %v4034
  %v5499 = vpack.c.b16 %v4039, %v4035
  %v5500 = vpack.c.b16 %v4040, %v4036
  %v5501 = vpack.c.b16 %v4045, %v4041
  %v5502 = vpack.c.b16 %v4046, %v4042
  %v5503 = vpack.c.b16 %v4047, %v4043
  %v5504 = vpack.c.b16 %v4048, %v4044
  %v5505 = vpack.c.b16 %v4053, %v4049
  %v5506 = vpack.c.b16 %v4054, %v4050
  %v5507 = vpack.c.b16 %v4055, %v4051
  %v5508 = vpack.c.b16 %v4056, %v4052
  %v5509 = vpack.c.b16 %v4061, %v4057
  %v5510 = vpack.c.b16 %v4062, %v4058
  %v5511 = vpack.c.b16 %v4063, %v4059
  %v5512 = vpack.c.b16 %v4064, %v4060
  %v5513 = vpack.c.b16 %v4069, %v4065
  %v5514 = vpack.c.b16 %v4070, %v4066
  %v5515 = vpack.c.b16 %v4071, %v4067
  %v5516 = vpack.c.b16 %v4072, %v4068
  %v5517 = vpack.c.b16 %v4077, %v4073
  %v5518 = vpack.c.b16 %v4078, %v4074
  %v5519 = vpack.c.b16 %v4079, %v4075
  %v5520 = vpack.c.b16 %v4080, %v4076
  %v5521 = vpack.c.b16 %v4085, %v4081
  %v5522 = vpack.c.b16 %v4086, %v4082
  %v5523 = vpack.c.b16 %v4087, %v4083
  %v5524 = vpack.c.b16 %v4088, %v4084
  %v5525 = vpack.c.b16 %v4093, %v4089
  %v5526 = vpack.c.b16 %v4094, %v4090
  %v5527 = vpack.c.b16 %v4095, %v4091
  %v5528 = vpack.c.b16 %v4096, %v4092
  %v5529 = vpack.c.b16 %v4101, %v4097
  %v5530 = vpack.c.b16 %v4102, %v4098
  %v5531 = vpack.c.b16 %v4103, %v4099
  %v5532 = vpack.c.b16 %v4104, %v4100
  %v5533 = vpack.c.b16 %v4109, %v4105
  %v5534 = vpack.c.b16 %v4110, %v4106
  %v5535 = vpack.c.b16 %v4111, %v4107
  %v5536 = vpack.c.b16 %v4112, %v4108
  %v5537 = vpack.c.b16 %v4117, %v4113
  %v5538 = vpack.c.b16 %v4118, %v4114
  %v5539 = vpack.c.b16 %v4119, %v4115
  %v5540 = vpack.c.b16 %v4120, %v4116
  %v5541 = vpack.c.b16 %v4125, %v4121
  %v5542 = vpack.c.b16 %v4126, %v4122
  %v5543 = vpack.c.b16 %v4127, %v4123
  %v5544 = vpack.c.b16 %v4128, %v4124
  %v5545 = vpack.c.b16 %v4133, %v4129
  %v5546 = vpack.c.b16 %v4134, %v4130
  %v5547 = vpack.c.b16 %v4135, %v4131
  %v5548 = vpack.c.b16 %v4136, %v4132
  %v5549 = vpack.c.b16 %v4141, %v4137
  %v5550 = vpack.c.b16 %v4142, %v4138
  %v5551 = vpack.c.b16 %v4143, %v4139
  %v5552 = vpack.c.b16 %v4144, %v4140
  %v5553 = vpack.c.b16 %v4149, %v4145
  %v5554 = vpack.c.b16 %v4150, %v4146
  %v5555 = vpack.c.b16 %v4151, %v4147
  %v5556 = vpack.c.b16 %v4152, %v4148
  %v5557 = vpack.c.b16 %v4157, %v4153
  %v5558 = vpack.c.b16 %v4158, %v4154
  %v5559 = vpack.c.b16 %v4159, %v4155
  %v5560 = vpack.c.b16 %v4160, %v4156
  %v5561 = vpack.c.b16 %v4165, %v4161
  %v5562 = vpack.c.b16 %v4166, %v4162
  %v5563 = vpack.c.b16 %v4167, %v4163
  %v5564 = vpack.c.b16 %v4168, %v4164
  %v5565 = vpack.c.b16 %v4173, %v4169
  %v5566 = vpack.c.b16 %v4174, %v4170
  %v5567 = vpack.c.b16 %v4175, %v4171
  %v5568 = vpack.c.b16 %v4176, %v4172
  %v5569 = vpack.c.b16 %v4181, %v4177
  %v5570 = vpack.c.b16 %v4182, %v4178
  %v5571 = vpack.c.b16 %v4183, %v4179
  %v5572 = vpack.c.b16 %v4184, %v4180
  %v5573 = vpack.c.b16 %v4189, %v4185
  %v5574 = vpack.c.b16 %v4190, %v4186
  %v5575 = vpack.c.b16 %v4191, %v4187
  %v5576 = vpack.c.b16 %v4192, %v4188
  %v5577 = vpack.c.b16 %v4197, %v4193
  %v5578 = vpack.c.b16 %v4198, %v4194
  %v5579 = vpack.c.b16 %v4199, %v4195
  %v5580 = vpack.c.b16 %v4200, %v4196
  %v5581 = vpack.c.b16 %v4205, %v4201
  %v5582 = vpack.c.b16 %v4206, %v4202
  %v5583 = vpack.c.b16 %v4207, %v4203
  %v5584 = vpack.c.b16 %v4208, %v4204
  %v5585 = vpack.c.b16 %v4213, %v4209
  %v5586 = vpack.c.b16 %v4214, %v4210
  %v5587 = vpack.c.b16 %v4215, %v4211
  %v5588 = vpack.c.b16 %v4216, %v4212
  %v5589 = vpack.c.b16 %v4221, %v4217
  %v5590 = vpack.c.b16 %v4222, %v4218
  %v5591 = vpack.c.b16 %v4223, %v4219
  %v5592 = vpack.c.b16 %v4224, %v4220
  %v5593 = vpack.c.b16 %v4229, %v4225
  %v5594 = vpack.c.b16 %v4230, %v4226
  %v5595 = vpack.c.b16 %v4231, %v4227
  %v5596 = vpack.c.b16 %v4232, %v4228
  %v5597 = vpack.c.b16 %v4237, %v4233
  %v5598 = vpack.c.b16 %v4238, %v4234
  %v5599 = vpack.c.b16 %v4239, %v4235
  %v5600 = vpack.c.b16 %v4240, %v4236
  %v5601 = vpack.c.b16 %v4245, %v4241
  %v5602 = vpack.c.b16 %v4246, %v4242
  %v5603 = vpack.c.b16 %v4247, %v4243
  %v5604 = vpack.c.b16 %v4248, %v4244
  %v5605 = vpack.c.b16 %v4253, %v4249
  %v5606 = vpack.c.b16 %v4254, %v4250
  %v5607 = vpack.c.b16 %v4255, %v4251
  %v5608 = vpack.c.b16 %v4256, %v4252
  %v5609 = vpack.c.b16 %v4261, %v4257
  %v5610 = vpack.c.b16 %v4262, %v4258
  %v5611 = vpack.c.b16 %v4263, %v4259
  %v5612 = vpack.c.b16 %v4264, %v4260
  %v5613 = vpack.c.b16 %v4269, %v4265
  %v5614 = vpack.c.b16 %v4270, %v4266
  %v5615 = vpack.c.b16 %v4271, %v4267
  %v5616 = vpack.c.b16 %v4272, %v4268
  %v5617 = vpack.c.b16 %v4277, %v4273
  %v5618 = vpack.c.b16 %v4278, %v4274
  %v5619 = vpack.c.b16 %v4279, %v4275
  %v5620 = vpack.c.b16 %v4280, %v4276
  %v5621 = vpack.c.b16 %v4285, %v4281
  %v5622 = vpack.c.b16 %v4286, %v4282
  %v5623 = vpack.c.b16 %v4287, %v4283
  %v5624 = vpack.c.b16 %v4288, %v4284
  %v5625 = vpack.c.b16 %v4293, %v4289
  %v5626 = vpack.c.b16 %v4294, %v4290
  %v5627 = vpack.c.b16 %v4295, %v4291
  %v5628 = vpack.c.b16 %v4296, %v4292
  %v5629 = vpack.c.b16 %v4301, %v4297
  %v5630 = vpack.c.b16 %v4302, %v4298
  %v5631 = vpack.c.b16 %v4303, %v4299
  %v5632 = vpack.c.b16 %v4304, %v4300
  %v5633 = vpack.c.b16 %v4309, %v4305
  %v5634 = vpack.c.b16 %v4310, %v4306
  %v5635 = vpack.c.b16 %v4311, %v4307
  %v5636 = vpack.c.b16 %v4312, %v4308
  %v5637 = vpack.c.b16 %v4317, %v4313
  %v5638 = vpack.c.b16 %v4318, %v4314
  %v5639 = vpack.c.b16 %v4319, %v4315
  %v5640 = vpack.c.b16 %v4320, %v4316
  %v5641 = vpack.c.b16 %v4325, %v4321
  %v5642 = vpack.c.b16 %v4326, %v4322
  %v5643 = vpack.c.b16 %v4327, %v4323
  %v5644 = vpack.c.b16 %v4328, %v4324
  %v5645 = vpack.c.b16 %v4333, %v4329
  %v5646 = vpack.c.b16 %v4334, %v4330
  %v5647 = vpack.c.b16 %v4335, %v4331
  %v5648 = vpack.c.b16 %v4336, %v4332
  %v5649 = vpack.c.b16 %v4341, %v4337
  %v5650 = vpack.c.b16 %v4342, %v4338
  %v5651 = vpack.c.b16 %v4343, %v4339
  %v5652 = vpack.c.b16 %v4344, %v4340
  %v5653 = vpack.c.b16 %v4349, %v4345
  %v5654 = vpack.c.b16 %v4350, %v4346
  %v5655 = vpack.c.b16 %v4351, %v4347
  %v5656 = vpack.c.b16 %v4352, %v4348
  %v5657 = vpack.c.b16 %v4357, %v4353
  %v5658 = vpack.c.b16 %v4358, %v4354
  %v5659 = vpack.c.b16 %v4359, %v4355
  %v5660 = vpack.c.b16 %v4360, %v4356
  %v5661 = vpack.c.b16 %v4365, %v4361
  %v5662 = vpack.c.b16 %v4366, %v4362
  %v5663 = vpack.c.b16 %v4367, %v4363
  %v5664 = vpack.c.b16 %v4368, %v4364
  %v5665 = vpack.c.b16 %v4373, %v4369
  %v5666 = vpack.c.b16 %v4374, %v4370
  %v5667 = vpack.c.b16 %v4375, %v4371
  %v5668 = vpack.c.b16 %v4376, %v4372
  %v5669 = vpack.c.b16 %v4381, %v4377
  %v5670 = vpack.c.b16 %v4382, %v4378
  %v5671 = vpack.c.b16 %v4383, %v4379
  %v5672 = vpack.c.b16 %v4384, %v4380
  %v5673 = vpack.c.b16 %v4389, %v4385
  %v5674 = vpack.c.b16 %v4390, %v4386
  %v5675 = vpack.c.b16 %v4391, %v4387
  %v5676 = vpack.c.b16 %v4392, %v4388
  %v5677 = vpack.c.b16 %v4397, %v4393
  %v5678 = vpack.c.b16 %v4398, %v4394
  %v5679 = vpack.c.b16 %v4399, %v4395
  %v5680 = vpack.c.b16 %v4400, %v4396
  %v5681 = vpack.c.b16 %v4405, %v4401
  %v5682 = vpack.c.b16 %v4406, %v4402
  %v5683 = vpack.c.b16 %v4407, %v4403
  %v5684 = vpack.c.b16 %v4408, %v4404
  %v5685 = vpack.c.b16 %v4413, %v4409
  %v5686 = vpack.c.b16 %v4414, %v4410
  %v5687 = vpack.c.b16 %v4415, %v4411
  %v5688 = vpack.c.b16 %v4416, %v4412
  %v5689 = vpack.c.b16 %v4421, %v4417
  %v5690 = vpack.c.b16 %v4422, %v4418
  %v5691 = vpack.c.b16 %v4423, %v4419
  %v5692 = vpack.c.b16 %v4424, %v4420
  %v5693 = vpack.c.b16 %v4429, %v4425
  %v5694 = vpack.c.b16 %v4430, %v4426
  %v5695 = vpack.c.b16 %v4431, %v4427
  %v5696 = vpack.c.b16 %v4432, %v4428
  %v5697 = vpack.c.b16 %v4437, %v4433
  %v5698 = vpack.c.b16 %v4438, %v4434
  %v5699 = vpack.c.b16 %v4439, %v4435
  %v5700 = vpack.c.b16 %v4440, %v4436
  %v5701 = vpack.c.b16 %v4445, %v4441
  %v5702 = vpack.c.b16 %v4446, %v4442
  %v5703 = vpack.c.b16 %v4447, %v4443
  %v5704 = vpack.c.b16 %v4448, %v4444
  %v5705 = vpack.c.b16 %v4453, %v4449
  %v5706 = vpack.c.b16 %v4454, %v4450
  %v5707 = vpack.c.b16 %v4455, %v4451
  %v5708 = vpack.c.b16 %v4456, %v4452
  %v5709 = vpack.c.b16 %v4461, %v4457
  %v5710 = vpack.c.b16 %v4462, %v4458
  %v5711 = vpack.c.b16 %v4463, %v4459
  %v5712 = vpack.c.b16 %v4464, %v4460
  %v5713 = vpack.c.b16 %v4469, %v4465
  %v5714 = vpack.c.b16 %v4470, %v4466
  %v5715 = vpack.c.b16 %v4471, %v4467
  %v5716 = vpack.c.b16 %v4472, %v4468
  %v5717 = vpack.c.b16 %v4477, %v4473
  %v5718 = vpack.c.b16 %v4478, %v4474
  %v5719 = vpack.c.b16 %v4479, %v4475
  %v5720 = vpack.c.b16 %v4480, %v4476
  %v5721 = vpack.c.b16 %v4485, %v4481
  %v5722 = vpack.c.b16 %v4486, %v4482
  %v5723 = vpack.c.b16 %v4487, %v4483
  %v5724 = vpack.c.b16 %v4488, %v4484
  %v5725 = vpack.c.b16 %v4493, %v4489
  %v5726 = vpack.c.b16 %v4494, %v4490
  %v5727 = vpack.c.b16 %v4495, %v4491
  %v5728 = vpack.c.b16 %v4496, %v4492
  %v5729 = vpack.c.b16 %v4501, %v4497
  %v5730 = vpack.c.b16 %v4502, %v4498
  %v5731 = vpack.c.b16 %v4503, %v4499
  %v5732 = vpack.c.b16 %v4504, %v4500
  %v5733 = vpack.c.b16 %v4509, %v4505
  %v5734 = vpack.c.b16 %v4510, %v4506
  %v5735 = vpack.c.b16 %v4511, %v4507
  %v5736 = vpack.c.b16 %v4512, %v4508
  %v5737 = vpack.c.b16 %v4517, %v4513
  %v5738 = vpack.c.b16 %v4518, %v4514
  %v5739 = vpack.c.b16 %v4519, %v4515
  %v5740 = vpack.c.b16 %v4520, %v4516
  %v5741 = vpack.c.b16 %v4525, %v4521
  %v5742 = vpack.c.b16 %v4526, %v4522
  %v5743 = vpack.c.b16 %v4527, %v4523
  %v5744 = vpack.c.b16 %v4528, %v4524
  %v5745 = vpack.c.b16 %v4533, %v4529
  %v5746 = vpack.c.b16 %v4534, %v4530
  %v5747 = vpack.c.b16 %v4535, %v4531
  %v5748 = vpack.c.b16 %v4536, %v4532
  %v5749 = vpack.c.b16 %v4541, %v4537
  %v5750 = vpack.c.b16 %v4542, %v4538
  %v5751 = vpack.c.b16 %v4543, %v4539
  %v5752 = vpack.c.b16 %v4544, %v4540
  %v5753 = vpack.c.b16 %v4549, %v4545
  %v5754 = vpack.c.b16 %v4550, %v4546
  %v5755 = vpack.c.b16 %v4551, %v4547
  %v5756 = vpack.c.b16 %v4552, %v4548
  %v5757 = vpack.c.b16 %v4557, %v4553
  %v5758 = vpack.c.b16 %v4558, %v4554
  %v5759 = vpack.c.b16 %v4559, %v4555
  %v5760 = vpack.c.b16 %v4560, %v4556
  %v5761 = vpack.c.b16 %v4565, %v4561
  %v5762 = vpack.c.b16 %v4566, %v4562
  %v5763 = vpack.c.b16 %v4567, %v4563
  %v5764 = vpack.c.b16 %v4568, %v4564
  %v5765 = vpack.c.b16 %v4573, %v4569
  %v5766 = vpack.c.b16 %v4574, %v4570
  %v5767 = vpack.c.b16 %v4575, %v4571
  %v5768 = vpack.c.b16 %v4576, %v4572
  %v5769 = vpack.c.b16 %v4581, %v4577
  %v5770 = vpack.c.b16 %v4582, %v4578
  %v5771 = vpack.c.b16 %v4583, %v4579
  %v5772 = vpack.c.b16 %v4584, %v4580
  %v5773 = vpack.c.b16 %v4589, %v4585
  %v5774 = vpack.c.b16 %v4590, %v4586
  %v5775 = vpack.c.b16 %v4591, %v4587
  %v5776 = vpack.c.b16 %v4592, %v4588
  %v5777 = vpack.c.b16 %v4597, %v4593
  %v5778 = vpack.c.b16 %v4598, %v4594
  %v5779 = vpack.c.b16 %v4599, %v4595
  %v5780 = vpack.c.b16 %v4600, %v4596
  %v5781 = vpack.c.b16 %v4605, %v4601
  %v5782 = vpack.c.b16 %v4606, %v4602
  %v5783 = vpack.c.b16 %v4607, %v4603
  %v5784 = vpack.c.b16 %v4608, %v4604
  %v5785 = vpack.c.b16 %v4613, %v4609
  %v5786 = vpack.c.b16 %v4614, %v4610
  %v5787 = vpack.c.b16 %v4615, %v4611
  %v5788 = vpack.c.b16 %v4616, %v4612
  %v5789 = vpack.c.b16 %v4621, %v4617
  %v5790 = vpack.c.b16 %v4622, %v4618
  %v5791 = vpack.c.b16 %v4623, %v4619
  %v5792 = vpack.c.b16 %v4624, %v4620
  %v5793 = vpack.c.b16 %v4629, %v4625
  %v5794 = vpack.c.b16 %v4630, %v4626
  %v5795 = vpack.c.b16 %v4631, %v4627
  %v5796 = vpack.c.b16 %v4632, %v4628
  %v5797 = vpack.c.b16 %v4637, %v4633
  %v5798 = vpack.c.b16 %v4638, %v4634
  %v5799 = vpack.c.b16 %v4639, %v4635
  %v5800 = vpack.c.b16 %v4640, %v4636
  %v5801 = vpack.c.b16 %v4645, %v4641
  %v5802 = vpack.c.b16 %v4646, %v4642
  %v5803 = vpack.c.b16 %v4647, %v4643
  %v5804 = vpack.c.b16 %v4648, %v4644
  %v5805 = vpack.c.b16 %v4653, %v4649
  %v5806 = vpack.c.b16 %v4654, %v4650
  %v5807 = vpack.c.b16 %v4655, %v4651
  %v5808 = vpack.c.b16 %v4656, %v4652
  %v5809 = vpack.c.b16 %v4661, %v4657
  %v5810 = vpack.c.b16 %v4662, %v4658
  %v5811 = vpack.c.b16 %v4663, %v4659
  %v5812 = vpack.c.b16 %v4664, %v4660
  %v5813 = vpack.c.b16 %v4669, %v4665
  %v5814 = vpack.c.b16 %v4670, %v4666
  %v5815 = vpack.c.b16 %v4671, %v4667
  %v5816 = vpack.c.b16 %v4672, %v4668
  %v5817 = vpack.c.b16 %v4677, %v4673
  %v5818 = vpack.c.b16 %v4678, %v4674
  %v5819 = vpack.c.b16 %v4679, %v4675
  %v5820 = vpack.c.b16 %v4680, %v4676
  %v5821 = vpack.c.b16 %v4685, %v4681
  %v5822 = vpack.c.b16 %v4686, %v4682
  %v5823 = vpack.c.b16 %v4687, %v4683
  %v5824 = vpack.c.b16 %v4688, %v4684
  %v5825 = vpack.c.b16 %v4693, %v4689
  %v5826 = vpack.c.b16 %v4694, %v4690
  %v5827 = vpack.c.b16 %v4695, %v4691
  %v5828 = vpack.c.b16 %v4696, %v4692
  %v5829 = vpack.c.b16 %v4701, %v4697
  %v5830 = vpack.c.b16 %v4702, %v4698
  %v5831 = vpack.c.b16 %v4703, %v4699
  %v5832 = vpack.c.b16 %v4704, %v4700
  %v5833 = vpack.c.b16 %v4709, %v4705
  %v5834 = vpack.c.b16 %v4710, %v4706
  %v5835 = vpack.c.b16 %v4711, %v4707
  %v5836 = vpack.c.b16 %v4712, %v4708
  %v5837 = vpack.c.b16 %v4717, %v4713
  %v5838 = vpack.c.b16 %v4718, %v4714
  %v5839 = vpack.c.b16 %v4719, %v4715
  %v5840 = vpack.c.b16 %v4720, %v4716
  %v5841 = vpack.c.b16 %v4725, %v4721
  %v5842 = vpack.c.b16 %v4726, %v4722
  %v5843 = vpack.c.b16 %v4727, %v4723
  %v5844 = vpack.c.b16 %v4728, %v4724
  %v5845 = vpack.c.b16 %v4733, %v4729
  %v5846 = vpack.c.b16 %v4734, %v4730
  %v5847 = vpack.c.b16 %v4735, %v4731
  %v5848 = vpack.c.b16 %v4736, %v4732
  %v5849 = vpack.c.b16 %v4741, %v4737
  %v5850 = vpack.c.b16 %v4742, %v4738
  %v5851 = vpack.c.b16 %v4743, %v4739
  %v5852 = vpack.c.b16 %v4744, %v4740
  %v5853 = vpack.c.b16 %v4749, %v4745
  %v5854 = vpack.c.b16 %v4750, %v4746
  %v5855 = vpack.c.b16 %v4751, %v4747
  %v5856 = vpack.c.b16 %v4752, %v4748
  %v5857 = vpack.c.b16 %v4757, %v4753
  %v5858 = vpack.c.b16 %v4758, %v4754
  %v5859 = vpack.c.b16 %v4759, %v4755
  %v5860 = vpack.c.b16 %v4760, %v4756
  %v5861 = vpack.c.b16 %v4765, %v4761
  %v5862 = vpack.c.b16 %v4766, %v4762
  %v5863 = vpack.c.b16 %v4767, %v4763
  %v5864 = vpack.c.b16 %v4768, %v4764
  %v5865 = vpack.c.b16 %v4773, %v4769
  %v5866 = vpack.c.b16 %v4774, %v4770
  %v5867 = vpack.c.b16 %v4775, %v4771
  %v5868 = vpack.c.b16 %v4776, %v4772
  %v5869 = vpack.c.b16 %v4781, %v4777
  %v5870 = vpack.c.b16 %v4782, %v4778
  %v5871 = vpack.c.b16 %v4783, %v4779
  %v5872 = vpack.c.b16 %v4784, %v4780
  %v5873 = vpack.c.b16 %v4789, %v4785
  %v5874 = vpack.c.b16 %v4790, %v4786
  %v5875 = vpack.c.b16 %v4791, %v4787
  %v5876 = vpack.c.b16 %v4792, %v4788
  %v5877 = vpack.c.b16 %v4797, %v4793
  %v5878 = vpack.c.b16 %v4798, %v4794
  %v5879 = vpack.c.b16 %v4799, %v4795
  %v5880 = vpack.c.b16 %v4800, %v4796
  %v5881 = vpack.c.b16 %v4805, %v4801
  %v5882 = vpack.c.b16 %v4806, %v4802
  %v5883 = vpack.c.b16 %v4807, %v4803
  %v5884 = vpack.c.b16 %v4808, %v4804
  %v5885 = vpack.c.b16 %v4813, %v4809
  %v5886 = vpack.c.b16 %v4814, %v4810
  %v5887 = vpack.c.b16 %v4815, %v4811
  %v5888 = vpack.c.b16 %v4816, %v4812
  %v5889 = vpack.c.b16 %v4821, %v4817
  %v5890 = vpack.c.b16 %v4822, %v4818
  %v5891 = vpack.c.b16 %v4823, %v4819
  %v5892 = vpack.c.b16 %v4824, %v4820
  %v5893 = vpack.c.b16 %v4829, %v4825
  %v5894 = vpack.c.b16 %v4830, %v4826
  %v5895 = vpack.c.b16 %v4831, %v4827
  %v5896 = vpack.c.b16 %v4832, %v4828
  %v5897 = vpack.c.b16 %v4837, %v4833
  %v5898 = vpack.c.b16 %v4838, %v4834
  %v5899 = vpack.c.b16 %v4839, %v4835
  %v5900 = vpack.c.b16 %v4840, %v4836
  %v5901 = vpack.c.b16 %v4845, %v4841
  %v5902 = vpack.c.b16 %v4846, %v4842
  %v5903 = vpack.c.b16 %v4847, %v4843
  %v5904 = vpack.c.b16 %v4848, %v4844
  %v5905 = vpack.c.b16 %v4853, %v4849
  %v5906 = vpack.c.b16 %v4854, %v4850
  %v5907 = vpack.c.b16 %v4855, %v4851
  %v5908 = vpack.c.b16 %v4856, %v4852
  %v5909 = vpack.c.b16 %v4861, %v4857
  %v5910 = vpack.c.b16 %v4862, %v4858
  %v5911 = vpack.c.b16 %v4863, %v4859
  %v5912 = vpack.c.b16 %v4864, %v4860
  %v5913 = vpack.c.b16 %v4869, %v4865
  %v5914 = vpack.c.b16 %v4870, %v4866
  %v5915 = vpack.c.b16 %v4871, %v4867
  %v5916 = vpack.c.b16 %v4872, %v4868
  %v5917 = vpack.c.b16 %v4877, %v4873
  %v5918 = vpack.c.b16 %v4878, %v4874
  %v5919 = vpack.c.b16 %v4879, %v4875
  %v5920 = vpack.c.b16 %v4880, %v4876
  %v5921 = vpack.c.b16 %v4885, %v4881
  %v5922 = vpack.c.b16 %v4886, %v4882
  %v5923 = vpack.c.b16 %v4887, %v4883
  %v5924 = vpack.c.b16 %v4888, %v4884
  %v5925 = vpack.c.b16 %v4893, %v4889
  %v5926 = vpack.c.b16 %v4894, %v4890
  %v5927 = vpack.c.b16 %v4895, %v4891
  %v5928 = vpack.c.b16 %v4896, %v4892
  %v5929 = vpack.c.b16 %v4901, %v4897
  %v5930 = vpack.c.b16 %v4902, %v4898
  %v5931 = vpack.c.b16 %v4903, %v4899
  %v5932 = vpack.c.b16 %v4904, %v4900
  %v5933 = vpack.c.b16 %v4909, %v4905
  %v5934 = vpack.c.b16 %v4910, %v4906
  %v5935 = vpack.c.b16 %v4911, %v4907
  %v5936 = vpack.c.b16 %v4912, %v4908
  %6961 = vmatprep.subr.bf16.mxu0 %v4942
  %6962 = vmatpush1.bf16.msra.mxu0 %v4941
  %6963 = vmatprep.subr.bf16.mxu0 %v4938
  %6964 = vmatpush1.bf16.msra.mxu0 %v4937
  %6965 = vmatprep.subr.bf16.mxu0 %v4934
  %6966 = vmatpush1.bf16.msra.mxu0 %v4933
  %6967 = vmatprep.subr.bf16.mxu0 %v4930
  %6968 = vmatpush1.bf16.msra.mxu0 %v4929
  %6969 = vmatprep.subr.bf16.mxu0 %v4926
  %6970 = vmatpush1.bf16.msra.mxu0 %v4925
  %6971 = vmatprep.subr.bf16.mxu0 %v4922
  %6972 = vmatpush1.bf16.msra.mxu0 %v4921
  %6973 = vmatprep.subr.bf16.mxu0 %v4918
  %6974 = vmatpush1.bf16.msra.mxu0 %v4917
  %6975 = vmatprep.subr.bf16.mxu0 %v4914
  %6976 = vmatpush1.bf16.msra.mxu0 %v4913
  %6977 = vmatprep.subr.bf16.mxu0 %v4974
  %6978 = vmatpush2.bf16.msra.mxu0 %v4973
  %6979 = vmatprep.subr.bf16.mxu0 %v4970
  %6980 = vmatpush2.bf16.msra.mxu0 %v4969
  %6981 = vmatprep.subr.bf16.mxu0 %v4966
  %6982 = vmatpush2.bf16.msra.mxu0 %v4965
  %6983 = vmatprep.subr.bf16.mxu0 %v4962
  %6984 = vmatpush2.bf16.msra.mxu0 %v4961
  %6985 = vmatprep.subr.bf16.mxu0 %v4958
  %6986 = vmatpush2.bf16.msra.mxu0 %v4957
  %6987 = vmatprep.subr.bf16.mxu0 %v4954
  %6988 = vmatpush2.bf16.msra.mxu0 %v4953
  %6989 = vmatprep.subr.bf16.mxu0 %v4950
  %6990 = vmatpush2.bf16.msra.mxu0 %v4949
  %6991 = vmatprep.subr.bf16.mxu0 %v4946
  %6992 = vmatpush2.bf16.msra.mxu0 %v4945
  %6993 = vmatprep.mubr.bf16.mxu0 %v540
  %6994 = vmatmul.mubr.bf16.gmra.mxu0 %v539
  %v6995 = vpop.f32.mrf.mxu0
  %v6996 = vadd.f32 %v1824, %v6995
  %v6997 = vpop.f32.mrf.mxu0
  %v6998 = vadd.f32 %v1828, %v6997
  %v6999 = vpop.f32.mrf.mxu0
  %v7000 = vadd.f32 %v1824, %v6999
  %v7001 = vpop.f32.mrf.mxu0
  %v7002 = vadd.f32 %v1828, %v7001
  %7003 = vmatprep.mubr.bf16.mxu0 %v572
  %7004 = vmatmul.mubr.bf16.gmra.mxu0 %v571
  %v7005 = vpop.f32.mrf.mxu0
  %v7006 = vadd.f32 %v1824, %v7005
  %v7007 = vpop.f32.mrf.mxu0
  %v7008 = vadd.f32 %v1828, %v7007
  %v7009 = vpop.f32.mrf.mxu0
  %v7010 = vadd.f32 %v1824, %v7009
  %v7011 = vpop.f32.mrf.mxu0
  %v7012 = vadd.f32 %v1828, %v7011
  %7013 = vmatprep.mubr.bf16.mxu0 %v604
  %7014 = vmatmul.mubr.bf16.gmra.mxu0 %v603
  %v7015 = vpop.f32.mrf.mxu0
  %v7016 = vadd.f32 %v1824, %v7015
  %v7017 = vpop.f32.mrf.mxu0
  %v7018 = vadd.f32 %v1828, %v7017
  %v7019 = vpop.f32.mrf.mxu0
  %v7020 = vadd.f32 %v1824, %v7019
  %v7021 = vpop.f32.mrf.mxu0
  %v7022 = vadd.f32 %v1828, %v7021
  %7023 = vmatprep.mubr.bf16.mxu0 %v636
  %7024 = vmatmul.mubr.bf16.gmra.mxu0 %v635
  %v7025 = vpop.f32.mrf.mxu0
  %v7026 = vadd.f32 %v1824, %v7025
  %v7027 = vpop.f32.mrf.mxu0
  %v7028 = vadd.f32 %v1828, %v7027
  %v7029 = vpop.f32.mrf.mxu0
  %v7030 = vadd.f32 %v1824, %v7029
  %v7031 = vpop.f32.mrf.mxu0
  %v7032 = vadd.f32 %v1828, %v7031
  %7033 = vmatprep.mubr.bf16.mxu0 %v668
  %7034 = vmatmul.mubr.bf16.gmra.mxu0 %v667
  %v7035 = vpop.f32.mrf.mxu0
  %v7036 = vadd.f32 %v1824, %v7035
  %v7037 = vpop.f32.mrf.mxu0
  %v7038 = vadd.f32 %v1828, %v7037
  %v7039 = vpop.f32.mrf.mxu0
  %v7040 = vadd.f32 %v1824, %v7039
  %v7041 = vpop.f32.mrf.mxu0
  %v7042 = vadd.f32 %v1828, %v7041
  %7043 = vmatprep.mubr.bf16.mxu0 %v700
  %7044 = vmatmul.mubr.bf16.gmra.mxu0 %v699
  %v7045 = vpop.f32.mrf.mxu0
  %v7046 = vadd.f32 %v1824, %v7045
  %v7047 = vpop.f32.mrf.mxu0
  %v7048 = vadd.f32 %v1828, %v7047
  %v7049 = vpop.f32.mrf.mxu0
  %v7050 = vadd.f32 %v1824, %v7049
  %v7051 = vpop.f32.mrf.mxu0
  %v7052 = vadd.f32 %v1828, %v7051
  %7053 = vmatprep.mubr.bf16.mxu0 %v732
  %7054 = vmatmul.mubr.bf16.gmra.mxu0 %v731
  %v7055 = vpop.f32.mrf.mxu0
  %v7056 = vadd.f32 %v1824, %v7055
  %v7057 = vpop.f32.mrf.mxu0
  %v7058 = vadd.f32 %v1828, %v7057
  %v7059 = vpop.f32.mrf.mxu0
  %v7060 = vadd.f32 %v1824, %v7059
  %v7061 = vpop.f32.mrf.mxu0
  %v7062 = vadd.f32 %v1828, %v7061
  %7063 = vmatprep.mubr.bf16.mxu0 %v764
  %7064 = vmatmul.mubr.bf16.gmra.mxu0 %v763
  %v7065 = vpop.f32.mrf.mxu0
  %v7066 = vadd.f32 %v1824, %v7065
  %v7067 = vpop.f32.mrf.mxu0
  %v7068 = vadd.f32 %v1828, %v7067
  %v7069 = vpop.f32.mrf.mxu0
  %v7070 = vadd.f32 %v1824, %v7069
  %v7071 = vpop.f32.mrf.mxu0
  %v7072 = vadd.f32 %v1828, %v7071
  %7073 = vdwg.mxu0
  %7074 = vmatprep.subr.bf16.mxu0 %v5006
  %7075 = vmatpush1.bf16.msra.mxu0 %v5005
  %7076 = vmatprep.subr.bf16.mxu0 %v5002
  %7077 = vmatpush1.bf16.msra.mxu0 %v5001
  %7078 = vmatprep.subr.bf16.mxu0 %v4998
  %7079 = vmatpush1.bf16.msra.mxu0 %v4997
  %7080 = vmatprep.subr.bf16.mxu0 %v4994
  %7081 = vmatpush1.bf16.msra.mxu0 %v4993
  %7082 = vmatprep.subr.bf16.mxu0 %v4990
  %7083 = vmatpush1.bf16.msra.mxu0 %v4989
  %7084 = vmatprep.subr.bf16.mxu0 %v4986
  %7085 = vmatpush1.bf16.msra.mxu0 %v4985
  %7086 = vmatprep.subr.bf16.mxu0 %v4982
  %7087 = vmatpush1.bf16.msra.mxu0 %v4981
  %7088 = vmatprep.subr.bf16.mxu0 %v4978
  %7089 = vmatpush1.bf16.msra.mxu0 %v4977
  %7090 = vmatprep.subr.bf16.mxu0 %v5038
  %7091 = vmatpush2.bf16.msra.mxu0 %v5037
  %7092 = vmatprep.subr.bf16.mxu0 %v5034
  %7093 = vmatpush2.bf16.msra.mxu0 %v5033
  %7094 = vmatprep.subr.bf16.mxu0 %v5030
  %7095 = vmatpush2.bf16.msra.mxu0 %v5029
  %7096 = vmatprep.subr.bf16.mxu0 %v5026
  %7097 = vmatpush2.bf16.msra.mxu0 %v5025
  %7098 = vmatprep.subr.bf16.mxu0 %v5022
  %7099 = vmatpush2.bf16.msra.mxu0 %v5021
  %7100 = vmatprep.subr.bf16.mxu0 %v5018
  %7101 = vmatpush2.bf16.msra.mxu0 %v5017
  %7102 = vmatprep.subr.bf16.mxu0 %v5014
  %7103 = vmatpush2.bf16.msra.mxu0 %v5013
  %7104 = vmatprep.subr.bf16.mxu0 %v5010
  %7105 = vmatpush2.bf16.msra.mxu0 %v5009
  %7106 = vmatprep.mubr.bf16.mxu0 %v542
  %7107 = vmatmul.mubr.bf16.gmra.mxu0 %v541
  %v7108 = vpop.f32.mrf.mxu0
  %v7109 = vadd.f32 %v6996, %v7108
  %v7110 = vpop.f32.mrf.mxu0
  %v7111 = vadd.f32 %v6998, %v7110
  %v7112 = vpop.f32.mrf.mxu0
  %v7113 = vadd.f32 %v7000, %v7112
  %v7114 = vpop.f32.mrf.mxu0
  %v7115 = vadd.f32 %v7002, %v7114
  %7116 = vmatprep.mubr.bf16.mxu0 %v574
  %7117 = vmatmul.mubr.bf16.gmra.mxu0 %v573
  %v7118 = vpop.f32.mrf.mxu0
  %v7119 = vadd.f32 %v7006, %v7118
  %v7120 = vpop.f32.mrf.mxu0
  %v7121 = vadd.f32 %v7008, %v7120
  %v7122 = vpop.f32.mrf.mxu0
  %v7123 = vadd.f32 %v7010, %v7122
  %v7124 = vpop.f32.mrf.mxu0
  %v7125 = vadd.f32 %v7012, %v7124
  %7126 = vmatprep.mubr.bf16.mxu0 %v606
  %7127 = vmatmul.mubr.bf16.gmra.mxu0 %v605
  %v7128 = vpop.f32.mrf.mxu0
  %v7129 = vadd.f32 %v7016, %v7128
  %v7130 = vpop.f32.mrf.mxu0
  %v7131 = vadd.f32 %v7018, %v7130
  %v7132 = vpop.f32.mrf.mxu0
  %v7133 = vadd.f32 %v7020, %v7132
  %v7134 = vpop.f32.mrf.mxu0
  %v7135 = vadd.f32 %v7022, %v7134
  %7136 = vmatprep.mubr.bf16.mxu0 %v638
  %7137 = vmatmul.mubr.bf16.gmra.mxu0 %v637
  %v7138 = vpop.f32.mrf.mxu0
  %v7139 = vadd.f32 %v7026, %v7138
  %v7140 = vpop.f32.mrf.mxu0
  %v7141 = vadd.f32 %v7028, %v7140
  %v7142 = vpop.f32.mrf.mxu0
  %v7143 = vadd.f32 %v7030, %v7142
  %v7144 = vpop.f32.mrf.mxu0
  %v7145 = vadd.f32 %v7032, %v7144
  %7146 = vmatprep.mubr.bf16.mxu0 %v670
  %7147 = vmatmul.mubr.bf16.gmra.mxu0 %v669
  %v7148 = vpop.f32.mrf.mxu0
  %v7149 = vadd.f32 %v7036, %v7148
  %v7150 = vpop.f32.mrf.mxu0
  %v7151 = vadd.f32 %v7038, %v7150
  %v7152 = vpop.f32.mrf.mxu0
  %v7153 = vadd.f32 %v7040, %v7152
  %v7154 = vpop.f32.mrf.mxu0
  %v7155 = vadd.f32 %v7042, %v7154
  %7156 = vmatprep.mubr.bf16.mxu0 %v702
  %7157 = vmatmul.mubr.bf16.gmra.mxu0 %v701
  %v7158 = vpop.f32.mrf.mxu0
  %v7159 = vadd.f32 %v7046, %v7158
  %v7160 = vpop.f32.mrf.mxu0
  %v7161 = vadd.f32 %v7048, %v7160
  %v7162 = vpop.f32.mrf.mxu0
  %v7163 = vadd.f32 %v7050, %v7162
  %v7164 = vpop.f32.mrf.mxu0
  %v7165 = vadd.f32 %v7052, %v7164
  %7166 = vmatprep.mubr.bf16.mxu0 %v734
  %7167 = vmatmul.mubr.bf16.gmra.mxu0 %v733
  %v7168 = vpop.f32.mrf.mxu0
  %v7169 = vadd.f32 %v7056, %v7168
  %v7170 = vpop.f32.mrf.mxu0
  %v7171 = vadd.f32 %v7058, %v7170
  %v7172 = vpop.f32.mrf.mxu0
  %v7173 = vadd.f32 %v7060, %v7172
  %v7174 = vpop.f32.mrf.mxu0
  %v7175 = vadd.f32 %v7062, %v7174
  %7176 = vmatprep.mubr.bf16.mxu0 %v766
  %7177 = vmatmul.mubr.bf16.gmra.mxu0 %v765
  %v7178 = vpop.f32.mrf.mxu0
  %v7179 = vadd.f32 %v7066, %v7178
  %v7180 = vpop.f32.mrf.mxu0
  %v7181 = vadd.f32 %v7068, %v7180
  %v7182 = vpop.f32.mrf.mxu0
  %v7183 = vadd.f32 %v7070, %v7182
  %v7184 = vpop.f32.mrf.mxu0
  %v7185 = vadd.f32 %v7072, %v7184
  %7186 = vdwg.mxu0
  %7187 = vmatprep.subr.bf16.mxu0 %v5070
  %7188 = vmatpush1.bf16.msra.mxu0 %v5069
  %7189 = vmatprep.subr.bf16.mxu0 %v5066
  %7190 = vmatpush1.bf16.msra.mxu0 %v5065
  %7191 = vmatprep.subr.bf16.mxu0 %v5062
  %7192 = vmatpush1.bf16.msra.mxu0 %v5061
  %7193 = vmatprep.subr.bf16.mxu0 %v5058
  %7194 = vmatpush1.bf16.msra.mxu0 %v5057
  %7195 = vmatprep.subr.bf16.mxu0 %v5054
  %7196 = vmatpush1.bf16.msra.mxu0 %v5053
  %7197 = vmatprep.subr.bf16.mxu0 %v5050
  %7198 = vmatpush1.bf16.msra.mxu0 %v5049
  %7199 = vmatprep.subr.bf16.mxu0 %v5046
  %7200 = vmatpush1.bf16.msra.mxu0 %v5045
  %7201 = vmatprep.subr.bf16.mxu0 %v5042
  %7202 = vmatpush1.bf16.msra.mxu0 %v5041
  %7203 = vmatprep.subr.bf16.mxu0 %v5102
  %7204 = vmatpush2.bf16.msra.mxu0 %v5101
  %7205 = vmatprep.subr.bf16.mxu0 %v5098
  %7206 = vmatpush2.bf16.msra.mxu0 %v5097
  %7207 = vmatprep.subr.bf16.mxu0 %v5094
  %7208 = vmatpush2.bf16.msra.mxu0 %v5093
  %7209 = vmatprep.subr.bf16.mxu0 %v5090
  %7210 = vmatpush2.bf16.msra.mxu0 %v5089
  %7211 = vmatprep.subr.bf16.mxu0 %v5086
  %7212 = vmatpush2.bf16.msra.mxu0 %v5085
  %7213 = vmatprep.subr.bf16.mxu0 %v5082
  %7214 = vmatpush2.bf16.msra.mxu0 %v5081
  %7215 = vmatprep.subr.bf16.mxu0 %v5078
  %7216 = vmatpush2.bf16.msra.mxu0 %v5077
  %7217 = vmatprep.subr.bf16.mxu0 %v5074
  %7218 = vmatpush2.bf16.msra.mxu0 %v5073
  %7219 = vmatprep.mubr.bf16.mxu0 %v544
  %7220 = vmatmul.mubr.bf16.gmra.mxu0 %v543
  %v7221 = vpop.f32.mrf.mxu0
  %v7222 = vadd.f32 %v7109, %v7221
  %v7223 = vpop.f32.mrf.mxu0
  %v7224 = vadd.f32 %v7111, %v7223
  %v7225 = vpop.f32.mrf.mxu0
  %v7226 = vadd.f32 %v7113, %v7225
  %v7227 = vpop.f32.mrf.mxu0
  %v7228 = vadd.f32 %v7115, %v7227
  %7229 = vmatprep.mubr.bf16.mxu0 %v576
  %7230 = vmatmul.mubr.bf16.gmra.mxu0 %v575
  %v7231 = vpop.f32.mrf.mxu0
  %v7232 = vadd.f32 %v7119, %v7231
  %v7233 = vpop.f32.mrf.mxu0
  %v7234 = vadd.f32 %v7121, %v7233
  %v7235 = vpop.f32.mrf.mxu0
  %v7236 = vadd.f32 %v7123, %v7235
  %v7237 = vpop.f32.mrf.mxu0
  %v7238 = vadd.f32 %v7125, %v7237
  %7239 = vmatprep.mubr.bf16.mxu0 %v608
  %7240 = vmatmul.mubr.bf16.gmra.mxu0 %v607
  %v7241 = vpop.f32.mrf.mxu0
  %v7242 = vadd.f32 %v7129, %v7241
  %v7243 = vpop.f32.mrf.mxu0
  %v7244 = vadd.f32 %v7131, %v7243
  %v7245 = vpop.f32.mrf.mxu0
  %v7246 = vadd.f32 %v7133, %v7245
  %v7247 = vpop.f32.mrf.mxu0
  %v7248 = vadd.f32 %v7135, %v7247
  %7249 = vmatprep.mubr.bf16.mxu0 %v640
  %7250 = vmatmul.mubr.bf16.gmra.mxu0 %v639
  %v7251 = vpop.f32.mrf.mxu0
  %v7252 = vadd.f32 %v7139, %v7251
  %v7253 = vpop.f32.mrf.mxu0
  %v7254 = vadd.f32 %v7141, %v7253
  %v7255 = vpop.f32.mrf.mxu0
  %v7256 = vadd.f32 %v7143, %v7255
  %v7257 = vpop.f32.mrf.mxu0
  %v7258 = vadd.f32 %v7145, %v7257
  %7259 = vmatprep.mubr.bf16.mxu0 %v672
  %7260 = vmatmul.mubr.bf16.gmra.mxu0 %v671
  %v7261 = vpop.f32.mrf.mxu0
  %v7262 = vadd.f32 %v7149, %v7261
  %v7263 = vpop.f32.mrf.mxu0
  %v7264 = vadd.f32 %v7151, %v7263
  %v7265 = vpop.f32.mrf.mxu0
  %v7266 = vadd.f32 %v7153, %v7265
  %v7267 = vpop.f32.mrf.mxu0
  %v7268 = vadd.f32 %v7155, %v7267
  %7269 = vmatprep.mubr.bf16.mxu0 %v704
  %7270 = vmatmul.mubr.bf16.gmra.mxu0 %v703
  %v7271 = vpop.f32.mrf.mxu0
  %v7272 = vadd.f32 %v7159, %v7271
  %v7273 = vpop.f32.mrf.mxu0
  %v7274 = vadd.f32 %v7161, %v7273
  %v7275 = vpop.f32.mrf.mxu0
  %v7276 = vadd.f32 %v7163, %v7275
  %v7277 = vpop.f32.mrf.mxu0
  %v7278 = vadd.f32 %v7165, %v7277
  %7279 = vmatprep.mubr.bf16.mxu0 %v736
  %7280 = vmatmul.mubr.bf16.gmra.mxu0 %v735
  %v7281 = vpop.f32.mrf.mxu0
  %v7282 = vadd.f32 %v7169, %v7281
  %v7283 = vpop.f32.mrf.mxu0
  %v7284 = vadd.f32 %v7171, %v7283
  %v7285 = vpop.f32.mrf.mxu0
  %v7286 = vadd.f32 %v7173, %v7285
  %v7287 = vpop.f32.mrf.mxu0
  %v7288 = vadd.f32 %v7175, %v7287
  %7289 = vmatprep.mubr.bf16.mxu0 %v768
  %7290 = vmatmul.mubr.bf16.gmra.mxu0 %v767
  %v7291 = vpop.f32.mrf.mxu0
  %v7292 = vadd.f32 %v7179, %v7291
  %v7293 = vpop.f32.mrf.mxu0
  %v7294 = vadd.f32 %v7181, %v7293
  %v7295 = vpop.f32.mrf.mxu0
  %v7296 = vadd.f32 %v7183, %v7295
  %v7297 = vpop.f32.mrf.mxu0
  %v7298 = vadd.f32 %v7185, %v7297
  %7299 = vdwg.mxu0
  %7300 = vmatprep.subr.bf16.mxu0 %v5134
  %7301 = vmatpush1.bf16.msra.mxu0 %v5133
  %7302 = vmatprep.subr.bf16.mxu0 %v5130
  %7303 = vmatpush1.bf16.msra.mxu0 %v5129
  %7304 = vmatprep.subr.bf16.mxu0 %v5126
  %7305 = vmatpush1.bf16.msra.mxu0 %v5125
  %7306 = vmatprep.subr.bf16.mxu0 %v5122
  %7307 = vmatpush1.bf16.msra.mxu0 %v5121
  %7308 = vmatprep.subr.bf16.mxu0 %v5118
  %7309 = vmatpush1.bf16.msra.mxu0 %v5117
  %7310 = vmatprep.subr.bf16.mxu0 %v5114
  %7311 = vmatpush1.bf16.msra.mxu0 %v5113
  %7312 = vmatprep.subr.bf16.mxu0 %v5110
  %7313 = vmatpush1.bf16.msra.mxu0 %v5109
  %7314 = vmatprep.subr.bf16.mxu0 %v5106
  %7315 = vmatpush1.bf16.msra.mxu0 %v5105
  %7316 = vmatprep.subr.bf16.mxu0 %v5166
  %7317 = vmatpush2.bf16.msra.mxu0 %v5165
  %7318 = vmatprep.subr.bf16.mxu0 %v5162
  %7319 = vmatpush2.bf16.msra.mxu0 %v5161
  %7320 = vmatprep.subr.bf16.mxu0 %v5158
  %7321 = vmatpush2.bf16.msra.mxu0 %v5157
  %7322 = vmatprep.subr.bf16.mxu0 %v5154
  %7323 = vmatpush2.bf16.msra.mxu0 %v5153
  %7324 = vmatprep.subr.bf16.mxu0 %v5150
  %7325 = vmatpush2.bf16.msra.mxu0 %v5149
  %7326 = vmatprep.subr.bf16.mxu0 %v5146
  %7327 = vmatpush2.bf16.msra.mxu0 %v5145
  %7328 = vmatprep.subr.bf16.mxu0 %v5142
  %7329 = vmatpush2.bf16.msra.mxu0 %v5141
  %7330 = vmatprep.subr.bf16.mxu0 %v5138
  %7331 = vmatpush2.bf16.msra.mxu0 %v5137
  %7332 = vmatprep.mubr.bf16.mxu0 %v546
  %7333 = vmatmul.mubr.bf16.gmra.mxu0 %v545
  %v7334 = vpop.f32.mrf.mxu0
  %v7335 = vadd.f32 %v7222, %v7334
  %v7336 = vpop.f32.mrf.mxu0
  %v7337 = vadd.f32 %v7224, %v7336
  %v7338 = vpop.f32.mrf.mxu0
  %v7339 = vadd.f32 %v7226, %v7338
  %v7340 = vpop.f32.mrf.mxu0
  %v7341 = vadd.f32 %v7228, %v7340
  %7342 = vmatprep.mubr.bf16.mxu0 %v578
  %7343 = vmatmul.mubr.bf16.gmra.mxu0 %v577
  %v7344 = vpop.f32.mrf.mxu0
  %v7345 = vadd.f32 %v7232, %v7344
  %v7346 = vpop.f32.mrf.mxu0
  %v7347 = vadd.f32 %v7234, %v7346
  %v7348 = vpop.f32.mrf.mxu0
  %v7349 = vadd.f32 %v7236, %v7348
  %v7350 = vpop.f32.mrf.mxu0
  %v7351 = vadd.f32 %v7238, %v7350
  %7352 = vmatprep.mubr.bf16.mxu0 %v610
  %7353 = vmatmul.mubr.bf16.gmra.mxu0 %v609
  %v7354 = vpop.f32.mrf.mxu0
  %v7355 = vadd.f32 %v7242, %v7354
  %v7356 = vpop.f32.mrf.mxu0
  %v7357 = vadd.f32 %v7244, %v7356
  %v7358 = vpop.f32.mrf.mxu0
  %v7359 = vadd.f32 %v7246, %v7358
  %v7360 = vpop.f32.mrf.mxu0
  %v7361 = vadd.f32 %v7248, %v7360
  %7362 = vmatprep.mubr.bf16.mxu0 %v642
  %7363 = vmatmul.mubr.bf16.gmra.mxu0 %v641
  %v7364 = vpop.f32.mrf.mxu0
  %v7365 = vadd.f32 %v7252, %v7364
  %v7366 = vpop.f32.mrf.mxu0
  %v7367 = vadd.f32 %v7254, %v7366
  %v7368 = vpop.f32.mrf.mxu0
  %v7369 = vadd.f32 %v7256, %v7368
  %v7370 = vpop.f32.mrf.mxu0
  %v7371 = vadd.f32 %v7258, %v7370
  %7372 = vmatprep.mubr.bf16.mxu0 %v674
  %7373 = vmatmul.mubr.bf16.gmra.mxu0 %v673
  %v7374 = vpop.f32.mrf.mxu0
  %v7375 = vadd.f32 %v7262, %v7374
  %v7376 = vpop.f32.mrf.mxu0
  %v7377 = vadd.f32 %v7264, %v7376
  %v7378 = vpop.f32.mrf.mxu0
  %v7379 = vadd.f32 %v7266, %v7378
  %v7380 = vpop.f32.mrf.mxu0
  %v7381 = vadd.f32 %v7268, %v7380
  %7382 = vmatprep.mubr.bf16.mxu0 %v706
  %7383 = vmatmul.mubr.bf16.gmra.mxu0 %v705
  %v7384 = vpop.f32.mrf.mxu0
  %v7385 = vadd.f32 %v7272, %v7384
  %v7386 = vpop.f32.mrf.mxu0
  %v7387 = vadd.f32 %v7274, %v7386
  %v7388 = vpop.f32.mrf.mxu0
  %v7389 = vadd.f32 %v7276, %v7388
  %v7390 = vpop.f32.mrf.mxu0
  %v7391 = vadd.f32 %v7278, %v7390
  %7392 = vmatprep.mubr.bf16.mxu0 %v738
  %7393 = vmatmul.mubr.bf16.gmra.mxu0 %v737
  %v7394 = vpop.f32.mrf.mxu0
  %v7395 = vadd.f32 %v7282, %v7394
  %v7396 = vpop.f32.mrf.mxu0
  %v7397 = vadd.f32 %v7284, %v7396
  %v7398 = vpop.f32.mrf.mxu0
  %v7399 = vadd.f32 %v7286, %v7398
  %v7400 = vpop.f32.mrf.mxu0
  %v7401 = vadd.f32 %v7288, %v7400
  %7402 = vmatprep.mubr.bf16.mxu0 %v770
  %7403 = vmatmul.mubr.bf16.gmra.mxu0 %v769
  %v7404 = vpop.f32.mrf.mxu0
  %v7405 = vadd.f32 %v7292, %v7404
  %v7406 = vpop.f32.mrf.mxu0
  %v7407 = vadd.f32 %v7294, %v7406
  %v7408 = vpop.f32.mrf.mxu0
  %v7409 = vadd.f32 %v7296, %v7408
  %v7410 = vpop.f32.mrf.mxu0
  %v7411 = vadd.f32 %v7298, %v7410
  %7412 = vdwg.mxu0
  %7413 = vmatprep.subr.bf16.mxu0 %v5198
  %7414 = vmatpush1.bf16.msra.mxu0 %v5197
  %7415 = vmatprep.subr.bf16.mxu0 %v5194
  %7416 = vmatpush1.bf16.msra.mxu0 %v5193
  %7417 = vmatprep.subr.bf16.mxu0 %v5190
  %7418 = vmatpush1.bf16.msra.mxu0 %v5189
  %7419 = vmatprep.subr.bf16.mxu0 %v5186
  %7420 = vmatpush1.bf16.msra.mxu0 %v5185
  %7421 = vmatprep.subr.bf16.mxu0 %v5182
  %7422 = vmatpush1.bf16.msra.mxu0 %v5181
  %7423 = vmatprep.subr.bf16.mxu0 %v5178
  %7424 = vmatpush1.bf16.msra.mxu0 %v5177
  %7425 = vmatprep.subr.bf16.mxu0 %v5174
  %7426 = vmatpush1.bf16.msra.mxu0 %v5173
  %7427 = vmatprep.subr.bf16.mxu0 %v5170
  %7428 = vmatpush1.bf16.msra.mxu0 %v5169
  %7429 = vmatprep.subr.bf16.mxu0 %v5230
  %7430 = vmatpush2.bf16.msra.mxu0 %v5229
  %7431 = vmatprep.subr.bf16.mxu0 %v5226
  %7432 = vmatpush2.bf16.msra.mxu0 %v5225
  %7433 = vmatprep.subr.bf16.mxu0 %v5222
  %7434 = vmatpush2.bf16.msra.mxu0 %v5221
  %7435 = vmatprep.subr.bf16.mxu0 %v5218
  %7436 = vmatpush2.bf16.msra.mxu0 %v5217
  %7437 = vmatprep.subr.bf16.mxu0 %v5214
  %7438 = vmatpush2.bf16.msra.mxu0 %v5213
  %7439 = vmatprep.subr.bf16.mxu0 %v5210
  %7440 = vmatpush2.bf16.msra.mxu0 %v5209
  %7441 = vmatprep.subr.bf16.mxu0 %v5206
  %7442 = vmatpush2.bf16.msra.mxu0 %v5205
  %7443 = vmatprep.subr.bf16.mxu0 %v5202
  %7444 = vmatpush2.bf16.msra.mxu0 %v5201
  %7445 = vmatprep.mubr.bf16.mxu0 %v548
  %7446 = vmatmul.mubr.bf16.gmra.mxu0 %v547
  %v7447 = vpop.f32.mrf.mxu0
  %v7448 = vadd.f32 %v7335, %v7447
  %v7449 = vpop.f32.mrf.mxu0
  %v7450 = vadd.f32 %v7337, %v7449
  %v7451 = vpop.f32.mrf.mxu0
  %v7452 = vadd.f32 %v7339, %v7451
  %v7453 = vpop.f32.mrf.mxu0
  %v7454 = vadd.f32 %v7341, %v7453
  %7455 = vmatprep.mubr.bf16.mxu0 %v580
  %7456 = vmatmul.mubr.bf16.gmra.mxu0 %v579
  %v7457 = vpop.f32.mrf.mxu0
  %v7458 = vadd.f32 %v7345, %v7457
  %v7459 = vpop.f32.mrf.mxu0
  %v7460 = vadd.f32 %v7347, %v7459
  %v7461 = vpop.f32.mrf.mxu0
  %v7462 = vadd.f32 %v7349, %v7461
  %v7463 = vpop.f32.mrf.mxu0
  %v7464 = vadd.f32 %v7351, %v7463
  %7465 = vmatprep.mubr.bf16.mxu0 %v612
  %7466 = vmatmul.mubr.bf16.gmra.mxu0 %v611
  %v7467 = vpop.f32.mrf.mxu0
  %v7468 = vadd.f32 %v7355, %v7467
  %v7469 = vpop.f32.mrf.mxu0
  %v7470 = vadd.f32 %v7357, %v7469
  %v7471 = vpop.f32.mrf.mxu0
  %v7472 = vadd.f32 %v7359, %v7471
  %v7473 = vpop.f32.mrf.mxu0
  %v7474 = vadd.f32 %v7361, %v7473
  %7475 = vmatprep.mubr.bf16.mxu0 %v644
  %7476 = vmatmul.mubr.bf16.gmra.mxu0 %v643
  %v7477 = vpop.f32.mrf.mxu0
  %v7478 = vadd.f32 %v7365, %v7477
  %v7479 = vpop.f32.mrf.mxu0
  %v7480 = vadd.f32 %v7367, %v7479
  %v7481 = vpop.f32.mrf.mxu0
  %v7482 = vadd.f32 %v7369, %v7481
  %v7483 = vpop.f32.mrf.mxu0
  %v7484 = vadd.f32 %v7371, %v7483
  %7485 = vmatprep.mubr.bf16.mxu0 %v676
  %7486 = vmatmul.mubr.bf16.gmra.mxu0 %v675
  %v7487 = vpop.f32.mrf.mxu0
  %v7488 = vadd.f32 %v7375, %v7487
  %v7489 = vpop.f32.mrf.mxu0
  %v7490 = vadd.f32 %v7377, %v7489
  %v7491 = vpop.f32.mrf.mxu0
  %v7492 = vadd.f32 %v7379, %v7491
  %v7493 = vpop.f32.mrf.mxu0
  %v7494 = vadd.f32 %v7381, %v7493
  %7495 = vmatprep.mubr.bf16.mxu0 %v708
  %7496 = vmatmul.mubr.bf16.gmra.mxu0 %v707
  %v7497 = vpop.f32.mrf.mxu0
  %v7498 = vadd.f32 %v7385, %v7497
  %v7499 = vpop.f32.mrf.mxu0
  %v7500 = vadd.f32 %v7387, %v7499
  %v7501 = vpop.f32.mrf.mxu0
  %v7502 = vadd.f32 %v7389, %v7501
  %v7503 = vpop.f32.mrf.mxu0
  %v7504 = vadd.f32 %v7391, %v7503
  %7505 = vmatprep.mubr.bf16.mxu0 %v740
  %7506 = vmatmul.mubr.bf16.gmra.mxu0 %v739
  %v7507 = vpop.f32.mrf.mxu0
  %v7508 = vadd.f32 %v7395, %v7507
  %v7509 = vpop.f32.mrf.mxu0
  %v7510 = vadd.f32 %v7397, %v7509
  %v7511 = vpop.f32.mrf.mxu0
  %v7512 = vadd.f32 %v7399, %v7511
  %v7513 = vpop.f32.mrf.mxu0
  %v7514 = vadd.f32 %v7401, %v7513
  %7515 = vmatprep.mubr.bf16.mxu0 %v772
  %7516 = vmatmul.mubr.bf16.gmra.mxu0 %v771
  %v7517 = vpop.f32.mrf.mxu0
  %v7518 = vadd.f32 %v7405, %v7517
  %v7519 = vpop.f32.mrf.mxu0
  %v7520 = vadd.f32 %v7407, %v7519
  %v7521 = vpop.f32.mrf.mxu0
  %v7522 = vadd.f32 %v7409, %v7521
  %v7523 = vpop.f32.mrf.mxu0
  %v7524 = vadd.f32 %v7411, %v7523
  %7525 = vdwg.mxu0
  %7526 = vmatprep.subr.bf16.mxu0 %v5262
  %7527 = vmatpush1.bf16.msra.mxu0 %v5261
  %7528 = vmatprep.subr.bf16.mxu0 %v5258
  %7529 = vmatpush1.bf16.msra.mxu0 %v5257
  %7530 = vmatprep.subr.bf16.mxu0 %v5254
  %7531 = vmatpush1.bf16.msra.mxu0 %v5253
  %7532 = vmatprep.subr.bf16.mxu0 %v5250
  %7533 = vmatpush1.bf16.msra.mxu0 %v5249
  %7534 = vmatprep.subr.bf16.mxu0 %v5246
  %7535 = vmatpush1.bf16.msra.mxu0 %v5245
  %7536 = vmatprep.subr.bf16.mxu0 %v5242
  %7537 = vmatpush1.bf16.msra.mxu0 %v5241
  %7538 = vmatprep.subr.bf16.mxu0 %v5238
  %7539 = vmatpush1.bf16.msra.mxu0 %v5237
  %7540 = vmatprep.subr.bf16.mxu0 %v5234
  %7541 = vmatpush1.bf16.msra.mxu0 %v5233
  %7542 = vmatprep.subr.bf16.mxu0 %v5294
  %7543 = vmatpush2.bf16.msra.mxu0 %v5293
  %7544 = vmatprep.subr.bf16.mxu0 %v5290
  %7545 = vmatpush2.bf16.msra.mxu0 %v5289
  %7546 = vmatprep.subr.bf16.mxu0 %v5286
  %7547 = vmatpush2.bf16.msra.mxu0 %v5285
  %7548 = vmatprep.subr.bf16.mxu0 %v5282
  %7549 = vmatpush2.bf16.msra.mxu0 %v5281
  %7550 = vmatprep.subr.bf16.mxu0 %v5278
  %7551 = vmatpush2.bf16.msra.mxu0 %v5277
  %7552 = vmatprep.subr.bf16.mxu0 %v5274
  %7553 = vmatpush2.bf16.msra.mxu0 %v5273
  %7554 = vmatprep.subr.bf16.mxu0 %v5270
  %7555 = vmatpush2.bf16.msra.mxu0 %v5269
  %7556 = vmatprep.subr.bf16.mxu0 %v5266
  %7557 = vmatpush2.bf16.msra.mxu0 %v5265
  %7558 = vmatprep.mubr.bf16.mxu0 %v550
  %7559 = vmatmul.mubr.bf16.gmra.mxu0 %v549
  %v7560 = vpop.f32.mrf.mxu0
  %v7561 = vadd.f32 %v7448, %v7560
  %v7562 = vpop.f32.mrf.mxu0
  %v7563 = vadd.f32 %v7450, %v7562
  %v7564 = vpop.f32.mrf.mxu0
  %v7565 = vadd.f32 %v7452, %v7564
  %v7566 = vpop.f32.mrf.mxu0
  %v7567 = vadd.f32 %v7454, %v7566
  %7568 = vmatprep.mubr.bf16.mxu0 %v582
  %7569 = vmatmul.mubr.bf16.gmra.mxu0 %v581
  %v7570 = vpop.f32.mrf.mxu0
  %v7571 = vadd.f32 %v7458, %v7570
  %v7572 = vpop.f32.mrf.mxu0
  %v7573 = vadd.f32 %v7460, %v7572
  %v7574 = vpop.f32.mrf.mxu0
  %v7575 = vadd.f32 %v7462, %v7574
  %v7576 = vpop.f32.mrf.mxu0
  %v7577 = vadd.f32 %v7464, %v7576
  %7578 = vmatprep.mubr.bf16.mxu0 %v614
  %7579 = vmatmul.mubr.bf16.gmra.mxu0 %v613
  %v7580 = vpop.f32.mrf.mxu0
  %v7581 = vadd.f32 %v7468, %v7580
  %v7582 = vpop.f32.mrf.mxu0
  %v7583 = vadd.f32 %v7470, %v7582
  %v7584 = vpop.f32.mrf.mxu0
  %v7585 = vadd.f32 %v7472, %v7584
  %v7586 = vpop.f32.mrf.mxu0
  %v7587 = vadd.f32 %v7474, %v7586
  %7588 = vmatprep.mubr.bf16.mxu0 %v646
  %7589 = vmatmul.mubr.bf16.gmra.mxu0 %v645
  %v7590 = vpop.f32.mrf.mxu0
  %v7591 = vadd.f32 %v7478, %v7590
  %v7592 = vpop.f32.mrf.mxu0
  %v7593 = vadd.f32 %v7480, %v7592
  %v7594 = vpop.f32.mrf.mxu0
  %v7595 = vadd.f32 %v7482, %v7594
  %v7596 = vpop.f32.mrf.mxu0
  %v7597 = vadd.f32 %v7484, %v7596
  %7598 = vmatprep.mubr.bf16.mxu0 %v678
  %7599 = vmatmul.mubr.bf16.gmra.mxu0 %v677
  %v7600 = vpop.f32.mrf.mxu0
  %v7601 = vadd.f32 %v7488, %v7600
  %v7602 = vpop.f32.mrf.mxu0
  %v7603 = vadd.f32 %v7490, %v7602
  %v7604 = vpop.f32.mrf.mxu0
  %v7605 = vadd.f32 %v7492, %v7604
  %v7606 = vpop.f32.mrf.mxu0
  %v7607 = vadd.f32 %v7494, %v7606
  %7608 = vmatprep.mubr.bf16.mxu0 %v710
  %7609 = vmatmul.mubr.bf16.gmra.mxu0 %v709
  %v7610 = vpop.f32.mrf.mxu0
  %v7611 = vadd.f32 %v7498, %v7610
  %v7612 = vpop.f32.mrf.mxu0
  %v7613 = vadd.f32 %v7500, %v7612
  %v7614 = vpop.f32.mrf.mxu0
  %v7615 = vadd.f32 %v7502, %v7614
  %v7616 = vpop.f32.mrf.mxu0
  %v7617 = vadd.f32 %v7504, %v7616
  %7618 = vmatprep.mubr.bf16.mxu0 %v742
  %7619 = vmatmul.mubr.bf16.gmra.mxu0 %v741
  %v7620 = vpop.f32.mrf.mxu0
  %v7621 = vadd.f32 %v7508, %v7620
  %v7622 = vpop.f32.mrf.mxu0
  %v7623 = vadd.f32 %v7510, %v7622
  %v7624 = vpop.f32.mrf.mxu0
  %v7625 = vadd.f32 %v7512, %v7624
  %v7626 = vpop.f32.mrf.mxu0
  %v7627 = vadd.f32 %v7514, %v7626
  %7628 = vmatprep.mubr.bf16.mxu0 %v774
  %7629 = vmatmul.mubr.bf16.gmra.mxu0 %v773
  %v7630 = vpop.f32.mrf.mxu0
  %v7631 = vadd.f32 %v7518, %v7630
  %v7632 = vpop.f32.mrf.mxu0
  %v7633 = vadd.f32 %v7520, %v7632
  %v7634 = vpop.f32.mrf.mxu0
  %v7635 = vadd.f32 %v7522, %v7634
  %v7636 = vpop.f32.mrf.mxu0
  %v7637 = vadd.f32 %v7524, %v7636
  %7638 = vdwg.mxu0
  %7639 = vmatprep.subr.bf16.mxu0 %v5326
  %7640 = vmatpush1.bf16.msra.mxu0 %v5325
  %7641 = vmatprep.subr.bf16.mxu0 %v5322
  %7642 = vmatpush1.bf16.msra.mxu0 %v5321
  %7643 = vmatprep.subr.bf16.mxu0 %v5318
  %7644 = vmatpush1.bf16.msra.mxu0 %v5317
  %7645 = vmatprep.subr.bf16.mxu0 %v5314
  %7646 = vmatpush1.bf16.msra.mxu0 %v5313
  %7647 = vmatprep.subr.bf16.mxu0 %v5310
  %7648 = vmatpush1.bf16.msra.mxu0 %v5309
  %7649 = vmatprep.subr.bf16.mxu0 %v5306
  %7650 = vmatpush1.bf16.msra.mxu0 %v5305
  %7651 = vmatprep.subr.bf16.mxu0 %v5302
  %7652 = vmatpush1.bf16.msra.mxu0 %v5301
  %7653 = vmatprep.subr.bf16.mxu0 %v5298
  %7654 = vmatpush1.bf16.msra.mxu0 %v5297
  %7655 = vmatprep.subr.bf16.mxu0 %v5358
  %7656 = vmatpush2.bf16.msra.mxu0 %v5357
  %7657 = vmatprep.subr.bf16.mxu0 %v5354
  %7658 = vmatpush2.bf16.msra.mxu0 %v5353
  %7659 = vmatprep.subr.bf16.mxu0 %v5350
  %7660 = vmatpush2.bf16.msra.mxu0 %v5349
  %7661 = vmatprep.subr.bf16.mxu0 %v5346
  %7662 = vmatpush2.bf16.msra.mxu0 %v5345
  %7663 = vmatprep.subr.bf16.mxu0 %v5342
  %7664 = vmatpush2.bf16.msra.mxu0 %v5341
  %7665 = vmatprep.subr.bf16.mxu0 %v5338
  %7666 = vmatpush2.bf16.msra.mxu0 %v5337
  %7667 = vmatprep.subr.bf16.mxu0 %v5334
  %7668 = vmatpush2.bf16.msra.mxu0 %v5333
  %7669 = vmatprep.subr.bf16.mxu0 %v5330
  %7670 = vmatpush2.bf16.msra.mxu0 %v5329
  %7671 = vmatprep.mubr.bf16.mxu0 %v552
  %7672 = vmatmul.mubr.bf16.gmra.mxu0 %v551
  %v7673 = vpop.f32.mrf.mxu0
  %v7674 = vadd.f32 %v7561, %v7673
  %v7675 = vpop.f32.mrf.mxu0
  %v7676 = vadd.f32 %v7563, %v7675
  %v7677 = vpop.f32.mrf.mxu0
  %v7678 = vadd.f32 %v7565, %v7677
  %v7679 = vpop.f32.mrf.mxu0
  %v7680 = vadd.f32 %v7567, %v7679
  %7681 = vmatprep.mubr.bf16.mxu0 %v584
  %7682 = vmatmul.mubr.bf16.gmra.mxu0 %v583
  %v7683 = vpop.f32.mrf.mxu0
  %v7684 = vadd.f32 %v7571, %v7683
  %v7685 = vpop.f32.mrf.mxu0
  %v7686 = vadd.f32 %v7573, %v7685
  %v7687 = vpop.f32.mrf.mxu0
  %v7688 = vadd.f32 %v7575, %v7687
  %v7689 = vpop.f32.mrf.mxu0
  %v7690 = vadd.f32 %v7577, %v7689
  %7691 = vmatprep.mubr.bf16.mxu0 %v616
  %7692 = vmatmul.mubr.bf16.gmra.mxu0 %v615
  %v7693 = vpop.f32.mrf.mxu0
  %v7694 = vadd.f32 %v7581, %v7693
  %v7695 = vpop.f32.mrf.mxu0
  %v7696 = vadd.f32 %v7583, %v7695
  %v7697 = vpop.f32.mrf.mxu0
  %v7698 = vadd.f32 %v7585, %v7697
  %v7699 = vpop.f32.mrf.mxu0
  %v7700 = vadd.f32 %v7587, %v7699
  %7701 = vmatprep.mubr.bf16.mxu0 %v648
  %7702 = vmatmul.mubr.bf16.gmra.mxu0 %v647
  %v7703 = vpop.f32.mrf.mxu0
  %v7704 = vadd.f32 %v7591, %v7703
  %v7705 = vpop.f32.mrf.mxu0
  %v7706 = vadd.f32 %v7593, %v7705
  %v7707 = vpop.f32.mrf.mxu0
  %v7708 = vadd.f32 %v7595, %v7707
  %v7709 = vpop.f32.mrf.mxu0
  %v7710 = vadd.f32 %v7597, %v7709
  %7711 = vmatprep.mubr.bf16.mxu0 %v680
  %7712 = vmatmul.mubr.bf16.gmra.mxu0 %v679
  %v7713 = vpop.f32.mrf.mxu0
  %v7714 = vadd.f32 %v7601, %v7713
  %v7715 = vpop.f32.mrf.mxu0
  %v7716 = vadd.f32 %v7603, %v7715
  %v7717 = vpop.f32.mrf.mxu0
  %v7718 = vadd.f32 %v7605, %v7717
  %v7719 = vpop.f32.mrf.mxu0
  %v7720 = vadd.f32 %v7607, %v7719
  %7721 = vmatprep.mubr.bf16.mxu0 %v712
  %7722 = vmatmul.mubr.bf16.gmra.mxu0 %v711
  %v7723 = vpop.f32.mrf.mxu0
  %v7724 = vadd.f32 %v7611, %v7723
  %v7725 = vpop.f32.mrf.mxu0
  %v7726 = vadd.f32 %v7613, %v7725
  %v7727 = vpop.f32.mrf.mxu0
  %v7728 = vadd.f32 %v7615, %v7727
  %v7729 = vpop.f32.mrf.mxu0
  %v7730 = vadd.f32 %v7617, %v7729
  %7731 = vmatprep.mubr.bf16.mxu0 %v744
  %7732 = vmatmul.mubr.bf16.gmra.mxu0 %v743
  %v7733 = vpop.f32.mrf.mxu0
  %v7734 = vadd.f32 %v7621, %v7733
  %v7735 = vpop.f32.mrf.mxu0
  %v7736 = vadd.f32 %v7623, %v7735
  %v7737 = vpop.f32.mrf.mxu0
  %v7738 = vadd.f32 %v7625, %v7737
  %v7739 = vpop.f32.mrf.mxu0
  %v7740 = vadd.f32 %v7627, %v7739
  %7741 = vmatprep.mubr.bf16.mxu0 %v776
  %7742 = vmatmul.mubr.bf16.gmra.mxu0 %v775
  %v7743 = vpop.f32.mrf.mxu0
  %v7744 = vadd.f32 %v7631, %v7743
  %v7745 = vpop.f32.mrf.mxu0
  %v7746 = vadd.f32 %v7633, %v7745
  %v7747 = vpop.f32.mrf.mxu0
  %v7748 = vadd.f32 %v7635, %v7747
  %v7749 = vpop.f32.mrf.mxu0
  %v7750 = vadd.f32 %v7637, %v7749
  %7751 = vdwg.mxu0
  %7752 = vmatprep.subr.bf16.mxu0 %v5390
  %7753 = vmatpush1.bf16.msra.mxu0 %v5389
  %7754 = vmatprep.subr.bf16.mxu0 %v5386
  %7755 = vmatpush1.bf16.msra.mxu0 %v5385
  %7756 = vmatprep.subr.bf16.mxu0 %v5382
  %7757 = vmatpush1.bf16.msra.mxu0 %v5381
  %7758 = vmatprep.subr.bf16.mxu0 %v5378
  %7759 = vmatpush1.bf16.msra.mxu0 %v5377
  %7760 = vmatprep.subr.bf16.mxu0 %v5374
  %7761 = vmatpush1.bf16.msra.mxu0 %v5373
  %7762 = vmatprep.subr.bf16.mxu0 %v5370
  %7763 = vmatpush1.bf16.msra.mxu0 %v5369
  %7764 = vmatprep.subr.bf16.mxu0 %v5366
  %7765 = vmatpush1.bf16.msra.mxu0 %v5365
  %7766 = vmatprep.subr.bf16.mxu0 %v5362
  %7767 = vmatpush1.bf16.msra.mxu0 %v5361
  %7768 = vmatprep.subr.bf16.mxu0 %v5422
  %7769 = vmatpush2.bf16.msra.mxu0 %v5421
  %7770 = vmatprep.subr.bf16.mxu0 %v5418
  %7771 = vmatpush2.bf16.msra.mxu0 %v5417
  %7772 = vmatprep.subr.bf16.mxu0 %v5414
  %7773 = vmatpush2.bf16.msra.mxu0 %v5413
  %7774 = vmatprep.subr.bf16.mxu0 %v5410
  %7775 = vmatpush2.bf16.msra.mxu0 %v5409
  %7776 = vmatprep.subr.bf16.mxu0 %v5406
  %7777 = vmatpush2.bf16.msra.mxu0 %v5405
  %7778 = vmatprep.subr.bf16.mxu0 %v5402
  %7779 = vmatpush2.bf16.msra.mxu0 %v5401
  %7780 = vmatprep.subr.bf16.mxu0 %v5398
  %7781 = vmatpush2.bf16.msra.mxu0 %v5397
  %7782 = vmatprep.subr.bf16.mxu0 %v5394
  %7783 = vmatpush2.bf16.msra.mxu0 %v5393
  %7784 = vmatprep.mubr.bf16.mxu0 %v554
  %7785 = vmatmul.mubr.bf16.gmra.mxu0 %v553
  %v7786 = vpop.f32.mrf.mxu0
  %v7787 = vadd.f32 %v7674, %v7786
  %v7788 = vpop.f32.mrf.mxu0
  %v7789 = vadd.f32 %v7676, %v7788
  %v7790 = vpop.f32.mrf.mxu0
  %v7791 = vadd.f32 %v7678, %v7790
  %v7792 = vpop.f32.mrf.mxu0
  %v7793 = vadd.f32 %v7680, %v7792
  %7794 = vmatprep.mubr.bf16.mxu0 %v586
  %7795 = vmatmul.mubr.bf16.gmra.mxu0 %v585
  %v7796 = vpop.f32.mrf.mxu0
  %v7797 = vadd.f32 %v7684, %v7796
  %v7798 = vpop.f32.mrf.mxu0
  %v7799 = vadd.f32 %v7686, %v7798
  %v7800 = vpop.f32.mrf.mxu0
  %v7801 = vadd.f32 %v7688, %v7800
  %v7802 = vpop.f32.mrf.mxu0
  %v7803 = vadd.f32 %v7690, %v7802
  %7804 = vmatprep.mubr.bf16.mxu0 %v618
  %7805 = vmatmul.mubr.bf16.gmra.mxu0 %v617
  %v7806 = vpop.f32.mrf.mxu0
  %v7807 = vadd.f32 %v7694, %v7806
  %v7808 = vpop.f32.mrf.mxu0
  %v7809 = vadd.f32 %v7696, %v7808
  %v7810 = vpop.f32.mrf.mxu0
  %v7811 = vadd.f32 %v7698, %v7810
  %v7812 = vpop.f32.mrf.mxu0
  %v7813 = vadd.f32 %v7700, %v7812
  %7814 = vmatprep.mubr.bf16.mxu0 %v650
  %7815 = vmatmul.mubr.bf16.gmra.mxu0 %v649
  %v7816 = vpop.f32.mrf.mxu0
  %v7817 = vadd.f32 %v7704, %v7816
  %v7818 = vpop.f32.mrf.mxu0
  %v7819 = vadd.f32 %v7706, %v7818
  %v7820 = vpop.f32.mrf.mxu0
  %v7821 = vadd.f32 %v7708, %v7820
  %v7822 = vpop.f32.mrf.mxu0
  %v7823 = vadd.f32 %v7710, %v7822
  %7824 = vmatprep.mubr.bf16.mxu0 %v682
  %7825 = vmatmul.mubr.bf16.gmra.mxu0 %v681
  %v7826 = vpop.f32.mrf.mxu0
  %v7827 = vadd.f32 %v7714, %v7826
  %v7828 = vpop.f32.mrf.mxu0
  %v7829 = vadd.f32 %v7716, %v7828
  %v7830 = vpop.f32.mrf.mxu0
  %v7831 = vadd.f32 %v7718, %v7830
  %v7832 = vpop.f32.mrf.mxu0
  %v7833 = vadd.f32 %v7720, %v7832
  %7834 = vmatprep.mubr.bf16.mxu0 %v714
  %7835 = vmatmul.mubr.bf16.gmra.mxu0 %v713
  %v7836 = vpop.f32.mrf.mxu0
  %v7837 = vadd.f32 %v7724, %v7836
  %v7838 = vpop.f32.mrf.mxu0
  %v7839 = vadd.f32 %v7726, %v7838
  %v7840 = vpop.f32.mrf.mxu0
  %v7841 = vadd.f32 %v7728, %v7840
  %v7842 = vpop.f32.mrf.mxu0
  %v7843 = vadd.f32 %v7730, %v7842
  %7844 = vmatprep.mubr.bf16.mxu0 %v746
  %7845 = vmatmul.mubr.bf16.gmra.mxu0 %v745
  %v7846 = vpop.f32.mrf.mxu0
  %v7847 = vadd.f32 %v7734, %v7846
  %v7848 = vpop.f32.mrf.mxu0
  %v7849 = vadd.f32 %v7736, %v7848
  %v7850 = vpop.f32.mrf.mxu0
  %v7851 = vadd.f32 %v7738, %v7850
  %v7852 = vpop.f32.mrf.mxu0
  %v7853 = vadd.f32 %v7740, %v7852
  %7854 = vmatprep.mubr.bf16.mxu0 %v778
  %7855 = vmatmul.mubr.bf16.gmra.mxu0 %v777
  %v7856 = vpop.f32.mrf.mxu0
  %v7857 = vadd.f32 %v7744, %v7856
  %v7858 = vpop.f32.mrf.mxu0
  %v7859 = vadd.f32 %v7746, %v7858
  %v7860 = vpop.f32.mrf.mxu0
  %v7861 = vadd.f32 %v7748, %v7860
  %v7862 = vpop.f32.mrf.mxu0
  %v7863 = vadd.f32 %v7750, %v7862
  %7864 = vdwg.mxu0
  %7865 = vmatprep.subr.bf16.mxu0 %v5454
  %7866 = vmatpush1.bf16.msra.mxu0 %v5453
  %7867 = vmatprep.subr.bf16.mxu0 %v5450
  %7868 = vmatpush1.bf16.msra.mxu0 %v5449
  %7869 = vmatprep.subr.bf16.mxu0 %v5446
  %7870 = vmatpush1.bf16.msra.mxu0 %v5445
  %7871 = vmatprep.subr.bf16.mxu0 %v5442
  %7872 = vmatpush1.bf16.msra.mxu0 %v5441
  %7873 = vmatprep.subr.bf16.mxu0 %v5438
  %7874 = vmatpush1.bf16.msra.mxu0 %v5437
  %7875 = vmatprep.subr.bf16.mxu0 %v5434
  %7876 = vmatpush1.bf16.msra.mxu0 %v5433
  %7877 = vmatprep.subr.bf16.mxu0 %v5430
  %7878 = vmatpush1.bf16.msra.mxu0 %v5429
  %7879 = vmatprep.subr.bf16.mxu0 %v5426
  %7880 = vmatpush1.bf16.msra.mxu0 %v5425
  %7881 = vmatprep.subr.bf16.mxu0 %v5486
  %7882 = vmatpush2.bf16.msra.mxu0 %v5485
  %7883 = vmatprep.subr.bf16.mxu0 %v5482
  %7884 = vmatpush2.bf16.msra.mxu0 %v5481
  %7885 = vmatprep.subr.bf16.mxu0 %v5478
  %7886 = vmatpush2.bf16.msra.mxu0 %v5477
  %7887 = vmatprep.subr.bf16.mxu0 %v5474
  %7888 = vmatpush2.bf16.msra.mxu0 %v5473
  %7889 = vmatprep.subr.bf16.mxu0 %v5470
  %7890 = vmatpush2.bf16.msra.mxu0 %v5469
  %7891 = vmatprep.subr.bf16.mxu0 %v5466
  %7892 = vmatpush2.bf16.msra.mxu0 %v5465
  %7893 = vmatprep.subr.bf16.mxu0 %v5462
  %7894 = vmatpush2.bf16.msra.mxu0 %v5461
  %7895 = vmatprep.subr.bf16.mxu0 %v5458
  %7896 = vmatpush2.bf16.msra.mxu0 %v5457
  %7897 = vmatprep.mubr.bf16.mxu0 %v556
  %7898 = vmatmul.mubr.bf16.gmra.mxu0 %v555
  %v7899 = vpop.f32.mrf.mxu0
  %v7900 = vadd.f32 %v7787, %v7899
  %v7901 = vpop.f32.mrf.mxu0
  %v7902 = vadd.f32 %v7789, %v7901
  %v7903 = vpop.f32.mrf.mxu0
  %v7904 = vadd.f32 %v7791, %v7903
  %v7905 = vpop.f32.mrf.mxu0
  %v7906 = vadd.f32 %v7793, %v7905
  %7907 = vmatprep.mubr.bf16.mxu0 %v588
  %7908 = vmatmul.mubr.bf16.gmra.mxu0 %v587
  %v7909 = vpop.f32.mrf.mxu0
  %v7910 = vadd.f32 %v7797, %v7909
  %v7911 = vpop.f32.mrf.mxu0
  %v7912 = vadd.f32 %v7799, %v7911
  %v7913 = vpop.f32.mrf.mxu0
  %v7914 = vadd.f32 %v7801, %v7913
  %v7915 = vpop.f32.mrf.mxu0
  %v7916 = vadd.f32 %v7803, %v7915
  %7917 = vmatprep.mubr.bf16.mxu0 %v620
  %7918 = vmatmul.mubr.bf16.gmra.mxu0 %v619
  %v7919 = vpop.f32.mrf.mxu0
  %v7920 = vadd.f32 %v7807, %v7919
  %v7921 = vpop.f32.mrf.mxu0
  %v7922 = vadd.f32 %v7809, %v7921
  %v7923 = vpop.f32.mrf.mxu0
  %v7924 = vadd.f32 %v7811, %v7923
  %v7925 = vpop.f32.mrf.mxu0
  %v7926 = vadd.f32 %v7813, %v7925
  %7927 = vmatprep.mubr.bf16.mxu0 %v652
  %7928 = vmatmul.mubr.bf16.gmra.mxu0 %v651
  %v7929 = vpop.f32.mrf.mxu0
  %v7930 = vadd.f32 %v7817, %v7929
  %v7931 = vpop.f32.mrf.mxu0
  %v7932 = vadd.f32 %v7819, %v7931
  %v7933 = vpop.f32.mrf.mxu0
  %v7934 = vadd.f32 %v7821, %v7933
  %v7935 = vpop.f32.mrf.mxu0
  %v7936 = vadd.f32 %v7823, %v7935
  %7937 = vmatprep.mubr.bf16.mxu0 %v684
  %7938 = vmatmul.mubr.bf16.gmra.mxu0 %v683
  %v7939 = vpop.f32.mrf.mxu0
  %v7940 = vadd.f32 %v7827, %v7939
  %v7941 = vpop.f32.mrf.mxu0
  %v7942 = vadd.f32 %v7829, %v7941
  %v7943 = vpop.f32.mrf.mxu0
  %v7944 = vadd.f32 %v7831, %v7943
  %v7945 = vpop.f32.mrf.mxu0
  %v7946 = vadd.f32 %v7833, %v7945
  %7947 = vmatprep.mubr.bf16.mxu0 %v716
  %7948 = vmatmul.mubr.bf16.gmra.mxu0 %v715
  %v7949 = vpop.f32.mrf.mxu0
  %v7950 = vadd.f32 %v7837, %v7949
  %v7951 = vpop.f32.mrf.mxu0
  %v7952 = vadd.f32 %v7839, %v7951
  %v7953 = vpop.f32.mrf.mxu0
  %v7954 = vadd.f32 %v7841, %v7953
  %v7955 = vpop.f32.mrf.mxu0
  %v7956 = vadd.f32 %v7843, %v7955
  %7957 = vmatprep.mubr.bf16.mxu0 %v748
  %7958 = vmatmul.mubr.bf16.gmra.mxu0 %v747
  %v7959 = vpop.f32.mrf.mxu0
  %v7960 = vadd.f32 %v7847, %v7959
  %v7961 = vpop.f32.mrf.mxu0
  %v7962 = vadd.f32 %v7849, %v7961
  %v7963 = vpop.f32.mrf.mxu0
  %v7964 = vadd.f32 %v7851, %v7963
  %v7965 = vpop.f32.mrf.mxu0
  %v7966 = vadd.f32 %v7853, %v7965
  %7967 = vmatprep.mubr.bf16.mxu0 %v780
  %7968 = vmatmul.mubr.bf16.gmra.mxu0 %v779
  %v7969 = vpop.f32.mrf.mxu0
  %v7970 = vadd.f32 %v7857, %v7969
  %v7971 = vpop.f32.mrf.mxu0
  %v7972 = vadd.f32 %v7859, %v7971
  %v7973 = vpop.f32.mrf.mxu0
  %v7974 = vadd.f32 %v7861, %v7973
  %v7975 = vpop.f32.mrf.mxu0
  %v7976 = vadd.f32 %v7863, %v7975
  %7977 = vdwg.mxu0
  %7978 = vmatprep.subr.bf16.mxu0 %v5518
  %7979 = vmatpush1.bf16.msra.mxu0 %v5517
  %7980 = vmatprep.subr.bf16.mxu0 %v5514
  %7981 = vmatpush1.bf16.msra.mxu0 %v5513
  %7982 = vmatprep.subr.bf16.mxu0 %v5510
  %7983 = vmatpush1.bf16.msra.mxu0 %v5509
  %7984 = vmatprep.subr.bf16.mxu0 %v5506
  %7985 = vmatpush1.bf16.msra.mxu0 %v5505
  %7986 = vmatprep.subr.bf16.mxu0 %v5502
  %7987 = vmatpush1.bf16.msra.mxu0 %v5501
  %7988 = vmatprep.subr.bf16.mxu0 %v5498
  %7989 = vmatpush1.bf16.msra.mxu0 %v5497
  %7990 = vmatprep.subr.bf16.mxu0 %v5494
  %7991 = vmatpush1.bf16.msra.mxu0 %v5493
  %7992 = vmatprep.subr.bf16.mxu0 %v5490
  %7993 = vmatpush1.bf16.msra.mxu0 %v5489
  %7994 = vmatprep.subr.bf16.mxu0 %v5550
  %7995 = vmatpush2.bf16.msra.mxu0 %v5549
  %7996 = vmatprep.subr.bf16.mxu0 %v5546
  %7997 = vmatpush2.bf16.msra.mxu0 %v5545
  %7998 = vmatprep.subr.bf16.mxu0 %v5542
  %7999 = vmatpush2.bf16.msra.mxu0 %v5541
  %8000 = vmatprep.subr.bf16.mxu0 %v5538
  %8001 = vmatpush2.bf16.msra.mxu0 %v5537
  %8002 = vmatprep.subr.bf16.mxu0 %v5534
  %8003 = vmatpush2.bf16.msra.mxu0 %v5533
  %8004 = vmatprep.subr.bf16.mxu0 %v5530
  %8005 = vmatpush2.bf16.msra.mxu0 %v5529
  %8006 = vmatprep.subr.bf16.mxu0 %v5526
  %8007 = vmatpush2.bf16.msra.mxu0 %v5525
  %8008 = vmatprep.subr.bf16.mxu0 %v5522
  %8009 = vmatpush2.bf16.msra.mxu0 %v5521
  %8010 = vmatprep.mubr.bf16.mxu0 %v558
  %8011 = vmatmul.mubr.bf16.gmra.mxu0 %v557
  %v8012 = vpop.f32.mrf.mxu0
  %v8013 = vadd.f32 %v7900, %v8012
  %v8014 = vpop.f32.mrf.mxu0
  %v8015 = vadd.f32 %v7902, %v8014
  %v8016 = vpop.f32.mrf.mxu0
  %v8017 = vadd.f32 %v7904, %v8016
  %v8018 = vpop.f32.mrf.mxu0
  %v8019 = vadd.f32 %v7906, %v8018
  %8020 = vmatprep.mubr.bf16.mxu0 %v590
  %8021 = vmatmul.mubr.bf16.gmra.mxu0 %v589
  %v8022 = vpop.f32.mrf.mxu0
  %v8023 = vadd.f32 %v7910, %v8022
  %v8024 = vpop.f32.mrf.mxu0
  %v8025 = vadd.f32 %v7912, %v8024
  %v8026 = vpop.f32.mrf.mxu0
  %v8027 = vadd.f32 %v7914, %v8026
  %v8028 = vpop.f32.mrf.mxu0
  %v8029 = vadd.f32 %v7916, %v8028
  %8030 = vmatprep.mubr.bf16.mxu0 %v622
  %8031 = vmatmul.mubr.bf16.gmra.mxu0 %v621
  %v8032 = vpop.f32.mrf.mxu0
  %v8033 = vadd.f32 %v7920, %v8032
  %v8034 = vpop.f32.mrf.mxu0
  %v8035 = vadd.f32 %v7922, %v8034
  %v8036 = vpop.f32.mrf.mxu0
  %v8037 = vadd.f32 %v7924, %v8036
  %v8038 = vpop.f32.mrf.mxu0
  %v8039 = vadd.f32 %v7926, %v8038
  %8040 = vmatprep.mubr.bf16.mxu0 %v654
  %8041 = vmatmul.mubr.bf16.gmra.mxu0 %v653
  %v8042 = vpop.f32.mrf.mxu0
  %v8043 = vadd.f32 %v7930, %v8042
  %v8044 = vpop.f32.mrf.mxu0
  %v8045 = vadd.f32 %v7932, %v8044
  %v8046 = vpop.f32.mrf.mxu0
  %v8047 = vadd.f32 %v7934, %v8046
  %v8048 = vpop.f32.mrf.mxu0
  %v8049 = vadd.f32 %v7936, %v8048
  %8050 = vmatprep.mubr.bf16.mxu0 %v686
  %8051 = vmatmul.mubr.bf16.gmra.mxu0 %v685
  %v8052 = vpop.f32.mrf.mxu0
  %v8053 = vadd.f32 %v7940, %v8052
  %v8054 = vpop.f32.mrf.mxu0
  %v8055 = vadd.f32 %v7942, %v8054
  %v8056 = vpop.f32.mrf.mxu0
  %v8057 = vadd.f32 %v7944, %v8056
  %v8058 = vpop.f32.mrf.mxu0
  %v8059 = vadd.f32 %v7946, %v8058
  %8060 = vmatprep.mubr.bf16.mxu0 %v718
  %8061 = vmatmul.mubr.bf16.gmra.mxu0 %v717
  %v8062 = vpop.f32.mrf.mxu0
  %v8063 = vadd.f32 %v7950, %v8062
  %v8064 = vpop.f32.mrf.mxu0
  %v8065 = vadd.f32 %v7952, %v8064
  %v8066 = vpop.f32.mrf.mxu0
  %v8067 = vadd.f32 %v7954, %v8066
  %v8068 = vpop.f32.mrf.mxu0
  %v8069 = vadd.f32 %v7956, %v8068
  %8070 = vmatprep.mubr.bf16.mxu0 %v750
  %8071 = vmatmul.mubr.bf16.gmra.mxu0 %v749
  %v8072 = vpop.f32.mrf.mxu0
  %v8073 = vadd.f32 %v7960, %v8072
  %v8074 = vpop.f32.mrf.mxu0
  %v8075 = vadd.f32 %v7962, %v8074
  %v8076 = vpop.f32.mrf.mxu0
  %v8077 = vadd.f32 %v7964, %v8076
  %v8078 = vpop.f32.mrf.mxu0
  %v8079 = vadd.f32 %v7966, %v8078
  %8080 = vmatprep.mubr.bf16.mxu0 %v782
  %8081 = vmatmul.mubr.bf16.gmra.mxu0 %v781
  %v8082 = vpop.f32.mrf.mxu0
  %v8083 = vadd.f32 %v7970, %v8082
  %v8084 = vpop.f32.mrf.mxu0
  %v8085 = vadd.f32 %v7972, %v8084
  %v8086 = vpop.f32.mrf.mxu0
  %v8087 = vadd.f32 %v7974, %v8086
  %v8088 = vpop.f32.mrf.mxu0
  %v8089 = vadd.f32 %v7976, %v8088
  %8090 = vdwg.mxu0
  %8091 = vmatprep.subr.bf16.mxu0 %v5582
  %8092 = vmatpush1.bf16.msra.mxu0 %v5581
  %8093 = vmatprep.subr.bf16.mxu0 %v5578
  %8094 = vmatpush1.bf16.msra.mxu0 %v5577
  %8095 = vmatprep.subr.bf16.mxu0 %v5574
  %8096 = vmatpush1.bf16.msra.mxu0 %v5573
  %8097 = vmatprep.subr.bf16.mxu0 %v5570
  %8098 = vmatpush1.bf16.msra.mxu0 %v5569
  %8099 = vmatprep.subr.bf16.mxu0 %v5566
  %8100 = vmatpush1.bf16.msra.mxu0 %v5565
  %8101 = vmatprep.subr.bf16.mxu0 %v5562
  %8102 = vmatpush1.bf16.msra.mxu0 %v5561
  %8103 = vmatprep.subr.bf16.mxu0 %v5558
  %8104 = vmatpush1.bf16.msra.mxu0 %v5557
  %8105 = vmatprep.subr.bf16.mxu0 %v5554
  %8106 = vmatpush1.bf16.msra.mxu0 %v5553
  %8107 = vmatprep.subr.bf16.mxu0 %v5614
  %8108 = vmatpush2.bf16.msra.mxu0 %v5613
  %8109 = vmatprep.subr.bf16.mxu0 %v5610
  %8110 = vmatpush2.bf16.msra.mxu0 %v5609
  %8111 = vmatprep.subr.bf16.mxu0 %v5606
  %8112 = vmatpush2.bf16.msra.mxu0 %v5605
  %8113 = vmatprep.subr.bf16.mxu0 %v5602
  %8114 = vmatpush2.bf16.msra.mxu0 %v5601
  %8115 = vmatprep.subr.bf16.mxu0 %v5598
  %8116 = vmatpush2.bf16.msra.mxu0 %v5597
  %8117 = vmatprep.subr.bf16.mxu0 %v5594
  %8118 = vmatpush2.bf16.msra.mxu0 %v5593
  %8119 = vmatprep.subr.bf16.mxu0 %v5590
  %8120 = vmatpush2.bf16.msra.mxu0 %v5589
  %8121 = vmatprep.subr.bf16.mxu0 %v5586
  %8122 = vmatpush2.bf16.msra.mxu0 %v5585
  %8123 = vmatprep.mubr.bf16.mxu0 %v560
  %8124 = vmatmul.mubr.bf16.gmra.mxu0 %v559
  %v8125 = vpop.f32.mrf.mxu0
  %v8126 = vadd.f32 %v8013, %v8125
  %v8127 = vpop.f32.mrf.mxu0
  %v8128 = vadd.f32 %v8015, %v8127
  %v8129 = vpop.f32.mrf.mxu0
  %v8130 = vadd.f32 %v8017, %v8129
  %v8131 = vpop.f32.mrf.mxu0
  %v8132 = vadd.f32 %v8019, %v8131
  %8133 = vmatprep.mubr.bf16.mxu0 %v592
  %8134 = vmatmul.mubr.bf16.gmra.mxu0 %v591
  %v8135 = vpop.f32.mrf.mxu0
  %v8136 = vadd.f32 %v8023, %v8135
  %v8137 = vpop.f32.mrf.mxu0
  %v8138 = vadd.f32 %v8025, %v8137
  %v8139 = vpop.f32.mrf.mxu0
  %v8140 = vadd.f32 %v8027, %v8139
  %v8141 = vpop.f32.mrf.mxu0
  %v8142 = vadd.f32 %v8029, %v8141
  %8143 = vmatprep.mubr.bf16.mxu0 %v624
  %8144 = vmatmul.mubr.bf16.gmra.mxu0 %v623
  %v8145 = vpop.f32.mrf.mxu0
  %v8146 = vadd.f32 %v8033, %v8145
  %v8147 = vpop.f32.mrf.mxu0
  %v8148 = vadd.f32 %v8035, %v8147
  %v8149 = vpop.f32.mrf.mxu0
  %v8150 = vadd.f32 %v8037, %v8149
  %v8151 = vpop.f32.mrf.mxu0
  %v8152 = vadd.f32 %v8039, %v8151
  %8153 = vmatprep.mubr.bf16.mxu0 %v656
  %8154 = vmatmul.mubr.bf16.gmra.mxu0 %v655
  %v8155 = vpop.f32.mrf.mxu0
  %v8156 = vadd.f32 %v8043, %v8155
  %v8157 = vpop.f32.mrf.mxu0
  %v8158 = vadd.f32 %v8045, %v8157
  %v8159 = vpop.f32.mrf.mxu0
  %v8160 = vadd.f32 %v8047, %v8159
  %v8161 = vpop.f32.mrf.mxu0
  %v8162 = vadd.f32 %v8049, %v8161
  %8163 = vmatprep.mubr.bf16.mxu0 %v688
  %8164 = vmatmul.mubr.bf16.gmra.mxu0 %v687
  %v8165 = vpop.f32.mrf.mxu0
  %v8166 = vadd.f32 %v8053, %v8165
  %v8167 = vpop.f32.mrf.mxu0
  %v8168 = vadd.f32 %v8055, %v8167
  %v8169 = vpop.f32.mrf.mxu0
  %v8170 = vadd.f32 %v8057, %v8169
  %v8171 = vpop.f32.mrf.mxu0
  %v8172 = vadd.f32 %v8059, %v8171
  %8173 = vmatprep.mubr.bf16.mxu0 %v720
  %8174 = vmatmul.mubr.bf16.gmra.mxu0 %v719
  %v8175 = vpop.f32.mrf.mxu0
  %v8176 = vadd.f32 %v8063, %v8175
  %v8177 = vpop.f32.mrf.mxu0
  %v8178 = vadd.f32 %v8065, %v8177
  %v8179 = vpop.f32.mrf.mxu0
  %v8180 = vadd.f32 %v8067, %v8179
  %v8181 = vpop.f32.mrf.mxu0
  %v8182 = vadd.f32 %v8069, %v8181
  %8183 = vmatprep.mubr.bf16.mxu0 %v752
  %8184 = vmatmul.mubr.bf16.gmra.mxu0 %v751
  %v8185 = vpop.f32.mrf.mxu0
  %v8186 = vadd.f32 %v8073, %v8185
  %v8187 = vpop.f32.mrf.mxu0
  %v8188 = vadd.f32 %v8075, %v8187
  %v8189 = vpop.f32.mrf.mxu0
  %v8190 = vadd.f32 %v8077, %v8189
  %v8191 = vpop.f32.mrf.mxu0
  %v8192 = vadd.f32 %v8079, %v8191
  %8193 = vmatprep.mubr.bf16.mxu0 %v784
  %8194 = vmatmul.mubr.bf16.gmra.mxu0 %v783
  %v8195 = vpop.f32.mrf.mxu0
  %v8196 = vadd.f32 %v8083, %v8195
  %v8197 = vpop.f32.mrf.mxu0
  %v8198 = vadd.f32 %v8085, %v8197
  %v8199 = vpop.f32.mrf.mxu0
  %v8200 = vadd.f32 %v8087, %v8199
  %v8201 = vpop.f32.mrf.mxu0
  %v8202 = vadd.f32 %v8089, %v8201
  %8203 = vdwg.mxu0
  %8204 = vmatprep.subr.bf16.mxu0 %v5646
  %8205 = vmatpush1.bf16.msra.mxu0 %v5645
  %8206 = vmatprep.subr.bf16.mxu0 %v5642
  %8207 = vmatpush1.bf16.msra.mxu0 %v5641
  %8208 = vmatprep.subr.bf16.mxu0 %v5638
  %8209 = vmatpush1.bf16.msra.mxu0 %v5637
  %8210 = vmatprep.subr.bf16.mxu0 %v5634
  %8211 = vmatpush1.bf16.msra.mxu0 %v5633
  %8212 = vmatprep.subr.bf16.mxu0 %v5630
  %8213 = vmatpush1.bf16.msra.mxu0 %v5629
  %8214 = vmatprep.subr.bf16.mxu0 %v5626
  %8215 = vmatpush1.bf16.msra.mxu0 %v5625
  %8216 = vmatprep.subr.bf16.mxu0 %v5622
  %8217 = vmatpush1.bf16.msra.mxu0 %v5621
  %8218 = vmatprep.subr.bf16.mxu0 %v5618
  %8219 = vmatpush1.bf16.msra.mxu0 %v5617
  %8220 = vmatprep.subr.bf16.mxu0 %v5678
  %8221 = vmatpush2.bf16.msra.mxu0 %v5677
  %8222 = vmatprep.subr.bf16.mxu0 %v5674
  %8223 = vmatpush2.bf16.msra.mxu0 %v5673
  %8224 = vmatprep.subr.bf16.mxu0 %v5670
  %8225 = vmatpush2.bf16.msra.mxu0 %v5669
  %8226 = vmatprep.subr.bf16.mxu0 %v5666
  %8227 = vmatpush2.bf16.msra.mxu0 %v5665
  %8228 = vmatprep.subr.bf16.mxu0 %v5662
  %8229 = vmatpush2.bf16.msra.mxu0 %v5661
  %8230 = vmatprep.subr.bf16.mxu0 %v5658
  %8231 = vmatpush2.bf16.msra.mxu0 %v5657
  %8232 = vmatprep.subr.bf16.mxu0 %v5654
  %8233 = vmatpush2.bf16.msra.mxu0 %v5653
  %8234 = vmatprep.subr.bf16.mxu0 %v5650
  %8235 = vmatpush2.bf16.msra.mxu0 %v5649
  %8236 = vmatprep.mubr.bf16.mxu0 %v562
  %8237 = vmatmul.mubr.bf16.gmra.mxu0 %v561
  %v8238 = vpop.f32.mrf.mxu0
  %v8239 = vadd.f32 %v8126, %v8238
  %v8240 = vpop.f32.mrf.mxu0
  %v8241 = vadd.f32 %v8128, %v8240
  %v8242 = vpop.f32.mrf.mxu0
  %v8243 = vadd.f32 %v8130, %v8242
  %v8244 = vpop.f32.mrf.mxu0
  %v8245 = vadd.f32 %v8132, %v8244
  %8246 = vmatprep.mubr.bf16.mxu0 %v594
  %8247 = vmatmul.mubr.bf16.gmra.mxu0 %v593
  %v8248 = vpop.f32.mrf.mxu0
  %v8249 = vadd.f32 %v8136, %v8248
  %v8250 = vpop.f32.mrf.mxu0
  %v8251 = vadd.f32 %v8138, %v8250
  %v8252 = vpop.f32.mrf.mxu0
  %v8253 = vadd.f32 %v8140, %v8252
  %v8254 = vpop.f32.mrf.mxu0
  %v8255 = vadd.f32 %v8142, %v8254
  %8256 = vmatprep.mubr.bf16.mxu0 %v626
  %8257 = vmatmul.mubr.bf16.gmra.mxu0 %v625
  %v8258 = vpop.f32.mrf.mxu0
  %v8259 = vadd.f32 %v8146, %v8258
  %v8260 = vpop.f32.mrf.mxu0
  %v8261 = vadd.f32 %v8148, %v8260
  %v8262 = vpop.f32.mrf.mxu0
  %v8263 = vadd.f32 %v8150, %v8262
  %v8264 = vpop.f32.mrf.mxu0
  %v8265 = vadd.f32 %v8152, %v8264
  %8266 = vmatprep.mubr.bf16.mxu0 %v658
  %8267 = vmatmul.mubr.bf16.gmra.mxu0 %v657
  %v8268 = vpop.f32.mrf.mxu0
  %v8269 = vadd.f32 %v8156, %v8268
  %v8270 = vpop.f32.mrf.mxu0
  %v8271 = vadd.f32 %v8158, %v8270
  %v8272 = vpop.f32.mrf.mxu0
  %v8273 = vadd.f32 %v8160, %v8272
  %v8274 = vpop.f32.mrf.mxu0
  %v8275 = vadd.f32 %v8162, %v8274
  %8276 = vmatprep.mubr.bf16.mxu0 %v690
  %8277 = vmatmul.mubr.bf16.gmra.mxu0 %v689
  %v8278 = vpop.f32.mrf.mxu0
  %v8279 = vadd.f32 %v8166, %v8278
  %v8280 = vpop.f32.mrf.mxu0
  %v8281 = vadd.f32 %v8168, %v8280
  %v8282 = vpop.f32.mrf.mxu0
  %v8283 = vadd.f32 %v8170, %v8282
  %v8284 = vpop.f32.mrf.mxu0
  %v8285 = vadd.f32 %v8172, %v8284
  %8286 = vmatprep.mubr.bf16.mxu0 %v722
  %8287 = vmatmul.mubr.bf16.gmra.mxu0 %v721
  %v8288 = vpop.f32.mrf.mxu0
  %v8289 = vadd.f32 %v8176, %v8288
  %v8290 = vpop.f32.mrf.mxu0
  %v8291 = vadd.f32 %v8178, %v8290
  %v8292 = vpop.f32.mrf.mxu0
  %v8293 = vadd.f32 %v8180, %v8292
  %v8294 = vpop.f32.mrf.mxu0
  %v8295 = vadd.f32 %v8182, %v8294
  %8296 = vmatprep.mubr.bf16.mxu0 %v754
  %8297 = vmatmul.mubr.bf16.gmra.mxu0 %v753
  %v8298 = vpop.f32.mrf.mxu0
  %v8299 = vadd.f32 %v8186, %v8298
  %v8300 = vpop.f32.mrf.mxu0
  %v8301 = vadd.f32 %v8188, %v8300
  %v8302 = vpop.f32.mrf.mxu0
  %v8303 = vadd.f32 %v8190, %v8302
  %v8304 = vpop.f32.mrf.mxu0
  %v8305 = vadd.f32 %v8192, %v8304
  %8306 = vmatprep.mubr.bf16.mxu0 %v786
  %8307 = vmatmul.mubr.bf16.gmra.mxu0 %v785
  %v8308 = vpop.f32.mrf.mxu0
  %v8309 = vadd.f32 %v8196, %v8308
  %v8310 = vpop.f32.mrf.mxu0
  %v8311 = vadd.f32 %v8198, %v8310
  %v8312 = vpop.f32.mrf.mxu0
  %v8313 = vadd.f32 %v8200, %v8312
  %v8314 = vpop.f32.mrf.mxu0
  %v8315 = vadd.f32 %v8202, %v8314
  %8316 = vdwg.mxu0
  %8317 = vmatprep.subr.bf16.mxu0 %v5710
  %8318 = vmatpush1.bf16.msra.mxu0 %v5709
  %8319 = vmatprep.subr.bf16.mxu0 %v5706
  %8320 = vmatpush1.bf16.msra.mxu0 %v5705
  %8321 = vmatprep.subr.bf16.mxu0 %v5702
  %8322 = vmatpush1.bf16.msra.mxu0 %v5701
  %8323 = vmatprep.subr.bf16.mxu0 %v5698
  %8324 = vmatpush1.bf16.msra.mxu0 %v5697
  %8325 = vmatprep.subr.bf16.mxu0 %v5694
  %8326 = vmatpush1.bf16.msra.mxu0 %v5693
  %8327 = vmatprep.subr.bf16.mxu0 %v5690
  %8328 = vmatpush1.bf16.msra.mxu0 %v5689
  %8329 = vmatprep.subr.bf16.mxu0 %v5686
  %8330 = vmatpush1.bf16.msra.mxu0 %v5685
  %8331 = vmatprep.subr.bf16.mxu0 %v5682
  %8332 = vmatpush1.bf16.msra.mxu0 %v5681
  %8333 = vmatprep.subr.bf16.mxu0 %v5742
  %8334 = vmatpush2.bf16.msra.mxu0 %v5741
  %8335 = vmatprep.subr.bf16.mxu0 %v5738
  %8336 = vmatpush2.bf16.msra.mxu0 %v5737
  %8337 = vmatprep.subr.bf16.mxu0 %v5734
  %8338 = vmatpush2.bf16.msra.mxu0 %v5733
  %8339 = vmatprep.subr.bf16.mxu0 %v5730
  %8340 = vmatpush2.bf16.msra.mxu0 %v5729
  %8341 = vmatprep.subr.bf16.mxu0 %v5726
  %8342 = vmatpush2.bf16.msra.mxu0 %v5725
  %8343 = vmatprep.subr.bf16.mxu0 %v5722
  %8344 = vmatpush2.bf16.msra.mxu0 %v5721
  %8345 = vmatprep.subr.bf16.mxu0 %v5718
  %8346 = vmatpush2.bf16.msra.mxu0 %v5717
  %8347 = vmatprep.subr.bf16.mxu0 %v5714
  %8348 = vmatpush2.bf16.msra.mxu0 %v5713
  %8349 = vmatprep.mubr.bf16.mxu0 %v564
  %8350 = vmatmul.mubr.bf16.gmra.mxu0 %v563
  %v8351 = vpop.f32.mrf.mxu0
  %v8352 = vadd.f32 %v8239, %v8351
  %v8353 = vpop.f32.mrf.mxu0
  %v8354 = vadd.f32 %v8241, %v8353
  %v8355 = vpop.f32.mrf.mxu0
  %v8356 = vadd.f32 %v8243, %v8355
  %v8357 = vpop.f32.mrf.mxu0
  %v8358 = vadd.f32 %v8245, %v8357
  %8359 = vmatprep.mubr.bf16.mxu0 %v596
  %8360 = vmatmul.mubr.bf16.gmra.mxu0 %v595
  %v8361 = vpop.f32.mrf.mxu0
  %v8362 = vadd.f32 %v8249, %v8361
  %v8363 = vpop.f32.mrf.mxu0
  %v8364 = vadd.f32 %v8251, %v8363
  %v8365 = vpop.f32.mrf.mxu0
  %v8366 = vadd.f32 %v8253, %v8365
  %v8367 = vpop.f32.mrf.mxu0
  %v8368 = vadd.f32 %v8255, %v8367
  %8369 = vmatprep.mubr.bf16.mxu0 %v628
  %8370 = vmatmul.mubr.bf16.gmra.mxu0 %v627
  %v8371 = vpop.f32.mrf.mxu0
  %v8372 = vadd.f32 %v8259, %v8371
  %v8373 = vpop.f32.mrf.mxu0
  %v8374 = vadd.f32 %v8261, %v8373
  %v8375 = vpop.f32.mrf.mxu0
  %v8376 = vadd.f32 %v8263, %v8375
  %v8377 = vpop.f32.mrf.mxu0
  %v8378 = vadd.f32 %v8265, %v8377
  %8379 = vmatprep.mubr.bf16.mxu0 %v660
  %8380 = vmatmul.mubr.bf16.gmra.mxu0 %v659
  %v8381 = vpop.f32.mrf.mxu0
  %v8382 = vadd.f32 %v8269, %v8381
  %v8383 = vpop.f32.mrf.mxu0
  %v8384 = vadd.f32 %v8271, %v8383
  %v8385 = vpop.f32.mrf.mxu0
  %v8386 = vadd.f32 %v8273, %v8385
  %v8387 = vpop.f32.mrf.mxu0
  %v8388 = vadd.f32 %v8275, %v8387
  %8389 = vmatprep.mubr.bf16.mxu0 %v692
  %8390 = vmatmul.mubr.bf16.gmra.mxu0 %v691
  %v8391 = vpop.f32.mrf.mxu0
  %v8392 = vadd.f32 %v8279, %v8391
  %v8393 = vpop.f32.mrf.mxu0
  %v8394 = vadd.f32 %v8281, %v8393
  %v8395 = vpop.f32.mrf.mxu0
  %v8396 = vadd.f32 %v8283, %v8395
  %v8397 = vpop.f32.mrf.mxu0
  %v8398 = vadd.f32 %v8285, %v8397
  %8399 = vmatprep.mubr.bf16.mxu0 %v724
  %8400 = vmatmul.mubr.bf16.gmra.mxu0 %v723
  %v8401 = vpop.f32.mrf.mxu0
  %v8402 = vadd.f32 %v8289, %v8401
  %v8403 = vpop.f32.mrf.mxu0
  %v8404 = vadd.f32 %v8291, %v8403
  %v8405 = vpop.f32.mrf.mxu0
  %v8406 = vadd.f32 %v8293, %v8405
  %v8407 = vpop.f32.mrf.mxu0
  %v8408 = vadd.f32 %v8295, %v8407
  %8409 = vmatprep.mubr.bf16.mxu0 %v756
  %8410 = vmatmul.mubr.bf16.gmra.mxu0 %v755
  %v8411 = vpop.f32.mrf.mxu0
  %v8412 = vadd.f32 %v8299, %v8411
  %v8413 = vpop.f32.mrf.mxu0
  %v8414 = vadd.f32 %v8301, %v8413
  %v8415 = vpop.f32.mrf.mxu0
  %v8416 = vadd.f32 %v8303, %v8415
  %v8417 = vpop.f32.mrf.mxu0
  %v8418 = vadd.f32 %v8305, %v8417
  %8419 = vmatprep.mubr.bf16.mxu0 %v788
  %8420 = vmatmul.mubr.bf16.gmra.mxu0 %v787
  %v8421 = vpop.f32.mrf.mxu0
  %v8422 = vadd.f32 %v8309, %v8421
  %v8423 = vpop.f32.mrf.mxu0
  %v8424 = vadd.f32 %v8311, %v8423
  %v8425 = vpop.f32.mrf.mxu0
  %v8426 = vadd.f32 %v8313, %v8425
  %v8427 = vpop.f32.mrf.mxu0
  %v8428 = vadd.f32 %v8315, %v8427
  %8429 = vdwg.mxu0
  %8430 = vmatprep.subr.bf16.mxu0 %v5774
  %8431 = vmatpush1.bf16.msra.mxu0 %v5773
  %8432 = vmatprep.subr.bf16.mxu0 %v5770
  %8433 = vmatpush1.bf16.msra.mxu0 %v5769
  %8434 = vmatprep.subr.bf16.mxu0 %v5766
  %8435 = vmatpush1.bf16.msra.mxu0 %v5765
  %8436 = vmatprep.subr.bf16.mxu0 %v5762
  %8437 = vmatpush1.bf16.msra.mxu0 %v5761
  %8438 = vmatprep.subr.bf16.mxu0 %v5758
  %8439 = vmatpush1.bf16.msra.mxu0 %v5757
  %8440 = vmatprep.subr.bf16.mxu0 %v5754
  %8441 = vmatpush1.bf16.msra.mxu0 %v5753
  %8442 = vmatprep.subr.bf16.mxu0 %v5750
  %8443 = vmatpush1.bf16.msra.mxu0 %v5749
  %8444 = vmatprep.subr.bf16.mxu0 %v5746
  %8445 = vmatpush1.bf16.msra.mxu0 %v5745
  %8446 = vmatprep.subr.bf16.mxu0 %v5806
  %8447 = vmatpush2.bf16.msra.mxu0 %v5805
  %8448 = vmatprep.subr.bf16.mxu0 %v5802
  %8449 = vmatpush2.bf16.msra.mxu0 %v5801
  %8450 = vmatprep.subr.bf16.mxu0 %v5798
  %8451 = vmatpush2.bf16.msra.mxu0 %v5797
  %8452 = vmatprep.subr.bf16.mxu0 %v5794
  %8453 = vmatpush2.bf16.msra.mxu0 %v5793
  %8454 = vmatprep.subr.bf16.mxu0 %v5790
  %8455 = vmatpush2.bf16.msra.mxu0 %v5789
  %8456 = vmatprep.subr.bf16.mxu0 %v5786
  %8457 = vmatpush2.bf16.msra.mxu0 %v5785
  %8458 = vmatprep.subr.bf16.mxu0 %v5782
  %8459 = vmatpush2.bf16.msra.mxu0 %v5781
  %8460 = vmatprep.subr.bf16.mxu0 %v5778
  %8461 = vmatpush2.bf16.msra.mxu0 %v5777
  %8462 = vmatprep.mubr.bf16.mxu0 %v566
  %8463 = vmatmul.mubr.bf16.gmra.mxu0 %v565
  %v8464 = vpop.f32.mrf.mxu0
  %v8465 = vadd.f32 %v8352, %v8464
  %v8466 = vpop.f32.mrf.mxu0
  %v8467 = vadd.f32 %v8354, %v8466
  %v8468 = vpop.f32.mrf.mxu0
  %v8469 = vadd.f32 %v8356, %v8468
  %v8470 = vpop.f32.mrf.mxu0
  %v8471 = vadd.f32 %v8358, %v8470
  %8472 = vmatprep.mubr.bf16.mxu0 %v598
  %8473 = vmatmul.mubr.bf16.gmra.mxu0 %v597
  %v8474 = vpop.f32.mrf.mxu0
  %v8475 = vadd.f32 %v8362, %v8474
  %v8476 = vpop.f32.mrf.mxu0
  %v8477 = vadd.f32 %v8364, %v8476
  %v8478 = vpop.f32.mrf.mxu0
  %v8479 = vadd.f32 %v8366, %v8478
  %v8480 = vpop.f32.mrf.mxu0
  %v8481 = vadd.f32 %v8368, %v8480
  %8482 = vmatprep.mubr.bf16.mxu0 %v630
  %8483 = vmatmul.mubr.bf16.gmra.mxu0 %v629
  %v8484 = vpop.f32.mrf.mxu0
  %v8485 = vadd.f32 %v8372, %v8484
  %v8486 = vpop.f32.mrf.mxu0
  %v8487 = vadd.f32 %v8374, %v8486
  %v8488 = vpop.f32.mrf.mxu0
  %v8489 = vadd.f32 %v8376, %v8488
  %v8490 = vpop.f32.mrf.mxu0
  %v8491 = vadd.f32 %v8378, %v8490
  %8492 = vmatprep.mubr.bf16.mxu0 %v662
  %8493 = vmatmul.mubr.bf16.gmra.mxu0 %v661
  %v8494 = vpop.f32.mrf.mxu0
  %v8495 = vadd.f32 %v8382, %v8494
  %v8496 = vpop.f32.mrf.mxu0
  %v8497 = vadd.f32 %v8384, %v8496
  %v8498 = vpop.f32.mrf.mxu0
  %v8499 = vadd.f32 %v8386, %v8498
  %v8500 = vpop.f32.mrf.mxu0
  %v8501 = vadd.f32 %v8388, %v8500
  %8502 = vmatprep.mubr.bf16.mxu0 %v694
  %8503 = vmatmul.mubr.bf16.gmra.mxu0 %v693
  %v8504 = vpop.f32.mrf.mxu0
  %v8505 = vadd.f32 %v8392, %v8504
  %v8506 = vpop.f32.mrf.mxu0
  %v8507 = vadd.f32 %v8394, %v8506
  %v8508 = vpop.f32.mrf.mxu0
  %v8509 = vadd.f32 %v8396, %v8508
  %v8510 = vpop.f32.mrf.mxu0
  %v8511 = vadd.f32 %v8398, %v8510
  %8512 = vmatprep.mubr.bf16.mxu0 %v726
  %8513 = vmatmul.mubr.bf16.gmra.mxu0 %v725
  %v8514 = vpop.f32.mrf.mxu0
  %v8515 = vadd.f32 %v8402, %v8514
  %v8516 = vpop.f32.mrf.mxu0
  %v8517 = vadd.f32 %v8404, %v8516
  %v8518 = vpop.f32.mrf.mxu0
  %v8519 = vadd.f32 %v8406, %v8518
  %v8520 = vpop.f32.mrf.mxu0
  %v8521 = vadd.f32 %v8408, %v8520
  %8522 = vmatprep.mubr.bf16.mxu0 %v758
  %8523 = vmatmul.mubr.bf16.gmra.mxu0 %v757
  %v8524 = vpop.f32.mrf.mxu0
  %v8525 = vadd.f32 %v8412, %v8524
  %v8526 = vpop.f32.mrf.mxu0
  %v8527 = vadd.f32 %v8414, %v8526
  %v8528 = vpop.f32.mrf.mxu0
  %v8529 = vadd.f32 %v8416, %v8528
  %v8530 = vpop.f32.mrf.mxu0
  %v8531 = vadd.f32 %v8418, %v8530
  %8532 = vmatprep.mubr.bf16.mxu0 %v790
  %8533 = vmatmul.mubr.bf16.gmra.mxu0 %v789
  %v8534 = vpop.f32.mrf.mxu0
  %v8535 = vadd.f32 %v8422, %v8534
  %v8536 = vpop.f32.mrf.mxu0
  %v8537 = vadd.f32 %v8424, %v8536
  %v8538 = vpop.f32.mrf.mxu0
  %v8539 = vadd.f32 %v8426, %v8538
  %v8540 = vpop.f32.mrf.mxu0
  %v8541 = vadd.f32 %v8428, %v8540
  %8542 = vdwg.mxu0
  %8543 = vmatprep.subr.bf16.mxu0 %v5838
  %8544 = vmatpush1.bf16.msra.mxu0 %v5837
  %8545 = vmatprep.subr.bf16.mxu0 %v5834
  %8546 = vmatpush1.bf16.msra.mxu0 %v5833
  %8547 = vmatprep.subr.bf16.mxu0 %v5830
  %8548 = vmatpush1.bf16.msra.mxu0 %v5829
  %8549 = vmatprep.subr.bf16.mxu0 %v5826
  %8550 = vmatpush1.bf16.msra.mxu0 %v5825
  %8551 = vmatprep.subr.bf16.mxu0 %v5822
  %8552 = vmatpush1.bf16.msra.mxu0 %v5821
  %8553 = vmatprep.subr.bf16.mxu0 %v5818
  %8554 = vmatpush1.bf16.msra.mxu0 %v5817
  %8555 = vmatprep.subr.bf16.mxu0 %v5814
  %8556 = vmatpush1.bf16.msra.mxu0 %v5813
  %8557 = vmatprep.subr.bf16.mxu0 %v5810
  %8558 = vmatpush1.bf16.msra.mxu0 %v5809
  %8559 = vmatprep.subr.bf16.mxu0 %v5870
  %8560 = vmatpush2.bf16.msra.mxu0 %v5869
  %8561 = vmatprep.subr.bf16.mxu0 %v5866
  %8562 = vmatpush2.bf16.msra.mxu0 %v5865
  %8563 = vmatprep.subr.bf16.mxu0 %v5862
  %8564 = vmatpush2.bf16.msra.mxu0 %v5861
  %8565 = vmatprep.subr.bf16.mxu0 %v5858
  %8566 = vmatpush2.bf16.msra.mxu0 %v5857
  %8567 = vmatprep.subr.bf16.mxu0 %v5854
  %8568 = vmatpush2.bf16.msra.mxu0 %v5853
  %8569 = vmatprep.subr.bf16.mxu0 %v5850
  %8570 = vmatpush2.bf16.msra.mxu0 %v5849
  %8571 = vmatprep.subr.bf16.mxu0 %v5846
  %8572 = vmatpush2.bf16.msra.mxu0 %v5845
  %8573 = vmatprep.subr.bf16.mxu0 %v5842
  %8574 = vmatpush2.bf16.msra.mxu0 %v5841
  %8575 = vmatprep.mubr.bf16.mxu0 %v568
  %8576 = vmatmul.mubr.bf16.gmra.mxu0 %v567
  %v8577 = vpop.f32.mrf.mxu0
  %v8578 = vadd.f32 %v8465, %v8577
  %v8579 = vpop.f32.mrf.mxu0
  %v8580 = vadd.f32 %v8467, %v8579
  %v8581 = vpop.f32.mrf.mxu0
  %v8582 = vadd.f32 %v8469, %v8581
  %v8583 = vpop.f32.mrf.mxu0
  %v8584 = vadd.f32 %v8471, %v8583
  %8585 = vmatprep.mubr.bf16.mxu0 %v600
  %8586 = vmatmul.mubr.bf16.gmra.mxu0 %v599
  %v8587 = vpop.f32.mrf.mxu0
  %v8588 = vadd.f32 %v8475, %v8587
  %v8589 = vpop.f32.mrf.mxu0
  %v8590 = vadd.f32 %v8477, %v8589
  %v8591 = vpop.f32.mrf.mxu0
  %v8592 = vadd.f32 %v8479, %v8591
  %v8593 = vpop.f32.mrf.mxu0
  %v8594 = vadd.f32 %v8481, %v8593
  %8595 = vmatprep.mubr.bf16.mxu0 %v632
  %8596 = vmatmul.mubr.bf16.gmra.mxu0 %v631
  %v8597 = vpop.f32.mrf.mxu0
  %v8598 = vadd.f32 %v8485, %v8597
  %v8599 = vpop.f32.mrf.mxu0
  %v8600 = vadd.f32 %v8487, %v8599
  %v8601 = vpop.f32.mrf.mxu0
  %v8602 = vadd.f32 %v8489, %v8601
  %v8603 = vpop.f32.mrf.mxu0
  %v8604 = vadd.f32 %v8491, %v8603
  %8605 = vmatprep.mubr.bf16.mxu0 %v664
  %8606 = vmatmul.mubr.bf16.gmra.mxu0 %v663
  %v8607 = vpop.f32.mrf.mxu0
  %v8608 = vadd.f32 %v8495, %v8607
  %v8609 = vpop.f32.mrf.mxu0
  %v8610 = vadd.f32 %v8497, %v8609
  %v8611 = vpop.f32.mrf.mxu0
  %v8612 = vadd.f32 %v8499, %v8611
  %v8613 = vpop.f32.mrf.mxu0
  %v8614 = vadd.f32 %v8501, %v8613
  %8615 = vmatprep.mubr.bf16.mxu0 %v696
  %8616 = vmatmul.mubr.bf16.gmra.mxu0 %v695
  %v8617 = vpop.f32.mrf.mxu0
  %v8618 = vadd.f32 %v8505, %v8617
  %v8619 = vpop.f32.mrf.mxu0
  %v8620 = vadd.f32 %v8507, %v8619
  %v8621 = vpop.f32.mrf.mxu0
  %v8622 = vadd.f32 %v8509, %v8621
  %v8623 = vpop.f32.mrf.mxu0
  %v8624 = vadd.f32 %v8511, %v8623
  %8625 = vmatprep.mubr.bf16.mxu0 %v728
  %8626 = vmatmul.mubr.bf16.gmra.mxu0 %v727
  %v8627 = vpop.f32.mrf.mxu0
  %v8628 = vadd.f32 %v8515, %v8627
  %v8629 = vpop.f32.mrf.mxu0
  %v8630 = vadd.f32 %v8517, %v8629
  %v8631 = vpop.f32.mrf.mxu0
  %v8632 = vadd.f32 %v8519, %v8631
  %v8633 = vpop.f32.mrf.mxu0
  %v8634 = vadd.f32 %v8521, %v8633
  %8635 = vmatprep.mubr.bf16.mxu0 %v760
  %8636 = vmatmul.mubr.bf16.gmra.mxu0 %v759
  %v8637 = vpop.f32.mrf.mxu0
  %v8638 = vadd.f32 %v8525, %v8637
  %v8639 = vpop.f32.mrf.mxu0
  %v8640 = vadd.f32 %v8527, %v8639
  %v8641 = vpop.f32.mrf.mxu0
  %v8642 = vadd.f32 %v8529, %v8641
  %v8643 = vpop.f32.mrf.mxu0
  %v8644 = vadd.f32 %v8531, %v8643
  %8645 = vmatprep.mubr.bf16.mxu0 %v792
  %8646 = vmatmul.mubr.bf16.gmra.mxu0 %v791
  %v8647 = vpop.f32.mrf.mxu0
  %v8648 = vadd.f32 %v8535, %v8647
  %v8649 = vpop.f32.mrf.mxu0
  %v8650 = vadd.f32 %v8537, %v8649
  %v8651 = vpop.f32.mrf.mxu0
  %v8652 = vadd.f32 %v8539, %v8651
  %v8653 = vpop.f32.mrf.mxu0
  %v8654 = vadd.f32 %v8541, %v8653
  %8655 = vdwg.mxu0
  %8656 = vmatprep.subr.bf16.mxu0 %v5902
  %8657 = vmatpush1.bf16.msra.mxu0 %v5901
  %8658 = vmatprep.subr.bf16.mxu0 %v5898
  %8659 = vmatpush1.bf16.msra.mxu0 %v5897
  %8660 = vmatprep.subr.bf16.mxu0 %v5894
  %8661 = vmatpush1.bf16.msra.mxu0 %v5893
  %8662 = vmatprep.subr.bf16.mxu0 %v5890
  %8663 = vmatpush1.bf16.msra.mxu0 %v5889
  %8664 = vmatprep.subr.bf16.mxu0 %v5886
  %8665 = vmatpush1.bf16.msra.mxu0 %v5885
  %8666 = vmatprep.subr.bf16.mxu0 %v5882
  %8667 = vmatpush1.bf16.msra.mxu0 %v5881
  %8668 = vmatprep.subr.bf16.mxu0 %v5878
  %8669 = vmatpush1.bf16.msra.mxu0 %v5877
  %8670 = vmatprep.subr.bf16.mxu0 %v5874
  %8671 = vmatpush1.bf16.msra.mxu0 %v5873
  %8672 = vmatprep.subr.bf16.mxu0 %v5934
  %8673 = vmatpush2.bf16.msra.mxu0 %v5933
  %8674 = vmatprep.subr.bf16.mxu0 %v5930
  %8675 = vmatpush2.bf16.msra.mxu0 %v5929
  %8676 = vmatprep.subr.bf16.mxu0 %v5926
  %8677 = vmatpush2.bf16.msra.mxu0 %v5925
  %8678 = vmatprep.subr.bf16.mxu0 %v5922
  %8679 = vmatpush2.bf16.msra.mxu0 %v5921
  %8680 = vmatprep.subr.bf16.mxu0 %v5918
  %8681 = vmatpush2.bf16.msra.mxu0 %v5917
  %8682 = vmatprep.subr.bf16.mxu0 %v5914
  %8683 = vmatpush2.bf16.msra.mxu0 %v5913
  %8684 = vmatprep.subr.bf16.mxu0 %v5910
  %8685 = vmatpush2.bf16.msra.mxu0 %v5909
  %8686 = vmatprep.subr.bf16.mxu0 %v5906
  %8687 = vmatpush2.bf16.msra.mxu0 %v5905
  %8688 = vmatprep.mubr.bf16.mxu0 %v570
  %8689 = vmatmul.mubr.bf16.gmra.mxu0 %v569
  %v8690 = vpop.f32.mrf.mxu0
  %v8691 = vadd.f32 %v8578, %v8690
  %v8692 = vpop.f32.mrf.mxu0
  %v8693 = vadd.f32 %v8580, %v8692
  %v8694 = vpop.f32.mrf.mxu0
  %v8695 = vadd.f32 %v8582, %v8694
  %v8696 = vpop.f32.mrf.mxu0
  %v8697 = vadd.f32 %v8584, %v8696
  %8698 = vmatprep.mubr.bf16.mxu0 %v602
  %8699 = vmatmul.mubr.bf16.gmra.mxu0 %v601
  %v8700 = vpop.f32.mrf.mxu0
  %v8701 = vadd.f32 %v8588, %v8700
  %v8702 = vpop.f32.mrf.mxu0
  %v8703 = vadd.f32 %v8590, %v8702
  %v8704 = vpop.f32.mrf.mxu0
  %v8705 = vadd.f32 %v8592, %v8704
  %v8706 = vpop.f32.mrf.mxu0
  %v8707 = vadd.f32 %v8594, %v8706
  %8708 = vmatprep.mubr.bf16.mxu0 %v634
  %8709 = vmatmul.mubr.bf16.gmra.mxu0 %v633
  %v8710 = vpop.f32.mrf.mxu0
  %v8711 = vadd.f32 %v8598, %v8710
  %v8712 = vpop.f32.mrf.mxu0
  %v8713 = vadd.f32 %v8600, %v8712
  %v8714 = vpop.f32.mrf.mxu0
  %v8715 = vadd.f32 %v8602, %v8714
  %v8716 = vpop.f32.mrf.mxu0
  %v8717 = vadd.f32 %v8604, %v8716
  %8718 = vmatprep.mubr.bf16.mxu0 %v666
  %8719 = vmatmul.mubr.bf16.gmra.mxu0 %v665
  %v8720 = vpop.f32.mrf.mxu0
  %v8721 = vadd.f32 %v8608, %v8720
  %v8722 = vpop.f32.mrf.mxu0
  %v8723 = vadd.f32 %v8610, %v8722
  %v8724 = vpop.f32.mrf.mxu0
  %v8725 = vadd.f32 %v8612, %v8724
  %v8726 = vpop.f32.mrf.mxu0
  %v8727 = vadd.f32 %v8614, %v8726
  %8728 = vmatprep.mubr.bf16.mxu0 %v698
  %8729 = vmatmul.mubr.bf16.gmra.mxu0 %v697
  %v8730 = vpop.f32.mrf.mxu0
  %v8731 = vadd.f32 %v8618, %v8730
  %v8732 = vpop.f32.mrf.mxu0
  %v8733 = vadd.f32 %v8620, %v8732
  %v8734 = vpop.f32.mrf.mxu0
  %v8735 = vadd.f32 %v8622, %v8734
  %v8736 = vpop.f32.mrf.mxu0
  %v8737 = vadd.f32 %v8624, %v8736
  %8738 = vmatprep.mubr.bf16.mxu0 %v730
  %8739 = vmatmul.mubr.bf16.gmra.mxu0 %v729
  %v8740 = vpop.f32.mrf.mxu0
  %v8741 = vadd.f32 %v8628, %v8740
  %v8742 = vpop.f32.mrf.mxu0
  %v8743 = vadd.f32 %v8630, %v8742
  %v8744 = vpop.f32.mrf.mxu0
  %v8745 = vadd.f32 %v8632, %v8744
  %v8746 = vpop.f32.mrf.mxu0
  %v8747 = vadd.f32 %v8634, %v8746
  %8748 = vmatprep.mubr.bf16.mxu0 %v762
  %8749 = vmatmul.mubr.bf16.gmra.mxu0 %v761
  %v8750 = vpop.f32.mrf.mxu0
  %v8751 = vadd.f32 %v8638, %v8750
  %v8752 = vpop.f32.mrf.mxu0
  %v8753 = vadd.f32 %v8640, %v8752
  %v8754 = vpop.f32.mrf.mxu0
  %v8755 = vadd.f32 %v8642, %v8754
  %v8756 = vpop.f32.mrf.mxu0
  %v8757 = vadd.f32 %v8644, %v8756
  %8758 = vmatprep.mubr.bf16.mxu0 %v794
  %8759 = vmatmul.mubr.bf16.gmra.mxu0 %v793
  %v8760 = vpop.f32.mrf.mxu0
  %v8761 = vadd.f32 %v8648, %v8760
  %v8762 = vpop.f32.mrf.mxu0
  %v8763 = vadd.f32 %v8650, %v8762
  %v8764 = vpop.f32.mrf.mxu0
  %v8765 = vadd.f32 %v8652, %v8764
  %v8766 = vpop.f32.mrf.mxu0
  %v8767 = vadd.f32 %v8654, %v8766
  %8768 = vdwg.mxu0
  %8769 = vmatprep.subr.bf16.mxu0 %v4944
  %8770 = vmatpush1.bf16.msra.mxu0 %v4943
  %8771 = vmatprep.subr.bf16.mxu0 %v4940
  %8772 = vmatpush1.bf16.msra.mxu0 %v4939
  %8773 = vmatprep.subr.bf16.mxu0 %v4936
  %8774 = vmatpush1.bf16.msra.mxu0 %v4935
  %8775 = vmatprep.subr.bf16.mxu0 %v4932
  %8776 = vmatpush1.bf16.msra.mxu0 %v4931
  %8777 = vmatprep.subr.bf16.mxu0 %v4928
  %8778 = vmatpush1.bf16.msra.mxu0 %v4927
  %8779 = vmatprep.subr.bf16.mxu0 %v4924
  %8780 = vmatpush1.bf16.msra.mxu0 %v4923
  %8781 = vmatprep.subr.bf16.mxu0 %v4920
  %8782 = vmatpush1.bf16.msra.mxu0 %v4919
  %8783 = vmatprep.subr.bf16.mxu0 %v4916
  %8784 = vmatpush1.bf16.msra.mxu0 %v4915
  %8785 = vmatprep.subr.bf16.mxu0 %v4976
  %8786 = vmatpush2.bf16.msra.mxu0 %v4975
  %8787 = vmatprep.subr.bf16.mxu0 %v4972
  %8788 = vmatpush2.bf16.msra.mxu0 %v4971
  %8789 = vmatprep.subr.bf16.mxu0 %v4968
  %8790 = vmatpush2.bf16.msra.mxu0 %v4967
  %8791 = vmatprep.subr.bf16.mxu0 %v4964
  %8792 = vmatpush2.bf16.msra.mxu0 %v4963
  %8793 = vmatprep.subr.bf16.mxu0 %v4960
  %8794 = vmatpush2.bf16.msra.mxu0 %v4959
  %8795 = vmatprep.subr.bf16.mxu0 %v4956
  %8796 = vmatpush2.bf16.msra.mxu0 %v4955
  %8797 = vmatprep.subr.bf16.mxu0 %v4952
  %8798 = vmatpush2.bf16.msra.mxu0 %v4951
  %8799 = vmatprep.subr.bf16.mxu0 %v4948
  %8800 = vmatpush2.bf16.msra.mxu0 %v4947
  %8801 = vmatprep.mubr.bf16.mxu0 %v540
  %8802 = vmatmul.mubr.bf16.gmra.mxu0 %v539
  %v8803 = vpop.f32.mrf.mxu0
  %v8804 = vadd.f32 %v1832, %v8803
  %v8805 = vpop.f32.mrf.mxu0
  %v8806 = vadd.f32 %v1836, %v8805
  %v8807 = vpop.f32.mrf.mxu0
  %v8808 = vadd.f32 %v1832, %v8807
  %v8809 = vpop.f32.mrf.mxu0
  %v8810 = vadd.f32 %v1836, %v8809
  %8811 = vmatprep.mubr.bf16.mxu0 %v572
  %8812 = vmatmul.mubr.bf16.gmra.mxu0 %v571
  %v8813 = vpop.f32.mrf.mxu0
  %v8814 = vadd.f32 %v1832, %v8813
  %v8815 = vpop.f32.mrf.mxu0
  %v8816 = vadd.f32 %v1836, %v8815
  %v8817 = vpop.f32.mrf.mxu0
  %v8818 = vadd.f32 %v1832, %v8817
  %v8819 = vpop.f32.mrf.mxu0
  %v8820 = vadd.f32 %v1836, %v8819
  %8821 = vmatprep.mubr.bf16.mxu0 %v604
  %8822 = vmatmul.mubr.bf16.gmra.mxu0 %v603
  %v8823 = vpop.f32.mrf.mxu0
  %v8824 = vadd.f32 %v1832, %v8823
  %v8825 = vpop.f32.mrf.mxu0
  %v8826 = vadd.f32 %v1836, %v8825
  %v8827 = vpop.f32.mrf.mxu0
  %v8828 = vadd.f32 %v1832, %v8827
  %v8829 = vpop.f32.mrf.mxu0
  %v8830 = vadd.f32 %v1836, %v8829
  %8831 = vmatprep.mubr.bf16.mxu0 %v636
  %8832 = vmatmul.mubr.bf16.gmra.mxu0 %v635
  %v8833 = vpop.f32.mrf.mxu0
  %v8834 = vadd.f32 %v1832, %v8833
  %v8835 = vpop.f32.mrf.mxu0
  %v8836 = vadd.f32 %v1836, %v8835
  %v8837 = vpop.f32.mrf.mxu0
  %v8838 = vadd.f32 %v1832, %v8837
  %v8839 = vpop.f32.mrf.mxu0
  %v8840 = vadd.f32 %v1836, %v8839
  %8841 = vmatprep.mubr.bf16.mxu0 %v668
  %8842 = vmatmul.mubr.bf16.gmra.mxu0 %v667
  %v8843 = vpop.f32.mrf.mxu0
  %v8844 = vadd.f32 %v1832, %v8843
  %v8845 = vpop.f32.mrf.mxu0
  %v8846 = vadd.f32 %v1836, %v8845
  %v8847 = vpop.f32.mrf.mxu0
  %v8848 = vadd.f32 %v1832, %v8847
  %v8849 = vpop.f32.mrf.mxu0
  %v8850 = vadd.f32 %v1836, %v8849
  %8851 = vmatprep.mubr.bf16.mxu0 %v700
  %8852 = vmatmul.mubr.bf16.gmra.mxu0 %v699
  %v8853 = vpop.f32.mrf.mxu0
  %v8854 = vadd.f32 %v1832, %v8853
  %v8855 = vpop.f32.mrf.mxu0
  %v8856 = vadd.f32 %v1836, %v8855
  %v8857 = vpop.f32.mrf.mxu0
  %v8858 = vadd.f32 %v1832, %v8857
  %v8859 = vpop.f32.mrf.mxu0
  %v8860 = vadd.f32 %v1836, %v8859
  %8861 = vmatprep.mubr.bf16.mxu0 %v732
  %8862 = vmatmul.mubr.bf16.gmra.mxu0 %v731
  %v8863 = vpop.f32.mrf.mxu0
  %v8864 = vadd.f32 %v1832, %v8863
  %v8865 = vpop.f32.mrf.mxu0
  %v8866 = vadd.f32 %v1836, %v8865
  %v8867 = vpop.f32.mrf.mxu0
  %v8868 = vadd.f32 %v1832, %v8867
  %v8869 = vpop.f32.mrf.mxu0
  %v8870 = vadd.f32 %v1836, %v8869
  %8871 = vmatprep.mubr.bf16.mxu0 %v764
  %8872 = vmatmul.mubr.bf16.gmra.mxu0 %v763
  %v8873 = vpop.f32.mrf.mxu0
  %v8874 = vadd.f32 %v1832, %v8873
  %v8875 = vpop.f32.mrf.mxu0
  %v8876 = vadd.f32 %v1836, %v8875
  %v8877 = vpop.f32.mrf.mxu0
  %v8878 = vadd.f32 %v1832, %v8877
  %v8879 = vpop.f32.mrf.mxu0
  %v8880 = vadd.f32 %v1836, %v8879
  %8881 = vdwg.mxu0
  %8882 = vmatprep.subr.bf16.mxu0 %v5008
  %8883 = vmatpush1.bf16.msra.mxu0 %v5007
  %8884 = vmatprep.subr.bf16.mxu0 %v5004
  %8885 = vmatpush1.bf16.msra.mxu0 %v5003
  %8886 = vmatprep.subr.bf16.mxu0 %v5000
  %8887 = vmatpush1.bf16.msra.mxu0 %v4999
  %8888 = vmatprep.subr.bf16.mxu0 %v4996
  %8889 = vmatpush1.bf16.msra.mxu0 %v4995
  %8890 = vmatprep.subr.bf16.mxu0 %v4992
  %8891 = vmatpush1.bf16.msra.mxu0 %v4991
  %8892 = vmatprep.subr.bf16.mxu0 %v4988
  %8893 = vmatpush1.bf16.msra.mxu0 %v4987
  %8894 = vmatprep.subr.bf16.mxu0 %v4984
  %8895 = vmatpush1.bf16.msra.mxu0 %v4983
  %8896 = vmatprep.subr.bf16.mxu0 %v4980
  %8897 = vmatpush1.bf16.msra.mxu0 %v4979
  %8898 = vmatprep.subr.bf16.mxu0 %v5040
  %8899 = vmatpush2.bf16.msra.mxu0 %v5039
  %8900 = vmatprep.subr.bf16.mxu0 %v5036
  %8901 = vmatpush2.bf16.msra.mxu0 %v5035
  %8902 = vmatprep.subr.bf16.mxu0 %v5032
  %8903 = vmatpush2.bf16.msra.mxu0 %v5031
  %8904 = vmatprep.subr.bf16.mxu0 %v5028
  %8905 = vmatpush2.bf16.msra.mxu0 %v5027
  %8906 = vmatprep.subr.bf16.mxu0 %v5024
  %8907 = vmatpush2.bf16.msra.mxu0 %v5023
  %8908 = vmatprep.subr.bf16.mxu0 %v5020
  %8909 = vmatpush2.bf16.msra.mxu0 %v5019
  %8910 = vmatprep.subr.bf16.mxu0 %v5016
  %8911 = vmatpush2.bf16.msra.mxu0 %v5015
  %8912 = vmatprep.subr.bf16.mxu0 %v5012
  %8913 = vmatpush2.bf16.msra.mxu0 %v5011
  %8914 = vmatprep.mubr.bf16.mxu0 %v542
  %8915 = vmatmul.mubr.bf16.gmra.mxu0 %v541
  %v8916 = vpop.f32.mrf.mxu0
  %v8917 = vadd.f32 %v8804, %v8916
  %v8918 = vpop.f32.mrf.mxu0
  %v8919 = vadd.f32 %v8806, %v8918
  %v8920 = vpop.f32.mrf.mxu0
  %v8921 = vadd.f32 %v8808, %v8920
  %v8922 = vpop.f32.mrf.mxu0
  %v8923 = vadd.f32 %v8810, %v8922
  %8924 = vmatprep.mubr.bf16.mxu0 %v574
  %8925 = vmatmul.mubr.bf16.gmra.mxu0 %v573
  %v8926 = vpop.f32.mrf.mxu0
  %v8927 = vadd.f32 %v8814, %v8926
  %v8928 = vpop.f32.mrf.mxu0
  %v8929 = vadd.f32 %v8816, %v8928
  %v8930 = vpop.f32.mrf.mxu0
  %v8931 = vadd.f32 %v8818, %v8930
  %v8932 = vpop.f32.mrf.mxu0
  %v8933 = vadd.f32 %v8820, %v8932
  %8934 = vmatprep.mubr.bf16.mxu0 %v606
  %8935 = vmatmul.mubr.bf16.gmra.mxu0 %v605
  %v8936 = vpop.f32.mrf.mxu0
  %v8937 = vadd.f32 %v8824, %v8936
  %v8938 = vpop.f32.mrf.mxu0
  %v8939 = vadd.f32 %v8826, %v8938
  %v8940 = vpop.f32.mrf.mxu0
  %v8941 = vadd.f32 %v8828, %v8940
  %v8942 = vpop.f32.mrf.mxu0
  %v8943 = vadd.f32 %v8830, %v8942
  %8944 = vmatprep.mubr.bf16.mxu0 %v638
  %8945 = vmatmul.mubr.bf16.gmra.mxu0 %v637
  %v8946 = vpop.f32.mrf.mxu0
  %v8947 = vadd.f32 %v8834, %v8946
  %v8948 = vpop.f32.mrf.mxu0
  %v8949 = vadd.f32 %v8836, %v8948
  %v8950 = vpop.f32.mrf.mxu0
  %v8951 = vadd.f32 %v8838, %v8950
  %v8952 = vpop.f32.mrf.mxu0
  %v8953 = vadd.f32 %v8840, %v8952
  %8954 = vmatprep.mubr.bf16.mxu0 %v670
  %8955 = vmatmul.mubr.bf16.gmra.mxu0 %v669
  %v8956 = vpop.f32.mrf.mxu0
  %v8957 = vadd.f32 %v8844, %v8956
  %v8958 = vpop.f32.mrf.mxu0
  %v8959 = vadd.f32 %v8846, %v8958
  %v8960 = vpop.f32.mrf.mxu0
  %v8961 = vadd.f32 %v8848, %v8960
  %v8962 = vpop.f32.mrf.mxu0
  %v8963 = vadd.f32 %v8850, %v8962
  %8964 = vmatprep.mubr.bf16.mxu0 %v702
  %8965 = vmatmul.mubr.bf16.gmra.mxu0 %v701
  %v8966 = vpop.f32.mrf.mxu0
  %v8967 = vadd.f32 %v8854, %v8966
  %v8968 = vpop.f32.mrf.mxu0
  %v8969 = vadd.f32 %v8856, %v8968
  %v8970 = vpop.f32.mrf.mxu0
  %v8971 = vadd.f32 %v8858, %v8970
  %v8972 = vpop.f32.mrf.mxu0
  %v8973 = vadd.f32 %v8860, %v8972
  %8974 = vmatprep.mubr.bf16.mxu0 %v734
  %8975 = vmatmul.mubr.bf16.gmra.mxu0 %v733
  %v8976 = vpop.f32.mrf.mxu0
  %v8977 = vadd.f32 %v8864, %v8976
  %v8978 = vpop.f32.mrf.mxu0
  %v8979 = vadd.f32 %v8866, %v8978
  %v8980 = vpop.f32.mrf.mxu0
  %v8981 = vadd.f32 %v8868, %v8980
  %v8982 = vpop.f32.mrf.mxu0
  %v8983 = vadd.f32 %v8870, %v8982
  %8984 = vmatprep.mubr.bf16.mxu0 %v766
  %8985 = vmatmul.mubr.bf16.gmra.mxu0 %v765
  %v8986 = vpop.f32.mrf.mxu0
  %v8987 = vadd.f32 %v8874, %v8986
  %v8988 = vpop.f32.mrf.mxu0
  %v8989 = vadd.f32 %v8876, %v8988
  %v8990 = vpop.f32.mrf.mxu0
  %v8991 = vadd.f32 %v8878, %v8990
  %v8992 = vpop.f32.mrf.mxu0
  %v8993 = vadd.f32 %v8880, %v8992
  %8994 = vdwg.mxu0
  %8995 = vmatprep.subr.bf16.mxu0 %v5072
  %8996 = vmatpush1.bf16.msra.mxu0 %v5071
  %8997 = vmatprep.subr.bf16.mxu0 %v5068
  %8998 = vmatpush1.bf16.msra.mxu0 %v5067
  %8999 = vmatprep.subr.bf16.mxu0 %v5064
  %9000 = vmatpush1.bf16.msra.mxu0 %v5063
  %9001 = vmatprep.subr.bf16.mxu0 %v5060
  %9002 = vmatpush1.bf16.msra.mxu0 %v5059
  %9003 = vmatprep.subr.bf16.mxu0 %v5056
  %9004 = vmatpush1.bf16.msra.mxu0 %v5055
  %9005 = vmatprep.subr.bf16.mxu0 %v5052
  %9006 = vmatpush1.bf16.msra.mxu0 %v5051
  %9007 = vmatprep.subr.bf16.mxu0 %v5048
  %9008 = vmatpush1.bf16.msra.mxu0 %v5047
  %9009 = vmatprep.subr.bf16.mxu0 %v5044
  %9010 = vmatpush1.bf16.msra.mxu0 %v5043
  %9011 = vmatprep.subr.bf16.mxu0 %v5104
  %9012 = vmatpush2.bf16.msra.mxu0 %v5103
  %9013 = vmatprep.subr.bf16.mxu0 %v5100
  %9014 = vmatpush2.bf16.msra.mxu0 %v5099
  %9015 = vmatprep.subr.bf16.mxu0 %v5096
  %9016 = vmatpush2.bf16.msra.mxu0 %v5095
  %9017 = vmatprep.subr.bf16.mxu0 %v5092
  %9018 = vmatpush2.bf16.msra.mxu0 %v5091
  %9019 = vmatprep.subr.bf16.mxu0 %v5088
  %9020 = vmatpush2.bf16.msra.mxu0 %v5087
  %9021 = vmatprep.subr.bf16.mxu0 %v5084
  %9022 = vmatpush2.bf16.msra.mxu0 %v5083
  %9023 = vmatprep.subr.bf16.mxu0 %v5080
  %9024 = vmatpush2.bf16.msra.mxu0 %v5079
  %9025 = vmatprep.subr.bf16.mxu0 %v5076
  %9026 = vmatpush2.bf16.msra.mxu0 %v5075
  %9027 = vmatprep.mubr.bf16.mxu0 %v544
  %9028 = vmatmul.mubr.bf16.gmra.mxu0 %v543
  %v9029 = vpop.f32.mrf.mxu0
  %v9030 = vadd.f32 %v8917, %v9029
  %v9031 = vpop.f32.mrf.mxu0
  %v9032 = vadd.f32 %v8919, %v9031
  %v9033 = vpop.f32.mrf.mxu0
  %v9034 = vadd.f32 %v8921, %v9033
  %v9035 = vpop.f32.mrf.mxu0
  %v9036 = vadd.f32 %v8923, %v9035
  %9037 = vmatprep.mubr.bf16.mxu0 %v576
  %9038 = vmatmul.mubr.bf16.gmra.mxu0 %v575
  %v9039 = vpop.f32.mrf.mxu0
  %v9040 = vadd.f32 %v8927, %v9039
  %v9041 = vpop.f32.mrf.mxu0
  %v9042 = vadd.f32 %v8929, %v9041
  %v9043 = vpop.f32.mrf.mxu0
  %v9044 = vadd.f32 %v8931, %v9043
  %v9045 = vpop.f32.mrf.mxu0
  %v9046 = vadd.f32 %v8933, %v9045
  %9047 = vmatprep.mubr.bf16.mxu0 %v608
  %9048 = vmatmul.mubr.bf16.gmra.mxu0 %v607
  %v9049 = vpop.f32.mrf.mxu0
  %v9050 = vadd.f32 %v8937, %v9049
  %v9051 = vpop.f32.mrf.mxu0
  %v9052 = vadd.f32 %v8939, %v9051
  %v9053 = vpop.f32.mrf.mxu0
  %v9054 = vadd.f32 %v8941, %v9053
  %v9055 = vpop.f32.mrf.mxu0
  %v9056 = vadd.f32 %v8943, %v9055
  %9057 = vmatprep.mubr.bf16.mxu0 %v640
  %9058 = vmatmul.mubr.bf16.gmra.mxu0 %v639
  %v9059 = vpop.f32.mrf.mxu0
  %v9060 = vadd.f32 %v8947, %v9059
  %v9061 = vpop.f32.mrf.mxu0
  %v9062 = vadd.f32 %v8949, %v9061
  %v9063 = vpop.f32.mrf.mxu0
  %v9064 = vadd.f32 %v8951, %v9063
  %v9065 = vpop.f32.mrf.mxu0
  %v9066 = vadd.f32 %v8953, %v9065
  %9067 = vmatprep.mubr.bf16.mxu0 %v672
  %9068 = vmatmul.mubr.bf16.gmra.mxu0 %v671
  %v9069 = vpop.f32.mrf.mxu0
  %v9070 = vadd.f32 %v8957, %v9069
  %v9071 = vpop.f32.mrf.mxu0
  %v9072 = vadd.f32 %v8959, %v9071
  %v9073 = vpop.f32.mrf.mxu0
  %v9074 = vadd.f32 %v8961, %v9073
  %v9075 = vpop.f32.mrf.mxu0
  %v9076 = vadd.f32 %v8963, %v9075
  %9077 = vmatprep.mubr.bf16.mxu0 %v704
  %9078 = vmatmul.mubr.bf16.gmra.mxu0 %v703
  %v9079 = vpop.f32.mrf.mxu0
  %v9080 = vadd.f32 %v8967, %v9079
  %v9081 = vpop.f32.mrf.mxu0
  %v9082 = vadd.f32 %v8969, %v9081
  %v9083 = vpop.f32.mrf.mxu0
  %v9084 = vadd.f32 %v8971, %v9083
  %v9085 = vpop.f32.mrf.mxu0
  %v9086 = vadd.f32 %v8973, %v9085
  %9087 = vmatprep.mubr.bf16.mxu0 %v736
  %9088 = vmatmul.mubr.bf16.gmra.mxu0 %v735
  %v9089 = vpop.f32.mrf.mxu0
  %v9090 = vadd.f32 %v8977, %v9089
  %v9091 = vpop.f32.mrf.mxu0
  %v9092 = vadd.f32 %v8979, %v9091
  %v9093 = vpop.f32.mrf.mxu0
  %v9094 = vadd.f32 %v8981, %v9093
  %v9095 = vpop.f32.mrf.mxu0
  %v9096 = vadd.f32 %v8983, %v9095
  %9097 = vmatprep.mubr.bf16.mxu0 %v768
  %9098 = vmatmul.mubr.bf16.gmra.mxu0 %v767
  %v9099 = vpop.f32.mrf.mxu0
  %v9100 = vadd.f32 %v8987, %v9099
  %v9101 = vpop.f32.mrf.mxu0
  %v9102 = vadd.f32 %v8989, %v9101
  %v9103 = vpop.f32.mrf.mxu0
  %v9104 = vadd.f32 %v8991, %v9103
  %v9105 = vpop.f32.mrf.mxu0
  %v9106 = vadd.f32 %v8993, %v9105
  %9107 = vdwg.mxu0
  %9108 = vmatprep.subr.bf16.mxu0 %v5136
  %9109 = vmatpush1.bf16.msra.mxu0 %v5135
  %9110 = vmatprep.subr.bf16.mxu0 %v5132
  %9111 = vmatpush1.bf16.msra.mxu0 %v5131
  %9112 = vmatprep.subr.bf16.mxu0 %v5128
  %9113 = vmatpush1.bf16.msra.mxu0 %v5127
  %9114 = vmatprep.subr.bf16.mxu0 %v5124
  %9115 = vmatpush1.bf16.msra.mxu0 %v5123
  %9116 = vmatprep.subr.bf16.mxu0 %v5120
  %9117 = vmatpush1.bf16.msra.mxu0 %v5119
  %9118 = vmatprep.subr.bf16.mxu0 %v5116
  %9119 = vmatpush1.bf16.msra.mxu0 %v5115
  %9120 = vmatprep.subr.bf16.mxu0 %v5112
  %9121 = vmatpush1.bf16.msra.mxu0 %v5111
  %9122 = vmatprep.subr.bf16.mxu0 %v5108
  %9123 = vmatpush1.bf16.msra.mxu0 %v5107
  %9124 = vmatprep.subr.bf16.mxu0 %v5168
  %9125 = vmatpush2.bf16.msra.mxu0 %v5167
  %9126 = vmatprep.subr.bf16.mxu0 %v5164
  %9127 = vmatpush2.bf16.msra.mxu0 %v5163
  %9128 = vmatprep.subr.bf16.mxu0 %v5160
  %9129 = vmatpush2.bf16.msra.mxu0 %v5159
  %9130 = vmatprep.subr.bf16.mxu0 %v5156
  %9131 = vmatpush2.bf16.msra.mxu0 %v5155
  %9132 = vmatprep.subr.bf16.mxu0 %v5152
  %9133 = vmatpush2.bf16.msra.mxu0 %v5151
  %9134 = vmatprep.subr.bf16.mxu0 %v5148
  %9135 = vmatpush2.bf16.msra.mxu0 %v5147
  %9136 = vmatprep.subr.bf16.mxu0 %v5144
  %9137 = vmatpush2.bf16.msra.mxu0 %v5143
  %9138 = vmatprep.subr.bf16.mxu0 %v5140
  %9139 = vmatpush2.bf16.msra.mxu0 %v5139
  %9140 = vmatprep.mubr.bf16.mxu0 %v546
  %9141 = vmatmul.mubr.bf16.gmra.mxu0 %v545
  %v9142 = vpop.f32.mrf.mxu0
  %v9143 = vadd.f32 %v9030, %v9142
  %v9144 = vpop.f32.mrf.mxu0
  %v9145 = vadd.f32 %v9032, %v9144
  %v9146 = vpop.f32.mrf.mxu0
  %v9147 = vadd.f32 %v9034, %v9146
  %v9148 = vpop.f32.mrf.mxu0
  %v9149 = vadd.f32 %v9036, %v9148
  %9150 = vmatprep.mubr.bf16.mxu0 %v578
  %9151 = vmatmul.mubr.bf16.gmra.mxu0 %v577
  %v9152 = vpop.f32.mrf.mxu0
  %v9153 = vadd.f32 %v9040, %v9152
  %v9154 = vpop.f32.mrf.mxu0
  %v9155 = vadd.f32 %v9042, %v9154
  %v9156 = vpop.f32.mrf.mxu0
  %v9157 = vadd.f32 %v9044, %v9156
  %v9158 = vpop.f32.mrf.mxu0
  %v9159 = vadd.f32 %v9046, %v9158
  %9160 = vmatprep.mubr.bf16.mxu0 %v610
  %9161 = vmatmul.mubr.bf16.gmra.mxu0 %v609
  %v9162 = vpop.f32.mrf.mxu0
  %v9163 = vadd.f32 %v9050, %v9162
  %v9164 = vpop.f32.mrf.mxu0
  %v9165 = vadd.f32 %v9052, %v9164
  %v9166 = vpop.f32.mrf.mxu0
  %v9167 = vadd.f32 %v9054, %v9166
  %v9168 = vpop.f32.mrf.mxu0
  %v9169 = vadd.f32 %v9056, %v9168
  %9170 = vmatprep.mubr.bf16.mxu0 %v642
  %9171 = vmatmul.mubr.bf16.gmra.mxu0 %v641
  %v9172 = vpop.f32.mrf.mxu0
  %v9173 = vadd.f32 %v9060, %v9172
  %v9174 = vpop.f32.mrf.mxu0
  %v9175 = vadd.f32 %v9062, %v9174
  %v9176 = vpop.f32.mrf.mxu0
  %v9177 = vadd.f32 %v9064, %v9176
  %v9178 = vpop.f32.mrf.mxu0
  %v9179 = vadd.f32 %v9066, %v9178
  %9180 = vmatprep.mubr.bf16.mxu0 %v674
  %9181 = vmatmul.mubr.bf16.gmra.mxu0 %v673
  %v9182 = vpop.f32.mrf.mxu0
  %v9183 = vadd.f32 %v9070, %v9182
  %v9184 = vpop.f32.mrf.mxu0
  %v9185 = vadd.f32 %v9072, %v9184
  %v9186 = vpop.f32.mrf.mxu0
  %v9187 = vadd.f32 %v9074, %v9186
  %v9188 = vpop.f32.mrf.mxu0
  %v9189 = vadd.f32 %v9076, %v9188
  %9190 = vmatprep.mubr.bf16.mxu0 %v706
  %9191 = vmatmul.mubr.bf16.gmra.mxu0 %v705
  %v9192 = vpop.f32.mrf.mxu0
  %v9193 = vadd.f32 %v9080, %v9192
  %v9194 = vpop.f32.mrf.mxu0
  %v9195 = vadd.f32 %v9082, %v9194
  %v9196 = vpop.f32.mrf.mxu0
  %v9197 = vadd.f32 %v9084, %v9196
  %v9198 = vpop.f32.mrf.mxu0
  %v9199 = vadd.f32 %v9086, %v9198
  %9200 = vmatprep.mubr.bf16.mxu0 %v738
  %9201 = vmatmul.mubr.bf16.gmra.mxu0 %v737
  %v9202 = vpop.f32.mrf.mxu0
  %v9203 = vadd.f32 %v9090, %v9202
  %v9204 = vpop.f32.mrf.mxu0
  %v9205 = vadd.f32 %v9092, %v9204
  %v9206 = vpop.f32.mrf.mxu0
  %v9207 = vadd.f32 %v9094, %v9206
  %v9208 = vpop.f32.mrf.mxu0
  %v9209 = vadd.f32 %v9096, %v9208
  %9210 = vmatprep.mubr.bf16.mxu0 %v770
  %9211 = vmatmul.mubr.bf16.gmra.mxu0 %v769
  %v9212 = vpop.f32.mrf.mxu0
  %v9213 = vadd.f32 %v9100, %v9212
  %v9214 = vpop.f32.mrf.mxu0
  %v9215 = vadd.f32 %v9102, %v9214
  %v9216 = vpop.f32.mrf.mxu0
  %v9217 = vadd.f32 %v9104, %v9216
  %v9218 = vpop.f32.mrf.mxu0
  %v9219 = vadd.f32 %v9106, %v9218
  %9220 = vdwg.mxu0
  %9221 = vmatprep.subr.bf16.mxu0 %v5200
  %9222 = vmatpush1.bf16.msra.mxu0 %v5199
  %9223 = vmatprep.subr.bf16.mxu0 %v5196
  %9224 = vmatpush1.bf16.msra.mxu0 %v5195
  %9225 = vmatprep.subr.bf16.mxu0 %v5192
  %9226 = vmatpush1.bf16.msra.mxu0 %v5191
  %9227 = vmatprep.subr.bf16.mxu0 %v5188
  %9228 = vmatpush1.bf16.msra.mxu0 %v5187
  %9229 = vmatprep.subr.bf16.mxu0 %v5184
  %9230 = vmatpush1.bf16.msra.mxu0 %v5183
  %9231 = vmatprep.subr.bf16.mxu0 %v5180
  %9232 = vmatpush1.bf16.msra.mxu0 %v5179
  %9233 = vmatprep.subr.bf16.mxu0 %v5176
  %9234 = vmatpush1.bf16.msra.mxu0 %v5175
  %9235 = vmatprep.subr.bf16.mxu0 %v5172
  %9236 = vmatpush1.bf16.msra.mxu0 %v5171
  %9237 = vmatprep.subr.bf16.mxu0 %v5232
  %9238 = vmatpush2.bf16.msra.mxu0 %v5231
  %9239 = vmatprep.subr.bf16.mxu0 %v5228
  %9240 = vmatpush2.bf16.msra.mxu0 %v5227
  %9241 = vmatprep.subr.bf16.mxu0 %v5224
  %9242 = vmatpush2.bf16.msra.mxu0 %v5223
  %9243 = vmatprep.subr.bf16.mxu0 %v5220
  %9244 = vmatpush2.bf16.msra.mxu0 %v5219
  %9245 = vmatprep.subr.bf16.mxu0 %v5216
  %9246 = vmatpush2.bf16.msra.mxu0 %v5215
  %9247 = vmatprep.subr.bf16.mxu0 %v5212
  %9248 = vmatpush2.bf16.msra.mxu0 %v5211
  %9249 = vmatprep.subr.bf16.mxu0 %v5208
  %9250 = vmatpush2.bf16.msra.mxu0 %v5207
  %9251 = vmatprep.subr.bf16.mxu0 %v5204
  %9252 = vmatpush2.bf16.msra.mxu0 %v5203
  %9253 = vmatprep.mubr.bf16.mxu0 %v548
  %9254 = vmatmul.mubr.bf16.gmra.mxu0 %v547
  %v9255 = vpop.f32.mrf.mxu0
  %v9256 = vadd.f32 %v9143, %v9255
  %v9257 = vpop.f32.mrf.mxu0
  %v9258 = vadd.f32 %v9145, %v9257
  %v9259 = vpop.f32.mrf.mxu0
  %v9260 = vadd.f32 %v9147, %v9259
  %v9261 = vpop.f32.mrf.mxu0
  %v9262 = vadd.f32 %v9149, %v9261
  %9263 = vmatprep.mubr.bf16.mxu0 %v580
  %9264 = vmatmul.mubr.bf16.gmra.mxu0 %v579
  %v9265 = vpop.f32.mrf.mxu0
  %v9266 = vadd.f32 %v9153, %v9265
  %v9267 = vpop.f32.mrf.mxu0
  %v9268 = vadd.f32 %v9155, %v9267
  %v9269 = vpop.f32.mrf.mxu0
  %v9270 = vadd.f32 %v9157, %v9269
  %v9271 = vpop.f32.mrf.mxu0
  %v9272 = vadd.f32 %v9159, %v9271
  %9273 = vmatprep.mubr.bf16.mxu0 %v612
  %9274 = vmatmul.mubr.bf16.gmra.mxu0 %v611
  %v9275 = vpop.f32.mrf.mxu0
  %v9276 = vadd.f32 %v9163, %v9275
  %v9277 = vpop.f32.mrf.mxu0
  %v9278 = vadd.f32 %v9165, %v9277
  %v9279 = vpop.f32.mrf.mxu0
  %v9280 = vadd.f32 %v9167, %v9279
  %v9281 = vpop.f32.mrf.mxu0
  %v9282 = vadd.f32 %v9169, %v9281
  %9283 = vmatprep.mubr.bf16.mxu0 %v644
  %9284 = vmatmul.mubr.bf16.gmra.mxu0 %v643
  %v9285 = vpop.f32.mrf.mxu0
  %v9286 = vadd.f32 %v9173, %v9285
  %v9287 = vpop.f32.mrf.mxu0
  %v9288 = vadd.f32 %v9175, %v9287
  %v9289 = vpop.f32.mrf.mxu0
  %v9290 = vadd.f32 %v9177, %v9289
  %v9291 = vpop.f32.mrf.mxu0
  %v9292 = vadd.f32 %v9179, %v9291
  %9293 = vmatprep.mubr.bf16.mxu0 %v676
  %9294 = vmatmul.mubr.bf16.gmra.mxu0 %v675
  %v9295 = vpop.f32.mrf.mxu0
  %v9296 = vadd.f32 %v9183, %v9295
  %v9297 = vpop.f32.mrf.mxu0
  %v9298 = vadd.f32 %v9185, %v9297
  %v9299 = vpop.f32.mrf.mxu0
  %v9300 = vadd.f32 %v9187, %v9299
  %v9301 = vpop.f32.mrf.mxu0
  %v9302 = vadd.f32 %v9189, %v9301
  %9303 = vmatprep.mubr.bf16.mxu0 %v708
  %9304 = vmatmul.mubr.bf16.gmra.mxu0 %v707
  %v9305 = vpop.f32.mrf.mxu0
  %v9306 = vadd.f32 %v9193, %v9305
  %v9307 = vpop.f32.mrf.mxu0
  %v9308 = vadd.f32 %v9195, %v9307
  %v9309 = vpop.f32.mrf.mxu0
  %v9310 = vadd.f32 %v9197, %v9309
  %v9311 = vpop.f32.mrf.mxu0
  %v9312 = vadd.f32 %v9199, %v9311
  %9313 = vmatprep.mubr.bf16.mxu0 %v740
  %9314 = vmatmul.mubr.bf16.gmra.mxu0 %v739
  %v9315 = vpop.f32.mrf.mxu0
  %v9316 = vadd.f32 %v9203, %v9315
  %v9317 = vpop.f32.mrf.mxu0
  %v9318 = vadd.f32 %v9205, %v9317
  %v9319 = vpop.f32.mrf.mxu0
  %v9320 = vadd.f32 %v9207, %v9319
  %v9321 = vpop.f32.mrf.mxu0
  %v9322 = vadd.f32 %v9209, %v9321
  %9323 = vmatprep.mubr.bf16.mxu0 %v772
  %9324 = vmatmul.mubr.bf16.gmra.mxu0 %v771
  %v9325 = vpop.f32.mrf.mxu0
  %v9326 = vadd.f32 %v9213, %v9325
  %v9327 = vpop.f32.mrf.mxu0
  %v9328 = vadd.f32 %v9215, %v9327
  %v9329 = vpop.f32.mrf.mxu0
  %v9330 = vadd.f32 %v9217, %v9329
  %v9331 = vpop.f32.mrf.mxu0
  %v9332 = vadd.f32 %v9219, %v9331
  %9333 = vdwg.mxu0
  %9334 = vmatprep.subr.bf16.mxu0 %v5264
  %9335 = vmatpush1.bf16.msra.mxu0 %v5263
  %9336 = vmatprep.subr.bf16.mxu0 %v5260
  %9337 = vmatpush1.bf16.msra.mxu0 %v5259
  %9338 = vmatprep.subr.bf16.mxu0 %v5256
  %9339 = vmatpush1.bf16.msra.mxu0 %v5255
  %9340 = vmatprep.subr.bf16.mxu0 %v5252
  %9341 = vmatpush1.bf16.msra.mxu0 %v5251
  %9342 = vmatprep.subr.bf16.mxu0 %v5248
  %9343 = vmatpush1.bf16.msra.mxu0 %v5247
  %9344 = vmatprep.subr.bf16.mxu0 %v5244
  %9345 = vmatpush1.bf16.msra.mxu0 %v5243
  %9346 = vmatprep.subr.bf16.mxu0 %v5240
  %9347 = vmatpush1.bf16.msra.mxu0 %v5239
  %9348 = vmatprep.subr.bf16.mxu0 %v5236
  %9349 = vmatpush1.bf16.msra.mxu0 %v5235
  %9350 = vmatprep.subr.bf16.mxu0 %v5296
  %9351 = vmatpush2.bf16.msra.mxu0 %v5295
  %9352 = vmatprep.subr.bf16.mxu0 %v5292
  %9353 = vmatpush2.bf16.msra.mxu0 %v5291
  %9354 = vmatprep.subr.bf16.mxu0 %v5288
  %9355 = vmatpush2.bf16.msra.mxu0 %v5287
  %9356 = vmatprep.subr.bf16.mxu0 %v5284
  %9357 = vmatpush2.bf16.msra.mxu0 %v5283
  %9358 = vmatprep.subr.bf16.mxu0 %v5280
  %9359 = vmatpush2.bf16.msra.mxu0 %v5279
  %9360 = vmatprep.subr.bf16.mxu0 %v5276
  %9361 = vmatpush2.bf16.msra.mxu0 %v5275
  %9362 = vmatprep.subr.bf16.mxu0 %v5272
  %9363 = vmatpush2.bf16.msra.mxu0 %v5271
  %9364 = vmatprep.subr.bf16.mxu0 %v5268
  %9365 = vmatpush2.bf16.msra.mxu0 %v5267
  %9366 = vmatprep.mubr.bf16.mxu0 %v550
  %9367 = vmatmul.mubr.bf16.gmra.mxu0 %v549
  %v9368 = vpop.f32.mrf.mxu0
  %v9369 = vadd.f32 %v9256, %v9368
  %v9370 = vpop.f32.mrf.mxu0
  %v9371 = vadd.f32 %v9258, %v9370
  %v9372 = vpop.f32.mrf.mxu0
  %v9373 = vadd.f32 %v9260, %v9372
  %v9374 = vpop.f32.mrf.mxu0
  %v9375 = vadd.f32 %v9262, %v9374
  %9376 = vmatprep.mubr.bf16.mxu0 %v582
  %9377 = vmatmul.mubr.bf16.gmra.mxu0 %v581
  %v9378 = vpop.f32.mrf.mxu0
  %v9379 = vadd.f32 %v9266, %v9378
  %v9380 = vpop.f32.mrf.mxu0
  %v9381 = vadd.f32 %v9268, %v9380
  %v9382 = vpop.f32.mrf.mxu0
  %v9383 = vadd.f32 %v9270, %v9382
  %v9384 = vpop.f32.mrf.mxu0
  %v9385 = vadd.f32 %v9272, %v9384
  %9386 = vmatprep.mubr.bf16.mxu0 %v614
  %9387 = vmatmul.mubr.bf16.gmra.mxu0 %v613
  %v9388 = vpop.f32.mrf.mxu0
  %v9389 = vadd.f32 %v9276, %v9388
  %v9390 = vpop.f32.mrf.mxu0
  %v9391 = vadd.f32 %v9278, %v9390
  %v9392 = vpop.f32.mrf.mxu0
  %v9393 = vadd.f32 %v9280, %v9392
  %v9394 = vpop.f32.mrf.mxu0
  %v9395 = vadd.f32 %v9282, %v9394
  %9396 = vmatprep.mubr.bf16.mxu0 %v646
  %9397 = vmatmul.mubr.bf16.gmra.mxu0 %v645
  %v9398 = vpop.f32.mrf.mxu0
  %v9399 = vadd.f32 %v9286, %v9398
  %v9400 = vpop.f32.mrf.mxu0
  %v9401 = vadd.f32 %v9288, %v9400
  %v9402 = vpop.f32.mrf.mxu0
  %v9403 = vadd.f32 %v9290, %v9402
  %v9404 = vpop.f32.mrf.mxu0
  %v9405 = vadd.f32 %v9292, %v9404
  %9406 = vmatprep.mubr.bf16.mxu0 %v678
  %9407 = vmatmul.mubr.bf16.gmra.mxu0 %v677
  %v9408 = vpop.f32.mrf.mxu0
  %v9409 = vadd.f32 %v9296, %v9408
  %v9410 = vpop.f32.mrf.mxu0
  %v9411 = vadd.f32 %v9298, %v9410
  %v9412 = vpop.f32.mrf.mxu0
  %v9413 = vadd.f32 %v9300, %v9412
  %v9414 = vpop.f32.mrf.mxu0
  %v9415 = vadd.f32 %v9302, %v9414
  %9416 = vmatprep.mubr.bf16.mxu0 %v710
  %9417 = vmatmul.mubr.bf16.gmra.mxu0 %v709
  %v9418 = vpop.f32.mrf.mxu0
  %v9419 = vadd.f32 %v9306, %v9418
  %v9420 = vpop.f32.mrf.mxu0
  %v9421 = vadd.f32 %v9308, %v9420
  %v9422 = vpop.f32.mrf.mxu0
  %v9423 = vadd.f32 %v9310, %v9422
  %v9424 = vpop.f32.mrf.mxu0
  %v9425 = vadd.f32 %v9312, %v9424
  %9426 = vmatprep.mubr.bf16.mxu0 %v742
  %9427 = vmatmul.mubr.bf16.gmra.mxu0 %v741
  %v9428 = vpop.f32.mrf.mxu0
  %v9429 = vadd.f32 %v9316, %v9428
  %v9430 = vpop.f32.mrf.mxu0
  %v9431 = vadd.f32 %v9318, %v9430
  %v9432 = vpop.f32.mrf.mxu0
  %v9433 = vadd.f32 %v9320, %v9432
  %v9434 = vpop.f32.mrf.mxu0
  %v9435 = vadd.f32 %v9322, %v9434
  %9436 = vmatprep.mubr.bf16.mxu0 %v774
  %9437 = vmatmul.mubr.bf16.gmra.mxu0 %v773
  %v9438 = vpop.f32.mrf.mxu0
  %v9439 = vadd.f32 %v9326, %v9438
  %v9440 = vpop.f32.mrf.mxu0
  %v9441 = vadd.f32 %v9328, %v9440
  %v9442 = vpop.f32.mrf.mxu0
  %v9443 = vadd.f32 %v9330, %v9442
  %v9444 = vpop.f32.mrf.mxu0
  %v9445 = vadd.f32 %v9332, %v9444
  %9446 = vdwg.mxu0
  %9447 = vmatprep.subr.bf16.mxu0 %v5328
  %9448 = vmatpush1.bf16.msra.mxu0 %v5327
  %9449 = vmatprep.subr.bf16.mxu0 %v5324
  %9450 = vmatpush1.bf16.msra.mxu0 %v5323
  %9451 = vmatprep.subr.bf16.mxu0 %v5320
  %9452 = vmatpush1.bf16.msra.mxu0 %v5319
  %9453 = vmatprep.subr.bf16.mxu0 %v5316
  %9454 = vmatpush1.bf16.msra.mxu0 %v5315
  %9455 = vmatprep.subr.bf16.mxu0 %v5312
  %9456 = vmatpush1.bf16.msra.mxu0 %v5311
  %9457 = vmatprep.subr.bf16.mxu0 %v5308
  %9458 = vmatpush1.bf16.msra.mxu0 %v5307
  %9459 = vmatprep.subr.bf16.mxu0 %v5304
  %9460 = vmatpush1.bf16.msra.mxu0 %v5303
  %9461 = vmatprep.subr.bf16.mxu0 %v5300
  %9462 = vmatpush1.bf16.msra.mxu0 %v5299
  %9463 = vmatprep.subr.bf16.mxu0 %v5360
  %9464 = vmatpush2.bf16.msra.mxu0 %v5359
  %9465 = vmatprep.subr.bf16.mxu0 %v5356
  %9466 = vmatpush2.bf16.msra.mxu0 %v5355
  %9467 = vmatprep.subr.bf16.mxu0 %v5352
  %9468 = vmatpush2.bf16.msra.mxu0 %v5351
  %9469 = vmatprep.subr.bf16.mxu0 %v5348
  %9470 = vmatpush2.bf16.msra.mxu0 %v5347
  %9471 = vmatprep.subr.bf16.mxu0 %v5344
  %9472 = vmatpush2.bf16.msra.mxu0 %v5343
  %9473 = vmatprep.subr.bf16.mxu0 %v5340
  %9474 = vmatpush2.bf16.msra.mxu0 %v5339
  %9475 = vmatprep.subr.bf16.mxu0 %v5336
  %9476 = vmatpush2.bf16.msra.mxu0 %v5335
  %9477 = vmatprep.subr.bf16.mxu0 %v5332
  %9478 = vmatpush2.bf16.msra.mxu0 %v5331
  %9479 = vmatprep.mubr.bf16.mxu0 %v552
  %9480 = vmatmul.mubr.bf16.gmra.mxu0 %v551
  %v9481 = vpop.f32.mrf.mxu0
  %v9482 = vadd.f32 %v9369, %v9481
  %v9483 = vpop.f32.mrf.mxu0
  %v9484 = vadd.f32 %v9371, %v9483
  %v9485 = vpop.f32.mrf.mxu0
  %v9486 = vadd.f32 %v9373, %v9485
  %v9487 = vpop.f32.mrf.mxu0
  %v9488 = vadd.f32 %v9375, %v9487
  %9489 = vmatprep.mubr.bf16.mxu0 %v584
  %9490 = vmatmul.mubr.bf16.gmra.mxu0 %v583
  %v9491 = vpop.f32.mrf.mxu0
  %v9492 = vadd.f32 %v9379, %v9491
  %v9493 = vpop.f32.mrf.mxu0
  %v9494 = vadd.f32 %v9381, %v9493
  %v9495 = vpop.f32.mrf.mxu0
  %v9496 = vadd.f32 %v9383, %v9495
  %v9497 = vpop.f32.mrf.mxu0
  %v9498 = vadd.f32 %v9385, %v9497
  %9499 = vmatprep.mubr.bf16.mxu0 %v616
  %9500 = vmatmul.mubr.bf16.gmra.mxu0 %v615
  %v9501 = vpop.f32.mrf.mxu0
  %v9502 = vadd.f32 %v9389, %v9501
  %v9503 = vpop.f32.mrf.mxu0
  %v9504 = vadd.f32 %v9391, %v9503
  %v9505 = vpop.f32.mrf.mxu0
  %v9506 = vadd.f32 %v9393, %v9505
  %v9507 = vpop.f32.mrf.mxu0
  %v9508 = vadd.f32 %v9395, %v9507
  %9509 = vmatprep.mubr.bf16.mxu0 %v648
  %9510 = vmatmul.mubr.bf16.gmra.mxu0 %v647
  %v9511 = vpop.f32.mrf.mxu0
  %v9512 = vadd.f32 %v9399, %v9511
  %v9513 = vpop.f32.mrf.mxu0
  %v9514 = vadd.f32 %v9401, %v9513
  %v9515 = vpop.f32.mrf.mxu0
  %v9516 = vadd.f32 %v9403, %v9515
  %v9517 = vpop.f32.mrf.mxu0
  %v9518 = vadd.f32 %v9405, %v9517
  %9519 = vmatprep.mubr.bf16.mxu0 %v680
  %9520 = vmatmul.mubr.bf16.gmra.mxu0 %v679
  %v9521 = vpop.f32.mrf.mxu0
  %v9522 = vadd.f32 %v9409, %v9521
  %v9523 = vpop.f32.mrf.mxu0
  %v9524 = vadd.f32 %v9411, %v9523
  %v9525 = vpop.f32.mrf.mxu0
  %v9526 = vadd.f32 %v9413, %v9525
  %v9527 = vpop.f32.mrf.mxu0
  %v9528 = vadd.f32 %v9415, %v9527
  %9529 = vmatprep.mubr.bf16.mxu0 %v712
  %9530 = vmatmul.mubr.bf16.gmra.mxu0 %v711
  %v9531 = vpop.f32.mrf.mxu0
  %v9532 = vadd.f32 %v9419, %v9531
  %v9533 = vpop.f32.mrf.mxu0
  %v9534 = vadd.f32 %v9421, %v9533
  %v9535 = vpop.f32.mrf.mxu0
  %v9536 = vadd.f32 %v9423, %v9535
  %v9537 = vpop.f32.mrf.mxu0
  %v9538 = vadd.f32 %v9425, %v9537
  %9539 = vmatprep.mubr.bf16.mxu0 %v744
  %9540 = vmatmul.mubr.bf16.gmra.mxu0 %v743
  %v9541 = vpop.f32.mrf.mxu0
  %v9542 = vadd.f32 %v9429, %v9541
  %v9543 = vpop.f32.mrf.mxu0
  %v9544 = vadd.f32 %v9431, %v9543
  %v9545 = vpop.f32.mrf.mxu0
  %v9546 = vadd.f32 %v9433, %v9545
  %v9547 = vpop.f32.mrf.mxu0
  %v9548 = vadd.f32 %v9435, %v9547
  %9549 = vmatprep.mubr.bf16.mxu0 %v776
  %9550 = vmatmul.mubr.bf16.gmra.mxu0 %v775
  %v9551 = vpop.f32.mrf.mxu0
  %v9552 = vadd.f32 %v9439, %v9551
  %v9553 = vpop.f32.mrf.mxu0
  %v9554 = vadd.f32 %v9441, %v9553
  %v9555 = vpop.f32.mrf.mxu0
  %v9556 = vadd.f32 %v9443, %v9555
  %v9557 = vpop.f32.mrf.mxu0
  %v9558 = vadd.f32 %v9445, %v9557
  %9559 = vdwg.mxu0
  %9560 = vmatprep.subr.bf16.mxu0 %v5392
  %9561 = vmatpush1.bf16.msra.mxu0 %v5391
  %9562 = vmatprep.subr.bf16.mxu0 %v5388
  %9563 = vmatpush1.bf16.msra.mxu0 %v5387
  %9564 = vmatprep.subr.bf16.mxu0 %v5384
  %9565 = vmatpush1.bf16.msra.mxu0 %v5383
  %9566 = vmatprep.subr.bf16.mxu0 %v5380
  %9567 = vmatpush1.bf16.msra.mxu0 %v5379
  %9568 = vmatprep.subr.bf16.mxu0 %v5376
  %9569 = vmatpush1.bf16.msra.mxu0 %v5375
  %9570 = vmatprep.subr.bf16.mxu0 %v5372
  %9571 = vmatpush1.bf16.msra.mxu0 %v5371
  %9572 = vmatprep.subr.bf16.mxu0 %v5368
  %9573 = vmatpush1.bf16.msra.mxu0 %v5367
  %9574 = vmatprep.subr.bf16.mxu0 %v5364
  %9575 = vmatpush1.bf16.msra.mxu0 %v5363
  %9576 = vmatprep.subr.bf16.mxu0 %v5424
  %9577 = vmatpush2.bf16.msra.mxu0 %v5423
  %9578 = vmatprep.subr.bf16.mxu0 %v5420
  %9579 = vmatpush2.bf16.msra.mxu0 %v5419
  %9580 = vmatprep.subr.bf16.mxu0 %v5416
  %9581 = vmatpush2.bf16.msra.mxu0 %v5415
  %9582 = vmatprep.subr.bf16.mxu0 %v5412
  %9583 = vmatpush2.bf16.msra.mxu0 %v5411
  %9584 = vmatprep.subr.bf16.mxu0 %v5408
  %9585 = vmatpush2.bf16.msra.mxu0 %v5407
  %9586 = vmatprep.subr.bf16.mxu0 %v5404
  %9587 = vmatpush2.bf16.msra.mxu0 %v5403
  %9588 = vmatprep.subr.bf16.mxu0 %v5400
  %9589 = vmatpush2.bf16.msra.mxu0 %v5399
  %9590 = vmatprep.subr.bf16.mxu0 %v5396
  %9591 = vmatpush2.bf16.msra.mxu0 %v5395
  %9592 = vmatprep.mubr.bf16.mxu0 %v554
  %9593 = vmatmul.mubr.bf16.gmra.mxu0 %v553
  %v9594 = vpop.f32.mrf.mxu0
  %v9595 = vadd.f32 %v9482, %v9594
  %v9596 = vpop.f32.mrf.mxu0
  %v9597 = vadd.f32 %v9484, %v9596
  %v9598 = vpop.f32.mrf.mxu0
  %v9599 = vadd.f32 %v9486, %v9598
  %v9600 = vpop.f32.mrf.mxu0
  %v9601 = vadd.f32 %v9488, %v9600
  %9602 = vmatprep.mubr.bf16.mxu0 %v586
  %9603 = vmatmul.mubr.bf16.gmra.mxu0 %v585
  %v9604 = vpop.f32.mrf.mxu0
  %v9605 = vadd.f32 %v9492, %v9604
  %v9606 = vpop.f32.mrf.mxu0
  %v9607 = vadd.f32 %v9494, %v9606
  %v9608 = vpop.f32.mrf.mxu0
  %v9609 = vadd.f32 %v9496, %v9608
  %v9610 = vpop.f32.mrf.mxu0
  %v9611 = vadd.f32 %v9498, %v9610
  %9612 = vmatprep.mubr.bf16.mxu0 %v618
  %9613 = vmatmul.mubr.bf16.gmra.mxu0 %v617
  %v9614 = vpop.f32.mrf.mxu0
  %v9615 = vadd.f32 %v9502, %v9614
  %v9616 = vpop.f32.mrf.mxu0
  %v9617 = vadd.f32 %v9504, %v9616
  %v9618 = vpop.f32.mrf.mxu0
  %v9619 = vadd.f32 %v9506, %v9618
  %v9620 = vpop.f32.mrf.mxu0
  %v9621 = vadd.f32 %v9508, %v9620
  %9622 = vmatprep.mubr.bf16.mxu0 %v650
  %9623 = vmatmul.mubr.bf16.gmra.mxu0 %v649
  %v9624 = vpop.f32.mrf.mxu0
  %v9625 = vadd.f32 %v9512, %v9624
  %v9626 = vpop.f32.mrf.mxu0
  %v9627 = vadd.f32 %v9514, %v9626
  %v9628 = vpop.f32.mrf.mxu0
  %v9629 = vadd.f32 %v9516, %v9628
  %v9630 = vpop.f32.mrf.mxu0
  %v9631 = vadd.f32 %v9518, %v9630
  %9632 = vmatprep.mubr.bf16.mxu0 %v682
  %9633 = vmatmul.mubr.bf16.gmra.mxu0 %v681
  %v9634 = vpop.f32.mrf.mxu0
  %v9635 = vadd.f32 %v9522, %v9634
  %v9636 = vpop.f32.mrf.mxu0
  %v9637 = vadd.f32 %v9524, %v9636
  %v9638 = vpop.f32.mrf.mxu0
  %v9639 = vadd.f32 %v9526, %v9638
  %v9640 = vpop.f32.mrf.mxu0
  %v9641 = vadd.f32 %v9528, %v9640
  %9642 = vmatprep.mubr.bf16.mxu0 %v714
  %9643 = vmatmul.mubr.bf16.gmra.mxu0 %v713
  %v9644 = vpop.f32.mrf.mxu0
  %v9645 = vadd.f32 %v9532, %v9644
  %v9646 = vpop.f32.mrf.mxu0
  %v9647 = vadd.f32 %v9534, %v9646
  %v9648 = vpop.f32.mrf.mxu0
  %v9649 = vadd.f32 %v9536, %v9648
  %v9650 = vpop.f32.mrf.mxu0
  %v9651 = vadd.f32 %v9538, %v9650
  %9652 = vmatprep.mubr.bf16.mxu0 %v746
  %9653 = vmatmul.mubr.bf16.gmra.mxu0 %v745
  %v9654 = vpop.f32.mrf.mxu0
  %v9655 = vadd.f32 %v9542, %v9654
  %v9656 = vpop.f32.mrf.mxu0
  %v9657 = vadd.f32 %v9544, %v9656
  %v9658 = vpop.f32.mrf.mxu0
  %v9659 = vadd.f32 %v9546, %v9658
  %v9660 = vpop.f32.mrf.mxu0
  %v9661 = vadd.f32 %v9548, %v9660
  %9662 = vmatprep.mubr.bf16.mxu0 %v778
  %9663 = vmatmul.mubr.bf16.gmra.mxu0 %v777
  %v9664 = vpop.f32.mrf.mxu0
  %v9665 = vadd.f32 %v9552, %v9664
  %v9666 = vpop.f32.mrf.mxu0
  %v9667 = vadd.f32 %v9554, %v9666
  %v9668 = vpop.f32.mrf.mxu0
  %v9669 = vadd.f32 %v9556, %v9668
  %v9670 = vpop.f32.mrf.mxu0
  %v9671 = vadd.f32 %v9558, %v9670
  %9672 = vdwg.mxu0
  %9673 = vmatprep.subr.bf16.mxu0 %v5456
  %9674 = vmatpush1.bf16.msra.mxu0 %v5455
  %9675 = vmatprep.subr.bf16.mxu0 %v5452
  %9676 = vmatpush1.bf16.msra.mxu0 %v5451
  %9677 = vmatprep.subr.bf16.mxu0 %v5448
  %9678 = vmatpush1.bf16.msra.mxu0 %v5447
  %9679 = vmatprep.subr.bf16.mxu0 %v5444
  %9680 = vmatpush1.bf16.msra.mxu0 %v5443
  %9681 = vmatprep.subr.bf16.mxu0 %v5440
  %9682 = vmatpush1.bf16.msra.mxu0 %v5439
  %9683 = vmatprep.subr.bf16.mxu0 %v5436
  %9684 = vmatpush1.bf16.msra.mxu0 %v5435
  %9685 = vmatprep.subr.bf16.mxu0 %v5432
  %9686 = vmatpush1.bf16.msra.mxu0 %v5431
  %9687 = vmatprep.subr.bf16.mxu0 %v5428
  %9688 = vmatpush1.bf16.msra.mxu0 %v5427
  %9689 = vmatprep.subr.bf16.mxu0 %v5488
  %9690 = vmatpush2.bf16.msra.mxu0 %v5487
  %9691 = vmatprep.subr.bf16.mxu0 %v5484
  %9692 = vmatpush2.bf16.msra.mxu0 %v5483
  %9693 = vmatprep.subr.bf16.mxu0 %v5480
  %9694 = vmatpush2.bf16.msra.mxu0 %v5479
  %9695 = vmatprep.subr.bf16.mxu0 %v5476
  %9696 = vmatpush2.bf16.msra.mxu0 %v5475
  %9697 = vmatprep.subr.bf16.mxu0 %v5472
  %9698 = vmatpush2.bf16.msra.mxu0 %v5471
  %9699 = vmatprep.subr.bf16.mxu0 %v5468
  %9700 = vmatpush2.bf16.msra.mxu0 %v5467
  %9701 = vmatprep.subr.bf16.mxu0 %v5464
  %9702 = vmatpush2.bf16.msra.mxu0 %v5463
  %9703 = vmatprep.subr.bf16.mxu0 %v5460
  %9704 = vmatpush2.bf16.msra.mxu0 %v5459
  %9705 = vmatprep.mubr.bf16.mxu0 %v556
  %9706 = vmatmul.mubr.bf16.gmra.mxu0 %v555
  %v9707 = vpop.f32.mrf.mxu0
  %v9708 = vadd.f32 %v9595, %v9707
  %v9709 = vpop.f32.mrf.mxu0
  %v9710 = vadd.f32 %v9597, %v9709
  %v9711 = vpop.f32.mrf.mxu0
  %v9712 = vadd.f32 %v9599, %v9711
  %v9713 = vpop.f32.mrf.mxu0
  %v9714 = vadd.f32 %v9601, %v9713
  %9715 = vmatprep.mubr.bf16.mxu0 %v588
  %9716 = vmatmul.mubr.bf16.gmra.mxu0 %v587
  %v9717 = vpop.f32.mrf.mxu0
  %v9718 = vadd.f32 %v9605, %v9717
  %v9719 = vpop.f32.mrf.mxu0
  %v9720 = vadd.f32 %v9607, %v9719
  %v9721 = vpop.f32.mrf.mxu0
  %v9722 = vadd.f32 %v9609, %v9721
  %v9723 = vpop.f32.mrf.mxu0
  %v9724 = vadd.f32 %v9611, %v9723
  %9725 = vmatprep.mubr.bf16.mxu0 %v620
  %9726 = vmatmul.mubr.bf16.gmra.mxu0 %v619
  %v9727 = vpop.f32.mrf.mxu0
  %v9728 = vadd.f32 %v9615, %v9727
  %v9729 = vpop.f32.mrf.mxu0
  %v9730 = vadd.f32 %v9617, %v9729
  %v9731 = vpop.f32.mrf.mxu0
  %v9732 = vadd.f32 %v9619, %v9731
  %v9733 = vpop.f32.mrf.mxu0
  %v9734 = vadd.f32 %v9621, %v9733
  %9735 = vmatprep.mubr.bf16.mxu0 %v652
  %9736 = vmatmul.mubr.bf16.gmra.mxu0 %v651
  %v9737 = vpop.f32.mrf.mxu0
  %v9738 = vadd.f32 %v9625, %v9737
  %v9739 = vpop.f32.mrf.mxu0
  %v9740 = vadd.f32 %v9627, %v9739
  %v9741 = vpop.f32.mrf.mxu0
  %v9742 = vadd.f32 %v9629, %v9741
  %v9743 = vpop.f32.mrf.mxu0
  %v9744 = vadd.f32 %v9631, %v9743
  %9745 = vmatprep.mubr.bf16.mxu0 %v684
  %9746 = vmatmul.mubr.bf16.gmra.mxu0 %v683
  %v9747 = vpop.f32.mrf.mxu0
  %v9748 = vadd.f32 %v9635, %v9747
  %v9749 = vpop.f32.mrf.mxu0
  %v9750 = vadd.f32 %v9637, %v9749
  %v9751 = vpop.f32.mrf.mxu0
  %v9752 = vadd.f32 %v9639, %v9751
  %v9753 = vpop.f32.mrf.mxu0
  %v9754 = vadd.f32 %v9641, %v9753
  %9755 = vmatprep.mubr.bf16.mxu0 %v716
  %9756 = vmatmul.mubr.bf16.gmra.mxu0 %v715
  %v9757 = vpop.f32.mrf.mxu0
  %v9758 = vadd.f32 %v9645, %v9757
  %v9759 = vpop.f32.mrf.mxu0
  %v9760 = vadd.f32 %v9647, %v9759
  %v9761 = vpop.f32.mrf.mxu0
  %v9762 = vadd.f32 %v9649, %v9761
  %v9763 = vpop.f32.mrf.mxu0
  %v9764 = vadd.f32 %v9651, %v9763
  %9765 = vmatprep.mubr.bf16.mxu0 %v748
  %9766 = vmatmul.mubr.bf16.gmra.mxu0 %v747
  %v9767 = vpop.f32.mrf.mxu0
  %v9768 = vadd.f32 %v9655, %v9767
  %v9769 = vpop.f32.mrf.mxu0
  %v9770 = vadd.f32 %v9657, %v9769
  %v9771 = vpop.f32.mrf.mxu0
  %v9772 = vadd.f32 %v9659, %v9771
  %v9773 = vpop.f32.mrf.mxu0
  %v9774 = vadd.f32 %v9661, %v9773
  %9775 = vmatprep.mubr.bf16.mxu0 %v780
  %9776 = vmatmul.mubr.bf16.gmra.mxu0 %v779
  %v9777 = vpop.f32.mrf.mxu0
  %v9778 = vadd.f32 %v9665, %v9777
  %v9779 = vpop.f32.mrf.mxu0
  %v9780 = vadd.f32 %v9667, %v9779
  %v9781 = vpop.f32.mrf.mxu0
  %v9782 = vadd.f32 %v9669, %v9781
  %v9783 = vpop.f32.mrf.mxu0
  %v9784 = vadd.f32 %v9671, %v9783
  %9785 = vdwg.mxu0
  %9786 = vmatprep.subr.bf16.mxu0 %v5520
  %9787 = vmatpush1.bf16.msra.mxu0 %v5519
  %9788 = vmatprep.subr.bf16.mxu0 %v5516
  %9789 = vmatpush1.bf16.msra.mxu0 %v5515
  %9790 = vmatprep.subr.bf16.mxu0 %v5512
  %9791 = vmatpush1.bf16.msra.mxu0 %v5511
  %9792 = vmatprep.subr.bf16.mxu0 %v5508
  %9793 = vmatpush1.bf16.msra.mxu0 %v5507
  %9794 = vmatprep.subr.bf16.mxu0 %v5504
  %9795 = vmatpush1.bf16.msra.mxu0 %v5503
  %9796 = vmatprep.subr.bf16.mxu0 %v5500
  %9797 = vmatpush1.bf16.msra.mxu0 %v5499
  %9798 = vmatprep.subr.bf16.mxu0 %v5496
  %9799 = vmatpush1.bf16.msra.mxu0 %v5495
  %9800 = vmatprep.subr.bf16.mxu0 %v5492
  %9801 = vmatpush1.bf16.msra.mxu0 %v5491
  %9802 = vmatprep.subr.bf16.mxu0 %v5552
  %9803 = vmatpush2.bf16.msra.mxu0 %v5551
  %9804 = vmatprep.subr.bf16.mxu0 %v5548
  %9805 = vmatpush2.bf16.msra.mxu0 %v5547
  %9806 = vmatprep.subr.bf16.mxu0 %v5544
  %9807 = vmatpush2.bf16.msra.mxu0 %v5543
  %9808 = vmatprep.subr.bf16.mxu0 %v5540
  %9809 = vmatpush2.bf16.msra.mxu0 %v5539
  %9810 = vmatprep.subr.bf16.mxu0 %v5536
  %9811 = vmatpush2.bf16.msra.mxu0 %v5535
  %9812 = vmatprep.subr.bf16.mxu0 %v5532
  %9813 = vmatpush2.bf16.msra.mxu0 %v5531
  %9814 = vmatprep.subr.bf16.mxu0 %v5528
  %9815 = vmatpush2.bf16.msra.mxu0 %v5527
  %9816 = vmatprep.subr.bf16.mxu0 %v5524
  %9817 = vmatpush2.bf16.msra.mxu0 %v5523
  %9818 = vmatprep.mubr.bf16.mxu0 %v558
  %9819 = vmatmul.mubr.bf16.gmra.mxu0 %v557
  %v9820 = vpop.f32.mrf.mxu0
  %v9821 = vadd.f32 %v9708, %v9820
  %v9822 = vpop.f32.mrf.mxu0
  %v9823 = vadd.f32 %v9710, %v9822
  %v9824 = vpop.f32.mrf.mxu0
  %v9825 = vadd.f32 %v9712, %v9824
  %v9826 = vpop.f32.mrf.mxu0
  %v9827 = vadd.f32 %v9714, %v9826
  %9828 = vmatprep.mubr.bf16.mxu0 %v590
  %9829 = vmatmul.mubr.bf16.gmra.mxu0 %v589
  %v9830 = vpop.f32.mrf.mxu0
  %v9831 = vadd.f32 %v9718, %v9830
  %v9832 = vpop.f32.mrf.mxu0
  %v9833 = vadd.f32 %v9720, %v9832
  %v9834 = vpop.f32.mrf.mxu0
  %v9835 = vadd.f32 %v9722, %v9834
  %v9836 = vpop.f32.mrf.mxu0
  %v9837 = vadd.f32 %v9724, %v9836
  %9838 = vmatprep.mubr.bf16.mxu0 %v622
  %9839 = vmatmul.mubr.bf16.gmra.mxu0 %v621
  %v9840 = vpop.f32.mrf.mxu0
  %v9841 = vadd.f32 %v9728, %v9840
  %v9842 = vpop.f32.mrf.mxu0
  %v9843 = vadd.f32 %v9730, %v9842
  %v9844 = vpop.f32.mrf.mxu0
  %v9845 = vadd.f32 %v9732, %v9844
  %v9846 = vpop.f32.mrf.mxu0
  %v9847 = vadd.f32 %v9734, %v9846
  %9848 = vmatprep.mubr.bf16.mxu0 %v654
  %9849 = vmatmul.mubr.bf16.gmra.mxu0 %v653
  %v9850 = vpop.f32.mrf.mxu0
  %v9851 = vadd.f32 %v9738, %v9850
  %v9852 = vpop.f32.mrf.mxu0
  %v9853 = vadd.f32 %v9740, %v9852
  %v9854 = vpop.f32.mrf.mxu0
  %v9855 = vadd.f32 %v9742, %v9854
  %v9856 = vpop.f32.mrf.mxu0
  %v9857 = vadd.f32 %v9744, %v9856
  %9858 = vmatprep.mubr.bf16.mxu0 %v686
  %9859 = vmatmul.mubr.bf16.gmra.mxu0 %v685
  %v9860 = vpop.f32.mrf.mxu0
  %v9861 = vadd.f32 %v9748, %v9860
  %v9862 = vpop.f32.mrf.mxu0
  %v9863 = vadd.f32 %v9750, %v9862
  %v9864 = vpop.f32.mrf.mxu0
  %v9865 = vadd.f32 %v9752, %v9864
  %v9866 = vpop.f32.mrf.mxu0
  %v9867 = vadd.f32 %v9754, %v9866
  %9868 = vmatprep.mubr.bf16.mxu0 %v718
  %9869 = vmatmul.mubr.bf16.gmra.mxu0 %v717
  %v9870 = vpop.f32.mrf.mxu0
  %v9871 = vadd.f32 %v9758, %v9870
  %v9872 = vpop.f32.mrf.mxu0
  %v9873 = vadd.f32 %v9760, %v9872
  %v9874 = vpop.f32.mrf.mxu0
  %v9875 = vadd.f32 %v9762, %v9874
  %v9876 = vpop.f32.mrf.mxu0
  %v9877 = vadd.f32 %v9764, %v9876
  %9878 = vmatprep.mubr.bf16.mxu0 %v750
  %9879 = vmatmul.mubr.bf16.gmra.mxu0 %v749
  %v9880 = vpop.f32.mrf.mxu0
  %v9881 = vadd.f32 %v9768, %v9880
  %v9882 = vpop.f32.mrf.mxu0
  %v9883 = vadd.f32 %v9770, %v9882
  %v9884 = vpop.f32.mrf.mxu0
  %v9885 = vadd.f32 %v9772, %v9884
  %v9886 = vpop.f32.mrf.mxu0
  %v9887 = vadd.f32 %v9774, %v9886
  %9888 = vmatprep.mubr.bf16.mxu0 %v782
  %9889 = vmatmul.mubr.bf16.gmra.mxu0 %v781
  %v9890 = vpop.f32.mrf.mxu0
  %v9891 = vadd.f32 %v9778, %v9890
  %v9892 = vpop.f32.mrf.mxu0
  %v9893 = vadd.f32 %v9780, %v9892
  %v9894 = vpop.f32.mrf.mxu0
  %v9895 = vadd.f32 %v9782, %v9894
  %v9896 = vpop.f32.mrf.mxu0
  %v9897 = vadd.f32 %v9784, %v9896
  %9898 = vdwg.mxu0
  %9899 = vmatprep.subr.bf16.mxu0 %v5584
  %9900 = vmatpush1.bf16.msra.mxu0 %v5583
  %9901 = vmatprep.subr.bf16.mxu0 %v5580
  %9902 = vmatpush1.bf16.msra.mxu0 %v5579
  %9903 = vmatprep.subr.bf16.mxu0 %v5576
  %9904 = vmatpush1.bf16.msra.mxu0 %v5575
  %9905 = vmatprep.subr.bf16.mxu0 %v5572
  %9906 = vmatpush1.bf16.msra.mxu0 %v5571
  %9907 = vmatprep.subr.bf16.mxu0 %v5568
  %9908 = vmatpush1.bf16.msra.mxu0 %v5567
  %9909 = vmatprep.subr.bf16.mxu0 %v5564
  %9910 = vmatpush1.bf16.msra.mxu0 %v5563
  %9911 = vmatprep.subr.bf16.mxu0 %v5560
  %9912 = vmatpush1.bf16.msra.mxu0 %v5559
  %9913 = vmatprep.subr.bf16.mxu0 %v5556
  %9914 = vmatpush1.bf16.msra.mxu0 %v5555
  %9915 = vmatprep.subr.bf16.mxu0 %v5616
  %9916 = vmatpush2.bf16.msra.mxu0 %v5615
  %9917 = vmatprep.subr.bf16.mxu0 %v5612
  %9918 = vmatpush2.bf16.msra.mxu0 %v5611
  %9919 = vmatprep.subr.bf16.mxu0 %v5608
  %9920 = vmatpush2.bf16.msra.mxu0 %v5607
  %9921 = vmatprep.subr.bf16.mxu0 %v5604
  %9922 = vmatpush2.bf16.msra.mxu0 %v5603
  %9923 = vmatprep.subr.bf16.mxu0 %v5600
  %9924 = vmatpush2.bf16.msra.mxu0 %v5599
  %9925 = vmatprep.subr.bf16.mxu0 %v5596
  %9926 = vmatpush2.bf16.msra.mxu0 %v5595
  %9927 = vmatprep.subr.bf16.mxu0 %v5592
  %9928 = vmatpush2.bf16.msra.mxu0 %v5591
  %9929 = vmatprep.subr.bf16.mxu0 %v5588
  %9930 = vmatpush2.bf16.msra.mxu0 %v5587
  %9931 = vmatprep.mubr.bf16.mxu0 %v560
  %9932 = vmatmul.mubr.bf16.gmra.mxu0 %v559
  %v9933 = vpop.f32.mrf.mxu0
  %v9934 = vadd.f32 %v9821, %v9933
  %v9935 = vpop.f32.mrf.mxu0
  %v9936 = vadd.f32 %v9823, %v9935
  %v9937 = vpop.f32.mrf.mxu0
  %v9938 = vadd.f32 %v9825, %v9937
  %v9939 = vpop.f32.mrf.mxu0
  %v9940 = vadd.f32 %v9827, %v9939
  %9941 = vmatprep.mubr.bf16.mxu0 %v592
  %9942 = vmatmul.mubr.bf16.gmra.mxu0 %v591
  %v9943 = vpop.f32.mrf.mxu0
  %v9944 = vadd.f32 %v9831, %v9943
  %v9945 = vpop.f32.mrf.mxu0
  %v9946 = vadd.f32 %v9833, %v9945
  %v9947 = vpop.f32.mrf.mxu0
  %v9948 = vadd.f32 %v9835, %v9947
  %v9949 = vpop.f32.mrf.mxu0
  %v9950 = vadd.f32 %v9837, %v9949
  %9951 = vmatprep.mubr.bf16.mxu0 %v624
  %9952 = vmatmul.mubr.bf16.gmra.mxu0 %v623
  %v9953 = vpop.f32.mrf.mxu0
  %v9954 = vadd.f32 %v9841, %v9953
  %v9955 = vpop.f32.mrf.mxu0
  %v9956 = vadd.f32 %v9843, %v9955
  %v9957 = vpop.f32.mrf.mxu0
  %v9958 = vadd.f32 %v9845, %v9957
  %v9959 = vpop.f32.mrf.mxu0
  %v9960 = vadd.f32 %v9847, %v9959
  %9961 = vmatprep.mubr.bf16.mxu0 %v656
  %9962 = vmatmul.mubr.bf16.gmra.mxu0 %v655
  %v9963 = vpop.f32.mrf.mxu0
  %v9964 = vadd.f32 %v9851, %v9963
  %v9965 = vpop.f32.mrf.mxu0
  %v9966 = vadd.f32 %v9853, %v9965
  %v9967 = vpop.f32.mrf.mxu0
  %v9968 = vadd.f32 %v9855, %v9967
  %v9969 = vpop.f32.mrf.mxu0
  %v9970 = vadd.f32 %v9857, %v9969
  %9971 = vmatprep.mubr.bf16.mxu0 %v688
  %9972 = vmatmul.mubr.bf16.gmra.mxu0 %v687
  %v9973 = vpop.f32.mrf.mxu0
  %v9974 = vadd.f32 %v9861, %v9973
  %v9975 = vpop.f32.mrf.mxu0
  %v9976 = vadd.f32 %v9863, %v9975
  %v9977 = vpop.f32.mrf.mxu0
  %v9978 = vadd.f32 %v9865, %v9977
  %v9979 = vpop.f32.mrf.mxu0
  %v9980 = vadd.f32 %v9867, %v9979
  %9981 = vmatprep.mubr.bf16.mxu0 %v720
  %9982 = vmatmul.mubr.bf16.gmra.mxu0 %v719
  %v9983 = vpop.f32.mrf.mxu0
  %v9984 = vadd.f32 %v9871, %v9983
  %v9985 = vpop.f32.mrf.mxu0
  %v9986 = vadd.f32 %v9873, %v9985
  %v9987 = vpop.f32.mrf.mxu0
  %v9988 = vadd.f32 %v9875, %v9987
  %v9989 = vpop.f32.mrf.mxu0
  %v9990 = vadd.f32 %v9877, %v9989
  %9991 = vmatprep.mubr.bf16.mxu0 %v752
  %9992 = vmatmul.mubr.bf16.gmra.mxu0 %v751
  %v9993 = vpop.f32.mrf.mxu0
  %v9994 = vadd.f32 %v9881, %v9993
  %v9995 = vpop.f32.mrf.mxu0
  %v9996 = vadd.f32 %v9883, %v9995
  %v9997 = vpop.f32.mrf.mxu0
  %v9998 = vadd.f32 %v9885, %v9997
  %v9999 = vpop.f32.mrf.mxu0
  %v10000 = vadd.f32 %v9887, %v9999
  %10001 = vmatprep.mubr.bf16.mxu0 %v784
  %10002 = vmatmul.mubr.bf16.gmra.mxu0 %v783
  %v10003 = vpop.f32.mrf.mxu0
  %v10004 = vadd.f32 %v9891, %v10003
  %v10005 = vpop.f32.mrf.mxu0
  %v10006 = vadd.f32 %v9893, %v10005
  %v10007 = vpop.f32.mrf.mxu0
  %v10008 = vadd.f32 %v9895, %v10007
  %v10009 = vpop.f32.mrf.mxu0
  %v10010 = vadd.f32 %v9897, %v10009
  %10011 = vdwg.mxu0
  %10012 = vmatprep.subr.bf16.mxu0 %v5648
  %10013 = vmatpush1.bf16.msra.mxu0 %v5647
  %10014 = vmatprep.subr.bf16.mxu0 %v5644
  %10015 = vmatpush1.bf16.msra.mxu0 %v5643
  %10016 = vmatprep.subr.bf16.mxu0 %v5640
  %10017 = vmatpush1.bf16.msra.mxu0 %v5639
  %10018 = vmatprep.subr.bf16.mxu0 %v5636
  %10019 = vmatpush1.bf16.msra.mxu0 %v5635
  %10020 = vmatprep.subr.bf16.mxu0 %v5632
  %10021 = vmatpush1.bf16.msra.mxu0 %v5631
  %10022 = vmatprep.subr.bf16.mxu0 %v5628
  %10023 = vmatpush1.bf16.msra.mxu0 %v5627
  %10024 = vmatprep.subr.bf16.mxu0 %v5624
  %10025 = vmatpush1.bf16.msra.mxu0 %v5623
  %10026 = vmatprep.subr.bf16.mxu0 %v5620
  %10027 = vmatpush1.bf16.msra.mxu0 %v5619
  %10028 = vmatprep.subr.bf16.mxu0 %v5680
  %10029 = vmatpush2.bf16.msra.mxu0 %v5679
  %10030 = vmatprep.subr.bf16.mxu0 %v5676
  %10031 = vmatpush2.bf16.msra.mxu0 %v5675
  %10032 = vmatprep.subr.bf16.mxu0 %v5672
  %10033 = vmatpush2.bf16.msra.mxu0 %v5671
  %10034 = vmatprep.subr.bf16.mxu0 %v5668
  %10035 = vmatpush2.bf16.msra.mxu0 %v5667
  %10036 = vmatprep.subr.bf16.mxu0 %v5664
  %10037 = vmatpush2.bf16.msra.mxu0 %v5663
  %10038 = vmatprep.subr.bf16.mxu0 %v5660
  %10039 = vmatpush2.bf16.msra.mxu0 %v5659
  %10040 = vmatprep.subr.bf16.mxu0 %v5656
  %10041 = vmatpush2.bf16.msra.mxu0 %v5655
  %10042 = vmatprep.subr.bf16.mxu0 %v5652
  %10043 = vmatpush2.bf16.msra.mxu0 %v5651
  %10044 = vmatprep.mubr.bf16.mxu0 %v562
  %10045 = vmatmul.mubr.bf16.gmra.mxu0 %v561
  %v10046 = vpop.f32.mrf.mxu0
  %v10047 = vadd.f32 %v9934, %v10046
  %v10048 = vpop.f32.mrf.mxu0
  %v10049 = vadd.f32 %v9936, %v10048
  %v10050 = vpop.f32.mrf.mxu0
  %v10051 = vadd.f32 %v9938, %v10050
  %v10052 = vpop.f32.mrf.mxu0
  %v10053 = vadd.f32 %v9940, %v10052
  %10054 = vmatprep.mubr.bf16.mxu0 %v594
  %10055 = vmatmul.mubr.bf16.gmra.mxu0 %v593
  %v10056 = vpop.f32.mrf.mxu0
  %v10057 = vadd.f32 %v9944, %v10056
  %v10058 = vpop.f32.mrf.mxu0
  %v10059 = vadd.f32 %v9946, %v10058
  %v10060 = vpop.f32.mrf.mxu0
  %v10061 = vadd.f32 %v9948, %v10060
  %v10062 = vpop.f32.mrf.mxu0
  %v10063 = vadd.f32 %v9950, %v10062
  %10064 = vmatprep.mubr.bf16.mxu0 %v626
  %10065 = vmatmul.mubr.bf16.gmra.mxu0 %v625
  %v10066 = vpop.f32.mrf.mxu0
  %v10067 = vadd.f32 %v9954, %v10066
  %v10068 = vpop.f32.mrf.mxu0
  %v10069 = vadd.f32 %v9956, %v10068
  %v10070 = vpop.f32.mrf.mxu0
  %v10071 = vadd.f32 %v9958, %v10070
  %v10072 = vpop.f32.mrf.mxu0
  %v10073 = vadd.f32 %v9960, %v10072
  %10074 = vmatprep.mubr.bf16.mxu0 %v658
  %10075 = vmatmul.mubr.bf16.gmra.mxu0 %v657
  %v10076 = vpop.f32.mrf.mxu0
  %v10077 = vadd.f32 %v9964, %v10076
  %v10078 = vpop.f32.mrf.mxu0
  %v10079 = vadd.f32 %v9966, %v10078
  %v10080 = vpop.f32.mrf.mxu0
  %v10081 = vadd.f32 %v9968, %v10080
  %v10082 = vpop.f32.mrf.mxu0
  %v10083 = vadd.f32 %v9970, %v10082
  %10084 = vmatprep.mubr.bf16.mxu0 %v690
  %10085 = vmatmul.mubr.bf16.gmra.mxu0 %v689
  %v10086 = vpop.f32.mrf.mxu0
  %v10087 = vadd.f32 %v9974, %v10086
  %v10088 = vpop.f32.mrf.mxu0
  %v10089 = vadd.f32 %v9976, %v10088
  %v10090 = vpop.f32.mrf.mxu0
  %v10091 = vadd.f32 %v9978, %v10090
  %v10092 = vpop.f32.mrf.mxu0
  %v10093 = vadd.f32 %v9980, %v10092
  %10094 = vmatprep.mubr.bf16.mxu0 %v722
  %10095 = vmatmul.mubr.bf16.gmra.mxu0 %v721
  %v10096 = vpop.f32.mrf.mxu0
  %v10097 = vadd.f32 %v9984, %v10096
  %v10098 = vpop.f32.mrf.mxu0
  %v10099 = vadd.f32 %v9986, %v10098
  %v10100 = vpop.f32.mrf.mxu0
  %v10101 = vadd.f32 %v9988, %v10100
  %v10102 = vpop.f32.mrf.mxu0
  %v10103 = vadd.f32 %v9990, %v10102
  %10104 = vmatprep.mubr.bf16.mxu0 %v754
  %10105 = vmatmul.mubr.bf16.gmra.mxu0 %v753
  %v10106 = vpop.f32.mrf.mxu0
  %v10107 = vadd.f32 %v9994, %v10106
  %v10108 = vpop.f32.mrf.mxu0
  %v10109 = vadd.f32 %v9996, %v10108
  %v10110 = vpop.f32.mrf.mxu0
  %v10111 = vadd.f32 %v9998, %v10110
  %v10112 = vpop.f32.mrf.mxu0
  %v10113 = vadd.f32 %v10000, %v10112
  %10114 = vmatprep.mubr.bf16.mxu0 %v786
  %10115 = vmatmul.mubr.bf16.gmra.mxu0 %v785
  %v10116 = vpop.f32.mrf.mxu0
  %v10117 = vadd.f32 %v10004, %v10116
  %v10118 = vpop.f32.mrf.mxu0
  %v10119 = vadd.f32 %v10006, %v10118
  %v10120 = vpop.f32.mrf.mxu0
  %v10121 = vadd.f32 %v10008, %v10120
  %v10122 = vpop.f32.mrf.mxu0
  %v10123 = vadd.f32 %v10010, %v10122
  %10124 = vdwg.mxu0
  %10125 = vmatprep.subr.bf16.mxu0 %v5712
  %10126 = vmatpush1.bf16.msra.mxu0 %v5711
  %10127 = vmatprep.subr.bf16.mxu0 %v5708
  %10128 = vmatpush1.bf16.msra.mxu0 %v5707
  %10129 = vmatprep.subr.bf16.mxu0 %v5704
  %10130 = vmatpush1.bf16.msra.mxu0 %v5703
  %10131 = vmatprep.subr.bf16.mxu0 %v5700
  %10132 = vmatpush1.bf16.msra.mxu0 %v5699
  %10133 = vmatprep.subr.bf16.mxu0 %v5696
  %10134 = vmatpush1.bf16.msra.mxu0 %v5695
  %10135 = vmatprep.subr.bf16.mxu0 %v5692
  %10136 = vmatpush1.bf16.msra.mxu0 %v5691
  %10137 = vmatprep.subr.bf16.mxu0 %v5688
  %10138 = vmatpush1.bf16.msra.mxu0 %v5687
  %10139 = vmatprep.subr.bf16.mxu0 %v5684
  %10140 = vmatpush1.bf16.msra.mxu0 %v5683
  %10141 = vmatprep.subr.bf16.mxu0 %v5744
  %10142 = vmatpush2.bf16.msra.mxu0 %v5743
  %10143 = vmatprep.subr.bf16.mxu0 %v5740
  %10144 = vmatpush2.bf16.msra.mxu0 %v5739
  %10145 = vmatprep.subr.bf16.mxu0 %v5736
  %10146 = vmatpush2.bf16.msra.mxu0 %v5735
  %10147 = vmatprep.subr.bf16.mxu0 %v5732
  %10148 = vmatpush2.bf16.msra.mxu0 %v5731
  %10149 = vmatprep.subr.bf16.mxu0 %v5728
  %10150 = vmatpush2.bf16.msra.mxu0 %v5727
  %10151 = vmatprep.subr.bf16.mxu0 %v5724
  %10152 = vmatpush2.bf16.msra.mxu0 %v5723
  %10153 = vmatprep.subr.bf16.mxu0 %v5720
  %10154 = vmatpush2.bf16.msra.mxu0 %v5719
  %10155 = vmatprep.subr.bf16.mxu0 %v5716
  %10156 = vmatpush2.bf16.msra.mxu0 %v5715
  %10157 = vmatprep.mubr.bf16.mxu0 %v564
  %10158 = vmatmul.mubr.bf16.gmra.mxu0 %v563
  %v10159 = vpop.f32.mrf.mxu0
  %v10160 = vadd.f32 %v10047, %v10159
  %v10161 = vpop.f32.mrf.mxu0
  %v10162 = vadd.f32 %v10049, %v10161
  %v10163 = vpop.f32.mrf.mxu0
  %v10164 = vadd.f32 %v10051, %v10163
  %v10165 = vpop.f32.mrf.mxu0
  %v10166 = vadd.f32 %v10053, %v10165
  %10167 = vmatprep.mubr.bf16.mxu0 %v596
  %10168 = vmatmul.mubr.bf16.gmra.mxu0 %v595
  %v10169 = vpop.f32.mrf.mxu0
  %v10170 = vadd.f32 %v10057, %v10169
  %v10171 = vpop.f32.mrf.mxu0
  %v10172 = vadd.f32 %v10059, %v10171
  %v10173 = vpop.f32.mrf.mxu0
  %v10174 = vadd.f32 %v10061, %v10173
  %v10175 = vpop.f32.mrf.mxu0
  %v10176 = vadd.f32 %v10063, %v10175
  %10177 = vmatprep.mubr.bf16.mxu0 %v628
  %10178 = vmatmul.mubr.bf16.gmra.mxu0 %v627
  %v10179 = vpop.f32.mrf.mxu0
  %v10180 = vadd.f32 %v10067, %v10179
  %v10181 = vpop.f32.mrf.mxu0
  %v10182 = vadd.f32 %v10069, %v10181
  %v10183 = vpop.f32.mrf.mxu0
  %v10184 = vadd.f32 %v10071, %v10183
  %v10185 = vpop.f32.mrf.mxu0
  %v10186 = vadd.f32 %v10073, %v10185
  %10187 = vmatprep.mubr.bf16.mxu0 %v660
  %10188 = vmatmul.mubr.bf16.gmra.mxu0 %v659
  %v10189 = vpop.f32.mrf.mxu0
  %v10190 = vadd.f32 %v10077, %v10189
  %v10191 = vpop.f32.mrf.mxu0
  %v10192 = vadd.f32 %v10079, %v10191
  %v10193 = vpop.f32.mrf.mxu0
  %v10194 = vadd.f32 %v10081, %v10193
  %v10195 = vpop.f32.mrf.mxu0
  %v10196 = vadd.f32 %v10083, %v10195
  %10197 = vmatprep.mubr.bf16.mxu0 %v692
  %10198 = vmatmul.mubr.bf16.gmra.mxu0 %v691
  %v10199 = vpop.f32.mrf.mxu0
  %v10200 = vadd.f32 %v10087, %v10199
  %v10201 = vpop.f32.mrf.mxu0
  %v10202 = vadd.f32 %v10089, %v10201
  %v10203 = vpop.f32.mrf.mxu0
  %v10204 = vadd.f32 %v10091, %v10203
  %v10205 = vpop.f32.mrf.mxu0
  %v10206 = vadd.f32 %v10093, %v10205
  %10207 = vmatprep.mubr.bf16.mxu0 %v724
  %10208 = vmatmul.mubr.bf16.gmra.mxu0 %v723
  %v10209 = vpop.f32.mrf.mxu0
  %v10210 = vadd.f32 %v10097, %v10209
  %v10211 = vpop.f32.mrf.mxu0
  %v10212 = vadd.f32 %v10099, %v10211
  %v10213 = vpop.f32.mrf.mxu0
  %v10214 = vadd.f32 %v10101, %v10213
  %v10215 = vpop.f32.mrf.mxu0
  %v10216 = vadd.f32 %v10103, %v10215
  %10217 = vmatprep.mubr.bf16.mxu0 %v756
  %10218 = vmatmul.mubr.bf16.gmra.mxu0 %v755
  %v10219 = vpop.f32.mrf.mxu0
  %v10220 = vadd.f32 %v10107, %v10219
  %v10221 = vpop.f32.mrf.mxu0
  %v10222 = vadd.f32 %v10109, %v10221
  %v10223 = vpop.f32.mrf.mxu0
  %v10224 = vadd.f32 %v10111, %v10223
  %v10225 = vpop.f32.mrf.mxu0
  %v10226 = vadd.f32 %v10113, %v10225
  %10227 = vmatprep.mubr.bf16.mxu0 %v788
  %10228 = vmatmul.mubr.bf16.gmra.mxu0 %v787
  %v10229 = vpop.f32.mrf.mxu0
  %v10230 = vadd.f32 %v10117, %v10229
  %v10231 = vpop.f32.mrf.mxu0
  %v10232 = vadd.f32 %v10119, %v10231
  %v10233 = vpop.f32.mrf.mxu0
  %v10234 = vadd.f32 %v10121, %v10233
  %v10235 = vpop.f32.mrf.mxu0
  %v10236 = vadd.f32 %v10123, %v10235
  %10237 = vdwg.mxu0
  %10238 = vmatprep.subr.bf16.mxu0 %v5776
  %10239 = vmatpush1.bf16.msra.mxu0 %v5775
  %10240 = vmatprep.subr.bf16.mxu0 %v5772
  %10241 = vmatpush1.bf16.msra.mxu0 %v5771
  %10242 = vmatprep.subr.bf16.mxu0 %v5768
  %10243 = vmatpush1.bf16.msra.mxu0 %v5767
  %10244 = vmatprep.subr.bf16.mxu0 %v5764
  %10245 = vmatpush1.bf16.msra.mxu0 %v5763
  %10246 = vmatprep.subr.bf16.mxu0 %v5760
  %10247 = vmatpush1.bf16.msra.mxu0 %v5759
  %10248 = vmatprep.subr.bf16.mxu0 %v5756
  %10249 = vmatpush1.bf16.msra.mxu0 %v5755
  %10250 = vmatprep.subr.bf16.mxu0 %v5752
  %10251 = vmatpush1.bf16.msra.mxu0 %v5751
  %10252 = vmatprep.subr.bf16.mxu0 %v5748
  %10253 = vmatpush1.bf16.msra.mxu0 %v5747
  %10254 = vmatprep.subr.bf16.mxu0 %v5808
  %10255 = vmatpush2.bf16.msra.mxu0 %v5807
  %10256 = vmatprep.subr.bf16.mxu0 %v5804
  %10257 = vmatpush2.bf16.msra.mxu0 %v5803
  %10258 = vmatprep.subr.bf16.mxu0 %v5800
  %10259 = vmatpush2.bf16.msra.mxu0 %v5799
  %10260 = vmatprep.subr.bf16.mxu0 %v5796
  %10261 = vmatpush2.bf16.msra.mxu0 %v5795
  %10262 = vmatprep.subr.bf16.mxu0 %v5792
  %10263 = vmatpush2.bf16.msra.mxu0 %v5791
  %10264 = vmatprep.subr.bf16.mxu0 %v5788
  %10265 = vmatpush2.bf16.msra.mxu0 %v5787
  %10266 = vmatprep.subr.bf16.mxu0 %v5784
  %10267 = vmatpush2.bf16.msra.mxu0 %v5783
  %10268 = vmatprep.subr.bf16.mxu0 %v5780
  %10269 = vmatpush2.bf16.msra.mxu0 %v5779
  %10270 = vmatprep.mubr.bf16.mxu0 %v566
  %10271 = vmatmul.mubr.bf16.gmra.mxu0 %v565
  %v10272 = vpop.f32.mrf.mxu0
  %v10273 = vadd.f32 %v10160, %v10272
  %v10274 = vpop.f32.mrf.mxu0
  %v10275 = vadd.f32 %v10162, %v10274
  %v10276 = vpop.f32.mrf.mxu0
  %v10277 = vadd.f32 %v10164, %v10276
  %v10278 = vpop.f32.mrf.mxu0
  %v10279 = vadd.f32 %v10166, %v10278
  %10280 = vmatprep.mubr.bf16.mxu0 %v598
  %10281 = vmatmul.mubr.bf16.gmra.mxu0 %v597
  %v10282 = vpop.f32.mrf.mxu0
  %v10283 = vadd.f32 %v10170, %v10282
  %v10284 = vpop.f32.mrf.mxu0
  %v10285 = vadd.f32 %v10172, %v10284
  %v10286 = vpop.f32.mrf.mxu0
  %v10287 = vadd.f32 %v10174, %v10286
  %v10288 = vpop.f32.mrf.mxu0
  %v10289 = vadd.f32 %v10176, %v10288
  %10290 = vmatprep.mubr.bf16.mxu0 %v630
  %10291 = vmatmul.mubr.bf16.gmra.mxu0 %v629
  %v10292 = vpop.f32.mrf.mxu0
  %v10293 = vadd.f32 %v10180, %v10292
  %v10294 = vpop.f32.mrf.mxu0
  %v10295 = vadd.f32 %v10182, %v10294
  %v10296 = vpop.f32.mrf.mxu0
  %v10297 = vadd.f32 %v10184, %v10296
  %v10298 = vpop.f32.mrf.mxu0
  %v10299 = vadd.f32 %v10186, %v10298
  %10300 = vmatprep.mubr.bf16.mxu0 %v662
  %10301 = vmatmul.mubr.bf16.gmra.mxu0 %v661
  %v10302 = vpop.f32.mrf.mxu0
  %v10303 = vadd.f32 %v10190, %v10302
  %v10304 = vpop.f32.mrf.mxu0
  %v10305 = vadd.f32 %v10192, %v10304
  %v10306 = vpop.f32.mrf.mxu0
  %v10307 = vadd.f32 %v10194, %v10306
  %v10308 = vpop.f32.mrf.mxu0
  %v10309 = vadd.f32 %v10196, %v10308
  %10310 = vmatprep.mubr.bf16.mxu0 %v694
  %10311 = vmatmul.mubr.bf16.gmra.mxu0 %v693
  %v10312 = vpop.f32.mrf.mxu0
  %v10313 = vadd.f32 %v10200, %v10312
  %v10314 = vpop.f32.mrf.mxu0
  %v10315 = vadd.f32 %v10202, %v10314
  %v10316 = vpop.f32.mrf.mxu0
  %v10317 = vadd.f32 %v10204, %v10316
  %v10318 = vpop.f32.mrf.mxu0
  %v10319 = vadd.f32 %v10206, %v10318
  %10320 = vmatprep.mubr.bf16.mxu0 %v726
  %10321 = vmatmul.mubr.bf16.gmra.mxu0 %v725
  %v10322 = vpop.f32.mrf.mxu0
  %v10323 = vadd.f32 %v10210, %v10322
  %v10324 = vpop.f32.mrf.mxu0
  %v10325 = vadd.f32 %v10212, %v10324
  %v10326 = vpop.f32.mrf.mxu0
  %v10327 = vadd.f32 %v10214, %v10326
  %v10328 = vpop.f32.mrf.mxu0
  %v10329 = vadd.f32 %v10216, %v10328
  %10330 = vmatprep.mubr.bf16.mxu0 %v758
  %10331 = vmatmul.mubr.bf16.gmra.mxu0 %v757
  %v10332 = vpop.f32.mrf.mxu0
  %v10333 = vadd.f32 %v10220, %v10332
  %v10334 = vpop.f32.mrf.mxu0
  %v10335 = vadd.f32 %v10222, %v10334
  %v10336 = vpop.f32.mrf.mxu0
  %v10337 = vadd.f32 %v10224, %v10336
  %v10338 = vpop.f32.mrf.mxu0
  %v10339 = vadd.f32 %v10226, %v10338
  %10340 = vmatprep.mubr.bf16.mxu0 %v790
  %10341 = vmatmul.mubr.bf16.gmra.mxu0 %v789
  %v10342 = vpop.f32.mrf.mxu0
  %v10343 = vadd.f32 %v10230, %v10342
  %v10344 = vpop.f32.mrf.mxu0
  %v10345 = vadd.f32 %v10232, %v10344
  %v10346 = vpop.f32.mrf.mxu0
  %v10347 = vadd.f32 %v10234, %v10346
  %v10348 = vpop.f32.mrf.mxu0
  %v10349 = vadd.f32 %v10236, %v10348
  %10350 = vdwg.mxu0
  %10351 = vmatprep.subr.bf16.mxu0 %v5840
  %10352 = vmatpush1.bf16.msra.mxu0 %v5839
  %10353 = vmatprep.subr.bf16.mxu0 %v5836
  %10354 = vmatpush1.bf16.msra.mxu0 %v5835
  %10355 = vmatprep.subr.bf16.mxu0 %v5832
  %10356 = vmatpush1.bf16.msra.mxu0 %v5831
  %10357 = vmatprep.subr.bf16.mxu0 %v5828
  %10358 = vmatpush1.bf16.msra.mxu0 %v5827
  %10359 = vmatprep.subr.bf16.mxu0 %v5824
  %10360 = vmatpush1.bf16.msra.mxu0 %v5823
  %10361 = vmatprep.subr.bf16.mxu0 %v5820
  %10362 = vmatpush1.bf16.msra.mxu0 %v5819
  %10363 = vmatprep.subr.bf16.mxu0 %v5816
  %10364 = vmatpush1.bf16.msra.mxu0 %v5815
  %10365 = vmatprep.subr.bf16.mxu0 %v5812
  %10366 = vmatpush1.bf16.msra.mxu0 %v5811
  %10367 = vmatprep.subr.bf16.mxu0 %v5872
  %10368 = vmatpush2.bf16.msra.mxu0 %v5871
  %10369 = vmatprep.subr.bf16.mxu0 %v5868
  %10370 = vmatpush2.bf16.msra.mxu0 %v5867
  %10371 = vmatprep.subr.bf16.mxu0 %v5864
  %10372 = vmatpush2.bf16.msra.mxu0 %v5863
  %10373 = vmatprep.subr.bf16.mxu0 %v5860
  %10374 = vmatpush2.bf16.msra.mxu0 %v5859
  %10375 = vmatprep.subr.bf16.mxu0 %v5856
  %10376 = vmatpush2.bf16.msra.mxu0 %v5855
  %10377 = vmatprep.subr.bf16.mxu0 %v5852
  %10378 = vmatpush2.bf16.msra.mxu0 %v5851
  %10379 = vmatprep.subr.bf16.mxu0 %v5848
  %10380 = vmatpush2.bf16.msra.mxu0 %v5847
  %10381 = vmatprep.subr.bf16.mxu0 %v5844
  %10382 = vmatpush2.bf16.msra.mxu0 %v5843
  %10383 = vmatprep.mubr.bf16.mxu0 %v568
  %10384 = vmatmul.mubr.bf16.gmra.mxu0 %v567
  %v10385 = vpop.f32.mrf.mxu0
  %v10386 = vadd.f32 %v10273, %v10385
  %v10387 = vpop.f32.mrf.mxu0
  %v10388 = vadd.f32 %v10275, %v10387
  %v10389 = vpop.f32.mrf.mxu0
  %v10390 = vadd.f32 %v10277, %v10389
  %v10391 = vpop.f32.mrf.mxu0
  %v10392 = vadd.f32 %v10279, %v10391
  %10393 = vmatprep.mubr.bf16.mxu0 %v600
  %10394 = vmatmul.mubr.bf16.gmra.mxu0 %v599
  %v10395 = vpop.f32.mrf.mxu0
  %v10396 = vadd.f32 %v10283, %v10395
  %v10397 = vpop.f32.mrf.mxu0
  %v10398 = vadd.f32 %v10285, %v10397
  %v10399 = vpop.f32.mrf.mxu0
  %v10400 = vadd.f32 %v10287, %v10399
  %v10401 = vpop.f32.mrf.mxu0
  %v10402 = vadd.f32 %v10289, %v10401
  %10403 = vmatprep.mubr.bf16.mxu0 %v632
  %10404 = vmatmul.mubr.bf16.gmra.mxu0 %v631
  %v10405 = vpop.f32.mrf.mxu0
  %v10406 = vadd.f32 %v10293, %v10405
  %v10407 = vpop.f32.mrf.mxu0
  %v10408 = vadd.f32 %v10295, %v10407
  %v10409 = vpop.f32.mrf.mxu0
  %v10410 = vadd.f32 %v10297, %v10409
  %v10411 = vpop.f32.mrf.mxu0
  %v10412 = vadd.f32 %v10299, %v10411
  %10413 = vmatprep.mubr.bf16.mxu0 %v664
  %10414 = vmatmul.mubr.bf16.gmra.mxu0 %v663
  %v10415 = vpop.f32.mrf.mxu0
  %v10416 = vadd.f32 %v10303, %v10415
  %v10417 = vpop.f32.mrf.mxu0
  %v10418 = vadd.f32 %v10305, %v10417
  %v10419 = vpop.f32.mrf.mxu0
  %v10420 = vadd.f32 %v10307, %v10419
  %v10421 = vpop.f32.mrf.mxu0
  %v10422 = vadd.f32 %v10309, %v10421
  %10423 = vmatprep.mubr.bf16.mxu0 %v696
  %10424 = vmatmul.mubr.bf16.gmra.mxu0 %v695
  %v10425 = vpop.f32.mrf.mxu0
  %v10426 = vadd.f32 %v10313, %v10425
  %v10427 = vpop.f32.mrf.mxu0
  %v10428 = vadd.f32 %v10315, %v10427
  %v10429 = vpop.f32.mrf.mxu0
  %v10430 = vadd.f32 %v10317, %v10429
  %v10431 = vpop.f32.mrf.mxu0
  %v10432 = vadd.f32 %v10319, %v10431
  %10433 = vmatprep.mubr.bf16.mxu0 %v728
  %10434 = vmatmul.mubr.bf16.gmra.mxu0 %v727
  %v10435 = vpop.f32.mrf.mxu0
  %v10436 = vadd.f32 %v10323, %v10435
  %v10437 = vpop.f32.mrf.mxu0
  %v10438 = vadd.f32 %v10325, %v10437
  %v10439 = vpop.f32.mrf.mxu0
  %v10440 = vadd.f32 %v10327, %v10439
  %v10441 = vpop.f32.mrf.mxu0
  %v10442 = vadd.f32 %v10329, %v10441
  %10443 = vmatprep.mubr.bf16.mxu0 %v760
  %10444 = vmatmul.mubr.bf16.gmra.mxu0 %v759
  %v10445 = vpop.f32.mrf.mxu0
  %v10446 = vadd.f32 %v10333, %v10445
  %v10447 = vpop.f32.mrf.mxu0
  %v10448 = vadd.f32 %v10335, %v10447
  %v10449 = vpop.f32.mrf.mxu0
  %v10450 = vadd.f32 %v10337, %v10449
  %v10451 = vpop.f32.mrf.mxu0
  %v10452 = vadd.f32 %v10339, %v10451
  %10453 = vmatprep.mubr.bf16.mxu0 %v792
  %10454 = vmatmul.mubr.bf16.gmra.mxu0 %v791
  %v10455 = vpop.f32.mrf.mxu0
  %v10456 = vadd.f32 %v10343, %v10455
  %v10457 = vpop.f32.mrf.mxu0
  %v10458 = vadd.f32 %v10345, %v10457
  %v10459 = vpop.f32.mrf.mxu0
  %v10460 = vadd.f32 %v10347, %v10459
  %v10461 = vpop.f32.mrf.mxu0
  %v10462 = vadd.f32 %v10349, %v10461
  %10463 = vdwg.mxu0
  %10464 = vmatprep.subr.bf16.mxu0 %v5904
  %10465 = vmatpush1.bf16.msra.mxu0 %v5903
  %10466 = vmatprep.subr.bf16.mxu0 %v5900
  %10467 = vmatpush1.bf16.msra.mxu0 %v5899
  %10468 = vmatprep.subr.bf16.mxu0 %v5896
  %10469 = vmatpush1.bf16.msra.mxu0 %v5895
  %10470 = vmatprep.subr.bf16.mxu0 %v5892
  %10471 = vmatpush1.bf16.msra.mxu0 %v5891
  %10472 = vmatprep.subr.bf16.mxu0 %v5888
  %10473 = vmatpush1.bf16.msra.mxu0 %v5887
  %10474 = vmatprep.subr.bf16.mxu0 %v5884
  %10475 = vmatpush1.bf16.msra.mxu0 %v5883
  %10476 = vmatprep.subr.bf16.mxu0 %v5880
  %10477 = vmatpush1.bf16.msra.mxu0 %v5879
  %10478 = vmatprep.subr.bf16.mxu0 %v5876
  %10479 = vmatpush1.bf16.msra.mxu0 %v5875
  %10480 = vmatprep.subr.bf16.mxu0 %v5936
  %10481 = vmatpush2.bf16.msra.mxu0 %v5935
  %10482 = vmatprep.subr.bf16.mxu0 %v5932
  %10483 = vmatpush2.bf16.msra.mxu0 %v5931
  %10484 = vmatprep.subr.bf16.mxu0 %v5928
  %10485 = vmatpush2.bf16.msra.mxu0 %v5927
  %10486 = vmatprep.subr.bf16.mxu0 %v5924
  %10487 = vmatpush2.bf16.msra.mxu0 %v5923
  %10488 = vmatprep.subr.bf16.mxu0 %v5920
  %10489 = vmatpush2.bf16.msra.mxu0 %v5919
  %10490 = vmatprep.subr.bf16.mxu0 %v5916
  %10491 = vmatpush2.bf16.msra.mxu0 %v5915
  %10492 = vmatprep.subr.bf16.mxu0 %v5912
  %10493 = vmatpush2.bf16.msra.mxu0 %v5911
  %10494 = vmatprep.subr.bf16.mxu0 %v5908
  %10495 = vmatpush2.bf16.msra.mxu0 %v5907
  %10496 = vmatprep.mubr.bf16.mxu0 %v570
  %10497 = vmatmul.mubr.bf16.gmra.mxu0 %v569
  %v10498 = vpop.f32.mrf.mxu0
  %v10499 = vadd.f32 %v10386, %v10498
  %v10500 = vpop.f32.mrf.mxu0
  %v10501 = vadd.f32 %v10388, %v10500
  %v10502 = vpop.f32.mrf.mxu0
  %v10503 = vadd.f32 %v10390, %v10502
  %v10504 = vpop.f32.mrf.mxu0
  %v10505 = vadd.f32 %v10392, %v10504
  %10506 = vmatprep.mubr.bf16.mxu0 %v602
  %10507 = vmatmul.mubr.bf16.gmra.mxu0 %v601
  %v10508 = vpop.f32.mrf.mxu0
  %v10509 = vadd.f32 %v10396, %v10508
  %v10510 = vpop.f32.mrf.mxu0
  %v10511 = vadd.f32 %v10398, %v10510
  %v10512 = vpop.f32.mrf.mxu0
  %v10513 = vadd.f32 %v10400, %v10512
  %v10514 = vpop.f32.mrf.mxu0
  %v10515 = vadd.f32 %v10402, %v10514
  %10516 = vmatprep.mubr.bf16.mxu0 %v634
  %10517 = vmatmul.mubr.bf16.gmra.mxu0 %v633
  %v10518 = vpop.f32.mrf.mxu0
  %v10519 = vadd.f32 %v10406, %v10518
  %v10520 = vpop.f32.mrf.mxu0
  %v10521 = vadd.f32 %v10408, %v10520
  %v10522 = vpop.f32.mrf.mxu0
  %v10523 = vadd.f32 %v10410, %v10522
  %v10524 = vpop.f32.mrf.mxu0
  %v10525 = vadd.f32 %v10412, %v10524
  %10526 = vmatprep.mubr.bf16.mxu0 %v666
  %10527 = vmatmul.mubr.bf16.gmra.mxu0 %v665
  %v10528 = vpop.f32.mrf.mxu0
  %v10529 = vadd.f32 %v10416, %v10528
  %v10530 = vpop.f32.mrf.mxu0
  %v10531 = vadd.f32 %v10418, %v10530
  %v10532 = vpop.f32.mrf.mxu0
  %v10533 = vadd.f32 %v10420, %v10532
  %v10534 = vpop.f32.mrf.mxu0
  %v10535 = vadd.f32 %v10422, %v10534
  %10536 = vmatprep.mubr.bf16.mxu0 %v698
  %10537 = vmatmul.mubr.bf16.gmra.mxu0 %v697
  %v10538 = vpop.f32.mrf.mxu0
  %v10539 = vadd.f32 %v10426, %v10538
  %v10540 = vpop.f32.mrf.mxu0
  %v10541 = vadd.f32 %v10428, %v10540
  %v10542 = vpop.f32.mrf.mxu0
  %v10543 = vadd.f32 %v10430, %v10542
  %v10544 = vpop.f32.mrf.mxu0
  %v10545 = vadd.f32 %v10432, %v10544
  %10546 = vmatprep.mubr.bf16.mxu0 %v730
  %10547 = vmatmul.mubr.bf16.gmra.mxu0 %v729
  %v10548 = vpop.f32.mrf.mxu0
  %v10549 = vadd.f32 %v10436, %v10548
  %v10550 = vpop.f32.mrf.mxu0
  %v10551 = vadd.f32 %v10438, %v10550
  %v10552 = vpop.f32.mrf.mxu0
  %v10553 = vadd.f32 %v10440, %v10552
  %v10554 = vpop.f32.mrf.mxu0
  %v10555 = vadd.f32 %v10442, %v10554
  %10556 = vmatprep.mubr.bf16.mxu0 %v762
  %10557 = vmatmul.mubr.bf16.gmra.mxu0 %v761
  %v10558 = vpop.f32.mrf.mxu0
  %v10559 = vadd.f32 %v10446, %v10558
  %v10560 = vpop.f32.mrf.mxu0
  %v10561 = vadd.f32 %v10448, %v10560
  %v10562 = vpop.f32.mrf.mxu0
  %v10563 = vadd.f32 %v10450, %v10562
  %v10564 = vpop.f32.mrf.mxu0
  %v10565 = vadd.f32 %v10452, %v10564
  %10566 = vmatprep.mubr.bf16.mxu0 %v794
  %10567 = vmatmul.mubr.bf16.gmra.mxu0 %v793
  %v10568 = vpop.f32.mrf.mxu0
  %v10569 = vadd.f32 %v10456, %v10568
  %v10570 = vpop.f32.mrf.mxu0
  %v10571 = vadd.f32 %v10458, %v10570
  %v10572 = vpop.f32.mrf.mxu0
  %v10573 = vadd.f32 %v10460, %v10572
  %v10574 = vpop.f32.mrf.mxu0
  %v10575 = vadd.f32 %v10462, %v10574
  %10576 = vdwg.mxu0
  %vm10577 = vcmp.gt.f32.partialorder %v8691, 0.0
  %vm10578 = vcmp.gt.f32.partialorder %v8693, 0.0
  %vm10579 = vcmp.gt.f32.partialorder %v10499, 0.0
  %vm10580 = vcmp.gt.f32.partialorder %v10501, 0.0
  %vm10581 = vcmp.gt.f32.partialorder %v8695, 0.0
  %vm10582 = vcmp.gt.f32.partialorder %v8697, 0.0
  %vm10583 = vcmp.gt.f32.partialorder %v10503, 0.0
  %vm10584 = vcmp.gt.f32.partialorder %v10505, 0.0
  %vm10585 = vcmp.gt.f32.partialorder %v8701, 0.0
  %vm10586 = vcmp.gt.f32.partialorder %v8703, 0.0
  %vm10587 = vcmp.gt.f32.partialorder %v10509, 0.0
  %vm10588 = vcmp.gt.f32.partialorder %v10511, 0.0
  %vm10589 = vcmp.gt.f32.partialorder %v8705, 0.0
  %vm10590 = vcmp.gt.f32.partialorder %v8707, 0.0
  %vm10591 = vcmp.gt.f32.partialorder %v10513, 0.0
  %vm10592 = vcmp.gt.f32.partialorder %v10515, 0.0
  %vm10593 = vcmp.gt.f32.partialorder %v8711, 0.0
  %vm10594 = vcmp.gt.f32.partialorder %v8713, 0.0
  %vm10595 = vcmp.gt.f32.partialorder %v10519, 0.0
  %vm10596 = vcmp.gt.f32.partialorder %v10521, 0.0
  %vm10597 = vcmp.gt.f32.partialorder %v8715, 0.0
  %vm10598 = vcmp.gt.f32.partialorder %v8717, 0.0
  %vm10599 = vcmp.gt.f32.partialorder %v10523, 0.0
  %vm10600 = vcmp.gt.f32.partialorder %v10525, 0.0
  %vm10601 = vcmp.gt.f32.partialorder %v8721, 0.0
  %vm10602 = vcmp.gt.f32.partialorder %v8723, 0.0
  %vm10603 = vcmp.gt.f32.partialorder %v10529, 0.0
  %vm10604 = vcmp.gt.f32.partialorder %v10531, 0.0
  %vm10605 = vcmp.gt.f32.partialorder %v8725, 0.0
  %vm10606 = vcmp.gt.f32.partialorder %v8727, 0.0
  %vm10607 = vcmp.gt.f32.partialorder %v10533, 0.0
  %vm10608 = vcmp.gt.f32.partialorder %v10535, 0.0
  %vm10609 = vcmp.gt.f32.partialorder %v8731, 0.0
  %vm10610 = vcmp.gt.f32.partialorder %v8733, 0.0
  %vm10611 = vcmp.gt.f32.partialorder %v10539, 0.0
  %vm10612 = vcmp.gt.f32.partialorder %v10541, 0.0
  %vm10613 = vcmp.gt.f32.partialorder %v8735, 0.0
  %vm10614 = vcmp.gt.f32.partialorder %v8737, 0.0
  %vm10615 = vcmp.gt.f32.partialorder %v10543, 0.0
  %vm10616 = vcmp.gt.f32.partialorder %v10545, 0.0
  %vm10617 = vcmp.gt.f32.partialorder %v8741, 0.0
  %vm10618 = vcmp.gt.f32.partialorder %v8743, 0.0
  %vm10619 = vcmp.gt.f32.partialorder %v10549, 0.0
  %vm10620 = vcmp.gt.f32.partialorder %v10551, 0.0
  %vm10621 = vcmp.gt.f32.partialorder %v8745, 0.0
  %vm10622 = vcmp.gt.f32.partialorder %v8747, 0.0
  %vm10623 = vcmp.gt.f32.partialorder %v10553, 0.0
  %vm10624 = vcmp.gt.f32.partialorder %v10555, 0.0
  %vm10625 = vcmp.gt.f32.partialorder %v8751, 0.0
  %vm10626 = vcmp.gt.f32.partialorder %v8753, 0.0
  %vm10627 = vcmp.gt.f32.partialorder %v10559, 0.0
  %vm10628 = vcmp.gt.f32.partialorder %v10561, 0.0
  %vm10629 = vcmp.gt.f32.partialorder %v8755, 0.0
  %vm10630 = vcmp.gt.f32.partialorder %v8757, 0.0
  %vm10631 = vcmp.gt.f32.partialorder %v10563, 0.0
  %vm10632 = vcmp.gt.f32.partialorder %v10565, 0.0
  %vm10633 = vcmp.gt.f32.partialorder %v8761, 0.0
  %vm10634 = vcmp.gt.f32.partialorder %v8763, 0.0
  %vm10635 = vcmp.gt.f32.partialorder %v10569, 0.0
  %vm10636 = vcmp.gt.f32.partialorder %v10571, 0.0
  %vm10637 = vcmp.gt.f32.partialorder %v8765, 0.0
  %vm10638 = vcmp.gt.f32.partialorder %v8767, 0.0
  %vm10639 = vcmp.gt.f32.partialorder %v10573, 0.0
  %vm10640 = vcmp.gt.f32.partialorder %v10575, 0.0
  %v10641 = vmul.f32 %v8691, 0.2
  %v10642 = vmul.f32 %v8693, 0.2
  %v10643 = vmul.f32 %v10499, 0.2
  %v10644 = vmul.f32 %v10501, 0.2
  %v10645 = vmul.f32 %v8695, 0.2
  %v10646 = vmul.f32 %v8697, 0.2
  %v10647 = vmul.f32 %v10503, 0.2
  %v10648 = vmul.f32 %v10505, 0.2
  %v10649 = vmul.f32 %v8701, 0.2
  %v10650 = vmul.f32 %v8703, 0.2
  %v10651 = vmul.f32 %v10509, 0.2
  %v10652 = vmul.f32 %v10511, 0.2
  %v10653 = vmul.f32 %v8705, 0.2
  %v10654 = vmul.f32 %v8707, 0.2
  %v10655 = vmul.f32 %v10513, 0.2
  %v10656 = vmul.f32 %v10515, 0.2
  %v10657 = vmul.f32 %v8711, 0.2
  %v10658 = vmul.f32 %v8713, 0.2
  %v10659 = vmul.f32 %v10519, 0.2
  %v10660 = vmul.f32 %v10521, 0.2
  %v10661 = vmul.f32 %v8715, 0.2
  %v10662 = vmul.f32 %v8717, 0.2
  %v10663 = vmul.f32 %v10523, 0.2
  %v10664 = vmul.f32 %v10525, 0.2
  %v10665 = vmul.f32 %v8721, 0.2
  %v10666 = vmul.f32 %v8723, 0.2
  %v10667 = vmul.f32 %v10529, 0.2
  %v10668 = vmul.f32 %v10531, 0.2
  %v10669 = vmul.f32 %v8725, 0.2
  %v10670 = vmul.f32 %v8727, 0.2
  %v10671 = vmul.f32 %v10533, 0.2
  %v10672 = vmul.f32 %v10535, 0.2
  %v10673 = vmul.f32 %v8731, 0.2
  %v10674 = vmul.f32 %v8733, 0.2
  %v10675 = vmul.f32 %v10539, 0.2
  %v10676 = vmul.f32 %v10541, 0.2
  %v10677 = vmul.f32 %v8735, 0.2
  %v10678 = vmul.f32 %v8737, 0.2
  %v10679 = vmul.f32 %v10543, 0.2
  %v10680 = vmul.f32 %v10545, 0.2
  %v10681 = vmul.f32 %v8741, 0.2
  %v10682 = vmul.f32 %v8743, 0.2
  %v10683 = vmul.f32 %v10549, 0.2
  %v10684 = vmul.f32 %v10551, 0.2
  %v10685 = vmul.f32 %v8745, 0.2
  %v10686 = vmul.f32 %v8747, 0.2
  %v10687 = vmul.f32 %v10553, 0.2
  %v10688 = vmul.f32 %v10555, 0.2
  %v10689 = vmul.f32 %v8751, 0.2
  %v10690 = vmul.f32 %v8753, 0.2
  %v10691 = vmul.f32 %v10559, 0.2
  %v10692 = vmul.f32 %v10561, 0.2
  %v10693 = vmul.f32 %v8755, 0.2
  %v10694 = vmul.f32 %v8757, 0.2
  %v10695 = vmul.f32 %v10563, 0.2
  %v10696 = vmul.f32 %v10565, 0.2
  %v10697 = vmul.f32 %v8761, 0.2
  %v10698 = vmul.f32 %v8763, 0.2
  %v10699 = vmul.f32 %v10569, 0.2
  %v10700 = vmul.f32 %v10571, 0.2
  %v10701 = vmul.f32 %v8765, 0.2
  %v10702 = vmul.f32 %v8767, 0.2
  %v10703 = vmul.f32 %v10573, 0.2
  %v10704 = vmul.f32 %v10575, 0.2
  %v10705 = vsel %vm10577, %v8691, %v10641
  %v10706 = vsel %vm10578, %v8693, %v10642
  %v10707 = vsel %vm10579, %v10499, %v10643
  %v10708 = vsel %vm10580, %v10501, %v10644
  %v10709 = vsel %vm10581, %v8695, %v10645
  %v10710 = vsel %vm10582, %v8697, %v10646
  %v10711 = vsel %vm10583, %v10503, %v10647
  %v10712 = vsel %vm10584, %v10505, %v10648
  %v10713 = vsel %vm10585, %v8701, %v10649
  %v10714 = vsel %vm10586, %v8703, %v10650
  %v10715 = vsel %vm10587, %v10509, %v10651
  %v10716 = vsel %vm10588, %v10511, %v10652
  %v10717 = vsel %vm10589, %v8705, %v10653
  %v10718 = vsel %vm10590, %v8707, %v10654
  %v10719 = vsel %vm10591, %v10513, %v10655
  %v10720 = vsel %vm10592, %v10515, %v10656
  %v10721 = vsel %vm10593, %v8711, %v10657
  %v10722 = vsel %vm10594, %v8713, %v10658
  %v10723 = vsel %vm10595, %v10519, %v10659
  %v10724 = vsel %vm10596, %v10521, %v10660
  %v10725 = vsel %vm10597, %v8715, %v10661
  %v10726 = vsel %vm10598, %v8717, %v10662
  %v10727 = vsel %vm10599, %v10523, %v10663
  %v10728 = vsel %vm10600, %v10525, %v10664
  %v10729 = vsel %vm10601, %v8721, %v10665
  %v10730 = vsel %vm10602, %v8723, %v10666
  %v10731 = vsel %vm10603, %v10529, %v10667
  %v10732 = vsel %vm10604, %v10531, %v10668
  %v10733 = vsel %vm10605, %v8725, %v10669
  %v10734 = vsel %vm10606, %v8727, %v10670
  %v10735 = vsel %vm10607, %v10533, %v10671
  %v10736 = vsel %vm10608, %v10535, %v10672
  %v10737 = vsel %vm10609, %v8731, %v10673
  %v10738 = vsel %vm10610, %v8733, %v10674
  %v10739 = vsel %vm10611, %v10539, %v10675
  %v10740 = vsel %vm10612, %v10541, %v10676
  %v10741 = vsel %vm10613, %v8735, %v10677
  %v10742 = vsel %vm10614, %v8737, %v10678
  %v10743 = vsel %vm10615, %v10543, %v10679
  %v10744 = vsel %vm10616, %v10545, %v10680
  %v10745 = vsel %vm10617, %v8741, %v10681
  %v10746 = vsel %vm10618, %v8743, %v10682
  %v10747 = vsel %vm10619, %v10549, %v10683
  %v10748 = vsel %vm10620, %v10551, %v10684
  %v10749 = vsel %vm10621, %v8745, %v10685
  %v10750 = vsel %vm10622, %v8747, %v10686
  %v10751 = vsel %vm10623, %v10553, %v10687
  %v10752 = vsel %vm10624, %v10555, %v10688
  %v10753 = vsel %vm10625, %v8751, %v10689
  %v10754 = vsel %vm10626, %v8753, %v10690
  %v10755 = vsel %vm10627, %v10559, %v10691
  %v10756 = vsel %vm10628, %v10561, %v10692
  %v10757 = vsel %vm10629, %v8755, %v10693
  %v10758 = vsel %vm10630, %v8757, %v10694
  %v10759 = vsel %vm10631, %v10563, %v10695
  %v10760 = vsel %vm10632, %v10565, %v10696
  %v10761 = vsel %vm10633, %v8761, %v10697
  %v10762 = vsel %vm10634, %v8763, %v10698
  %v10763 = vsel %vm10635, %v10569, %v10699
  %v10764 = vsel %vm10636, %v10571, %v10700
  %v10765 = vsel %vm10637, %v8765, %v10701
  %v10766 = vsel %vm10638, %v8767, %v10702
  %v10767 = vsel %vm10639, %v10573, %v10703
  %v10768 = vsel %vm10640, %v10575, %v10704
  %v10769 = vpack.c.bf16 %v10709, %v10705
  %v10770 = vpack.c.bf16 %v10710, %v10706
  %v10771 = vpack.c.bf16 %v10711, %v10707
  %v10772 = vpack.c.bf16 %v10712, %v10708
  %v10773 = vpack.c.bf16 %v10717, %v10713
  %v10774 = vpack.c.bf16 %v10718, %v10714
  %v10775 = vpack.c.bf16 %v10719, %v10715
  %v10776 = vpack.c.bf16 %v10720, %v10716
  %v10777 = vpack.c.bf16 %v10725, %v10721
  %v10778 = vpack.c.bf16 %v10726, %v10722
  %v10779 = vpack.c.bf16 %v10727, %v10723
  %v10780 = vpack.c.bf16 %v10728, %v10724
  %v10781 = vpack.c.bf16 %v10733, %v10729
  %v10782 = vpack.c.bf16 %v10734, %v10730
  %v10783 = vpack.c.bf16 %v10735, %v10731
  %v10784 = vpack.c.bf16 %v10736, %v10732
  %v10785 = vpack.c.bf16 %v10741, %v10737
  %v10786 = vpack.c.bf16 %v10742, %v10738
  %v10787 = vpack.c.bf16 %v10743, %v10739
  %v10788 = vpack.c.bf16 %v10744, %v10740
  %v10789 = vpack.c.bf16 %v10749, %v10745
  %v10790 = vpack.c.bf16 %v10750, %v10746
  %v10791 = vpack.c.bf16 %v10751, %v10747
  %v10792 = vpack.c.bf16 %v10752, %v10748
  %v10793 = vpack.c.bf16 %v10757, %v10753
  %v10794 = vpack.c.bf16 %v10758, %v10754
  %v10795 = vpack.c.bf16 %v10759, %v10755
  %v10796 = vpack.c.bf16 %v10760, %v10756
  %v10797 = vpack.c.bf16 %v10765, %v10761
  %v10798 = vpack.c.bf16 %v10766, %v10762
  %v10799 = vpack.c.bf16 %v10767, %v10763
  %v10800 = vpack.c.bf16 %v10768, %v10764
  %v10801 = vld [vmem:[%s3] sm:$0xff]
  %v10802 = vld [vmem:[%s3 + $0x8] sm:$0xff]
  %v10803 = vld [vmem:[%s3 + $0x10] sm:$0xff]
  %v10804 = vld [vmem:[%s3 + $0x18] sm:$0xff]
  %v10805 = vld [vmem:[%s3 + $0x20] sm:$0xff]
  %v10806 = vld [vmem:[%s3 + $0x28] sm:$0xff]
  %v10807 = vld [vmem:[%s3 + $0x30] sm:$0xff]
  %v10808 = vld [vmem:[%s3 + $0x38] sm:$0xff]
  %v10809 = vld [vmem:[%s3 + $0x40] sm:$0xff]
  %v10810 = vld [vmem:[%s3 + $0x48] sm:$0xff]
  %v10811 = vld [vmem:[%s3 + $0x50] sm:$0xff]
  %v10812 = vld [vmem:[%s3 + $0x58] sm:$0xff]
  %v10813 = vld [vmem:[%s3 + $0x60] sm:$0xff]
  %v10814 = vld [vmem:[%s3 + $0x68] sm:$0xff]
  %v10815 = vld [vmem:[%s3 + $0x70] sm:$0xff]
  %v10816 = vld [vmem:[%s3 + $0x78] sm:$0xff]
  %v10817 = vld [vmem:[%s3 + $0x80] sm:$0xff]
  %v10818 = vld [vmem:[%s3 + $0x88] sm:$0xff]
  %v10819 = vld [vmem:[%s3 + $0x90] sm:$0xff]
  %v10820 = vld [vmem:[%s3 + $0x98] sm:$0xff]
  %v10821 = vld [vmem:[%s3 + $0xa0] sm:$0xff]
  %v10822 = vld [vmem:[%s3 + $0xa8] sm:$0xff]
  %v10823 = vld [vmem:[%s3 + $0xb0] sm:$0xff]
  %v10824 = vld [vmem:[%s3 + $0xb8] sm:$0xff]
  %v10825 = vld [vmem:[%s3 + $0xc0] sm:$0xff]
  %v10826 = vld [vmem:[%s3 + $0xc8] sm:$0xff]
  %v10827 = vld [vmem:[%s3 + $0xd0] sm:$0xff]
  %v10828 = vld [vmem:[%s3 + $0xd8] sm:$0xff]
  %v10829 = vld [vmem:[%s3 + $0xe0] sm:$0xff]
  %v10830 = vld [vmem:[%s3 + $0xe8] sm:$0xff]
  %v10831 = vld [vmem:[%s3 + $0xf0] sm:$0xff]
  %v10832 = vld [vmem:[%s3 + $0xf8] sm:$0xff]
  %v10833 = vld [vmem:[%s3 + $0x100] sm:$0xff]
  %v10834 = vld [vmem:[%s3 + $0x108] sm:$0xff]
  %v10835 = vld [vmem:[%s3 + $0x110] sm:$0xff]
  %v10836 = vld [vmem:[%s3 + $0x118] sm:$0xff]
  %v10837 = vld [vmem:[%s3 + $0x120] sm:$0xff]
  %v10838 = vld [vmem:[%s3 + $0x128] sm:$0xff]
  %v10839 = vld [vmem:[%s3 + $0x130] sm:$0xff]
  %v10840 = vld [vmem:[%s3 + $0x138] sm:$0xff]
  %v10841 = vld [vmem:[%s3 + $0x140] sm:$0xff]
  %v10842 = vld [vmem:[%s3 + $0x148] sm:$0xff]
  %v10843 = vld [vmem:[%s3 + $0x150] sm:$0xff]
  %v10844 = vld [vmem:[%s3 + $0x158] sm:$0xff]
  %v10845 = vld [vmem:[%s3 + $0x160] sm:$0xff]
  %v10846 = vld [vmem:[%s3 + $0x168] sm:$0xff]
  %v10847 = vld [vmem:[%s3 + $0x170] sm:$0xff]
  %v10848 = vld [vmem:[%s3 + $0x178] sm:$0xff]
  %v10849 = vld [vmem:[%s3 + $0x180] sm:$0xff]
  %v10850 = vld [vmem:[%s3 + $0x188] sm:$0xff]
  %v10851 = vld [vmem:[%s3 + $0x190] sm:$0xff]
  %v10852 = vld [vmem:[%s3 + $0x198] sm:$0xff]
  %v10853 = vld [vmem:[%s3 + $0x1a0] sm:$0xff]
  %v10854 = vld [vmem:[%s3 + $0x1a8] sm:$0xff]
  %v10855 = vld [vmem:[%s3 + $0x1b0] sm:$0xff]
  %v10856 = vld [vmem:[%s3 + $0x1b8] sm:$0xff]
  %v10857 = vld [vmem:[%s3 + $0x1c0] sm:$0xff]
  %v10858 = vld [vmem:[%s3 + $0x1c8] sm:$0xff]
  %v10859 = vld [vmem:[%s3 + $0x1d0] sm:$0xff]
  %v10860 = vld [vmem:[%s3 + $0x1d8] sm:$0xff]
  %v10861 = vld [vmem:[%s3 + $0x1e0] sm:$0xff]
  %v10862 = vld [vmem:[%s3 + $0x1e8] sm:$0xff]
  %v10863 = vld [vmem:[%s3 + $0x1f0] sm:$0xff]
  %v10864 = vld [vmem:[%s3 + $0x1f8] sm:$0xff]
  %v10865 = vld [vmem:[%s4] sm:$0x3]
  %v10867 = vlaneseq
  %v10868 = vshrl.u32 %v10867, 7
  %v10869 = vsub.s32 0, %v10868
  %v10870 = vrot.slane %v10865, %v10869
  %v10871 = vlaneseq
  %v10872 = vshrl.u32 %v10871, 7
  %v10873 = vsub.s32 1, %v10872
  %v10874 = vrot.slane %v10865, %v10873
  %v10941 = vunpack.c.l.b16 %v10801
  %v10942 = vunpack.c.h.b16 %v10801
  %v10943 = vunpack.c.l.b16 %v10802
  %v10944 = vunpack.c.h.b16 %v10802
  %v10945 = vunpack.c.l.b16 %v10803
  %v10946 = vunpack.c.h.b16 %v10803
  %v10947 = vunpack.c.l.b16 %v10804
  %v10948 = vunpack.c.h.b16 %v10804
  %v10949 = vunpack.c.l.b16 %v10805
  %v10950 = vunpack.c.h.b16 %v10805
  %v10951 = vunpack.c.l.b16 %v10806
  %v10952 = vunpack.c.h.b16 %v10806
  %v10953 = vunpack.c.l.b16 %v10807
  %v10954 = vunpack.c.h.b16 %v10807
  %v10955 = vunpack.c.l.b16 %v10808
  %v10956 = vunpack.c.h.b16 %v10808
  %v10957 = vunpack.c.l.b16 %v10809
  %v10958 = vunpack.c.h.b16 %v10809
  %v10959 = vunpack.c.l.b16 %v10810
  %v10960 = vunpack.c.h.b16 %v10810
  %v10961 = vunpack.c.l.b16 %v10811
  %v10962 = vunpack.c.h.b16 %v10811
  %v10963 = vunpack.c.l.b16 %v10812
  %v10964 = vunpack.c.h.b16 %v10812
  %v10965 = vunpack.c.l.b16 %v10813
  %v10966 = vunpack.c.h.b16 %v10813
  %v10967 = vunpack.c.l.b16 %v10814
  %v10968 = vunpack.c.h.b16 %v10814
  %v10969 = vunpack.c.l.b16 %v10815
  %v10970 = vunpack.c.h.b16 %v10815
  %v10971 = vunpack.c.l.b16 %v10816
  %v10972 = vunpack.c.h.b16 %v10816
  %v10973 = vunpack.c.l.b16 %v10817
  %v10974 = vunpack.c.h.b16 %v10817
  %v10975 = vunpack.c.l.b16 %v10818
  %v10976 = vunpack.c.h.b16 %v10818
  %v10977 = vunpack.c.l.b16 %v10819
  %v10978 = vunpack.c.h.b16 %v10819
  %v10979 = vunpack.c.l.b16 %v10820
  %v10980 = vunpack.c.h.b16 %v10820
  %v10981 = vunpack.c.l.b16 %v10821
  %v10982 = vunpack.c.h.b16 %v10821
  %v10983 = vunpack.c.l.b16 %v10822
  %v10984 = vunpack.c.h.b16 %v10822
  %v10985 = vunpack.c.l.b16 %v10823
  %v10986 = vunpack.c.h.b16 %v10823
  %v10987 = vunpack.c.l.b16 %v10824
  %v10988 = vunpack.c.h.b16 %v10824
  %v10989 = vunpack.c.l.b16 %v10825
  %v10990 = vunpack.c.h.b16 %v10825
  %v10991 = vunpack.c.l.b16 %v10826
  %v10992 = vunpack.c.h.b16 %v10826
  %v10993 = vunpack.c.l.b16 %v10827
  %v10994 = vunpack.c.h.b16 %v10827
  %v10995 = vunpack.c.l.b16 %v10828
  %v10996 = vunpack.c.h.b16 %v10828
  %v10997 = vunpack.c.l.b16 %v10829
  %v10998 = vunpack.c.h.b16 %v10829
  %v10999 = vunpack.c.l.b16 %v10830
  %v11000 = vunpack.c.h.b16 %v10830
  %v11001 = vunpack.c.l.b16 %v10831
  %v11002 = vunpack.c.h.b16 %v10831
  %v11003 = vunpack.c.l.b16 %v10832
  %v11004 = vunpack.c.h.b16 %v10832
  %v11005 = vunpack.c.l.b16 %v10833
  %v11006 = vunpack.c.h.b16 %v10833
  %v11007 = vunpack.c.l.b16 %v10834
  %v11008 = vunpack.c.h.b16 %v10834
  %v11009 = vunpack.c.l.b16 %v10835
  %v11010 = vunpack.c.h.b16 %v10835
  %v11011 = vunpack.c.l.b16 %v10836
  %v11012 = vunpack.c.h.b16 %v10836
  %v11013 = vunpack.c.l.b16 %v10837
  %v11014 = vunpack.c.h.b16 %v10837
  %v11015 = vunpack.c.l.b16 %v10838
  %v11016 = vunpack.c.h.b16 %v10838
  %v11017 = vunpack.c.l.b16 %v10839
  %v11018 = vunpack.c.h.b16 %v10839
  %v11019 = vunpack.c.l.b16 %v10840
  %v11020 = vunpack.c.h.b16 %v10840
  %v11021 = vunpack.c.l.b16 %v10841
  %v11022 = vunpack.c.h.b16 %v10841
  %v11023 = vunpack.c.l.b16 %v10842
  %v11024 = vunpack.c.h.b16 %v10842
  %v11025 = vunpack.c.l.b16 %v10843
  %v11026 = vunpack.c.h.b16 %v10843
  %v11027 = vunpack.c.l.b16 %v10844
  %v11028 = vunpack.c.h.b16 %v10844
  %v11029 = vunpack.c.l.b16 %v10845
  %v11030 = vunpack.c.h.b16 %v10845
  %v11031 = vunpack.c.l.b16 %v10846
  %v11032 = vunpack.c.h.b16 %v10846
  %v11033 = vunpack.c.l.b16 %v10847
  %v11034 = vunpack.c.h.b16 %v10847
  %v11035 = vunpack.c.l.b16 %v10848
  %v11036 = vunpack.c.h.b16 %v10848
  %v11037 = vunpack.c.l.b16 %v10849
  %v11038 = vunpack.c.h.b16 %v10849
  %v11039 = vunpack.c.l.b16 %v10850
  %v11040 = vunpack.c.h.b16 %v10850
  %v11041 = vunpack.c.l.b16 %v10851
  %v11042 = vunpack.c.h.b16 %v10851
  %v11043 = vunpack.c.l.b16 %v10852
  %v11044 = vunpack.c.h.b16 %v10852
  %v11045 = vunpack.c.l.b16 %v10853
  %v11046 = vunpack.c.h.b16 %v10853
  %v11047 = vunpack.c.l.b16 %v10854
  %v11048 = vunpack.c.h.b16 %v10854
  %v11049 = vunpack.c.l.b16 %v10855
  %v11050 = vunpack.c.h.b16 %v10855
  %v11051 = vunpack.c.l.b16 %v10856
  %v11052 = vunpack.c.h.b16 %v10856
  %v11053 = vunpack.c.l.b16 %v10857
  %v11054 = vunpack.c.h.b16 %v10857
  %v11055 = vunpack.c.l.b16 %v10858
  %v11056 = vunpack.c.h.b16 %v10858
  %v11057 = vunpack.c.l.b16 %v10859
  %v11058 = vunpack.c.h.b16 %v10859
  %v11059 = vunpack.c.l.b16 %v10860
  %v11060 = vunpack.c.h.b16 %v10860
  %v11061 = vunpack.c.l.b16 %v10861
  %v11062 = vunpack.c.h.b16 %v10861
  %v11063 = vunpack.c.l.b16 %v10862
  %v11064 = vunpack.c.h.b16 %v10862
  %v11065 = vunpack.c.l.b16 %v10863
  %v11066 = vunpack.c.h.b16 %v10863
  %v11067 = vunpack.c.l.b16 %v10864
  %v11068 = vunpack.c.h.b16 %v10864
  %v11069 = vpack.c.b16 %v10943, %v10941
  %v11070 = vpack.c.b16 %v10944, %v10942
  %v11071 = vpack.c.b16 %v10947, %v10945
  %v11072 = vpack.c.b16 %v10948, %v10946
  %v11073 = vpack.c.b16 %v10951, %v10949
  %v11074 = vpack.c.b16 %v10952, %v10950
  %v11075 = vpack.c.b16 %v10955, %v10953
  %v11076 = vpack.c.b16 %v10956, %v10954
  %v11077 = vpack.c.b16 %v10959, %v10957
  %v11078 = vpack.c.b16 %v10960, %v10958
  %v11079 = vpack.c.b16 %v10963, %v10961
  %v11080 = vpack.c.b16 %v10964, %v10962
  %v11081 = vpack.c.b16 %v10967, %v10965
  %v11082 = vpack.c.b16 %v10968, %v10966
  %v11083 = vpack.c.b16 %v10971, %v10969
  %v11084 = vpack.c.b16 %v10972, %v10970
  %v11085 = vpack.c.b16 %v10975, %v10973
  %v11086 = vpack.c.b16 %v10976, %v10974
  %v11087 = vpack.c.b16 %v10979, %v10977
  %v11088 = vpack.c.b16 %v10980, %v10978
  %v11089 = vpack.c.b16 %v10983, %v10981
  %v11090 = vpack.c.b16 %v10984, %v10982
  %v11091 = vpack.c.b16 %v10987, %v10985
  %v11092 = vpack.c.b16 %v10988, %v10986
  %v11093 = vpack.c.b16 %v10991, %v10989
  %v11094 = vpack.c.b16 %v10992, %v10990
  %v11095 = vpack.c.b16 %v10995, %v10993
  %v11096 = vpack.c.b16 %v10996, %v10994
  %v11097 = vpack.c.b16 %v10999, %v10997
  %v11098 = vpack.c.b16 %v11000, %v10998
  %v11099 = vpack.c.b16 %v11003, %v11001
  %v11100 = vpack.c.b16 %v11004, %v11002
  %v11101 = vpack.c.b16 %v11007, %v11005
  %v11102 = vpack.c.b16 %v11008, %v11006
  %v11103 = vpack.c.b16 %v11011, %v11009
  %v11104 = vpack.c.b16 %v11012, %v11010
  %v11105 = vpack.c.b16 %v11015, %v11013
  %v11106 = vpack.c.b16 %v11016, %v11014
  %v11107 = vpack.c.b16 %v11019, %v11017
  %v11108 = vpack.c.b16 %v11020, %v11018
  %v11109 = vpack.c.b16 %v11023, %v11021
  %v11110 = vpack.c.b16 %v11024, %v11022
  %v11111 = vpack.c.b16 %v11027, %v11025
  %v11112 = vpack.c.b16 %v11028, %v11026
  %v11113 = vpack.c.b16 %v11031, %v11029
  %v11114 = vpack.c.b16 %v11032, %v11030
  %v11115 = vpack.c.b16 %v11035, %v11033
  %v11116 = vpack.c.b16 %v11036, %v11034
  %v11117 = vpack.c.b16 %v11039, %v11037
  %v11118 = vpack.c.b16 %v11040, %v11038
  %v11119 = vpack.c.b16 %v11043, %v11041
  %v11120 = vpack.c.b16 %v11044, %v11042
  %v11121 = vpack.c.b16 %v11047, %v11045
  %v11122 = vpack.c.b16 %v11048, %v11046
  %v11123 = vpack.c.b16 %v11051, %v11049
  %v11124 = vpack.c.b16 %v11052, %v11050
  %v11125 = vpack.c.b16 %v11055, %v11053
  %v11126 = vpack.c.b16 %v11056, %v11054
  %v11127 = vpack.c.b16 %v11059, %v11057
  %v11128 = vpack.c.b16 %v11060, %v11058
  %v11129 = vpack.c.b16 %v11063, %v11061
  %v11130 = vpack.c.b16 %v11064, %v11062
  %v11131 = vpack.c.b16 %v11067, %v11065
  %v11132 = vpack.c.b16 %v11068, %v11066
  %11197 = vmatprep.subr.bf16.mxu0 %v11084
  %11198 = vmatpush1.bf16.msra.mxu0 %v11083
  %11199 = vmatprep.subr.bf16.mxu0 %v11082
  %11200 = vmatpush1.bf16.msra.mxu0 %v11081
  %11201 = vmatprep.subr.bf16.mxu0 %v11080
  %11202 = vmatpush1.bf16.msra.mxu0 %v11079
  %11203 = vmatprep.subr.bf16.mxu0 %v11078
  %11204 = vmatpush1.bf16.msra.mxu0 %v11077
  %11205 = vmatprep.subr.bf16.mxu0 %v11076
  %11206 = vmatpush1.bf16.msra.mxu0 %v11075
  %11207 = vmatprep.subr.bf16.mxu0 %v11074
  %11208 = vmatpush1.bf16.msra.mxu0 %v11073
  %11209 = vmatprep.subr.bf16.mxu0 %v11072
  %11210 = vmatpush1.bf16.msra.mxu0 %v11071
  %11211 = vmatprep.subr.bf16.mxu0 %v11070
  %11212 = vmatpush1.bf16.msra.mxu0 %v11069
  %11213 = vmatprep.subr.bf16.mxu0 %v11100
  %11214 = vmatpush2.bf16.msra.mxu0 %v11099
  %11215 = vmatprep.subr.bf16.mxu0 %v11098
  %11216 = vmatpush2.bf16.msra.mxu0 %v11097
  %11217 = vmatprep.subr.bf16.mxu0 %v11096
  %11218 = vmatpush2.bf16.msra.mxu0 %v11095
  %11219 = vmatprep.subr.bf16.mxu0 %v11094
  %11220 = vmatpush2.bf16.msra.mxu0 %v11093
  %11221 = vmatprep.subr.bf16.mxu0 %v11092
  %11222 = vmatpush2.bf16.msra.mxu0 %v11091
  %11223 = vmatprep.subr.bf16.mxu0 %v11090
  %11224 = vmatpush2.bf16.msra.mxu0 %v11089
  %11225 = vmatprep.subr.bf16.mxu0 %v11088
  %11226 = vmatpush2.bf16.msra.mxu0 %v11087
  %11227 = vmatprep.subr.bf16.mxu0 %v11086
  %11228 = vmatpush2.bf16.msra.mxu0 %v11085
  %11229 = vmatprep.mubr.bf16.mxu0 %v10770
  %11230 = vmatmul.mubr.bf16.gmra.mxu0 %v10769
  %v11231 = vpop.f32.mrf.mxu0
  %v11232 = vadd.f32 %v10870, %v11231
  %v11233 = vpop.f32.mrf.mxu0
  %v11234 = vadd.f32 %v10874, %v11233
  %v11235 = vpop.f32.mrf.mxu0
  %v11236 = vadd.f32 %v10870, %v11235
  %v11237 = vpop.f32.mrf.mxu0
  %v11238 = vadd.f32 %v10874, %v11237
  %11239 = vmatprep.mubr.bf16.mxu0 %v10774
  %11240 = vmatmul.mubr.bf16.gmra.mxu0 %v10773
  %v11241 = vpop.f32.mrf.mxu0
  %v11242 = vadd.f32 %v10870, %v11241
  %v11243 = vpop.f32.mrf.mxu0
  %v11244 = vadd.f32 %v10874, %v11243
  %v11245 = vpop.f32.mrf.mxu0
  %v11246 = vadd.f32 %v10870, %v11245
  %v11247 = vpop.f32.mrf.mxu0
  %v11248 = vadd.f32 %v10874, %v11247
  %11249 = vmatprep.mubr.bf16.mxu0 %v10778
  %11250 = vmatmul.mubr.bf16.gmra.mxu0 %v10777
  %v11251 = vpop.f32.mrf.mxu0
  %v11252 = vadd.f32 %v10870, %v11251
  %v11253 = vpop.f32.mrf.mxu0
  %v11254 = vadd.f32 %v10874, %v11253
  %v11255 = vpop.f32.mrf.mxu0
  %v11256 = vadd.f32 %v10870, %v11255
  %v11257 = vpop.f32.mrf.mxu0
  %v11258 = vadd.f32 %v10874, %v11257
  %11259 = vmatprep.mubr.bf16.mxu0 %v10782
  %11260 = vmatmul.mubr.bf16.gmra.mxu0 %v10781
  %v11261 = vpop.f32.mrf.mxu0
  %v11262 = vadd.f32 %v10870, %v11261
  %v11263 = vpop.f32.mrf.mxu0
  %v11264 = vadd.f32 %v10874, %v11263
  %v11265 = vpop.f32.mrf.mxu0
  %v11266 = vadd.f32 %v10870, %v11265
  %v11267 = vpop.f32.mrf.mxu0
  %v11268 = vadd.f32 %v10874, %v11267
  %11269 = vmatprep.mubr.bf16.mxu0 %v10786
  %11270 = vmatmul.mubr.bf16.gmra.mxu0 %v10785
  %v11271 = vpop.f32.mrf.mxu0
  %v11272 = vadd.f32 %v10870, %v11271
  %v11273 = vpop.f32.mrf.mxu0
  %v11274 = vadd.f32 %v10874, %v11273
  %v11275 = vpop.f32.mrf.mxu0
  %v11276 = vadd.f32 %v10870, %v11275
  %v11277 = vpop.f32.mrf.mxu0
  %v11278 = vadd.f32 %v10874, %v11277
  %11279 = vmatprep.mubr.bf16.mxu0 %v10790
  %11280 = vmatmul.mubr.bf16.gmra.mxu0 %v10789
  %v11281 = vpop.f32.mrf.mxu0
  %v11282 = vadd.f32 %v10870, %v11281
  %v11283 = vpop.f32.mrf.mxu0
  %v11284 = vadd.f32 %v10874, %v11283
  %v11285 = vpop.f32.mrf.mxu0
  %v11286 = vadd.f32 %v10870, %v11285
  %v11287 = vpop.f32.mrf.mxu0
  %v11288 = vadd.f32 %v10874, %v11287
  %11289 = vmatprep.mubr.bf16.mxu0 %v10794
  %11290 = vmatmul.mubr.bf16.gmra.mxu0 %v10793
  %v11291 = vpop.f32.mrf.mxu0
  %v11292 = vadd.f32 %v10870, %v11291
  %v11293 = vpop.f32.mrf.mxu0
  %v11294 = vadd.f32 %v10874, %v11293
  %v11295 = vpop.f32.mrf.mxu0
  %v11296 = vadd.f32 %v10870, %v11295
  %v11297 = vpop.f32.mrf.mxu0
  %v11298 = vadd.f32 %v10874, %v11297
  %11299 = vmatprep.mubr.bf16.mxu0 %v10798
  %11300 = vmatmul.mubr.bf16.gmra.mxu0 %v10797
  %v11301 = vpop.f32.mrf.mxu0
  %v11302 = vadd.f32 %v10870, %v11301
  %v11303 = vpop.f32.mrf.mxu0
  %v11304 = vadd.f32 %v10874, %v11303
  %v11305 = vpop.f32.mrf.mxu0
  %v11306 = vadd.f32 %v10870, %v11305
  %v11307 = vpop.f32.mrf.mxu0
  %v11308 = vadd.f32 %v10874, %v11307
  %11309 = vdwg.mxu0
  %11310 = vmatprep.subr.bf16.mxu0 %v11116
  %11311 = vmatpush1.bf16.msra.mxu0 %v11115
  %11312 = vmatprep.subr.bf16.mxu0 %v11114
  %11313 = vmatpush1.bf16.msra.mxu0 %v11113
  %11314 = vmatprep.subr.bf16.mxu0 %v11112
  %11315 = vmatpush1.bf16.msra.mxu0 %v11111
  %11316 = vmatprep.subr.bf16.mxu0 %v11110
  %11317 = vmatpush1.bf16.msra.mxu0 %v11109
  %11318 = vmatprep.subr.bf16.mxu0 %v11108
  %11319 = vmatpush1.bf16.msra.mxu0 %v11107
  %11320 = vmatprep.subr.bf16.mxu0 %v11106
  %11321 = vmatpush1.bf16.msra.mxu0 %v11105
  %11322 = vmatprep.subr.bf16.mxu0 %v11104
  %11323 = vmatpush1.bf16.msra.mxu0 %v11103
  %11324 = vmatprep.subr.bf16.mxu0 %v11102
  %11325 = vmatpush1.bf16.msra.mxu0 %v11101
  %11326 = vmatprep.subr.bf16.mxu0 %v11132
  %11327 = vmatpush2.bf16.msra.mxu0 %v11131
  %11328 = vmatprep.subr.bf16.mxu0 %v11130
  %11329 = vmatpush2.bf16.msra.mxu0 %v11129
  %11330 = vmatprep.subr.bf16.mxu0 %v11128
  %11331 = vmatpush2.bf16.msra.mxu0 %v11127
  %11332 = vmatprep.subr.bf16.mxu0 %v11126
  %11333 = vmatpush2.bf16.msra.mxu0 %v11125
  %11334 = vmatprep.subr.bf16.mxu0 %v11124
  %11335 = vmatpush2.bf16.msra.mxu0 %v11123
  %11336 = vmatprep.subr.bf16.mxu0 %v11122
  %11337 = vmatpush2.bf16.msra.mxu0 %v11121
  %11338 = vmatprep.subr.bf16.mxu0 %v11120
  %11339 = vmatpush2.bf16.msra.mxu0 %v11119
  %11340 = vmatprep.subr.bf16.mxu0 %v11118
  %11341 = vmatpush2.bf16.msra.mxu0 %v11117
  %11342 = vmatprep.mubr.bf16.mxu0 %v10772
  %11343 = vmatmul.mubr.bf16.gmra.mxu0 %v10771
  %v11344 = vpop.f32.mrf.mxu0
  %v11345 = vadd.f32 %v11232, %v11344
  %v11346 = vpop.f32.mrf.mxu0
  %v11347 = vadd.f32 %v11234, %v11346
  %v11348 = vpop.f32.mrf.mxu0
  %v11349 = vadd.f32 %v11236, %v11348
  %v11350 = vpop.f32.mrf.mxu0
  %v11351 = vadd.f32 %v11238, %v11350
  %11352 = vmatprep.mubr.bf16.mxu0 %v10776
  %11353 = vmatmul.mubr.bf16.gmra.mxu0 %v10775
  %v11354 = vpop.f32.mrf.mxu0
  %v11355 = vadd.f32 %v11242, %v11354
  %v11356 = vpop.f32.mrf.mxu0
  %v11357 = vadd.f32 %v11244, %v11356
  %v11358 = vpop.f32.mrf.mxu0
  %v11359 = vadd.f32 %v11246, %v11358
  %v11360 = vpop.f32.mrf.mxu0
  %v11361 = vadd.f32 %v11248, %v11360
  %11362 = vmatprep.mubr.bf16.mxu0 %v10780
  %11363 = vmatmul.mubr.bf16.gmra.mxu0 %v10779
  %v11364 = vpop.f32.mrf.mxu0
  %v11365 = vadd.f32 %v11252, %v11364
  %v11366 = vpop.f32.mrf.mxu0
  %v11367 = vadd.f32 %v11254, %v11366
  %v11368 = vpop.f32.mrf.mxu0
  %v11369 = vadd.f32 %v11256, %v11368
  %v11370 = vpop.f32.mrf.mxu0
  %v11371 = vadd.f32 %v11258, %v11370
  %11372 = vmatprep.mubr.bf16.mxu0 %v10784
  %11373 = vmatmul.mubr.bf16.gmra.mxu0 %v10783
  %v11374 = vpop.f32.mrf.mxu0
  %v11375 = vadd.f32 %v11262, %v11374
  %v11376 = vpop.f32.mrf.mxu0
  %v11377 = vadd.f32 %v11264, %v11376
  %v11378 = vpop.f32.mrf.mxu0
  %v11379 = vadd.f32 %v11266, %v11378
  %v11380 = vpop.f32.mrf.mxu0
  %v11381 = vadd.f32 %v11268, %v11380
  %11382 = vmatprep.mubr.bf16.mxu0 %v10788
  %11383 = vmatmul.mubr.bf16.gmra.mxu0 %v10787
  %v11384 = vpop.f32.mrf.mxu0
  %v11385 = vadd.f32 %v11272, %v11384
  %v11386 = vpop.f32.mrf.mxu0
  %v11387 = vadd.f32 %v11274, %v11386
  %v11388 = vpop.f32.mrf.mxu0
  %v11389 = vadd.f32 %v11276, %v11388
  %v11390 = vpop.f32.mrf.mxu0
  %v11391 = vadd.f32 %v11278, %v11390
  %11392 = vmatprep.mubr.bf16.mxu0 %v10792
  %11393 = vmatmul.mubr.bf16.gmra.mxu0 %v10791
  %v11394 = vpop.f32.mrf.mxu0
  %v11395 = vadd.f32 %v11282, %v11394
  %v11396 = vpop.f32.mrf.mxu0
  %v11397 = vadd.f32 %v11284, %v11396
  %v11398 = vpop.f32.mrf.mxu0
  %v11399 = vadd.f32 %v11286, %v11398
  %v11400 = vpop.f32.mrf.mxu0
  %v11401 = vadd.f32 %v11288, %v11400
  %11402 = vmatprep.mubr.bf16.mxu0 %v10796
  %11403 = vmatmul.mubr.bf16.gmra.mxu0 %v10795
  %v11404 = vpop.f32.mrf.mxu0
  %v11405 = vadd.f32 %v11292, %v11404
  %v11406 = vpop.f32.mrf.mxu0
  %v11407 = vadd.f32 %v11294, %v11406
  %v11408 = vpop.f32.mrf.mxu0
  %v11409 = vadd.f32 %v11296, %v11408
  %v11410 = vpop.f32.mrf.mxu0
  %v11411 = vadd.f32 %v11298, %v11410
  %11412 = vmatprep.mubr.bf16.mxu0 %v10800
  %11413 = vmatmul.mubr.bf16.gmra.mxu0 %v10799
  %v11414 = vpop.f32.mrf.mxu0
  %v11415 = vadd.f32 %v11302, %v11414
  %v11416 = vpop.f32.mrf.mxu0
  %v11417 = vadd.f32 %v11304, %v11416
  %v11418 = vpop.f32.mrf.mxu0
  %v11419 = vadd.f32 %v11306, %v11418
  %v11420 = vpop.f32.mrf.mxu0
  %v11421 = vadd.f32 %v11308, %v11420
  %11422 = vdwg.mxu0
  %vm11423 = vcmp.gt.f32.partialorder %v11345, 0.0
  %vm11424 = vcmp.gt.f32.partialorder %v11347, 0.0
  %vm11425 = vcmp.gt.f32.partialorder %v11349, 0.0
  %vm11426 = vcmp.gt.f32.partialorder %v11351, 0.0
  %vm11427 = vcmp.gt.f32.partialorder %v11355, 0.0
  %vm11428 = vcmp.gt.f32.partialorder %v11357, 0.0
  %vm11429 = vcmp.gt.f32.partialorder %v11359, 0.0
  %vm11430 = vcmp.gt.f32.partialorder %v11361, 0.0
  %vm11431 = vcmp.gt.f32.partialorder %v11365, 0.0
  %vm11432 = vcmp.gt.f32.partialorder %v11367, 0.0
  %vm11433 = vcmp.gt.f32.partialorder %v11369, 0.0
  %vm11434 = vcmp.gt.f32.partialorder %v11371, 0.0
  %vm11435 = vcmp.gt.f32.partialorder %v11375, 0.0
  %vm11436 = vcmp.gt.f32.partialorder %v11377, 0.0
  %vm11437 = vcmp.gt.f32.partialorder %v11379, 0.0
  %vm11438 = vcmp.gt.f32.partialorder %v11381, 0.0
  %vm11439 = vcmp.gt.f32.partialorder %v11385, 0.0
  %vm11440 = vcmp.gt.f32.partialorder %v11387, 0.0
  %vm11441 = vcmp.gt.f32.partialorder %v11389, 0.0
  %vm11442 = vcmp.gt.f32.partialorder %v11391, 0.0
  %vm11443 = vcmp.gt.f32.partialorder %v11395, 0.0
  %vm11444 = vcmp.gt.f32.partialorder %v11397, 0.0
  %vm11445 = vcmp.gt.f32.partialorder %v11399, 0.0
  %vm11446 = vcmp.gt.f32.partialorder %v11401, 0.0
  %vm11447 = vcmp.gt.f32.partialorder %v11405, 0.0
  %vm11448 = vcmp.gt.f32.partialorder %v11407, 0.0
  %vm11449 = vcmp.gt.f32.partialorder %v11409, 0.0
  %vm11450 = vcmp.gt.f32.partialorder %v11411, 0.0
  %vm11451 = vcmp.gt.f32.partialorder %v11415, 0.0
  %vm11452 = vcmp.gt.f32.partialorder %v11417, 0.0
  %vm11453 = vcmp.gt.f32.partialorder %v11419, 0.0
  %vm11454 = vcmp.gt.f32.partialorder %v11421, 0.0
  %v11455 = vmul.f32 %v11345, 0.2
  %v11456 = vmul.f32 %v11347, 0.2
  %v11457 = vmul.f32 %v11349, 0.2
  %v11458 = vmul.f32 %v11351, 0.2
  %v11459 = vmul.f32 %v11355, 0.2
  %v11460 = vmul.f32 %v11357, 0.2
  %v11461 = vmul.f32 %v11359, 0.2
  %v11462 = vmul.f32 %v11361, 0.2
  %v11463 = vmul.f32 %v11365, 0.2
  %v11464 = vmul.f32 %v11367, 0.2
  %v11465 = vmul.f32 %v11369, 0.2
  %v11466 = vmul.f32 %v11371, 0.2
  %v11467 = vmul.f32 %v11375, 0.2
  %v11468 = vmul.f32 %v11377, 0.2
  %v11469 = vmul.f32 %v11379, 0.2
  %v11470 = vmul.f32 %v11381, 0.2
  %v11471 = vmul.f32 %v11385, 0.2
  %v11472 = vmul.f32 %v11387, 0.2
  %v11473 = vmul.f32 %v11389, 0.2
  %v11474 = vmul.f32 %v11391, 0.2
  %v11475 = vmul.f32 %v11395, 0.2
  %v11476 = vmul.f32 %v11397, 0.2
  %v11477 = vmul.f32 %v11399, 0.2
  %v11478 = vmul.f32 %v11401, 0.2
  %v11479 = vmul.f32 %v11405, 0.2
  %v11480 = vmul.f32 %v11407, 0.2
  %v11481 = vmul.f32 %v11409, 0.2
  %v11482 = vmul.f32 %v11411, 0.2
  %v11483 = vmul.f32 %v11415, 0.2
  %v11484 = vmul.f32 %v11417, 0.2
  %v11485 = vmul.f32 %v11419, 0.2
  %v11486 = vmul.f32 %v11421, 0.2
  %v11487 = vsel %vm11423, %v11345, %v11455
  %v11488 = vsel %vm11424, %v11347, %v11456
  %v11489 = vsel %vm11425, %v11349, %v11457
  %v11490 = vsel %vm11426, %v11351, %v11458
  %v11491 = vsel %vm11427, %v11355, %v11459
  %v11492 = vsel %vm11428, %v11357, %v11460
  %v11493 = vsel %vm11429, %v11359, %v11461
  %v11494 = vsel %vm11430, %v11361, %v11462
  %v11495 = vsel %vm11431, %v11365, %v11463
  %v11496 = vsel %vm11432, %v11367, %v11464
  %v11497 = vsel %vm11433, %v11369, %v11465
  %v11498 = vsel %vm11434, %v11371, %v11466
  %v11499 = vsel %vm11435, %v11375, %v11467
  %v11500 = vsel %vm11436, %v11377, %v11468
  %v11501 = vsel %vm11437, %v11379, %v11469
  %v11502 = vsel %vm11438, %v11381, %v11470
  %v11503 = vsel %vm11439, %v11385, %v11471
  %v11504 = vsel %vm11440, %v11387, %v11472
  %v11505 = vsel %vm11441, %v11389, %v11473
  %v11506 = vsel %vm11442, %v11391, %v11474
  %v11507 = vsel %vm11443, %v11395, %v11475
  %v11508 = vsel %vm11444, %v11397, %v11476
  %v11509 = vsel %vm11445, %v11399, %v11477
  %v11510 = vsel %vm11446, %v11401, %v11478
  %v11511 = vsel %vm11447, %v11405, %v11479
  %v11512 = vsel %vm11448, %v11407, %v11480
  %v11513 = vsel %vm11449, %v11409, %v11481
  %v11514 = vsel %vm11450, %v11411, %v11482
  %v11515 = vsel %vm11451, %v11415, %v11483
  %v11516 = vsel %vm11452, %v11417, %v11484
  %v11517 = vsel %vm11453, %v11419, %v11485
  %v11518 = vsel %vm11454, %v11421, %v11486
  %v11519 = vpack.c.bf16 %v11489, %v11487
  %v11520 = vpack.c.bf16 %v11490, %v11488
  %v11521 = vpack.c.bf16 %v11493, %v11491
  %v11522 = vpack.c.bf16 %v11494, %v11492
  %v11523 = vpack.c.bf16 %v11497, %v11495
  %v11524 = vpack.c.bf16 %v11498, %v11496
  %v11525 = vpack.c.bf16 %v11501, %v11499
  %v11526 = vpack.c.bf16 %v11502, %v11500
  %v11527 = vpack.c.bf16 %v11505, %v11503
  %v11528 = vpack.c.bf16 %v11506, %v11504
  %v11529 = vpack.c.bf16 %v11509, %v11507
  %v11530 = vpack.c.bf16 %v11510, %v11508
  %v11531 = vpack.c.bf16 %v11513, %v11511
  %v11532 = vpack.c.bf16 %v11514, %v11512
  %v11533 = vpack.c.bf16 %v11517, %v11515
  %v11534 = vpack.c.bf16 %v11518, %v11516
  %v11535 = vld [vmem:[%s5] sm:$0xf]
  %v11536 = vld [vmem:[%s5 + $0x4] sm:$0xf]
  %v11537 = vld [vmem:[%s5 + $0x8] sm:$0xf]
  %v11538 = vld [vmem:[%s5 + $0xc] sm:$0xf]
  %v11539 = vld [vmem:[%s5 + $0x10] sm:$0xf]
  %v11540 = vld [vmem:[%s5 + $0x14] sm:$0xf]
  %v11541 = vld [vmem:[%s5 + $0x18] sm:$0xf]
  %v11542 = vld [vmem:[%s5 + $0x1c] sm:$0xf]
  %v11543 = vld [vmem:[%s5 + $0x20] sm:$0xf]
  %v11544 = vld [vmem:[%s5 + $0x24] sm:$0xf]
  %v11545 = vld [vmem:[%s5 + $0x28] sm:$0xf]
  %v11546 = vld [vmem:[%s5 + $0x2c] sm:$0xf]
  %v11547 = vld [vmem:[%s5 + $0x30] sm:$0xf]
  %v11548 = vld [vmem:[%s5 + $0x34] sm:$0xf]
  %v11549 = vld [vmem:[%s5 + $0x38] sm:$0xf]
  %v11550 = vld [vmem:[%s5 + $0x3c] sm:$0xf]
  %v11551 = vld [vmem:[%s5 + $0x40] sm:$0xf]
  %v11552 = vld [vmem:[%s5 + $0x44] sm:$0xf]
  %v11553 = vld [vmem:[%s5 + $0x48] sm:$0xf]
  %v11554 = vld [vmem:[%s5 + $0x4c] sm:$0xf]
  %v11555 = vld [vmem:[%s5 + $0x50] sm:$0xf]
  %v11556 = vld [vmem:[%s5 + $0x54] sm:$0xf]
  %v11557 = vld [vmem:[%s5 + $0x58] sm:$0xf]
  %v11558 = vld [vmem:[%s5 + $0x5c] sm:$0xf]
  %v11559 = vld [vmem:[%s5 + $0x60] sm:$0xf]
  %v11560 = vld [vmem:[%s5 + $0x64] sm:$0xf]
  %v11561 = vld [vmem:[%s5 + $0x68] sm:$0xf]
  %v11562 = vld [vmem:[%s5 + $0x6c] sm:$0xf]
  %v11563 = vld [vmem:[%s5 + $0x70] sm:$0xf]
  %v11564 = vld [vmem:[%s5 + $0x74] sm:$0xf]
  %v11565 = vld [vmem:[%s5 + $0x78] sm:$0xf]
  %v11566 = vld [vmem:[%s5 + $0x7c] sm:$0xf]
  %v11567 = vld [vmem:[%s6] sm:$0x1]
  %v11569 = vlaneseq
  %v11570 = vshrl.u32 %v11569, 7
  %v11571 = vsub.s32 0, %v11570
  %v11572 = vrot.slane %v11567, %v11571
  %v11606 = vunpack.c.l.b16 %v11535
  %v11607 = vunpack.c.l.b16 %v11536
  %v11608 = vunpack.c.l.b16 %v11537
  %v11609 = vunpack.c.l.b16 %v11538
  %v11610 = vunpack.c.l.b16 %v11539
  %v11611 = vunpack.c.l.b16 %v11540
  %v11612 = vunpack.c.l.b16 %v11541
  %v11613 = vunpack.c.l.b16 %v11542
  %v11614 = vunpack.c.l.b16 %v11543
  %v11615 = vunpack.c.l.b16 %v11544
  %v11616 = vunpack.c.l.b16 %v11545
  %v11617 = vunpack.c.l.b16 %v11546
  %v11618 = vunpack.c.l.b16 %v11547
  %v11619 = vunpack.c.l.b16 %v11548
  %v11620 = vunpack.c.l.b16 %v11549
  %v11621 = vunpack.c.l.b16 %v11550
  %v11622 = vunpack.c.l.b16 %v11551
  %v11623 = vunpack.c.l.b16 %v11552
  %v11624 = vunpack.c.l.b16 %v11553
  %v11625 = vunpack.c.l.b16 %v11554
  %v11626 = vunpack.c.l.b16 %v11555
  %v11627 = vunpack.c.l.b16 %v11556
  %v11628 = vunpack.c.l.b16 %v11557
  %v11629 = vunpack.c.l.b16 %v11558
  %v11630 = vunpack.c.l.b16 %v11559
  %v11631 = vunpack.c.l.b16 %v11560
  %v11632 = vunpack.c.l.b16 %v11561
  %v11633 = vunpack.c.l.b16 %v11562
  %v11634 = vunpack.c.l.b16 %v11563
  %v11635 = vunpack.c.l.b16 %v11564
  %v11636 = vunpack.c.l.b16 %v11565
  %v11637 = vunpack.c.l.b16 %v11566
  %v11638 = vpack.c.b16 %v11607, %v11606
  %v11639 = vpack.c.b16 %v11609, %v11608
  %v11640 = vpack.c.b16 %v11611, %v11610
  %v11641 = vpack.c.b16 %v11613, %v11612
  %v11642 = vpack.c.b16 %v11615, %v11614
  %v11643 = vpack.c.b16 %v11617, %v11616
  %v11644 = vpack.c.b16 %v11619, %v11618
  %v11645 = vpack.c.b16 %v11621, %v11620
  %v11646 = vpack.c.b16 %v11623, %v11622
  %v11647 = vpack.c.b16 %v11625, %v11624
  %v11648 = vpack.c.b16 %v11627, %v11626
  %v11649 = vpack.c.b16 %v11629, %v11628
  %v11650 = vpack.c.b16 %v11631, %v11630
  %v11651 = vpack.c.b16 %v11633, %v11632
  %v11652 = vpack.c.b16 %v11635, %v11634
  %v11653 = vpack.c.b16 %v11637, %v11636
  %11670 = vmatprep.subr.bf16.mxu0 0
  %11671 = vmatpush1.bf16.msra.mxu0 %v11645
  %11672 = vmatprep.subr.bf16.mxu0 0
  %11673 = vmatpush1.bf16.msra.mxu0 %v11644
  %11674 = vmatprep.subr.bf16.mxu0 0
  %11675 = vmatpush1.bf16.msra.mxu0 %v11643
  %11676 = vmatprep.subr.bf16.mxu0 0
  %11677 = vmatpush1.bf16.msra.mxu0 %v11642
  %11678 = vmatprep.subr.bf16.mxu0 0
  %11679 = vmatpush1.bf16.msra.mxu0 %v11641
  %11680 = vmatprep.subr.bf16.mxu0 0
  %11681 = vmatpush1.bf16.msra.mxu0 %v11640
  %11682 = vmatprep.subr.bf16.mxu0 0
  %11683 = vmatpush1.bf16.msra.mxu0 %v11639
  %11684 = vmatprep.subr.bf16.mxu0 0
  %11685 = vmatpush1.bf16.msra.mxu0 %v11638
  %11686 = vmatprep.subr.bf16.mxu0 0
  %11687 = vmatpush2.bf16.msra.mxu0 %v11653
  %11688 = vmatprep.subr.bf16.mxu0 0
  %11689 = vmatpush2.bf16.msra.mxu0 %v11652
  %11690 = vmatprep.subr.bf16.mxu0 0
  %11691 = vmatpush2.bf16.msra.mxu0 %v11651
  %11692 = vmatprep.subr.bf16.mxu0 0
  %11693 = vmatpush2.bf16.msra.mxu0 %v11650
  %11694 = vmatprep.subr.bf16.mxu0 0
  %11695 = vmatpush2.bf16.msra.mxu0 %v11649
  %11696 = vmatprep.subr.bf16.mxu0 0
  %11697 = vmatpush2.bf16.msra.mxu0 %v11648
  %11698 = vmatprep.subr.bf16.mxu0 0
  %11699 = vmatpush2.bf16.msra.mxu0 %v11647
  %11700 = vmatprep.subr.bf16.mxu0 0
  %11701 = vmatpush2.bf16.msra.mxu0 %v11646
  %11702 = vmatprep.mubr.bf16.mxu0 %v11520
  %11703 = vmatmul.mubr.bf16.gmra.mxu0 %v11519
  %v11704 = vpop.f32.mrf.mxu0
  %v11705 = vadd.f32 %v11572, %v11704
  %v11706 = vpop.f32.mrf.mxu0
  %v11707 = vpop.f32.mrf.mxu0
  %v11708 = vadd.f32 %v11572, %v11707
  %v11709 = vpop.f32.mrf.mxu0
  %11710 = vmatprep.mubr.bf16.mxu0 %v11522
  %11711 = vmatmul.mubr.bf16.gmra.mxu0 %v11521
  %v11712 = vpop.f32.mrf.mxu0
  %v11713 = vadd.f32 %v11572, %v11712
  %v11714 = vpop.f32.mrf.mxu0
  %v11715 = vpop.f32.mrf.mxu0
  %v11716 = vadd.f32 %v11572, %v11715
  %v11717 = vpop.f32.mrf.mxu0
  %11718 = vmatprep.mubr.bf16.mxu0 %v11524
  %11719 = vmatmul.mubr.bf16.gmra.mxu0 %v11523
  %v11720 = vpop.f32.mrf.mxu0
  %v11721 = vadd.f32 %v11572, %v11720
  %v11722 = vpop.f32.mrf.mxu0
  %v11723 = vpop.f32.mrf.mxu0
  %v11724 = vadd.f32 %v11572, %v11723
  %v11725 = vpop.f32.mrf.mxu0
  %11726 = vmatprep.mubr.bf16.mxu0 %v11526
  %11727 = vmatmul.mubr.bf16.gmra.mxu0 %v11525
  %v11728 = vpop.f32.mrf.mxu0
  %v11729 = vadd.f32 %v11572, %v11728
  %v11730 = vpop.f32.mrf.mxu0
  %v11731 = vpop.f32.mrf.mxu0
  %v11732 = vadd.f32 %v11572, %v11731
  %v11733 = vpop.f32.mrf.mxu0
  %11734 = vmatprep.mubr.bf16.mxu0 %v11528
  %11735 = vmatmul.mubr.bf16.gmra.mxu0 %v11527
  %v11736 = vpop.f32.mrf.mxu0
  %v11737 = vadd.f32 %v11572, %v11736
  %v11738 = vpop.f32.mrf.mxu0
  %v11739 = vpop.f32.mrf.mxu0
  %v11740 = vadd.f32 %v11572, %v11739
  %v11741 = vpop.f32.mrf.mxu0
  %11742 = vmatprep.mubr.bf16.mxu0 %v11530
  %11743 = vmatmul.mubr.bf16.gmra.mxu0 %v11529
  %v11744 = vpop.f32.mrf.mxu0
  %v11745 = vadd.f32 %v11572, %v11744
  %v11746 = vpop.f32.mrf.mxu0
  %v11747 = vpop.f32.mrf.mxu0
  %v11748 = vadd.f32 %v11572, %v11747
  %v11749 = vpop.f32.mrf.mxu0
  %11750 = vmatprep.mubr.bf16.mxu0 %v11532
  %11751 = vmatmul.mubr.bf16.gmra.mxu0 %v11531
  %v11752 = vpop.f32.mrf.mxu0
  %v11753 = vadd.f32 %v11572, %v11752
  %v11754 = vpop.f32.mrf.mxu0
  %v11755 = vpop.f32.mrf.mxu0
  %v11756 = vadd.f32 %v11572, %v11755
  %v11757 = vpop.f32.mrf.mxu0
  %11758 = vmatprep.mubr.bf16.mxu0 %v11534
  %11759 = vmatmul.mubr.bf16.gmra.mxu0 %v11533
  %v11760 = vpop.f32.mrf.mxu0
  %v11761 = vadd.f32 %v11572, %v11760
  %v11762 = vpop.f32.mrf.mxu0
  %v11763 = vpop.f32.mrf.mxu0
  %v11764 = vadd.f32 %v11572, %v11763
  %v11765 = vpop.f32.mrf.mxu0
  %11766 = vdwg.mxu0
  %11767 = vst [vmem:[%s7] sm:$0xff] %v11705
  %11768 = vst [vmem:[%s7 + $0x8] sm:$0xff] %v11708
  %11769 = vst [vmem:[%s7 + $0x10] sm:$0xff] %v11713
  %11770 = vst [vmem:[%s7 + $0x18] sm:$0xff] %v11716
  %11771 = vst [vmem:[%s7 + $0x20] sm:$0xff] %v11721
  %11772 = vst [vmem:[%s7 + $0x28] sm:$0xff] %v11724
  %11773 = vst [vmem:[%s7 + $0x30] sm:$0xff] %v11729
  %11774 = vst [vmem:[%s7 + $0x38] sm:$0xff] %v11732
  %11775 = vst [vmem:[%s7 + $0x40] sm:$0xff] %v11737
  %11776 = vst [vmem:[%s7 + $0x48] sm:$0xff] %v11740
  %11777 = vst [vmem:[%s7 + $0x50] sm:$0xff] %v11745
  %11778 = vst [vmem:[%s7 + $0x58] sm:$0xff] %v11748
  %11779 = vst [vmem:[%s7 + $0x60] sm:$0xff] %v11753
  %11780 = vst [vmem:[%s7 + $0x68] sm:$0xff] %v11756
  %11781 = vst [vmem:[%s7 + $0x70] sm:$0xff] %v11761
  %11782 = vst [vmem:[%s7 + $0x78] sm:$0xff] %v11764
  // Predicated region
  $region30: #{_discriminator_forward_impl.1} parent=0 // pred_check
    _
  $region31: #{_discriminator_forward_impl.1} parent=0 // pred_check_branch
    %11784 = sbr.rel (0) target = $region33
  $region32: #{_discriminator_forward_impl.1} parent=0 // pred_region
    _
  $region33: #{_discriminator_forward_impl.1} parent=0 // pred_fallthru
    _
  // Predicated region
  $region34: #{_discriminator_forward_impl.1} parent=0 // pred_check
    _
  $region35: #{_discriminator_forward_impl.1} parent=0 // pred_check_branch
    %11786 = sbr.rel (0) target = $region37
  $region36: #{_discriminator_forward_impl.1} parent=0 // pred_region
    _
  $region37: #{_discriminator_forward_impl.1} parent=0 // pred_fallthru
    _

</llo_original>
